<compile_context>
chip_gen: v5e
topology: v5e:2x2
jax: 0.10.0
libtpu: 0.0.40
codegen_flags: <defaults>
</compile_context>

<pallas_src>
import functools

import jax
import jax.numpy as jnp
from jax.experimental import pallas as pl
from jax.experimental.pallas import tpu as pltpu


# ---------------------------------------------------------------------------
# Kernel 1: row/N-tiled (R, K) @ (K, N) + bias  (used for the deferred FC).
# ---------------------------------------------------------------------------
def _matmul_bias_kernel(x_ref, w_ref, b_ref, o_ref):
    x = x_ref[...].astype(w_ref.dtype)          # bf16 operands, f32 accumulation
    o_ref[...] = (
        jnp.dot(x, w_ref[...], preferred_element_type=jnp.float32)
        + b_ref[...].astype(jnp.float32)
    ).astype(o_ref.dtype)


def _matmul_bias(x, w, b, *, block_rows=256, block_cols=512, out_dtype=jnp.float32):
    """out[r, n] = x[r, :] @ w[:, n] + b[0, n], tiled over rows and output columns."""
    R, K = x.shape
    N = w.shape[1]
    assert N % 128 == 0, "pad N to a multiple of 128 before calling _matmul_bias"

    tr = min(block_rows, R)
    if tr >= 8:
        tr -= tr % 8                            # keep sublane dim a multiple of 8
    rp = pl.cdiv(R, tr) * tr
    if rp != R:
        x = jnp.pad(x, ((0, rp - R), (0, 0)))

    # N tile: a multiple of 128 that divides N (N is already a multiple of 128).
    tn = 128
    for cand in (block_cols, 256, 128):
        if cand <= N and N % cand == 0:
            tn = cand
            break

    out = pl.pallas_call(
        _matmul_bias_kernel,
        out_shape=jax.ShapeDtypeStruct((rp, N), out_dtype),
        grid_spec=pltpu.PrefetchScalarGridSpec(
            num_scalar_prefetch=0,
            grid=(rp // tr, N // tn),
            in_specs=[
                pl.BlockSpec((tr, K), lambda i, j: (i, 0)),
                pl.BlockSpec((K, tn), lambda i, j: (0, j)),
                pl.BlockSpec((1, tn), lambda i, j: (0, j)),
            ],
            out_specs=pl.BlockSpec((tr, tn), lambda i, j: (i, j)),
        ),
        compiler_params=pltpu.CompilerParams(
            dimension_semantics=("parallel", "parallel")),
    )(x, w, b)
    return out[:R] if rp != R else out


# ---------------------------------------------------------------------------
# Kernel 2: the serial LSTM recurrence, chunked over time, sharded over batch.
# ---------------------------------------------------------------------------
def _lstm_recurrence_kernel(gx_ref, whh_ref, h_seq_ref, hN_ref, cN_ref,
                            h_sc, c_sc, *, seq_len, needs_mask):
    """One grid step == one (batch shard, time chunk).

    gx_ref:    (Tc, Bblk, 4H) bf16  precomputed x_t @ W_ih^T + (b_ih + b_hh)
    whh_ref:   (H, 4H)        bf16  hidden->hidden weight (transposed)
    h_seq_ref: (Tc, Bblk, H)  bf16  per-step hidden states, time-major (full-tile stores)
    hN_ref, cN_ref: (Bblk, H) f32   final state, written only on the last chunk
    h_sc, c_sc: (Bblk, H)     f32   VMEM carry across chunks of one batch shard
    """
    chunk = pl.program_id(1)

    @pl.when(chunk == 0)
    def _():
        # hidden=None in the PyTorch forward -> zero-initialized state.
        h_sc[...] = jnp.zeros_like(h_sc)
        c_sc[...] = jnp.zeros_like(c_sc)

    H = h_sc.shape[-1]
    Tc = gx_ref.shape[0]
    whh = whh_ref[...]
    h = h_sc[...]
    c = c_sc[...]
    base_t = chunk * Tc

    # TODO(synk): advanced: pltpu.matmul_push_rhs once per chunk + matmul_acc_lhs per step
    # to keep W_hh staged in the MXU across the unrolled loop (verify via bundle dump first).
    for tt in range(Tc):
        gates = gx_ref[tt].astype(jnp.float32) + jnp.dot(
            h.astype(whh.dtype), whh, preferred_element_type=jnp.float32)
        # Gate math stays in f32 (v5e has no bf16 VALU/EUP).
        i_g = jax.nn.sigmoid(gates[:, 0 * H:1 * H])
        f_g = jax.nn.sigmoid(gates[:, 1 * H:2 * H])
        g_g = jnp.tanh(gates[:, 2 * H:3 * H])
        o_g = jax.nn.sigmoid(gates[:, 3 * H:4 * H])
        c_new = f_g * c + i_g * g_g
        h_new = o_g * jnp.tanh(c_new)

        if needs_mask:
            # Padded time steps (t >= seq_len) must not advance the state.
            m = (base_t + tt < seq_len).astype(jnp.float32)
            c = m * c_new + (1.0 - m) * c
            h = m * h_new + (1.0 - m) * h
        else:
            c = c_new
            h = h_new

        h_seq_ref[tt] = h.astype(h_seq_ref.dtype)   # full (Bblk, H) tile store

    h_sc[...] = h
    c_sc[...] = c

    @pl.when(chunk == pl.num_programs(1) - 1)
    def _():
        hN_ref[...] = h.astype(hN_ref.dtype)
        cN_ref[...] = c.astype(cN_ref.dtype)


# ---------------------------------------------------------------------------
# Forward wrapper == CharRNN.forward(x, hidden=None)
# ---------------------------------------------------------------------------
def char_rnn_forward(x_ids, params, *, time_chunk=32, batch_block=None):
    """x_ids: int32 (B, T). Returns (logits (B,T,V), (h_n (1,B,H), c_n (1,B,H)))."""
    emb_table = params["embedding"]                    # (V, E)  f32
    wih_t = params["w_ih_t"]                           # (E, 4H) bf16/f32
    whh_t = params["w_hh_t"]                           # (H, 4H) bf16/f32
    b_gates = (params["b_ih"] + params["b_hh"]).astype(jnp.float32)   # (1, 4H)
    wfc_t = params["w_fc_t"]                           # (H, V)  bf16/f32
    bfc = params["b_fc"].astype(jnp.float32)           # (1, V)

    B, T = x_ids.shape
    V, _ = emb_table.shape
    H = whh_t.shape[0]
    assert H % 128 == 0, "rnn_units must be a multiple of 128 (lane alignment)"
    # TODO(synk): pad H to a multiple of 128 automatically for arbitrary configs.

    act_dtype = jnp.bfloat16                           # HBM intermediates (gx, h_seq)

    # Lane-dense logits: pad V up to a multiple of 128, slice afterwards.
    Vp = pl.cdiv(V, 128) * 128
    if Vp != V:
        wfc_t = jnp.pad(wfc_t, ((0, 0), (0, Vp - V)))
        bfc = jnp.pad(bfc, ((0, 0), (0, Vp - V)))

    # Fused input-projection table (char vocab is tiny): G = emb @ W_ih^T + (b_ih + b_hh).
    # Then gx is a pure gather -- no (T*B,E)@(E,4H) matmul, no (T,B,E) intermediate.
    gate_table = (emb_table.astype(jnp.float32) @ wih_t.astype(jnp.float32)
                  + b_gates).astype(act_dtype)         # (V, 4H)
    gx = jnp.take(gate_table, x_ids.T, axis=0)         # (T, B, 4H) time-major, bf16

    # Time chunking: pad T to a multiple of tc; padded steps are masked in-kernel.
    tc = min(time_chunk, T)
    Tp = pl.cdiv(T, tc) * tc
    if Tp != T:
        gx = jnp.pad(gx, ((0, Tp - T), (0, 0), (0, 0)))
    n_chunks = Tp // tc

    # Batch sharding: one shard by default; >=2 shards lets v7x's two TensorCores
    # run independent batch slices of the recurrence (parallel leading grid axis).
    if batch_block is None:
        batch_block = B if B < 16 else (B // 2 if B % 2 == 0 else B)
    if B % batch_block != 0 or (batch_block % 8 != 0 and batch_block != B):
        batch_block = B
    bblk = batch_block
    n_b = B // bblk

    # VMEM budget (sized for v7x's 64 MiB physical / 32 MiB default scoped).
    abytes = 2
    est = (2 * (tc * bblk * 4 * H * abytes + tc * bblk * H * abytes)
           + H * 4 * H * abytes + 4 * bblk * H * 4)
    vmem_limit = int(min(max(2 * est + (4 << 20), 32 << 20), 48 << 20))

    h_seq, h_n, c_n = pl.pallas_call(
        functools.partial(_lstm_recurrence_kernel,
                          seq_len=T, needs_mask=(Tp != T)),
        out_shape=(
            jax.ShapeDtypeStruct((Tp, B, H), act_dtype),   # time-major hidden sequence
            jax.ShapeDtypeStruct((B, H), jnp.float32),
            jax.ShapeDtypeStruct((B, H), jnp.float32),
        ),
        grid_spec=pltpu.PrefetchScalarGridSpec(
            num_scalar_prefetch=0,
            grid=(n_b, n_chunks),
            in_specs=[
                pl.BlockSpec((tc, bblk, 4 * H), lambda b, c: (c, b, 0)),   # gx chunk
                pl.BlockSpec((H, 4 * H), lambda b, c: (0, 0)),             # W_hh^T
            ],
            out_specs=[
                pl.BlockSpec((tc, bblk, H), lambda b, c: (c, b, 0)),       # h sequence
                pl.BlockSpec((bblk, H), lambda b, c: (b, 0)),              # h_n (resident)
                pl.BlockSpec((bblk, H), lambda b, c: (b, 0)),              # c_n (resident)
            ],
            scratch_shapes=[
                pltpu.VMEM((bblk, H), jnp.float32),  # h carry
                pltpu.VMEM((bblk, H), jnp.float32),  # c carry
            ],
        ),
        compiler_params=pltpu.CompilerParams(
            # batch shards are independent (v7x megacore); time chunks are strictly serial.
            dimension_semantics=("parallel", "arbitrary"),
            vmem_limit_bytes=vmem_limit,
        ),
    )(gx.astype(act_dtype), whh_t)

    # Deferred FC: one N-tiled batched matmul over the (real) time-major rows.
    h_rows = h_seq[:T].reshape(T * B, H)                               # bf16
    logits = _matmul_bias(h_rows, wfc_t, bfc)                          # (T*B, Vp) f32
    logits = logits.reshape(T, B, Vp).transpose(1, 0, 2)               # (B, T, Vp)
    if Vp != V:
        logits = logits[:, :, :V]

    hidden = (h_n[None, :, :], c_n[None, :, :])                        # (1, B, H) like PyTorch
    return logits, hidden


# ---------------------------------------------------------------------------
# Pure-JAX reference (mirrors the kernel's bf16 quantization points).
# ---------------------------------------------------------------------------
def char_rnn_reference(x_ids, params):
    emb = params["embedding"].astype(jnp.float32)
    wih = params["w_ih_t"].astype(jnp.float32)
    whh = params["w_hh_t"]
    bg = (params["b_ih"] + params["b_hh"]).astype(jnp.float32)
    wfc = params["w_fc_t"]
    bfc = params["b_fc"].astype(jnp.float32)
    B, T = x_ids.shape
    H = whh.shape[0]
    V = wfc.shape[1]

    G = (emb @ wih + bg).astype(jnp.bfloat16)
    gx = jnp.take(G, x_ids.T, axis=0)                                  # (T, B, 4H)

    def step(carry, g):
        h, c = carry
        gates = g.astype(jnp.float32) + jnp.dot(
            h.astype(whh.dtype), whh, preferred_element_type=jnp.float32)
        i = jax.nn.sigmoid(gates[:, :H])
        f = jax.nn.sigmoid(gates[:, H:2 * H])
        gg = jnp.tanh(gates[:, 2 * H:3 * H])
        o = jax.nn.sigmoid(gates[:, 3 * H:])
        c = f * c + i * gg
        h = o * jnp.tanh(c)
        return (h, c), h.astype(jnp.bfloat16)

    init = (jnp.zeros((B, H), jnp.float32), jnp.zeros((B, H), jnp.float32))
    (h_n, c_n), hs = jax.lax.scan(step, init, gx)
    logits = (jnp.dot(hs.reshape(T * B, H).astype(wfc.dtype), wfc,
                      preferred_element_type=jnp.float32) + bfc)
    logits = logits.reshape(T, B, V).transpose(1, 0, 2)
    return logits, (h_n[None], c_n[None])


def init_params(key, vocab_size, embedding_dim, rnn_units,
                param_dtype=jnp.bfloat16):
    """Deterministic synthetic parameters matching nn.Embedding/nn.LSTM/nn.Linear."""
    k = jax.random.split(key, 7)
    H = rnn_units
    s = 1.0 / jnp.sqrt(jnp.float32(H))
    return {
        # nn.Embedding(vocab_size, embedding_dim): N(0, 1)
        "embedding": jax.random.normal(k[0], (vocab_size, embedding_dim), jnp.float32),
        # nn.LSTM: weight_ih_l0 (4H, E), weight_hh_l0 (4H, H) -> stored transposed (bf16 MXU operands)
        "w_ih_t": jax.random.uniform(k[1], (embedding_dim, 4 * H), jnp.float32, -s, s).astype(param_dtype),
        "w_hh_t": jax.random.uniform(k[2], (H, 4 * H), jnp.float32, -s, s).astype(param_dtype),
        "b_ih": jax.random.uniform(k[3], (1, 4 * H), jnp.float32, -s, s),
        "b_hh": jax.random.uniform(k[4], (1, 4 * H), jnp.float32, -s, s),
        # nn.Linear(rnn_units, vocab_size): weight (V, H) -> stored transposed
        "w_fc_t": jax.random.uniform(k[5], (H, vocab_size), jnp.float32, -s, s).astype(param_dtype),
        "b_fc": jax.random.uniform(k[6], (1, vocab_size), jnp.float32, -s, s),
    }


if __name__ == "__main__":
    # Small TPU-friendly shapes consistent with the module's forward.
    vocab_size = 64
    embedding_dim = 128
    rnn_units = 256          # multiple of 128 (lane-aligned gate slices)
    batch_size = 8
    seq_len = 24             # with time_chunk=16 -> 2 chunks, last chunk masked (Tp=32)

    key = jax.random.PRNGKey(0)
    pkey, xkey = jax.random.split(key)
    params = init_params(pkey, vocab_size, embedding_dim, rnn_units)
    x_ids = jax.random.randint(xkey, (batch_size, seq_len), 0, vocab_size, dtype=jnp.int32)

    logits, (h_n, c_n) = char_rnn_forward(x_ids, params, time_chunk=16)
    jax.block_until_ready((logits, h_n, c_n))

    assert logits.shape == (batch_size, seq_len, vocab_size)
    assert h_n.shape == (1, batch_size, rnn_units)
    assert c_n.shape == (1, batch_size, rnn_units)

    # Numerical sanity check against a pure-JAX reference with matching quantization.
    ref_logits, (ref_h, ref_c) = char_rnn_reference(x_ids, params)
    jax.block_until_ready((ref_logits, ref_h, ref_c))
    assert float(jnp.max(jnp.abs(logits - ref_logits))) < 5e-2
    assert float(jnp.max(jnp.abs(h_n - ref_h))) < 5e-2
    assert float(jnp.max(jnp.abs(c_n - ref_c))) < 5e-2

    print("KERNEL_OK")
</pallas_src>

<mosaic_0001>
module attributes {stable_mosaic.version = 11 : i64} {
  func.func @_lstm_recurrence_kernel(%arg0: i32, %arg1: i32, %arg2: memref<16x8x1024xbf16, #tpu.memory_space<vmem>>, %arg3: memref<256x1024xbf16, #tpu.memory_space<vmem>>, %arg4: memref<16x8x256xbf16, #tpu.memory_space<vmem>>, %arg5: memref<8x256xf32, #tpu.memory_space<vmem>>, %arg6: memref<8x256xf32, #tpu.memory_space<vmem>>, %arg7: memref<8x256xf32, #tpu.memory_space<vmem>>, %arg8: memref<8x256xf32, #tpu.memory_space<vmem>>) attributes {dimension_semantics = [#tpu.dimension_semantics<parallel>, #tpu.dimension_semantics<arbitrary>], iteration_bounds = array<i64: 1, 2>, scalar_prefetch = 0 : i64, scratch_operands = 2 : i64, tpu.core_type = #tpu.core_type<tc>, window_params = [{transform_indices = @transform_0, window_bounds = array<i64: 16, 8, 1024>}, {pipeline_mode = #tpu.pipeline_mode<synchronous>, transform_indices = @transform_1, window_bounds = array<i64: 256, 1024>}, {transform_indices = @transform_2, window_bounds = array<i64: 16, 8, 256>}, {transform_indices = @transform_3, window_bounds = array<i64: 8, 256>}, {transform_indices = @transform_4, window_bounds = array<i64: 8, 256>}]} {
    %c0_i32 = arith.constant 0 : i32
    %0 = arith.cmpi eq, %arg1, %c0_i32 : i32
    %1 = arith.extui %0 : i1 to i32
    %c0_i32_0 = arith.constant 0 : i32
    %2 = arith.cmpi ne, %1, %c0_i32_0 : i32
    scf.if %2 {
      %cst_204 = arith.constant 0.000000e+00 : f32
      %828 = vector.broadcast %cst_204 : f32 to vector<8x256xf32>
      %c0_205 = arith.constant 0 : index
      %c0_206 = arith.constant 0 : index
      %829 = vector.load %arg7[%c0_205, %c0_206] : memref<8x256xf32, #tpu.memory_space<vmem>>, vector<8x256xf32>
      tpu.vector_store %arg7[%c0_205, %c0_206], %828 {strides = array<i32>} : memref<8x256xf32, #tpu.memory_space<vmem>>, vector<8x256xf32>,
      %cst_207 = arith.constant 0.000000e+00 : f32
      %830 = vector.broadcast %cst_207 : f32 to vector<8x256xf32>
      %c0_208 = arith.constant 0 : index
      %c0_209 = arith.constant 0 : index
      %831 = vector.load %arg8[%c0_208, %c0_209] : memref<8x256xf32, #tpu.memory_space<vmem>>, vector<8x256xf32>
      tpu.vector_store %arg8[%c0_208, %c0_209], %830 {strides = array<i32>} : memref<8x256xf32, #tpu.memory_space<vmem>>, vector<8x256xf32>,
    } else {
    }
    %c0 = arith.constant 0 : index
    %c0_1 = arith.constant 0 : index
    %3 = vector.load %arg3[%c0, %c0_1] : memref<256x1024xbf16, #tpu.memory_space<vmem>>, vector<256x1024xbf16>
    %c0_2 = arith.constant 0 : index
    %c0_3 = arith.constant 0 : index
    %4 = vector.load %arg7[%c0_2, %c0_3] : memref<8x256xf32, #tpu.memory_space<vmem>>, vector<8x256xf32>
    %c0_4 = arith.constant 0 : index
    %c0_5 = arith.constant 0 : index
    %5 = vector.load %arg8[%c0_4, %c0_5] : memref<8x256xf32, #tpu.memory_space<vmem>>, vector<8x256xf32>
    %c16_i32 = arith.constant 16 : i32
    %6 = arith.muli %arg1, %c16_i32 : i32
    %c0_6 = arith.constant 0 : index
    %c0_7 = arith.constant 0 : index
    %c0_8 = arith.constant 0 : index
    %7 = vector.load %arg2[%c0_6, %c0_7, %c0_8] : memref<16x8x1024xbf16, #tpu.memory_space<vmem>>, vector<1x8x1024xbf16>
    %8 = vector.shape_cast %7 : vector<1x8x1024xbf16> to vector<8x1024xbf16>
    %9 = arith.extf %8 : vector<8x1024xbf16> to vector<8x1024xf32>
    %10 = arith.truncf %4 : vector<8x256xf32> to vector<8x256xbf16>
    %cst = arith.constant dense<0.000000e+00> : vector<8x1024xf32>
    %11 = tpu.matmul %10, %3, %cst {dimension_numbers = #tpu.dot_dimension_numbers<[1], [0], [0], [1], [0, 0, 1, 1], [], []>} : vector<8x256xbf16>, vector<256x1024xbf16>, vector<8x1024xf32> -> vector<8x1024xf32>
    %12 = arith.addf %9, %11 : vector<8x1024xf32>
    %13 = vector.extract_strided_slice %12 {offsets = [0, 0], sizes = [8, 256], strides = [1, 1]} : vector<8x1024xf32> to vector<8x256xf32>
    %14 = arith.negf %13 : vector<8x256xf32>
    %15 = math.exp %14 : vector<8x256xf32>
    %cst_9 = arith.constant 1.000000e+00 : f32
    %16 = vector.broadcast %cst_9 : f32 to vector<8x256xf32>
    %17 = arith.addf %16, %15 : vector<8x256xf32>
    %18 = arith.divf %16, %17 : vector<8x256xf32>
    %19 = vector.extract_strided_slice %12 {offsets = [0, 256], sizes = [8, 256], strides = [1, 1]} : vector<8x1024xf32> to vector<8x256xf32>
    %20 = arith.negf %19 : vector<8x256xf32>
    %21 = math.exp %20 : vector<8x256xf32>
    %cst_10 = arith.constant 1.000000e+00 : f32
    %22 = vector.broadcast %cst_10 : f32 to vector<8x256xf32>
    %23 = arith.addf %22, %21 : vector<8x256xf32>
    %24 = arith.divf %22, %23 : vector<8x256xf32>
    %25 = vector.extract_strided_slice %12 {offsets = [0, 512], sizes = [8, 256], strides = [1, 1]} : vector<8x1024xf32> to vector<8x256xf32>
    %26 = math.tanh %25 : vector<8x256xf32>
    %27 = vector.extract_strided_slice %12 {offsets = [0, 768], sizes = [8, 256], strides = [1, 1]} : vector<8x1024xf32> to vector<8x256xf32>
    %28 = arith.negf %27 : vector<8x256xf32>
    %29 = math.exp %28 : vector<8x256xf32>
    %cst_11 = arith.constant 1.000000e+00 : f32
    %30 = vector.broadcast %cst_11 : f32 to vector<8x256xf32>
    %31 = arith.addf %30, %29 : vector<8x256xf32>
    %32 = arith.divf %30, %31 : vector<8x256xf32>
    %33 = arith.mulf %24, %5 : vector<8x256xf32>
    %34 = arith.mulf %18, %26 : vector<8x256xf32>
    %35 = arith.addf %33, %34 : vector<8x256xf32>
    %36 = math.tanh %35 : vector<8x256xf32>
    %37 = arith.mulf %32, %36 : vector<8x256xf32>
    %c0_i32_12 = arith.constant 0 : i32
    %38 = arith.addi %6, %c0_i32_12 : i32
    %c24_i32 = arith.constant 24 : i32
    %39 = arith.cmpi slt, %38, %c24_i32 : i32
    %40 = arith.extui %39 : i1 to i32
    %41 = arith.sitofp %40 : i32 to f32
    %42 = vector.broadcast %41 : f32 to vector<8x256xf32>
    %43 = arith.mulf %42, %35 : vector<8x256xf32>
    %cst_13 = arith.constant 1.000000e+00 : f32
    %44 = arith.subf %cst_13, %41 : f32
    %45 = vector.broadcast %44 : f32 to vector<8x256xf32>
    %46 = arith.mulf %45, %5 : vector<8x256xf32>
    %47 = arith.addf %43, %46 : vector<8x256xf32>
    %48 = vector.broadcast %41 : f32 to vector<8x256xf32>
    %49 = arith.mulf %48, %37 : vector<8x256xf32>
    %cst_14 = arith.constant 1.000000e+00 : f32
    %50 = arith.subf %cst_14, %41 : f32
    %51 = vector.broadcast %50 : f32 to vector<8x256xf32>
    %52 = arith.mulf %51, %4 : vector<8x256xf32>
    %53 = arith.addf %49, %52 : vector<8x256xf32>
    %54 = arith.truncf %53 : vector<8x256xf32> to vector<8x256xbf16>
    %c0_15 = arith.constant 0 : index
    %c0_16 = arith.constant 0 : index
    %c0_17 = arith.constant 0 : index
    %55 = vector.load %arg4[%c0_15, %c0_16, %c0_17] : memref<16x8x256xbf16, #tpu.memory_space<vmem>>, vector<1x8x256xbf16>
    %56 = vector.shape_cast %55 : vector<1x8x256xbf16> to vector<8x256xbf16>
    %57 = vector.shape_cast %54 : vector<8x256xbf16> to vector<1x8x256xbf16>
    tpu.vector_store %arg4[%c0_15, %c0_16, %c0_17], %57 {strides = array<i32>} : memref<16x8x256xbf16, #tpu.memory_space<vmem>>, vector<1x8x256xbf16>,
    %c1 = arith.constant 1 : index
    %c0_18 = arith.constant 0 : index
    %c0_19 = arith.constant 0 : index
    %58 = vector.load %arg2[%c1, %c0_18, %c0_19] : memref<16x8x1024xbf16, #tpu.memory_space<vmem>>, vector<1x8x1024xbf16>
    %59 = vector.shape_cast %58 : vector<1x8x1024xbf16> to vector<8x1024xbf16>
    %60 = arith.extf %59 : vector<8x1024xbf16> to vector<8x1024xf32>
    %61 = arith.truncf %53 : vector<8x256xf32> to vector<8x256xbf16>
    %cst_20 = arith.constant dense<0.000000e+00> : vector<8x1024xf32>
    %62 = tpu.matmul %61, %3, %cst_20 {dimension_numbers = #tpu.dot_dimension_numbers<[1], [0], [0], [1], [0, 0, 1, 1], [], []>} : vector<8x256xbf16>, vector<256x1024xbf16>, vector<8x1024xf32> -> vector<8x1024xf32>
    %63 = arith.addf %60, %62 : vector<8x1024xf32>
    %64 = vector.extract_strided_slice %63 {offsets = [0, 0], sizes = [8, 256], strides = [1, 1]} : vector<8x1024xf32> to vector<8x256xf32>
    %65 = arith.negf %64 : vector<8x256xf32>
    %66 = math.exp %65 : vector<8x256xf32>
    %cst_21 = arith.constant 1.000000e+00 : f32
    %67 = vector.broadcast %cst_21 : f32 to vector<8x256xf32>
    %68 = arith.addf %67, %66 : vector<8x256xf32>
    %69 = arith.divf %67, %68 : vector<8x256xf32>
    %70 = vector.extract_strided_slice %63 {offsets = [0, 256], sizes = [8, 256], strides = [1, 1]} : vector<8x1024xf32> to vector<8x256xf32>
    %71 = arith.negf %70 : vector<8x256xf32>
    %72 = math.exp %71 : vector<8x256xf32>
    %cst_22 = arith.constant 1.000000e+00 : f32
    %73 = vector.broadcast %cst_22 : f32 to vector<8x256xf32>
    %74 = arith.addf %73, %72 : vector<8x256xf32>
    %75 = arith.divf %73, %74 : vector<8x256xf32>
    %76 = vector.extract_strided_slice %63 {offsets = [0, 512], sizes = [8, 256], strides = [1, 1]} : vector<8x1024xf32> to vector<8x256xf32>
    %77 = math.tanh %76 : vector<8x256xf32>
    %78 = vector.extract_strided_slice %63 {offsets = [0, 768], sizes = [8, 256], strides = [1, 1]} : vector<8x1024xf32> to vector<8x256xf32>
    %79 = arith.negf %78 : vector<8x256xf32>
    %80 = math.exp %79 : vector<8x256xf32>
    %cst_23 = arith.constant 1.000000e+00 : f32
    %81 = vector.broadcast %cst_23 : f32 to vector<8x256xf32>
    %82 = arith.addf %81, %80 : vector<8x256xf32>
    %83 = arith.divf %81, %82 : vector<8x256xf32>
    %84 = arith.mulf %75, %47 : vector<8x256xf32>
    %85 = arith.mulf %69, %77 : vector<8x256xf32>
    %86 = arith.addf %84, %85 : vector<8x256xf32>
    %87 = math.tanh %86 : vector<8x256xf32>
    %88 = arith.mulf %83, %87 : vector<8x256xf32>
    %c1_i32 = arith.constant 1 : i32
    %89 = arith.addi %6, %c1_i32 : i32
    %c24_i32_24 = arith.constant 24 : i32
    %90 = arith.cmpi slt, %89, %c24_i32_24 : i32
    %91 = arith.extui %90 : i1 to i32
    %92 = arith.sitofp %91 : i32 to f32
    %93 = vector.broadcast %92 : f32 to vector<8x256xf32>
    %94 = arith.mulf %93, %86 : vector<8x256xf32>
    %cst_25 = arith.constant 1.000000e+00 : f32
    %95 = arith.subf %cst_25, %92 : f32
    %96 = vector.broadcast %95 : f32 to vector<8x256xf32>
    %97 = arith.mulf %96, %47 : vector<8x256xf32>
    %98 = arith.addf %94, %97 : vector<8x256xf32>
    %99 = vector.broadcast %92 : f32 to vector<8x256xf32>
    %100 = arith.mulf %99, %88 : vector<8x256xf32>
    %cst_26 = arith.constant 1.000000e+00 : f32
    %101 = arith.subf %cst_26, %92 : f32
    %102 = vector.broadcast %101 : f32 to vector<8x256xf32>
    %103 = arith.mulf %102, %53 : vector<8x256xf32>
    %104 = arith.addf %100, %103 : vector<8x256xf32>
    %105 = arith.truncf %104 : vector<8x256xf32> to vector<8x256xbf16>
    %c1_27 = arith.constant 1 : index
    %c0_28 = arith.constant 0 : index
    %c0_29 = arith.constant 0 : index
    %106 = vector.load %arg4[%c1_27, %c0_28, %c0_29] : memref<16x8x256xbf16, #tpu.memory_space<vmem>>, vector<1x8x256xbf16>
    %107 = vector.shape_cast %106 : vector<1x8x256xbf16> to vector<8x256xbf16>
    %108 = vector.shape_cast %105 : vector<8x256xbf16> to vector<1x8x256xbf16>
    tpu.vector_store %arg4[%c1_27, %c0_28, %c0_29], %108 {strides = array<i32>} : memref<16x8x256xbf16, #tpu.memory_space<vmem>>, vector<1x8x256xbf16>,
    %c2 = arith.constant 2 : index
    %c0_30 = arith.constant 0 : index
    %c0_31 = arith.constant 0 : index
    %109 = vector.load %arg2[%c2, %c0_30, %c0_31] : memref<16x8x1024xbf16, #tpu.memory_space<vmem>>, vector<1x8x1024xbf16>
    %110 = vector.shape_cast %109 : vector<1x8x1024xbf16> to vector<8x1024xbf16>
    %111 = arith.extf %110 : vector<8x1024xbf16> to vector<8x1024xf32>
    %112 = arith.truncf %104 : vector<8x256xf32> to vector<8x256xbf16>
    %cst_32 = arith.constant dense<0.000000e+00> : vector<8x1024xf32>
    %113 = tpu.matmul %112, %3, %cst_32 {dimension_numbers = #tpu.dot_dimension_numbers<[1], [0], [0], [1], [0, 0, 1, 1], [], []>} : vector<8x256xbf16>, vector<256x1024xbf16>, vector<8x1024xf32> -> vector<8x1024xf32>
    %114 = arith.addf %111, %113 : vector<8x1024xf32>
    %115 = vector.extract_strided_slice %114 {offsets = [0, 0], sizes = [8, 256], strides = [1, 1]} : vector<8x1024xf32> to vector<8x256xf32>
    %116 = arith.negf %115 : vector<8x256xf32>
    %117 = math.exp %116 : vector<8x256xf32>
    %cst_33 = arith.constant 1.000000e+00 : f32
    %118 = vector.broadcast %cst_33 : f32 to vector<8x256xf32>
    %119 = arith.addf %118, %117 : vector<8x256xf32>
    %120 = arith.divf %118, %119 : vector<8x256xf32>
    %121 = vector.extract_strided_slice %114 {offsets = [0, 256], sizes = [8, 256], strides = [1, 1]} : vector<8x1024xf32> to vector<8x256xf32>
    %122 = arith.negf %121 : vector<8x256xf32>
    %123 = math.exp %122 : vector<8x256xf32>
    %cst_34 = arith.constant 1.000000e+00 : f32
    %124 = vector.broadcast %cst_34 : f32 to vector<8x256xf32>
    %125 = arith.addf %124, %123 : vector<8x256xf32>
    %126 = arith.divf %124, %125 : vector<8x256xf32>
    %127 = vector.extract_strided_slice %114 {offsets = [0, 512], sizes = [8, 256], strides = [1, 1]} : vector<8x1024xf32> to vector<8x256xf32>
    %128 = math.tanh %127 : vector<8x256xf32>
    %129 = vector.extract_strided_slice %114 {offsets = [0, 768], sizes = [8, 256], strides = [1, 1]} : vector<8x1024xf32> to vector<8x256xf32>
    %130 = arith.negf %129 : vector<8x256xf32>
    %131 = math.exp %130 : vector<8x256xf32>
    %cst_35 = arith.constant 1.000000e+00 : f32
    %132 = vector.broadcast %cst_35 : f32 to vector<8x256xf32>
    %133 = arith.addf %132, %131 : vector<8x256xf32>
    %134 = arith.divf %132, %133 : vector<8x256xf32>
    %135 = arith.mulf %126, %98 : vector<8x256xf32>
    %136 = arith.mulf %120, %128 : vector<8x256xf32>
    %137 = arith.addf %135, %136 : vector<8x256xf32>
    %138 = math.tanh %137 : vector<8x256xf32>
    %139 = arith.mulf %134, %138 : vector<8x256xf32>
    %c2_i32 = arith.constant 2 : i32
    %140 = arith.addi %6, %c2_i32 : i32
    %c24_i32_36 = arith.constant 24 : i32
    %141 = arith.cmpi slt, %140, %c24_i32_36 : i32
    %142 = arith.extui %141 : i1 to i32
    %143 = arith.sitofp %142 : i32 to f32
    %144 = vector.broadcast %143 : f32 to vector<8x256xf32>
    %145 = arith.mulf %144, %137 : vector<8x256xf32>
    %cst_37 = arith.constant 1.000000e+00 : f32
    %146 = arith.subf %cst_37, %143 : f32
    %147 = vector.broadcast %146 : f32 to vector<8x256xf32>
    %148 = arith.mulf %147, %98 : vector<8x256xf32>
    %149 = arith.addf %145, %148 : vector<8x256xf32>
    %150 = vector.broadcast %143 : f32 to vector<8x256xf32>
    %151 = arith.mulf %150, %139 : vector<8x256xf32>
    %cst_38 = arith.constant 1.000000e+00 : f32
    %152 = arith.subf %cst_38, %143 : f32
    %153 = vector.broadcast %152 : f32 to vector<8x256xf32>
    %154 = arith.mulf %153, %104 : vector<8x256xf32>
    %155 = arith.addf %151, %154 : vector<8x256xf32>
    %156 = arith.truncf %155 : vector<8x256xf32> to vector<8x256xbf16>
    %c2_39 = arith.constant 2 : index
    %c0_40 = arith.constant 0 : index
    %c0_41 = arith.constant 0 : index
    %157 = vector.load %arg4[%c2_39, %c0_40, %c0_41] : memref<16x8x256xbf16, #tpu.memory_space<vmem>>, vector<1x8x256xbf16>
    %158 = vector.shape_cast %157 : vector<1x8x256xbf16> to vector<8x256xbf16>
    %159 = vector.shape_cast %156 : vector<8x256xbf16> to vector<1x8x256xbf16>
    tpu.vector_store %arg4[%c2_39, %c0_40, %c0_41], %159 {strides = array<i32>} : memref<16x8x256xbf16, #tpu.memory_space<vmem>>, vector<1x8x256xbf16>,
    %c3 = arith.constant 3 : index
    %c0_42 = arith.constant 0 : index
    %c0_43 = arith.constant 0 : index
    %160 = vector.load %arg2[%c3, %c0_42, %c0_43] : memref<16x8x1024xbf16, #tpu.memory_space<vmem>>, vector<1x8x1024xbf16>
    %161 = vector.shape_cast %160 : vector<1x8x1024xbf16> to vector<8x1024xbf16>
    %162 = arith.extf %161 : vector<8x1024xbf16> to vector<8x1024xf32>
    %163 = arith.truncf %155 : vector<8x256xf32> to vector<8x256xbf16>
    %cst_44 = arith.constant dense<0.000000e+00> : vector<8x1024xf32>
    %164 = tpu.matmul %163, %3, %cst_44 {dimension_numbers = #tpu.dot_dimension_numbers<[1], [0], [0], [1], [0, 0, 1, 1], [], []>} : vector<8x256xbf16>, vector<256x1024xbf16>, vector<8x1024xf32> -> vector<8x1024xf32>
    %165 = arith.addf %162, %164 : vector<8x1024xf32>
    %166 = vector.extract_strided_slice %165 {offsets = [0, 0], sizes = [8, 256], strides = [1, 1]} : vector<8x1024xf32> to vector<8x256xf32>
    %167 = arith.negf %166 : vector<8x256xf32>
    %168 = math.exp %167 : vector<8x256xf32>
    %cst_45 = arith.constant 1.000000e+00 : f32
    %169 = vector.broadcast %cst_45 : f32 to vector<8x256xf32>
    %170 = arith.addf %169, %168 : vector<8x256xf32>
    %171 = arith.divf %169, %170 : vector<8x256xf32>
    %172 = vector.extract_strided_slice %165 {offsets = [0, 256], sizes = [8, 256], strides = [1, 1]} : vector<8x1024xf32> to vector<8x256xf32>
    %173 = arith.negf %172 : vector<8x256xf32>
    %174 = math.exp %173 : vector<8x256xf32>
    %cst_46 = arith.constant 1.000000e+00 : f32
    %175 = vector.broadcast %cst_46 : f32 to vector<8x256xf32>
    %176 = arith.addf %175, %174 : vector<8x256xf32>
    %177 = arith.divf %175, %176 : vector<8x256xf32>
    %178 = vector.extract_strided_slice %165 {offsets = [0, 512], sizes = [8, 256], strides = [1, 1]} : vector<8x1024xf32> to vector<8x256xf32>
    %179 = math.tanh %178 : vector<8x256xf32>
    %180 = vector.extract_strided_slice %165 {offsets = [0, 768], sizes = [8, 256], strides = [1, 1]} : vector<8x1024xf32> to vector<8x256xf32>
    %181 = arith.negf %180 : vector<8x256xf32>
    %182 = math.exp %181 : vector<8x256xf32>
    %cst_47 = arith.constant 1.000000e+00 : f32
    %183 = vector.broadcast %cst_47 : f32 to vector<8x256xf32>
    %184 = arith.addf %183, %182 : vector<8x256xf32>
    %185 = arith.divf %183, %184 : vector<8x256xf32>
    %186 = arith.mulf %177, %149 : vector<8x256xf32>
    %187 = arith.mulf %171, %179 : vector<8x256xf32>
    %188 = arith.addf %186, %187 : vector<8x256xf32>
    %189 = math.tanh %188 : vector<8x256xf32>
    %190 = arith.mulf %185, %189 : vector<8x256xf32>
    %c3_i32 = arith.constant 3 : i32
    %191 = arith.addi %6, %c3_i32 : i32
    %c24_i32_48 = arith.constant 24 : i32
    %192 = arith.cmpi slt, %191, %c24_i32_48 : i32
    %193 = arith.extui %192 : i1 to i32
    %194 = arith.sitofp %193 : i32 to f32
    %195 = vector.broadcast %194 : f32 to vector<8x256xf32>
    %196 = arith.mulf %195, %188 : vector<8x256xf32>
    %cst_49 = arith.constant 1.000000e+00 : f32
    %197 = arith.subf %cst_49, %194 : f32
    %198 = vector.broadcast %197 : f32 to vector<8x256xf32>
    %199 = arith.mulf %198, %149 : vector<8x256xf32>
    %200 = arith.addf %196, %199 : vector<8x256xf32>
    %201 = vector.broadcast %194 : f32 to vector<8x256xf32>
    %202 = arith.mulf %201, %190 : vector<8x256xf32>
    %cst_50 = arith.constant 1.000000e+00 : f32
    %203 = arith.subf %cst_50, %194 : f32
    %204 = vector.broadcast %203 : f32 to vector<8x256xf32>
    %205 = arith.mulf %204, %155 : vector<8x256xf32>
    %206 = arith.addf %202, %205 : vector<8x256xf32>
    %207 = arith.truncf %206 : vector<8x256xf32> to vector<8x256xbf16>
    %c3_51 = arith.constant 3 : index
    %c0_52 = arith.constant 0 : index
    %c0_53 = arith.constant 0 : index
    %208 = vector.load %arg4[%c3_51, %c0_52, %c0_53] : memref<16x8x256xbf16, #tpu.memory_space<vmem>>, vector<1x8x256xbf16>
    %209 = vector.shape_cast %208 : vector<1x8x256xbf16> to vector<8x256xbf16>
    %210 = vector.shape_cast %207 : vector<8x256xbf16> to vector<1x8x256xbf16>
    tpu.vector_store %arg4[%c3_51, %c0_52, %c0_53], %210 {strides = array<i32>} : memref<16x8x256xbf16, #tpu.memory_space<vmem>>, vector<1x8x256xbf16>,
    %c4 = arith.constant 4 : index
    %c0_54 = arith.constant 0 : index
    %c0_55 = arith.constant 0 : index
    %211 = vector.load %arg2[%c4, %c0_54, %c0_55] : memref<16x8x1024xbf16, #tpu.memory_space<vmem>>, vector<1x8x1024xbf16>
    %212 = vector.shape_cast %211 : vector<1x8x1024xbf16> to vector<8x1024xbf16>
    %213 = arith.extf %212 : vector<8x1024xbf16> to vector<8x1024xf32>
    %214 = arith.truncf %206 : vector<8x256xf32> to vector<8x256xbf16>
    %cst_56 = arith.constant dense<0.000000e+00> : vector<8x1024xf32>
    %215 = tpu.matmul %214, %3, %cst_56 {dimension_numbers = #tpu.dot_dimension_numbers<[1], [0], [0], [1], [0, 0, 1, 1], [], []>} : vector<8x256xbf16>, vector<256x1024xbf16>, vector<8x1024xf32> -> vector<8x1024xf32>
    %216 = arith.addf %213, %215 : vector<8x1024xf32>
    %217 = vector.extract_strided_slice %216 {offsets = [0, 0], sizes = [8, 256], strides = [1, 1]} : vector<8x1024xf32> to vector<8x256xf32>
    %218 = arith.negf %217 : vector<8x256xf32>
    %219 = math.exp %218 : vector<8x256xf32>
    %cst_57 = arith.constant 1.000000e+00 : f32
    %220 = vector.broadcast %cst_57 : f32 to vector<8x256xf32>
    %221 = arith.addf %220, %219 : vector<8x256xf32>
    %222 = arith.divf %220, %221 : vector<8x256xf32>
    %223 = vector.extract_strided_slice %216 {offsets = [0, 256], sizes = [8, 256], strides = [1, 1]} : vector<8x1024xf32> to vector<8x256xf32>
    %224 = arith.negf %223 : vector<8x256xf32>
    %225 = math.exp %224 : vector<8x256xf32>
    %cst_58 = arith.constant 1.000000e+00 : f32
    %226 = vector.broadcast %cst_58 : f32 to vector<8x256xf32>
    %227 = arith.addf %226, %225 : vector<8x256xf32>
    %228 = arith.divf %226, %227 : vector<8x256xf32>
    %229 = vector.extract_strided_slice %216 {offsets = [0, 512], sizes = [8, 256], strides = [1, 1]} : vector<8x1024xf32> to vector<8x256xf32>
    %230 = math.tanh %229 : vector<8x256xf32>
    %231 = vector.extract_strided_slice %216 {offsets = [0, 768], sizes = [8, 256], strides = [1, 1]} : vector<8x1024xf32> to vector<8x256xf32>
    %232 = arith.negf %231 : vector<8x256xf32>
    %233 = math.exp %232 : vector<8x256xf32>
    %cst_59 = arith.constant 1.000000e+00 : f32
    %234 = vector.broadcast %cst_59 : f32 to vector<8x256xf32>
    %235 = arith.addf %234, %233 : vector<8x256xf32>
    %236 = arith.divf %234, %235 : vector<8x256xf32>
    %237 = arith.mulf %228, %200 : vector<8x256xf32>
    %238 = arith.mulf %222, %230 : vector<8x256xf32>
    %239 = arith.addf %237, %238 : vector<8x256xf32>
    %240 = math.tanh %239 : vector<8x256xf32>
    %241 = arith.mulf %236, %240 : vector<8x256xf32>
    %c4_i32 = arith.constant 4 : i32
    %242 = arith.addi %6, %c4_i32 : i32
    %c24_i32_60 = arith.constant 24 : i32
    %243 = arith.cmpi slt, %242, %c24_i32_60 : i32
    %244 = arith.extui %243 : i1 to i32
    %245 = arith.sitofp %244 : i32 to f32
    %246 = vector.broadcast %245 : f32 to vector<8x256xf32>
    %247 = arith.mulf %246, %239 : vector<8x256xf32>
    %cst_61 = arith.constant 1.000000e+00 : f32
    %248 = arith.subf %cst_61, %245 : f32
    %249 = vector.broadcast %248 : f32 to vector<8x256xf32>
    %250 = arith.mulf %249, %200 : vector<8x256xf32>
    %251 = arith.addf %247, %250 : vector<8x256xf32>
    %252 = vector.broadcast %245 : f32 to vector<8x256xf32>
    %253 = arith.mulf %252, %241 : vector<8x256xf32>
    %cst_62 = arith.constant 1.000000e+00 : f32
    %254 = arith.subf %cst_62, %245 : f32
    %255 = vector.broadcast %254 : f32 to vector<8x256xf32>
    %256 = arith.mulf %255, %206 : vector<8x256xf32>
    %257 = arith.addf %253, %256 : vector<8x256xf32>
    %258 = arith.truncf %257 : vector<8x256xf32> to vector<8x256xbf16>
    %c4_63 = arith.constant 4 : index
    %c0_64 = arith.constant 0 : index
    %c0_65 = arith.constant 0 : index
    %259 = vector.load %arg4[%c4_63, %c0_64, %c0_65] : memref<16x8x256xbf16, #tpu.memory_space<vmem>>, vector<1x8x256xbf16>
    %260 = vector.shape_cast %259 : vector<1x8x256xbf16> to vector<8x256xbf16>
    %261 = vector.shape_cast %258 : vector<8x256xbf16> to vector<1x8x256xbf16>
    tpu.vector_store %arg4[%c4_63, %c0_64, %c0_65], %261 {strides = array<i32>} : memref<16x8x256xbf16, #tpu.memory_space<vmem>>, vector<1x8x256xbf16>,
    %c5 = arith.constant 5 : index
    %c0_66 = arith.constant 0 : index
    %c0_67 = arith.constant 0 : index
    %262 = vector.load %arg2[%c5, %c0_66, %c0_67] : memref<16x8x1024xbf16, #tpu.memory_space<vmem>>, vector<1x8x1024xbf16>
    %263 = vector.shape_cast %262 : vector<1x8x1024xbf16> to vector<8x1024xbf16>
    %264 = arith.extf %263 : vector<8x1024xbf16> to vector<8x1024xf32>
    %265 = arith.truncf %257 : vector<8x256xf32> to vector<8x256xbf16>
    %cst_68 = arith.constant dense<0.000000e+00> : vector<8x1024xf32>
    %266 = tpu.matmul %265, %3, %cst_68 {dimension_numbers = #tpu.dot_dimension_numbers<[1], [0], [0], [1], [0, 0, 1, 1], [], []>} : vector<8x256xbf16>, vector<256x1024xbf16>, vector<8x1024xf32> -> vector<8x1024xf32>
    %267 = arith.addf %264, %266 : vector<8x1024xf32>
    %268 = vector.extract_strided_slice %267 {offsets = [0, 0], sizes = [8, 256], strides = [1, 1]} : vector<8x1024xf32> to vector<8x256xf32>
    %269 = arith.negf %268 : vector<8x256xf32>
    %270 = math.exp %269 : vector<8x256xf32>
    %cst_69 = arith.constant 1.000000e+00 : f32
    %271 = vector.broadcast %cst_69 : f32 to vector<8x256xf32>
    %272 = arith.addf %271, %270 : vector<8x256xf32>
    %273 = arith.divf %271, %272 : vector<8x256xf32>
    %274 = vector.extract_strided_slice %267 {offsets = [0, 256], sizes = [8, 256], strides = [1, 1]} : vector<8x1024xf32> to vector<8x256xf32>
    %275 = arith.negf %274 : vector<8x256xf32>
    %276 = math.exp %275 : vector<8x256xf32>
    %cst_70 = arith.constant 1.000000e+00 : f32
    %277 = vector.broadcast %cst_70 : f32 to vector<8x256xf32>
    %278 = arith.addf %277, %276 : vector<8x256xf32>
    %279 = arith.divf %277, %278 : vector<8x256xf32>
    %280 = vector.extract_strided_slice %267 {offsets = [0, 512], sizes = [8, 256], strides = [1, 1]} : vector<8x1024xf32> to vector<8x256xf32>
    %281 = math.tanh %280 : vector<8x256xf32>
    %282 = vector.extract_strided_slice %267 {offsets = [0, 768], sizes = [8, 256], strides = [1, 1]} : vector<8x1024xf32> to vector<8x256xf32>
    %283 = arith.negf %282 : vector<8x256xf32>
    %284 = math.exp %283 : vector<8x256xf32>
    %cst_71 = arith.constant 1.000000e+00 : f32
    %285 = vector.broadcast %cst_71 : f32 to vector<8x256xf32>
    %286 = arith.addf %285, %284 : vector<8x256xf32>
    %287 = arith.divf %285, %286 : vector<8x256xf32>
    %288 = arith.mulf %279, %251 : vector<8x256xf32>
    %289 = arith.mulf %273, %281 : vector<8x256xf32>
    %290 = arith.addf %288, %289 : vector<8x256xf32>
    %291 = math.tanh %290 : vector<8x256xf32>
    %292 = arith.mulf %287, %291 : vector<8x256xf32>
    %c5_i32 = arith.constant 5 : i32
    %293 = arith.addi %6, %c5_i32 : i32
    %c24_i32_72 = arith.constant 24 : i32
    %294 = arith.cmpi slt, %293, %c24_i32_72 : i32
    %295 = arith.extui %294 : i1 to i32
    %296 = arith.sitofp %295 : i32 to f32
    %297 = vector.broadcast %296 : f32 to vector<8x256xf32>
    %298 = arith.mulf %297, %290 : vector<8x256xf32>
    %cst_73 = arith.constant 1.000000e+00 : f32
    %299 = arith.subf %cst_73, %296 : f32
    %300 = vector.broadcast %299 : f32 to vector<8x256xf32>
    %301 = arith.mulf %300, %251 : vector<8x256xf32>
    %302 = arith.addf %298, %301 : vector<8x256xf32>
    %303 = vector.broadcast %296 : f32 to vector<8x256xf32>
    %304 = arith.mulf %303, %292 : vector<8x256xf32>
    %cst_74 = arith.constant 1.000000e+00 : f32
    %305 = arith.subf %cst_74, %296 : f32
    %306 = vector.broadcast %305 : f32 to vector<8x256xf32>
    %307 = arith.mulf %306, %257 : vector<8x256xf32>
    %308 = arith.addf %304, %307 : vector<8x256xf32>
    %309 = arith.truncf %308 : vector<8x256xf32> to vector<8x256xbf16>
    %c5_75 = arith.constant 5 : index
    %c0_76 = arith.constant 0 : index
    %c0_77 = arith.constant 0 : index
    %310 = vector.load %arg4[%c5_75, %c0_76, %c0_77] : memref<16x8x256xbf16, #tpu.memory_space<vmem>>, vector<1x8x256xbf16>
    %311 = vector.shape_cast %310 : vector<1x8x256xbf16> to vector<8x256xbf16>
    %312 = vector.shape_cast %309 : vector<8x256xbf16> to vector<1x8x256xbf16>
    tpu.vector_store %arg4[%c5_75, %c0_76, %c0_77], %312 {strides = array<i32>} : memref<16x8x256xbf16, #tpu.memory_space<vmem>>, vector<1x8x256xbf16>,
    %c6 = arith.constant 6 : index
    %c0_78 = arith.constant 0 : index
    %c0_79 = arith.constant 0 : index
    %313 = vector.load %arg2[%c6, %c0_78, %c0_79] : memref<16x8x1024xbf16, #tpu.memory_space<vmem>>, vector<1x8x1024xbf16>
    %314 = vector.shape_cast %313 : vector<1x8x1024xbf16> to vector<8x1024xbf16>
    %315 = arith.extf %314 : vector<8x1024xbf16> to vector<8x1024xf32>
    %316 = arith.truncf %308 : vector<8x256xf32> to vector<8x256xbf16>
    %cst_80 = arith.constant dense<0.000000e+00> : vector<8x1024xf32>
    %317 = tpu.matmul %316, %3, %cst_80 {dimension_numbers = #tpu.dot_dimension_numbers<[1], [0], [0], [1], [0, 0, 1, 1], [], []>} : vector<8x256xbf16>, vector<256x1024xbf16>, vector<8x1024xf32> -> vector<8x1024xf32>
    %318 = arith.addf %315, %317 : vector<8x1024xf32>
    %319 = vector.extract_strided_slice %318 {offsets = [0, 0], sizes = [8, 256], strides = [1, 1]} : vector<8x1024xf32> to vector<8x256xf32>
    %320 = arith.negf %319 : vector<8x256xf32>
    %321 = math.exp %320 : vector<8x256xf32>
    %cst_81 = arith.constant 1.000000e+00 : f32
    %322 = vector.broadcast %cst_81 : f32 to vector<8x256xf32>
    %323 = arith.addf %322, %321 : vector<8x256xf32>
    %324 = arith.divf %322, %323 : vector<8x256xf32>
    %325 = vector.extract_strided_slice %318 {offsets = [0, 256], sizes = [8, 256], strides = [1, 1]} : vector<8x1024xf32> to vector<8x256xf32>
    %326 = arith.negf %325 : vector<8x256xf32>
    %327 = math.exp %326 : vector<8x256xf32>
    %cst_82 = arith.constant 1.000000e+00 : f32
    %328 = vector.broadcast %cst_82 : f32 to vector<8x256xf32>
    %329 = arith.addf %328, %327 : vector<8x256xf32>
    %330 = arith.divf %328, %329 : vector<8x256xf32>
    %331 = vector.extract_strided_slice %318 {offsets = [0, 512], sizes = [8, 256], strides = [1, 1]} : vector<8x1024xf32> to vector<8x256xf32>
    %332 = math.tanh %331 : vector<8x256xf32>
    %333 = vector.extract_strided_slice %318 {offsets = [0, 768], sizes = [8, 256], strides = [1, 1]} : vector<8x1024xf32> to vector<8x256xf32>
    %334 = arith.negf %333 : vector<8x256xf32>
    %335 = math.exp %334 : vector<8x256xf32>
    %cst_83 = arith.constant 1.000000e+00 : f32
    %336 = vector.broadcast %cst_83 : f32 to vector<8x256xf32>
    %337 = arith.addf %336, %335 : vector<8x256xf32>
    %338 = arith.divf %336, %337 : vector<8x256xf32>
    %339 = arith.mulf %330, %302 : vector<8x256xf32>
    %340 = arith.mulf %324, %332 : vector<8x256xf32>
    %341 = arith.addf %339, %340 : vector<8x256xf32>
    %342 = math.tanh %341 : vector<8x256xf32>
    %343 = arith.mulf %338, %342 : vector<8x256xf32>
    %c6_i32 = arith.constant 6 : i32
    %344 = arith.addi %6, %c6_i32 : i32
    %c24_i32_84 = arith.constant 24 : i32
    %345 = arith.cmpi slt, %344, %c24_i32_84 : i32
    %346 = arith.extui %345 : i1 to i32
    %347 = arith.sitofp %346 : i32 to f32
    %348 = vector.broadcast %347 : f32 to vector<8x256xf32>
    %349 = arith.mulf %348, %341 : vector<8x256xf32>
    %cst_85 = arith.constant 1.000000e+00 : f32
    %350 = arith.subf %cst_85, %347 : f32
    %351 = vector.broadcast %350 : f32 to vector<8x256xf32>
    %352 = arith.mulf %351, %302 : vector<8x256xf32>
    %353 = arith.addf %349, %352 : vector<8x256xf32>
    %354 = vector.broadcast %347 : f32 to vector<8x256xf32>
    %355 = arith.mulf %354, %343 : vector<8x256xf32>
    %cst_86 = arith.constant 1.000000e+00 : f32
    %356 = arith.subf %cst_86, %347 : f32
    %357 = vector.broadcast %356 : f32 to vector<8x256xf32>
    %358 = arith.mulf %357, %308 : vector<8x256xf32>
    %359 = arith.addf %355, %358 : vector<8x256xf32>
    %360 = arith.truncf %359 : vector<8x256xf32> to vector<8x256xbf16>
    %c6_87 = arith.constant 6 : index
    %c0_88 = arith.constant 0 : index
    %c0_89 = arith.constant 0 : index
    %361 = vector.load %arg4[%c6_87, %c0_88, %c0_89] : memref<16x8x256xbf16, #tpu.memory_space<vmem>>, vector<1x8x256xbf16>
    %362 = vector.shape_cast %361 : vector<1x8x256xbf16> to vector<8x256xbf16>
    %363 = vector.shape_cast %360 : vector<8x256xbf16> to vector<1x8x256xbf16>
    tpu.vector_store %arg4[%c6_87, %c0_88, %c0_89], %363 {strides = array<i32>} : memref<16x8x256xbf16, #tpu.memory_space<vmem>>, vector<1x8x256xbf16>,
    %c7 = arith.constant 7 : index
    %c0_90 = arith.constant 0 : index
    %c0_91 = arith.constant 0 : index
    %364 = vector.load %arg2[%c7, %c0_90, %c0_91] : memref<16x8x1024xbf16, #tpu.memory_space<vmem>>, vector<1x8x1024xbf16>
    %365 = vector.shape_cast %364 : vector<1x8x1024xbf16> to vector<8x1024xbf16>
    %366 = arith.extf %365 : vector<8x1024xbf16> to vector<8x1024xf32>
    %367 = arith.truncf %359 : vector<8x256xf32> to vector<8x256xbf16>
    %cst_92 = arith.constant dense<0.000000e+00> : vector<8x1024xf32>
    %368 = tpu.matmul %367, %3, %cst_92 {dimension_numbers = #tpu.dot_dimension_numbers<[1], [0], [0], [1], [0, 0, 1, 1], [], []>} : vector<8x256xbf16>, vector<256x1024xbf16>, vector<8x1024xf32> -> vector<8x1024xf32>
    %369 = arith.addf %366, %368 : vector<8x1024xf32>
    %370 = vector.extract_strided_slice %369 {offsets = [0, 0], sizes = [8, 256], strides = [1, 1]} : vector<8x1024xf32> to vector<8x256xf32>
    %371 = arith.negf %370 : vector<8x256xf32>
    %372 = math.exp %371 : vector<8x256xf32>
    %cst_93 = arith.constant 1.000000e+00 : f32
    %373 = vector.broadcast %cst_93 : f32 to vector<8x256xf32>
    %374 = arith.addf %373, %372 : vector<8x256xf32>
    %375 = arith.divf %373, %374 : vector<8x256xf32>
    %376 = vector.extract_strided_slice %369 {offsets = [0, 256], sizes = [8, 256], strides = [1, 1]} : vector<8x1024xf32> to vector<8x256xf32>
    %377 = arith.negf %376 : vector<8x256xf32>
    %378 = math.exp %377 : vector<8x256xf32>
    %cst_94 = arith.constant 1.000000e+00 : f32
    %379 = vector.broadcast %cst_94 : f32 to vector<8x256xf32>
    %380 = arith.addf %379, %378 : vector<8x256xf32>
    %381 = arith.divf %379, %380 : vector<8x256xf32>
    %382 = vector.extract_strided_slice %369 {offsets = [0, 512], sizes = [8, 256], strides = [1, 1]} : vector<8x1024xf32> to vector<8x256xf32>
    %383 = math.tanh %382 : vector<8x256xf32>
    %384 = vector.extract_strided_slice %369 {offsets = [0, 768], sizes = [8, 256], strides = [1, 1]} : vector<8x1024xf32> to vector<8x256xf32>
    %385 = arith.negf %384 : vector<8x256xf32>
    %386 = math.exp %385 : vector<8x256xf32>
    %cst_95 = arith.constant 1.000000e+00 : f32
    %387 = vector.broadcast %cst_95 : f32 to vector<8x256xf32>
    %388 = arith.addf %387, %386 : vector<8x256xf32>
    %389 = arith.divf %387, %388 : vector<8x256xf32>
    %390 = arith.mulf %381, %353 : vector<8x256xf32>
    %391 = arith.mulf %375, %383 : vector<8x256xf32>
    %392 = arith.addf %390, %391 : vector<8x256xf32>
    %393 = math.tanh %392 : vector<8x256xf32>
    %394 = arith.mulf %389, %393 : vector<8x256xf32>
    %c7_i32 = arith.constant 7 : i32
    %395 = arith.addi %6, %c7_i32 : i32
    %c24_i32_96 = arith.constant 24 : i32
    %396 = arith.cmpi slt, %395, %c24_i32_96 : i32
    %397 = arith.extui %396 : i1 to i32
    %398 = arith.sitofp %397 : i32 to f32
    %399 = vector.broadcast %398 : f32 to vector<8x256xf32>
    %400 = arith.mulf %399, %392 : vector<8x256xf32>
    %cst_97 = arith.constant 1.000000e+00 : f32
    %401 = arith.subf %cst_97, %398 : f32
    %402 = vector.broadcast %401 : f32 to vector<8x256xf32>
    %403 = arith.mulf %402, %353 : vector<8x256xf32>
    %404 = arith.addf %400, %403 : vector<8x256xf32>
    %405 = vector.broadcast %398 : f32 to vector<8x256xf32>
    %406 = arith.mulf %405, %394 : vector<8x256xf32>
    %cst_98 = arith.constant 1.000000e+00 : f32
    %407 = arith.subf %cst_98, %398 : f32
    %408 = vector.broadcast %407 : f32 to vector<8x256xf32>
    %409 = arith.mulf %408, %359 : vector<8x256xf32>
    %410 = arith.addf %406, %409 : vector<8x256xf32>
    %411 = arith.truncf %410 : vector<8x256xf32> to vector<8x256xbf16>
    %c7_99 = arith.constant 7 : index
    %c0_100 = arith.constant 0 : index
    %c0_101 = arith.constant 0 : index
    %412 = vector.load %arg4[%c7_99, %c0_100, %c0_101] : memref<16x8x256xbf16, #tpu.memory_space<vmem>>, vector<1x8x256xbf16>
    %413 = vector.shape_cast %412 : vector<1x8x256xbf16> to vector<8x256xbf16>
    %414 = vector.shape_cast %411 : vector<8x256xbf16> to vector<1x8x256xbf16>
    tpu.vector_store %arg4[%c7_99, %c0_100, %c0_101], %414 {strides = array<i32>} : memref<16x8x256xbf16, #tpu.memory_space<vmem>>, vector<1x8x256xbf16>,
    %c8 = arith.constant 8 : index
    %c0_102 = arith.constant 0 : index
    %c0_103 = arith.constant 0 : index
    %415 = vector.load %arg2[%c8, %c0_102, %c0_103] : memref<16x8x1024xbf16, #tpu.memory_space<vmem>>, vector<1x8x1024xbf16>
    %416 = vector.shape_cast %415 : vector<1x8x1024xbf16> to vector<8x1024xbf16>
    %417 = arith.extf %416 : vector<8x1024xbf16> to vector<8x1024xf32>
    %418 = arith.truncf %410 : vector<8x256xf32> to vector<8x256xbf16>
    %cst_104 = arith.constant dense<0.000000e+00> : vector<8x1024xf32>
    %419 = tpu.matmul %418, %3, %cst_104 {dimension_numbers = #tpu.dot_dimension_numbers<[1], [0], [0], [1], [0, 0, 1, 1], [], []>} : vector<8x256xbf16>, vector<256x1024xbf16>, vector<8x1024xf32> -> vector<8x1024xf32>
    %420 = arith.addf %417, %419 : vector<8x1024xf32>
    %421 = vector.extract_strided_slice %420 {offsets = [0, 0], sizes = [8, 256], strides = [1, 1]} : vector<8x1024xf32> to vector<8x256xf32>
    %422 = arith.negf %421 : vector<8x256xf32>
    %423 = math.exp %422 : vector<8x256xf32>
    %cst_105 = arith.constant 1.000000e+00 : f32
    %424 = vector.broadcast %cst_105 : f32 to vector<8x256xf32>
    %425 = arith.addf %424, %423 : vector<8x256xf32>
    %426 = arith.divf %424, %425 : vector<8x256xf32>
    %427 = vector.extract_strided_slice %420 {offsets = [0, 256], sizes = [8, 256], strides = [1, 1]} : vector<8x1024xf32> to vector<8x256xf32>
    %428 = arith.negf %427 : vector<8x256xf32>
    %429 = math.exp %428 : vector<8x256xf32>
    %cst_106 = arith.constant 1.000000e+00 : f32
    %430 = vector.broadcast %cst_106 : f32 to vector<8x256xf32>
    %431 = arith.addf %430, %429 : vector<8x256xf32>
    %432 = arith.divf %430, %431 : vector<8x256xf32>
    %433 = vector.extract_strided_slice %420 {offsets = [0, 512], sizes = [8, 256], strides = [1, 1]} : vector<8x1024xf32> to vector<8x256xf32>
    %434 = math.tanh %433 : vector<8x256xf32>
    %435 = vector.extract_strided_slice %420 {offsets = [0, 768], sizes = [8, 256], strides = [1, 1]} : vector<8x1024xf32> to vector<8x256xf32>
    %436 = arith.negf %435 : vector<8x256xf32>
    %437 = math.exp %436 : vector<8x256xf32>
    %cst_107 = arith.constant 1.000000e+00 : f32
    %438 = vector.broadcast %cst_107 : f32 to vector<8x256xf32>
    %439 = arith.addf %438, %437 : vector<8x256xf32>
    %440 = arith.divf %438, %439 : vector<8x256xf32>
    %441 = arith.mulf %432, %404 : vector<8x256xf32>
    %442 = arith.mulf %426, %434 : vector<8x256xf32>
    %443 = arith.addf %441, %442 : vector<8x256xf32>
    %444 = math.tanh %443 : vector<8x256xf32>
    %445 = arith.mulf %440, %444 : vector<8x256xf32>
    %c8_i32 = arith.constant 8 : i32
    %446 = arith.addi %6, %c8_i32 : i32
    %c24_i32_108 = arith.constant 24 : i32
    %447 = arith.cmpi slt, %446, %c24_i32_108 : i32
    %448 = arith.extui %447 : i1 to i32
    %449 = arith.sitofp %448 : i32 to f32
    %450 = vector.broadcast %449 : f32 to vector<8x256xf32>
    %451 = arith.mulf %450, %443 : vector<8x256xf32>
    %cst_109 = arith.constant 1.000000e+00 : f32
    %452 = arith.subf %cst_109, %449 : f32
    %453 = vector.broadcast %452 : f32 to vector<8x256xf32>
    %454 = arith.mulf %453, %404 : vector<8x256xf32>
    %455 = arith.addf %451, %454 : vector<8x256xf32>
    %456 = vector.broadcast %449 : f32 to vector<8x256xf32>
    %457 = arith.mulf %456, %445 : vector<8x256xf32>
    %cst_110 = arith.constant 1.000000e+00 : f32
    %458 = arith.subf %cst_110, %449 : f32
    %459 = vector.broadcast %458 : f32 to vector<8x256xf32>
    %460 = arith.mulf %459, %410 : vector<8x256xf32>
    %461 = arith.addf %457, %460 : vector<8x256xf32>
    %462 = arith.truncf %461 : vector<8x256xf32> to vector<8x256xbf16>
    %c8_111 = arith.constant 8 : index
    %c0_112 = arith.constant 0 : index
    %c0_113 = arith.constant 0 : index
    %463 = vector.load %arg4[%c8_111, %c0_112, %c0_113] : memref<16x8x256xbf16, #tpu.memory_space<vmem>>, vector<1x8x256xbf16>
    %464 = vector.shape_cast %463 : vector<1x8x256xbf16> to vector<8x256xbf16>
    %465 = vector.shape_cast %462 : vector<8x256xbf16> to vector<1x8x256xbf16>
    tpu.vector_store %arg4[%c8_111, %c0_112, %c0_113], %465 {strides = array<i32>} : memref<16x8x256xbf16, #tpu.memory_space<vmem>>, vector<1x8x256xbf16>,
    %c9 = arith.constant 9 : index
    %c0_114 = arith.constant 0 : index
    %c0_115 = arith.constant 0 : index
    %466 = vector.load %arg2[%c9, %c0_114, %c0_115] : memref<16x8x1024xbf16, #tpu.memory_space<vmem>>, vector<1x8x1024xbf16>
    %467 = vector.shape_cast %466 : vector<1x8x1024xbf16> to vector<8x1024xbf16>
    %468 = arith.extf %467 : vector<8x1024xbf16> to vector<8x1024xf32>
    %469 = arith.truncf %461 : vector<8x256xf32> to vector<8x256xbf16>
    %cst_116 = arith.constant dense<0.000000e+00> : vector<8x1024xf32>
    %470 = tpu.matmul %469, %3, %cst_116 {dimension_numbers = #tpu.dot_dimension_numbers<[1], [0], [0], [1], [0, 0, 1, 1], [], []>} : vector<8x256xbf16>, vector<256x1024xbf16>, vector<8x1024xf32> -> vector<8x1024xf32>
    %471 = arith.addf %468, %470 : vector<8x1024xf32>
    %472 = vector.extract_strided_slice %471 {offsets = [0, 0], sizes = [8, 256], strides = [1, 1]} : vector<8x1024xf32> to vector<8x256xf32>
    %473 = arith.negf %472 : vector<8x256xf32>
    %474 = math.exp %473 : vector<8x256xf32>
    %cst_117 = arith.constant 1.000000e+00 : f32
    %475 = vector.broadcast %cst_117 : f32 to vector<8x256xf32>
    %476 = arith.addf %475, %474 : vector<8x256xf32>
    %477 = arith.divf %475, %476 : vector<8x256xf32>
    %478 = vector.extract_strided_slice %471 {offsets = [0, 256], sizes = [8, 256], strides = [1, 1]} : vector<8x1024xf32> to vector<8x256xf32>
    %479 = arith.negf %478 : vector<8x256xf32>
    %480 = math.exp %479 : vector<8x256xf32>
    %cst_118 = arith.constant 1.000000e+00 : f32
    %481 = vector.broadcast %cst_118 : f32 to vector<8x256xf32>
    %482 = arith.addf %481, %480 : vector<8x256xf32>
    %483 = arith.divf %481, %482 : vector<8x256xf32>
    %484 = vector.extract_strided_slice %471 {offsets = [0, 512], sizes = [8, 256], strides = [1, 1]} : vector<8x1024xf32> to vector<8x256xf32>
    %485 = math.tanh %484 : vector<8x256xf32>
    %486 = vector.extract_strided_slice %471 {offsets = [0, 768], sizes = [8, 256], strides = [1, 1]} : vector<8x1024xf32> to vector<8x256xf32>
    %487 = arith.negf %486 : vector<8x256xf32>
    %488 = math.exp %487 : vector<8x256xf32>
    %cst_119 = arith.constant 1.000000e+00 : f32
    %489 = vector.broadcast %cst_119 : f32 to vector<8x256xf32>
    %490 = arith.addf %489, %488 : vector<8x256xf32>
    %491 = arith.divf %489, %490 : vector<8x256xf32>
    %492 = arith.mulf %483, %455 : vector<8x256xf32>
    %493 = arith.mulf %477, %485 : vector<8x256xf32>
    %494 = arith.addf %492, %493 : vector<8x256xf32>
    %495 = math.tanh %494 : vector<8x256xf32>
    %496 = arith.mulf %491, %495 : vector<8x256xf32>
    %c9_i32 = arith.constant 9 : i32
    %497 = arith.addi %6, %c9_i32 : i32
    %c24_i32_120 = arith.constant 24 : i32
    %498 = arith.cmpi slt, %497, %c24_i32_120 : i32
    %499 = arith.extui %498 : i1 to i32
    %500 = arith.sitofp %499 : i32 to f32
    %501 = vector.broadcast %500 : f32 to vector<8x256xf32>
    %502 = arith.mulf %501, %494 : vector<8x256xf32>
    %cst_121 = arith.constant 1.000000e+00 : f32
    %503 = arith.subf %cst_121, %500 : f32
    %504 = vector.broadcast %503 : f32 to vector<8x256xf32>
    %505 = arith.mulf %504, %455 : vector<8x256xf32>
    %506 = arith.addf %502, %505 : vector<8x256xf32>
    %507 = vector.broadcast %500 : f32 to vector<8x256xf32>
    %508 = arith.mulf %507, %496 : vector<8x256xf32>
    %cst_122 = arith.constant 1.000000e+00 : f32
    %509 = arith.subf %cst_122, %500 : f32
    %510 = vector.broadcast %509 : f32 to vector<8x256xf32>
    %511 = arith.mulf %510, %461 : vector<8x256xf32>
    %512 = arith.addf %508, %511 : vector<8x256xf32>
    %513 = arith.truncf %512 : vector<8x256xf32> to vector<8x256xbf16>
    %c9_123 = arith.constant 9 : index
    %c0_124 = arith.constant 0 : index
    %c0_125 = arith.constant 0 : index
    %514 = vector.load %arg4[%c9_123, %c0_124, %c0_125] : memref<16x8x256xbf16, #tpu.memory_space<vmem>>, vector<1x8x256xbf16>
    %515 = vector.shape_cast %514 : vector<1x8x256xbf16> to vector<8x256xbf16>
    %516 = vector.shape_cast %513 : vector<8x256xbf16> to vector<1x8x256xbf16>
    tpu.vector_store %arg4[%c9_123, %c0_124, %c0_125], %516 {strides = array<i32>} : memref<16x8x256xbf16, #tpu.memory_space<vmem>>, vector<1x8x256xbf16>,
    %c10 = arith.constant 10 : index
    %c0_126 = arith.constant 0 : index
    %c0_127 = arith.constant 0 : index
    %517 = vector.load %arg2[%c10, %c0_126, %c0_127] : memref<16x8x1024xbf16, #tpu.memory_space<vmem>>, vector<1x8x1024xbf16>
    %518 = vector.shape_cast %517 : vector<1x8x1024xbf16> to vector<8x1024xbf16>
    %519 = arith.extf %518 : vector<8x1024xbf16> to vector<8x1024xf32>
    %520 = arith.truncf %512 : vector<8x256xf32> to vector<8x256xbf16>
    %cst_128 = arith.constant dense<0.000000e+00> : vector<8x1024xf32>
    %521 = tpu.matmul %520, %3, %cst_128 {dimension_numbers = #tpu.dot_dimension_numbers<[1], [0], [0], [1], [0, 0, 1, 1], [], []>} : vector<8x256xbf16>, vector<256x1024xbf16>, vector<8x1024xf32> -> vector<8x1024xf32>
    %522 = arith.addf %519, %521 : vector<8x1024xf32>
    %523 = vector.extract_strided_slice %522 {offsets = [0, 0], sizes = [8, 256], strides = [1, 1]} : vector<8x1024xf32> to vector<8x256xf32>
    %524 = arith.negf %523 : vector<8x256xf32>
    %525 = math.exp %524 : vector<8x256xf32>
    %cst_129 = arith.constant 1.000000e+00 : f32
    %526 = vector.broadcast %cst_129 : f32 to vector<8x256xf32>
    %527 = arith.addf %526, %525 : vector<8x256xf32>
    %528 = arith.divf %526, %527 : vector<8x256xf32>
    %529 = vector.extract_strided_slice %522 {offsets = [0, 256], sizes = [8, 256], strides = [1, 1]} : vector<8x1024xf32> to vector<8x256xf32>
    %530 = arith.negf %529 : vector<8x256xf32>
    %531 = math.exp %530 : vector<8x256xf32>
    %cst_130 = arith.constant 1.000000e+00 : f32
    %532 = vector.broadcast %cst_130 : f32 to vector<8x256xf32>
    %533 = arith.addf %532, %531 : vector<8x256xf32>
    %534 = arith.divf %532, %533 : vector<8x256xf32>
    %535 = vector.extract_strided_slice %522 {offsets = [0, 512], sizes = [8, 256], strides = [1, 1]} : vector<8x1024xf32> to vector<8x256xf32>
    %536 = math.tanh %535 : vector<8x256xf32>
    %537 = vector.extract_strided_slice %522 {offsets = [0, 768], sizes = [8, 256], strides = [1, 1]} : vector<8x1024xf32> to vector<8x256xf32>
    %538 = arith.negf %537 : vector<8x256xf32>
    %539 = math.exp %538 : vector<8x256xf32>
    %cst_131 = arith.constant 1.000000e+00 : f32
    %540 = vector.broadcast %cst_131 : f32 to vector<8x256xf32>
    %541 = arith.addf %540, %539 : vector<8x256xf32>
    %542 = arith.divf %540, %541 : vector<8x256xf32>
    %543 = arith.mulf %534, %506 : vector<8x256xf32>
    %544 = arith.mulf %528, %536 : vector<8x256xf32>
    %545 = arith.addf %543, %544 : vector<8x256xf32>
    %546 = math.tanh %545 : vector<8x256xf32>
    %547 = arith.mulf %542, %546 : vector<8x256xf32>
    %c10_i32 = arith.constant 10 : i32
    %548 = arith.addi %6, %c10_i32 : i32
    %c24_i32_132 = arith.constant 24 : i32
    %549 = arith.cmpi slt, %548, %c24_i32_132 : i32
    %550 = arith.extui %549 : i1 to i32
    %551 = arith.sitofp %550 : i32 to f32
    %552 = vector.broadcast %551 : f32 to vector<8x256xf32>
    %553 = arith.mulf %552, %545 : vector<8x256xf32>
    %cst_133 = arith.constant 1.000000e+00 : f32
    %554 = arith.subf %cst_133, %551 : f32
    %555 = vector.broadcast %554 : f32 to vector<8x256xf32>
    %556 = arith.mulf %555, %506 : vector<8x256xf32>
    %557 = arith.addf %553, %556 : vector<8x256xf32>
    %558 = vector.broadcast %551 : f32 to vector<8x256xf32>
    %559 = arith.mulf %558, %547 : vector<8x256xf32>
    %cst_134 = arith.constant 1.000000e+00 : f32
    %560 = arith.subf %cst_134, %551 : f32
    %561 = vector.broadcast %560 : f32 to vector<8x256xf32>
    %562 = arith.mulf %561, %512 : vector<8x256xf32>
    %563 = arith.addf %559, %562 : vector<8x256xf32>
    %564 = arith.truncf %563 : vector<8x256xf32> to vector<8x256xbf16>
    %c10_135 = arith.constant 10 : index
    %c0_136 = arith.constant 0 : index
    %c0_137 = arith.constant 0 : index
    %565 = vector.load %arg4[%c10_135, %c0_136, %c0_137] : memref<16x8x256xbf16, #tpu.memory_space<vmem>>, vector<1x8x256xbf16>
    %566 = vector.shape_cast %565 : vector<1x8x256xbf16> to vector<8x256xbf16>
    %567 = vector.shape_cast %564 : vector<8x256xbf16> to vector<1x8x256xbf16>
    tpu.vector_store %arg4[%c10_135, %c0_136, %c0_137], %567 {strides = array<i32>} : memref<16x8x256xbf16, #tpu.memory_space<vmem>>, vector<1x8x256xbf16>,
    %c11 = arith.constant 11 : index
    %c0_138 = arith.constant 0 : index
    %c0_139 = arith.constant 0 : index
    %568 = vector.load %arg2[%c11, %c0_138, %c0_139] : memref<16x8x1024xbf16, #tpu.memory_space<vmem>>, vector<1x8x1024xbf16>
    %569 = vector.shape_cast %568 : vector<1x8x1024xbf16> to vector<8x1024xbf16>
    %570 = arith.extf %569 : vector<8x1024xbf16> to vector<8x1024xf32>
    %571 = arith.truncf %563 : vector<8x256xf32> to vector<8x256xbf16>
    %cst_140 = arith.constant dense<0.000000e+00> : vector<8x1024xf32>
    %572 = tpu.matmul %571, %3, %cst_140 {dimension_numbers = #tpu.dot_dimension_numbers<[1], [0], [0], [1], [0, 0, 1, 1], [], []>} : vector<8x256xbf16>, vector<256x1024xbf16>, vector<8x1024xf32> -> vector<8x1024xf32>
    %573 = arith.addf %570, %572 : vector<8x1024xf32>
    %574 = vector.extract_strided_slice %573 {offsets = [0, 0], sizes = [8, 256], strides = [1, 1]} : vector<8x1024xf32> to vector<8x256xf32>
    %575 = arith.negf %574 : vector<8x256xf32>
    %576 = math.exp %575 : vector<8x256xf32>
    %cst_141 = arith.constant 1.000000e+00 : f32
    %577 = vector.broadcast %cst_141 : f32 to vector<8x256xf32>
    %578 = arith.addf %577, %576 : vector<8x256xf32>
    %579 = arith.divf %577, %578 : vector<8x256xf32>
    %580 = vector.extract_strided_slice %573 {offsets = [0, 256], sizes = [8, 256], strides = [1, 1]} : vector<8x1024xf32> to vector<8x256xf32>
    %581 = arith.negf %580 : vector<8x256xf32>
    %582 = math.exp %581 : vector<8x256xf32>
    %cst_142 = arith.constant 1.000000e+00 : f32
    %583 = vector.broadcast %cst_142 : f32 to vector<8x256xf32>
    %584 = arith.addf %583, %582 : vector<8x256xf32>
    %585 = arith.divf %583, %584 : vector<8x256xf32>
    %586 = vector.extract_strided_slice %573 {offsets = [0, 512], sizes = [8, 256], strides = [1, 1]} : vector<8x1024xf32> to vector<8x256xf32>
    %587 = math.tanh %586 : vector<8x256xf32>
    %588 = vector.extract_strided_slice %573 {offsets = [0, 768], sizes = [8, 256], strides = [1, 1]} : vector<8x1024xf32> to vector<8x256xf32>
    %589 = arith.negf %588 : vector<8x256xf32>
    %590 = math.exp %589 : vector<8x256xf32>
    %cst_143 = arith.constant 1.000000e+00 : f32
    %591 = vector.broadcast %cst_143 : f32 to vector<8x256xf32>
    %592 = arith.addf %591, %590 : vector<8x256xf32>
    %593 = arith.divf %591, %592 : vector<8x256xf32>
    %594 = arith.mulf %585, %557 : vector<8x256xf32>
    %595 = arith.mulf %579, %587 : vector<8x256xf32>
    %596 = arith.addf %594, %595 : vector<8x256xf32>
    %597 = math.tanh %596 : vector<8x256xf32>
    %598 = arith.mulf %593, %597 : vector<8x256xf32>
    %c11_i32 = arith.constant 11 : i32
    %599 = arith.addi %6, %c11_i32 : i32
    %c24_i32_144 = arith.constant 24 : i32
    %600 = arith.cmpi slt, %599, %c24_i32_144 : i32
    %601 = arith.extui %600 : i1 to i32
    %602 = arith.sitofp %601 : i32 to f32
    %603 = vector.broadcast %602 : f32 to vector<8x256xf32>
    %604 = arith.mulf %603, %596 : vector<8x256xf32>
    %cst_145 = arith.constant 1.000000e+00 : f32
    %605 = arith.subf %cst_145, %602 : f32
    %606 = vector.broadcast %605 : f32 to vector<8x256xf32>
    %607 = arith.mulf %606, %557 : vector<8x256xf32>
    %608 = arith.addf %604, %607 : vector<8x256xf32>
    %609 = vector.broadcast %602 : f32 to vector<8x256xf32>
    %610 = arith.mulf %609, %598 : vector<8x256xf32>
    %cst_146 = arith.constant 1.000000e+00 : f32
    %611 = arith.subf %cst_146, %602 : f32
    %612 = vector.broadcast %611 : f32 to vector<8x256xf32>
    %613 = arith.mulf %612, %563 : vector<8x256xf32>
    %614 = arith.addf %610, %613 : vector<8x256xf32>
    %615 = arith.truncf %614 : vector<8x256xf32> to vector<8x256xbf16>
    %c11_147 = arith.constant 11 : index
    %c0_148 = arith.constant 0 : index
    %c0_149 = arith.constant 0 : index
    %616 = vector.load %arg4[%c11_147, %c0_148, %c0_149] : memref<16x8x256xbf16, #tpu.memory_space<vmem>>, vector<1x8x256xbf16>
    %617 = vector.shape_cast %616 : vector<1x8x256xbf16> to vector<8x256xbf16>
    %618 = vector.shape_cast %615 : vector<8x256xbf16> to vector<1x8x256xbf16>
    tpu.vector_store %arg4[%c11_147, %c0_148, %c0_149], %618 {strides = array<i32>} : memref<16x8x256xbf16, #tpu.memory_space<vmem>>, vector<1x8x256xbf16>,
    %c12 = arith.constant 12 : index
    %c0_150 = arith.constant 0 : index
    %c0_151 = arith.constant 0 : index
    %619 = vector.load %arg2[%c12, %c0_150, %c0_151] : memref<16x8x1024xbf16, #tpu.memory_space<vmem>>, vector<1x8x1024xbf16>
    %620 = vector.shape_cast %619 : vector<1x8x1024xbf16> to vector<8x1024xbf16>
    %621 = arith.extf %620 : vector<8x1024xbf16> to vector<8x1024xf32>
    %622 = arith.truncf %614 : vector<8x256xf32> to vector<8x256xbf16>
    %cst_152 = arith.constant dense<0.000000e+00> : vector<8x1024xf32>
    %623 = tpu.matmul %622, %3, %cst_152 {dimension_numbers = #tpu.dot_dimension_numbers<[1], [0], [0], [1], [0, 0, 1, 1], [], []>} : vector<8x256xbf16>, vector<256x1024xbf16>, vector<8x1024xf32> -> vector<8x1024xf32>
    %624 = arith.addf %621, %623 : vector<8x1024xf32>
    %625 = vector.extract_strided_slice %624 {offsets = [0, 0], sizes = [8, 256], strides = [1, 1]} : vector<8x1024xf32> to vector<8x256xf32>
    %626 = arith.negf %625 : vector<8x256xf32>
    %627 = math.exp %626 : vector<8x256xf32>
    %cst_153 = arith.constant 1.000000e+00 : f32
    %628 = vector.broadcast %cst_153 : f32 to vector<8x256xf32>
    %629 = arith.addf %628, %627 : vector<8x256xf32>
    %630 = arith.divf %628, %629 : vector<8x256xf32>
    %631 = vector.extract_strided_slice %624 {offsets = [0, 256], sizes = [8, 256], strides = [1, 1]} : vector<8x1024xf32> to vector<8x256xf32>
    %632 = arith.negf %631 : vector<8x256xf32>
    %633 = math.exp %632 : vector<8x256xf32>
    %cst_154 = arith.constant 1.000000e+00 : f32
    %634 = vector.broadcast %cst_154 : f32 to vector<8x256xf32>
    %635 = arith.addf %634, %633 : vector<8x256xf32>
    %636 = arith.divf %634, %635 : vector<8x256xf32>
    %637 = vector.extract_strided_slice %624 {offsets = [0, 512], sizes = [8, 256], strides = [1, 1]} : vector<8x1024xf32> to vector<8x256xf32>
    %638 = math.tanh %637 : vector<8x256xf32>
    %639 = vector.extract_strided_slice %624 {offsets = [0, 768], sizes = [8, 256], strides = [1, 1]} : vector<8x1024xf32> to vector<8x256xf32>
    %640 = arith.negf %639 : vector<8x256xf32>
    %641 = math.exp %640 : vector<8x256xf32>
    %cst_155 = arith.constant 1.000000e+00 : f32
    %642 = vector.broadcast %cst_155 : f32 to vector<8x256xf32>
    %643 = arith.addf %642, %641 : vector<8x256xf32>
    %644 = arith.divf %642, %643 : vector<8x256xf32>
    %645 = arith.mulf %636, %608 : vector<8x256xf32>
    %646 = arith.mulf %630, %638 : vector<8x256xf32>
    %647 = arith.addf %645, %646 : vector<8x256xf32>
    %648 = math.tanh %647 : vector<8x256xf32>
    %649 = arith.mulf %644, %648 : vector<8x256xf32>
    %c12_i32 = arith.constant 12 : i32
    %650 = arith.addi %6, %c12_i32 : i32
    %c24_i32_156 = arith.constant 24 : i32
    %651 = arith.cmpi slt, %650, %c24_i32_156 : i32
    %652 = arith.extui %651 : i1 to i32
    %653 = arith.sitofp %652 : i32 to f32
    %654 = vector.broadcast %653 : f32 to vector<8x256xf32>
    %655 = arith.mulf %654, %647 : vector<8x256xf32>
    %cst_157 = arith.constant 1.000000e+00 : f32
    %656 = arith.subf %cst_157, %653 : f32
    %657 = vector.broadcast %656 : f32 to vector<8x256xf32>
    %658 = arith.mulf %657, %608 : vector<8x256xf32>
    %659 = arith.addf %655, %658 : vector<8x256xf32>
    %660 = vector.broadcast %653 : f32 to vector<8x256xf32>
    %661 = arith.mulf %660, %649 : vector<8x256xf32>
    %cst_158 = arith.constant 1.000000e+00 : f32
    %662 = arith.subf %cst_158, %653 : f32
    %663 = vector.broadcast %662 : f32 to vector<8x256xf32>
    %664 = arith.mulf %663, %614 : vector<8x256xf32>
    %665 = arith.addf %661, %664 : vector<8x256xf32>
    %666 = arith.truncf %665 : vector<8x256xf32> to vector<8x256xbf16>
    %c12_159 = arith.constant 12 : index
    %c0_160 = arith.constant 0 : index
    %c0_161 = arith.constant 0 : index
    %667 = vector.load %arg4[%c12_159, %c0_160, %c0_161] : memref<16x8x256xbf16, #tpu.memory_space<vmem>>, vector<1x8x256xbf16>
    %668 = vector.shape_cast %667 : vector<1x8x256xbf16> to vector<8x256xbf16>
    %669 = vector.shape_cast %666 : vector<8x256xbf16> to vector<1x8x256xbf16>
    tpu.vector_store %arg4[%c12_159, %c0_160, %c0_161], %669 {strides = array<i32>} : memref<16x8x256xbf16, #tpu.memory_space<vmem>>, vector<1x8x256xbf16>,
    %c13 = arith.constant 13 : index
    %c0_162 = arith.constant 0 : index
    %c0_163 = arith.constant 0 : index
    %670 = vector.load %arg2[%c13, %c0_162, %c0_163] : memref<16x8x1024xbf16, #tpu.memory_space<vmem>>, vector<1x8x1024xbf16>
    %671 = vector.shape_cast %670 : vector<1x8x1024xbf16> to vector<8x1024xbf16>
    %672 = arith.extf %671 : vector<8x1024xbf16> to vector<8x1024xf32>
    %673 = arith.truncf %665 : vector<8x256xf32> to vector<8x256xbf16>
    %cst_164 = arith.constant dense<0.000000e+00> : vector<8x1024xf32>
    %674 = tpu.matmul %673, %3, %cst_164 {dimension_numbers = #tpu.dot_dimension_numbers<[1], [0], [0], [1], [0, 0, 1, 1], [], []>} : vector<8x256xbf16>, vector<256x1024xbf16>, vector<8x1024xf32> -> vector<8x1024xf32>
    %675 = arith.addf %672, %674 : vector<8x1024xf32>
    %676 = vector.extract_strided_slice %675 {offsets = [0, 0], sizes = [8, 256], strides = [1, 1]} : vector<8x1024xf32> to vector<8x256xf32>
    %677 = arith.negf %676 : vector<8x256xf32>
    %678 = math.exp %677 : vector<8x256xf32>
    %cst_165 = arith.constant 1.000000e+00 : f32
    %679 = vector.broadcast %cst_165 : f32 to vector<8x256xf32>
    %680 = arith.addf %679, %678 : vector<8x256xf32>
    %681 = arith.divf %679, %680 : vector<8x256xf32>
    %682 = vector.extract_strided_slice %675 {offsets = [0, 256], sizes = [8, 256], strides = [1, 1]} : vector<8x1024xf32> to vector<8x256xf32>
    %683 = arith.negf %682 : vector<8x256xf32>
    %684 = math.exp %683 : vector<8x256xf32>
    %cst_166 = arith.constant 1.000000e+00 : f32
    %685 = vector.broadcast %cst_166 : f32 to vector<8x256xf32>
    %686 = arith.addf %685, %684 : vector<8x256xf32>
    %687 = arith.divf %685, %686 : vector<8x256xf32>
    %688 = vector.extract_strided_slice %675 {offsets = [0, 512], sizes = [8, 256], strides = [1, 1]} : vector<8x1024xf32> to vector<8x256xf32>
    %689 = math.tanh %688 : vector<8x256xf32>
    %690 = vector.extract_strided_slice %675 {offsets = [0, 768], sizes = [8, 256], strides = [1, 1]} : vector<8x1024xf32> to vector<8x256xf32>
    %691 = arith.negf %690 : vector<8x256xf32>
    %692 = math.exp %691 : vector<8x256xf32>
    %cst_167 = arith.constant 1.000000e+00 : f32
    %693 = vector.broadcast %cst_167 : f32 to vector<8x256xf32>
    %694 = arith.addf %693, %692 : vector<8x256xf32>
    %695 = arith.divf %693, %694 : vector<8x256xf32>
    %696 = arith.mulf %687, %659 : vector<8x256xf32>
    %697 = arith.mulf %681, %689 : vector<8x256xf32>
    %698 = arith.addf %696, %697 : vector<8x256xf32>
    %699 = math.tanh %698 : vector<8x256xf32>
    %700 = arith.mulf %695, %699 : vector<8x256xf32>
    %c13_i32 = arith.constant 13 : i32
    %701 = arith.addi %6, %c13_i32 : i32
    %c24_i32_168 = arith.constant 24 : i32
    %702 = arith.cmpi slt, %701, %c24_i32_168 : i32
    %703 = arith.extui %702 : i1 to i32
    %704 = arith.sitofp %703 : i32 to f32
    %705 = vector.broadcast %704 : f32 to vector<8x256xf32>
    %706 = arith.mulf %705, %698 : vector<8x256xf32>
    %cst_169 = arith.constant 1.000000e+00 : f32
    %707 = arith.subf %cst_169, %704 : f32
    %708 = vector.broadcast %707 : f32 to vector<8x256xf32>
    %709 = arith.mulf %708, %659 : vector<8x256xf32>
    %710 = arith.addf %706, %709 : vector<8x256xf32>
    %711 = vector.broadcast %704 : f32 to vector<8x256xf32>
    %712 = arith.mulf %711, %700 : vector<8x256xf32>
    %cst_170 = arith.constant 1.000000e+00 : f32
    %713 = arith.subf %cst_170, %704 : f32
    %714 = vector.broadcast %713 : f32 to vector<8x256xf32>
    %715 = arith.mulf %714, %665 : vector<8x256xf32>
    %716 = arith.addf %712, %715 : vector<8x256xf32>
    %717 = arith.truncf %716 : vector<8x256xf32> to vector<8x256xbf16>
    %c13_171 = arith.constant 13 : index
    %c0_172 = arith.constant 0 : index
    %c0_173 = arith.constant 0 : index
    %718 = vector.load %arg4[%c13_171, %c0_172, %c0_173] : memref<16x8x256xbf16, #tpu.memory_space<vmem>>, vector<1x8x256xbf16>
    %719 = vector.shape_cast %718 : vector<1x8x256xbf16> to vector<8x256xbf16>
    %720 = vector.shape_cast %717 : vector<8x256xbf16> to vector<1x8x256xbf16>
    tpu.vector_store %arg4[%c13_171, %c0_172, %c0_173], %720 {strides = array<i32>} : memref<16x8x256xbf16, #tpu.memory_space<vmem>>, vector<1x8x256xbf16>,
    %c14 = arith.constant 14 : index
    %c0_174 = arith.constant 0 : index
    %c0_175 = arith.constant 0 : index
    %721 = vector.load %arg2[%c14, %c0_174, %c0_175] : memref<16x8x1024xbf16, #tpu.memory_space<vmem>>, vector<1x8x1024xbf16>
    %722 = vector.shape_cast %721 : vector<1x8x1024xbf16> to vector<8x1024xbf16>
    %723 = arith.extf %722 : vector<8x1024xbf16> to vector<8x1024xf32>
    %724 = arith.truncf %716 : vector<8x256xf32> to vector<8x256xbf16>
    %cst_176 = arith.constant dense<0.000000e+00> : vector<8x1024xf32>
    %725 = tpu.matmul %724, %3, %cst_176 {dimension_numbers = #tpu.dot_dimension_numbers<[1], [0], [0], [1], [0, 0, 1, 1], [], []>} : vector<8x256xbf16>, vector<256x1024xbf16>, vector<8x1024xf32> -> vector<8x1024xf32>
    %726 = arith.addf %723, %725 : vector<8x1024xf32>
    %727 = vector.extract_strided_slice %726 {offsets = [0, 0], sizes = [8, 256], strides = [1, 1]} : vector<8x1024xf32> to vector<8x256xf32>
    %728 = arith.negf %727 : vector<8x256xf32>
    %729 = math.exp %728 : vector<8x256xf32>
    %cst_177 = arith.constant 1.000000e+00 : f32
    %730 = vector.broadcast %cst_177 : f32 to vector<8x256xf32>
    %731 = arith.addf %730, %729 : vector<8x256xf32>
    %732 = arith.divf %730, %731 : vector<8x256xf32>
    %733 = vector.extract_strided_slice %726 {offsets = [0, 256], sizes = [8, 256], strides = [1, 1]} : vector<8x1024xf32> to vector<8x256xf32>
    %734 = arith.negf %733 : vector<8x256xf32>
    %735 = math.exp %734 : vector<8x256xf32>
    %cst_178 = arith.constant 1.000000e+00 : f32
    %736 = vector.broadcast %cst_178 : f32 to vector<8x256xf32>
    %737 = arith.addf %736, %735 : vector<8x256xf32>
    %738 = arith.divf %736, %737 : vector<8x256xf32>
    %739 = vector.extract_strided_slice %726 {offsets = [0, 512], sizes = [8, 256], strides = [1, 1]} : vector<8x1024xf32> to vector<8x256xf32>
    %740 = math.tanh %739 : vector<8x256xf32>
    %741 = vector.extract_strided_slice %726 {offsets = [0, 768], sizes = [8, 256], strides = [1, 1]} : vector<8x1024xf32> to vector<8x256xf32>
    %742 = arith.negf %741 : vector<8x256xf32>
    %743 = math.exp %742 : vector<8x256xf32>
    %cst_179 = arith.constant 1.000000e+00 : f32
    %744 = vector.broadcast %cst_179 : f32 to vector<8x256xf32>
    %745 = arith.addf %744, %743 : vector<8x256xf32>
    %746 = arith.divf %744, %745 : vector<8x256xf32>
    %747 = arith.mulf %738, %710 : vector<8x256xf32>
    %748 = arith.mulf %732, %740 : vector<8x256xf32>
    %749 = arith.addf %747, %748 : vector<8x256xf32>
    %750 = math.tanh %749 : vector<8x256xf32>
    %751 = arith.mulf %746, %750 : vector<8x256xf32>
    %c14_i32 = arith.constant 14 : i32
    %752 = arith.addi %6, %c14_i32 : i32
    %c24_i32_180 = arith.constant 24 : i32
    %753 = arith.cmpi slt, %752, %c24_i32_180 : i32
    %754 = arith.extui %753 : i1 to i32
    %755 = arith.sitofp %754 : i32 to f32
    %756 = vector.broadcast %755 : f32 to vector<8x256xf32>
    %757 = arith.mulf %756, %749 : vector<8x256xf32>
    %cst_181 = arith.constant 1.000000e+00 : f32
    %758 = arith.subf %cst_181, %755 : f32
    %759 = vector.broadcast %758 : f32 to vector<8x256xf32>
    %760 = arith.mulf %759, %710 : vector<8x256xf32>
    %761 = arith.addf %757, %760 : vector<8x256xf32>
    %762 = vector.broadcast %755 : f32 to vector<8x256xf32>
    %763 = arith.mulf %762, %751 : vector<8x256xf32>
    %cst_182 = arith.constant 1.000000e+00 : f32
    %764 = arith.subf %cst_182, %755 : f32
    %765 = vector.broadcast %764 : f32 to vector<8x256xf32>
    %766 = arith.mulf %765, %716 : vector<8x256xf32>
    %767 = arith.addf %763, %766 : vector<8x256xf32>
    %768 = arith.truncf %767 : vector<8x256xf32> to vector<8x256xbf16>
    %c14_183 = arith.constant 14 : index
    %c0_184 = arith.constant 0 : index
    %c0_185 = arith.constant 0 : index
    %769 = vector.load %arg4[%c14_183, %c0_184, %c0_185] : memref<16x8x256xbf16, #tpu.memory_space<vmem>>, vector<1x8x256xbf16>
    %770 = vector.shape_cast %769 : vector<1x8x256xbf16> to vector<8x256xbf16>
    %771 = vector.shape_cast %768 : vector<8x256xbf16> to vector<1x8x256xbf16>
    tpu.vector_store %arg4[%c14_183, %c0_184, %c0_185], %771 {strides = array<i32>} : memref<16x8x256xbf16, #tpu.memory_space<vmem>>, vector<1x8x256xbf16>,
    %c15 = arith.constant 15 : index
    %c0_186 = arith.constant 0 : index
    %c0_187 = arith.constant 0 : index
    %772 = vector.load %arg2[%c15, %c0_186, %c0_187] : memref<16x8x1024xbf16, #tpu.memory_space<vmem>>, vector<1x8x1024xbf16>
    %773 = vector.shape_cast %772 : vector<1x8x1024xbf16> to vector<8x1024xbf16>
    %774 = arith.extf %773 : vector<8x1024xbf16> to vector<8x1024xf32>
    %775 = arith.truncf %767 : vector<8x256xf32> to vector<8x256xbf16>
    %cst_188 = arith.constant dense<0.000000e+00> : vector<8x1024xf32>
    %776 = tpu.matmul %775, %3, %cst_188 {dimension_numbers = #tpu.dot_dimension_numbers<[1], [0], [0], [1], [0, 0, 1, 1], [], []>} : vector<8x256xbf16>, vector<256x1024xbf16>, vector<8x1024xf32> -> vector<8x1024xf32>
    %777 = arith.addf %774, %776 : vector<8x1024xf32>
    %778 = vector.extract_strided_slice %777 {offsets = [0, 0], sizes = [8, 256], strides = [1, 1]} : vector<8x1024xf32> to vector<8x256xf32>
    %779 = arith.negf %778 : vector<8x256xf32>
    %780 = math.exp %779 : vector<8x256xf32>
    %cst_189 = arith.constant 1.000000e+00 : f32
    %781 = vector.broadcast %cst_189 : f32 to vector<8x256xf32>
    %782 = arith.addf %781, %780 : vector<8x256xf32>
    %783 = arith.divf %781, %782 : vector<8x256xf32>
    %784 = vector.extract_strided_slice %777 {offsets = [0, 256], sizes = [8, 256], strides = [1, 1]} : vector<8x1024xf32> to vector<8x256xf32>
    %785 = arith.negf %784 : vector<8x256xf32>
    %786 = math.exp %785 : vector<8x256xf32>
    %cst_190 = arith.constant 1.000000e+00 : f32
    %787 = vector.broadcast %cst_190 : f32 to vector<8x256xf32>
    %788 = arith.addf %787, %786 : vector<8x256xf32>
    %789 = arith.divf %787, %788 : vector<8x256xf32>
    %790 = vector.extract_strided_slice %777 {offsets = [0, 512], sizes = [8, 256], strides = [1, 1]} : vector<8x1024xf32> to vector<8x256xf32>
    %791 = math.tanh %790 : vector<8x256xf32>
    %792 = vector.extract_strided_slice %777 {offsets = [0, 768], sizes = [8, 256], strides = [1, 1]} : vector<8x1024xf32> to vector<8x256xf32>
    %793 = arith.negf %792 : vector<8x256xf32>
    %794 = math.exp %793 : vector<8x256xf32>
    %cst_191 = arith.constant 1.000000e+00 : f32
    %795 = vector.broadcast %cst_191 : f32 to vector<8x256xf32>
    %796 = arith.addf %795, %794 : vector<8x256xf32>
    %797 = arith.divf %795, %796 : vector<8x256xf32>
    %798 = arith.mulf %789, %761 : vector<8x256xf32>
    %799 = arith.mulf %783, %791 : vector<8x256xf32>
    %800 = arith.addf %798, %799 : vector<8x256xf32>
    %801 = math.tanh %800 : vector<8x256xf32>
    %802 = arith.mulf %797, %801 : vector<8x256xf32>
    %c15_i32 = arith.constant 15 : i32
    %803 = arith.addi %6, %c15_i32 : i32
    %c24_i32_192 = arith.constant 24 : i32
    %804 = arith.cmpi slt, %803, %c24_i32_192 : i32
    %805 = arith.extui %804 : i1 to i32
    %806 = arith.sitofp %805 : i32 to f32
    %807 = vector.broadcast %806 : f32 to vector<8x256xf32>
    %808 = arith.mulf %807, %800 : vector<8x256xf32>
    %cst_193 = arith.constant 1.000000e+00 : f32
    %809 = arith.subf %cst_193, %806 : f32
    %810 = vector.broadcast %809 : f32 to vector<8x256xf32>
    %811 = arith.mulf %810, %761 : vector<8x256xf32>
    %812 = arith.addf %808, %811 : vector<8x256xf32>
    %813 = vector.broadcast %806 : f32 to vector<8x256xf32>
    %814 = arith.mulf %813, %802 : vector<8x256xf32>
    %cst_194 = arith.constant 1.000000e+00 : f32
    %815 = arith.subf %cst_194, %806 : f32
    %816 = vector.broadcast %815 : f32 to vector<8x256xf32>
    %817 = arith.mulf %816, %767 : vector<8x256xf32>
    %818 = arith.addf %814, %817 : vector<8x256xf32>
    %819 = arith.truncf %818 : vector<8x256xf32> to vector<8x256xbf16>
    %c15_195 = arith.constant 15 : index
    %c0_196 = arith.constant 0 : index
    %c0_197 = arith.constant 0 : index
    %820 = vector.load %arg4[%c15_195, %c0_196, %c0_197] : memref<16x8x256xbf16, #tpu.memory_space<vmem>>, vector<1x8x256xbf16>
    %821 = vector.shape_cast %820 : vector<1x8x256xbf16> to vector<8x256xbf16>
    %822 = vector.shape_cast %819 : vector<8x256xbf16> to vector<1x8x256xbf16>
    tpu.vector_store %arg4[%c15_195, %c0_196, %c0_197], %822 {strides = array<i32>} : memref<16x8x256xbf16, #tpu.memory_space<vmem>>, vector<1x8x256xbf16>,
    %c0_198 = arith.constant 0 : index
    %c0_199 = arith.constant 0 : index
    %823 = vector.load %arg7[%c0_198, %c0_199] : memref<8x256xf32, #tpu.memory_space<vmem>>, vector<8x256xf32>
    tpu.vector_store %arg7[%c0_198, %c0_199], %818 {strides = array<i32>} : memref<8x256xf32, #tpu.memory_space<vmem>>, vector<8x256xf32>,
    %c0_200 = arith.constant 0 : index
    %c0_201 = arith.constant 0 : index
    %824 = vector.load %arg8[%c0_200, %c0_201] : memref<8x256xf32, #tpu.memory_space<vmem>>, vector<8x256xf32>
    tpu.vector_store %arg8[%c0_200, %c0_201], %812 {strides = array<i32>} : memref<8x256xf32, #tpu.memory_space<vmem>>, vector<8x256xf32>,
    %c1_i32_202 = arith.constant 1 : i32
    %825 = arith.cmpi eq, %arg1, %c1_i32_202 : i32
    %826 = arith.extui %825 : i1 to i32
    %c0_i32_203 = arith.constant 0 : i32
    %827 = arith.cmpi ne, %826, %c0_i32_203 : i32
    scf.if %827 {
      %c0_204 = arith.constant 0 : index
      %c0_205 = arith.constant 0 : index
      %828 = vector.load %arg5[%c0_204, %c0_205] : memref<8x256xf32, #tpu.memory_space<vmem>>, vector<8x256xf32>
      tpu.vector_store %arg5[%c0_204, %c0_205], %818 {strides = array<i32>} : memref<8x256xf32, #tpu.memory_space<vmem>>, vector<8x256xf32>,
      %c0_206 = arith.constant 0 : index
      %c0_207 = arith.constant 0 : index
      %829 = vector.load %arg6[%c0_206, %c0_207] : memref<8x256xf32, #tpu.memory_space<vmem>>, vector<8x256xf32>
      tpu.vector_store %arg6[%c0_206, %c0_207], %812 {strides = array<i32>} : memref<8x256xf32, #tpu.memory_space<vmem>>, vector<8x256xf32>,
    } else {
    }
    return
  }
  func.func @transform_0(%arg0: i32, %arg1: i32) -> (i32, i32, i32) {
    %c0_i32 = arith.constant 0 : i32
    %c0_i32_0 = arith.constant 0 : i32
    return %arg1, %arg0, %c0_i32 : i32, i32, i32
  }
  func.func @transform_1(%arg0: i32, %arg1: i32) -> (i32, i32) {
    %c0_i32 = arith.constant 0 : i32
    %c0_i32_0 = arith.constant 0 : i32
    %c0_i32_1 = arith.constant 0 : i32
    return %c0_i32, %c0_i32_0 : i32, i32
  }
  func.func @transform_2(%arg0: i32, %arg1: i32) -> (i32, i32, i32) {
    %c0_i32 = arith.constant 0 : i32
    %c0_i32_0 = arith.constant 0 : i32
    return %arg1, %arg0, %c0_i32 : i32, i32, i32
  }
  func.func @transform_3(%arg0: i32, %arg1: i32) -> (i32, i32) {
    %c0_i32 = arith.constant 0 : i32
    %c0_i32_0 = arith.constant 0 : i32
    return %arg0, %c0_i32 : i32, i32
  }
  func.func @transform_4(%arg0: i32, %arg1: i32) -> (i32, i32) {
    %c0_i32 = arith.constant 0 : i32
    %c0_i32_0 = arith.constant 0 : i32
    return %arg0, %c0_i32 : i32, i32
  }
}

</mosaic_0001>

<llo_original>
// kernel: tpu_custom_call.1
$region0: #{tpu_custom_call.1}
  #allocation0 [shape = 'u32[]', space=smem, size = 0x4, offset = 0x4, fixed_abs, tag = 'smem constant byte address 0x4 - core index']
  #allocation1 [shape = 'u32[72,128]{1,0:T(1,128)}', space=vmem, size = 0x9000, scoped, tag = 'internal scratch']
  #allocation2 [shape = 'f32[8,256]{1,0:T(8,128)}', space=vmem, size = 0x2000, scoped, tag = 'scratch operand']
  #allocation3 [shape = 'f32[8,256]{1,0:T(8,128)}', space=vmem, size = 0x2000, scoped, tag = 'scratch operand']
  %s0 = inlined_call_operand.hbm [shape: bf16[32,8,1024], index: 0, kind: input, shape index: {}]
  %s1 = inlined_call_operand.hbm [shape: bf16[256,1024], index: 1, kind: input, shape index: {}]
  %s2 = inlined_call_operand.hbm [shape: bf16[32,8,256], index: 2, kind: output, shape index: {0}]
  %s3 = inlined_call_operand.hbm [shape: f32[8,256], index: 3, kind: output, shape index: {1}]
  %s4 = inlined_call_operand.hbm [shape: f32[8,256], index: 4, kind: output, shape index: {2}]
  %5 = xla_tuple %s2, %s3, %s4
  %s6 = sld [smem:[#allocation0]]
  $region73: #{tpu_custom_call.1} parent=0
    _
  %s8 = ssub.s32 1, %s6
  %s9 = scalar_select 0, %s8, %s6
  $region1: #{tpu_custom_call.1} parent=0
    #allocation4 [shape = 'u8[524288]{0}', space=vmem, size = 0x80000, scoped, tag = 'input window, operand 0']
    #allocation5 [shape = 's32[2]{0}', space=sflag, size = 0x8, scoped, tag = 'scoped memory for tpu_custom_call.1']
    #allocation6 [shape = 's32[2]{0}', space=sflag, size = 0x8, scoped, tag = 'scoped memory for tpu_custom_call.1']
    #allocation7 [shape = 'u8[524288]{0}', space=vmem, size = 0x80000, scoped, tag = 'input window, operand 1, single buffered']
    #allocation8 [shape = 's32[1]{0}', space=sflag, size = 0x4, scoped, tag = 'scoped memory for tpu_custom_call.1']
    #allocation9 [shape = 'u8[131072]{0}', space=vmem, size = 0x20000, scoped, tag = 'output window, operand 0']
    #allocation10 [shape = 'u8[8192]{0}', space=vmem, size = 0x2000, scoped, tag = 'output window, operand 1, single buffered']
    #allocation11 [shape = 's32[1]{0}', space=sflag, size = 0x4, scoped, tag = 'scoped memory for tpu_custom_call.1']
    #allocation12 [shape = 'u8[8192]{0}', space=vmem, size = 0x2000, scoped, tag = 'output window, operand 2, single buffered']
    %10 = vsyncpa [#allocation5], 0
    %s11 = scalar_lea.sflag [#allocation5], 1
    %12 = vsyncpa %s11, 0
    %13 = vsyncpa [#allocation8], 0
    %14 = vsyncpa [#allocation6], 0
    %s15 = scalar_lea.sflag [#allocation6], 1
    %16 = vsyncpa %s15, 0
    %17 = vsyncpa [#allocation11], 0
    loop: start=0, step=1, limit=4
    $region2: #{tpu_custom_call.1} parent=1 // loop_pre_header
      _
    $region3: #{tpu_custom_call.1} parent=1 // loop_header
      %s19 = sphi 0, %s23
      %p20 = scmp.ge.s32.totalorder %s19, 4
      %s26 = sphi 0, %s38
      %s27 = sphi 0, %s34
      %s28 = sphi 0, %s26
      %s29 = sphi 0, %s27
      %s30 = sphi 0, %s28
      %s31 = sphi 0, %s29
      %s43 = sphi 0, %s45
      %s46 = sphi 0, %s43
      %s47 = sphi 0, %s46
      %s63 = sphi 0, %s47
      %s67 = sphi 0, %s67
      %s69 = sphi 0, %s67
      %s70 = sphi 0, %s69
      %s84 = sphi 0, %s70
      %s92 = sphi 0, %s94
      %s95 = sphi 0, %s92
      %s96 = sphi 0, %s95
      %s112 = sphi 0, %s96
      %s118 = sphi 0, %s120
      %s121 = sphi 0, %s118
      %s122 = sphi 0, %s121
      %s138 = sphi 0, %s122
      %s144 = sphi 0, %s146
      %s147 = sphi 0, %s144
      %s148 = sphi 0, %s147
      %s164 = sphi 0, %s148
    $region4: #{tpu_custom_call.1} parent=1 // loop_header_branch
      %22 = sbr.rel (%p20) target = $region8
    $region5: #{tpu_custom_call.1} parent=1 // loop_body
      %s24 = ssub.s32 %s19, 1
      %s25 = ssub.s32 %s19, 2
      %s32 = sadd.s32 1, %s27
      %p33 = scmp.ge.s32.totalorder %s32, 2
      %s34 = scalar_select %p33, 0, %s32
      %s35 = sadd.s32 1, %s26
      %s36 = scalar_select %p33, %s35, %s26
      %p37 = scmp.ge.s32.totalorder %s36, 1
      %s38 = scalar_select %p37, 0, %s36
      %s39 = ssub.s32 %s27, %s34
      %s40 = ssub.s32 %s26, %s38
      %s41 = sor.u32 %s39, %s40
      %p42 = scmp.eq.s32.totalorder %s41, 0
      %s44 = sadd.s32 %s43, 1
      %s45 = scalar_select %p42, %s43, %s44
      %p48 = pneg %p42
      %p49 = scmp.eq.s32.totalorder %s19, 1
      %p50 = por %p48, %p49
      %p51 = scmp.ne.s32.totalorder %s43, %s46
      %p52 = scmp.eq.s32.totalorder %s19, 0
      %p53 = por %p51, %p52
      %p54 = scmp.ne.s32.totalorder %s43, %s46
      %p55 = scmp.eq.s32.totalorder %s24, 1
      %p56 = por %p54, %p55
      %p57 = scmp.ne.s32.totalorder %s46, %s47
      %p58 = scmp.eq.s32.totalorder %s24, 0
      %p59 = por %p57, %p58
      %p60 = scmp.ne.s32.totalorder %s46, %s47
      %p61 = scmp.eq.s32.totalorder %s25, 1
      %p62 = por %p60, %p61
      %p64 = scmp.ne.s32.totalorder %s47, %s63
      %p65 = scmp.eq.s32.totalorder %s25, 0
      %p66 = por %p64, %p65
      %s68 = sadd.s32 %s67, 1
      %p71 = scmp.eq.s32.totalorder %s19, 1
      %p72 = scmp.ne.s32.totalorder %s67, %s69
      %p73 = scmp.eq.s32.totalorder %s19, 0
      %p74 = por %p72, %p73
      %p75 = scmp.ne.s32.totalorder %s67, %s69
      %p76 = scmp.eq.s32.totalorder %s24, 1
      %p77 = por %p75, %p76
      %p78 = scmp.ne.s32.totalorder %s69, %s70
      %p79 = scmp.eq.s32.totalorder %s24, 0
      %p80 = por %p78, %p79
      %p81 = scmp.ne.s32.totalorder %s69, %s70
      %p82 = scmp.eq.s32.totalorder %s25, 1
      %p83 = por %p81, %p82
      %p85 = scmp.ne.s32.totalorder %s70, %s84
      %p86 = scmp.eq.s32.totalorder %s25, 0
      %p87 = por %p85, %p86
      %s88 = ssub.s32 %s27, %s34
      %s89 = ssub.s32 %s26, %s38
      %s90 = sor.u32 %s88, %s89
      %p91 = scmp.eq.s32.totalorder %s90, 0
      %s93 = sadd.s32 %s92, 1
      %s94 = scalar_select %p91, %s92, %s93
      %p97 = pneg %p91
      %p98 = scmp.eq.s32.totalorder %s19, 1
      %p99 = por %p97, %p98
      %p100 = scmp.ne.s32.totalorder %s92, %s95
      %p101 = scmp.eq.s32.totalorder %s19, 0
      %p102 = por %p100, %p101
      %p103 = scmp.ne.s32.totalorder %s92, %s95
      %p104 = scmp.eq.s32.totalorder %s24, 1
      %p105 = por %p103, %p104
      %p106 = scmp.ne.s32.totalorder %s95, %s96
      %p107 = scmp.eq.s32.totalorder %s24, 0
      %p108 = por %p106, %p107
      %p109 = scmp.ne.s32.totalorder %s95, %s96
      %p110 = scmp.eq.s32.totalorder %s25, 1
      %p111 = por %p109, %p110
      %p113 = scmp.ne.s32.totalorder %s96, %s112
      %p114 = scmp.eq.s32.totalorder %s25, 0
      %p115 = por %p113, %p114
      %s116 = ssub.s32 %s26, %s38
      %p117 = scmp.eq.s32.totalorder %s116, 0
      %s119 = sadd.s32 %s118, 1
      %s120 = scalar_select %p117, %s118, %s119
      %p123 = pneg %p117
      %p124 = scmp.eq.s32.totalorder %s19, 1
      %p125 = por %p123, %p124
      %p126 = scmp.ne.s32.totalorder %s118, %s121
      %p127 = scmp.eq.s32.totalorder %s19, 0
      %p128 = por %p126, %p127
      %p129 = scmp.ne.s32.totalorder %s118, %s121
      %p130 = scmp.eq.s32.totalorder %s24, 1
      %p131 = por %p129, %p130
      %p132 = scmp.ne.s32.totalorder %s121, %s122
      %p133 = scmp.eq.s32.totalorder %s24, 0
      %p134 = por %p132, %p133
      %p135 = scmp.ne.s32.totalorder %s121, %s122
      %p136 = scmp.eq.s32.totalorder %s25, 1
      %p137 = por %p135, %p136
      %p139 = scmp.ne.s32.totalorder %s122, %s138
      %p140 = scmp.eq.s32.totalorder %s25, 0
      %p141 = por %p139, %p140
      %s142 = ssub.s32 %s26, %s38
      %p143 = scmp.eq.s32.totalorder %s142, 0
      %s145 = sadd.s32 %s144, 1
      %s146 = scalar_select %p143, %s144, %s145
      %p149 = pneg %p143
      %p150 = scmp.eq.s32.totalorder %s19, 1
      %p151 = por %p149, %p150
      %p152 = scmp.ne.s32.totalorder %s144, %s147
      %p153 = scmp.eq.s32.totalorder %s19, 0
      %p154 = por %p152, %p153
      %p155 = scmp.ne.s32.totalorder %s144, %s147
      %p156 = scmp.eq.s32.totalorder %s24, 1
      %p157 = por %p155, %p156
      %p158 = scmp.ne.s32.totalorder %s147, %s148
      %p159 = scmp.eq.s32.totalorder %s24, 0
      %p160 = por %p158, %p159
      %p161 = scmp.ne.s32.totalorder %s147, %s148
      %p162 = scmp.eq.s32.totalorder %s25, 1
      %p163 = por %p161, %p162
      %p165 = scmp.ne.s32.totalorder %s148, %s164
      %p166 = scmp.eq.s32.totalorder %s25, 0
      %p167 = por %p165, %p166
      %p168 = scmp.le.s32.totalorder 1, %s19
      %p169 = scmp.lt.s32.totalorder %s19, 3
      %p170 = pnand %p168, %p169
      %p171 = pneg %p170
      // Predicated region
      $region9: #{tpu_custom_call.1} parent=5 // pred_check
        _
      $region10: #{tpu_custom_call.1} parent=5 // pred_check_branch
        %173 = sbr.rel (%p170) target = $region12
      $region11: #{tpu_custom_call.1} parent=5 // pred_region
        %s174 = ssub.s32 %s19, 1
        // Predicated region
        $region13: #{tpu_custom_call.1} parent=11 // pred_check
          %p175 = pneg %p80
        $region14: #{tpu_custom_call.1} parent=11 // pred_check_branch
          %177 = sbr.rel (%p175) target = $region16
        $region15: #{tpu_custom_call.1} parent=11 // pred_region
          %179 = vsyncadd [#allocation8], 0
          %s180 = sshll.u32 %s1, 4
          %s181 = int_to_ptr.hbm [resolvable:$true] %s180
          %s182 = sshll.u32 [#allocation7], 4
          %s183 = int_to_ptr.vmem [resolvable:$true] %s182
          %188 = dma.hbm_to_vmem [thread:$0]  %s181, 16384, %s183, [#allocation8], 512, 512, 32
        $region16: #{tpu_custom_call.1} parent=11 // pred_fallthru
          _
      $region12: #{tpu_custom_call.1} parent=5 // pred_fallthru
        _
      %p189 = scmp.lt.s32.totalorder %s19, 2
      // Predicated region
      $region17: #{tpu_custom_call.1} parent=5 // pred_check
        %p190 = pneg %p189
      $region18: #{tpu_custom_call.1} parent=5 // pred_check_branch
        %192 = sbr.rel (%p190) target = $region20
      $region19: #{tpu_custom_call.1} parent=5 // pred_region
        // Predicated region
        $region21: #{tpu_custom_call.1} parent=19 // pred_check
          %p193 = pneg %p53
        $region22: #{tpu_custom_call.1} parent=19 // pred_check_branch
          %195 = sbr.rel (%p193) target = $region24
        $region23: #{tpu_custom_call.1} parent=19 // pred_region
          %s196 = sand.u32 %s43, 1
          %s197 = scalar_lea.sflag [#allocation5], %s196
          %s198 = sand.u32 %s43, 1
          %s199 = smul.addr %s198, 512
          %s200 = scalar_lea.vmem [#allocation4], %s199
          %s201 = smul.u32 16, %s27
          %203 = vsyncadd %s197, 0
          %s204 = smul.addr %s26, 8
          %s205 = smul.addr %s201, 8
          %s206 = sadd.s32 %s204, %s205
          %s207 = smul.addr %s206, 4
          %s208 = scalar_lea.hbm %s0, %s207
          %s209 = sshll.u32 %s208, 4
          %s210 = int_to_ptr.hbm [resolvable:$true] %s209
          %s211 = sshll.u32 %s200, 4
          %s212 = int_to_ptr.vmem [resolvable:$true] %s211
          %217 = dma.hbm_to_vmem [thread:$0]  %s210, 8192, %s212, %s197, 512, 512, 32
        $region24: #{tpu_custom_call.1} parent=19 // pred_fallthru
          _
      $region20: #{tpu_custom_call.1} parent=5 // pred_fallthru
        _
      %p218 = scmp.le.s32.totalorder 1, %s19
      %p219 = scmp.lt.s32.totalorder %s19, 3
      %p220 = pnand %p218, %p219
      %p221 = pneg %p220
      // Predicated region
      $region25: #{tpu_custom_call.1} parent=5 // pred_check
        _
      $region26: #{tpu_custom_call.1} parent=5 // pred_check_branch
        %223 = sbr.rel (%p220) target = $region28
      $region27: #{tpu_custom_call.1} parent=5 // pred_region
        %s224 = ssub.s32 %s19, 1
        %s225 = sand.u32 %s46, 1
        %s226 = scalar_lea.sflag [#allocation5], %s225
        %s227 = sand.u32 %s46, 1
        %s228 = smul.addr %s227, 512
        %s229 = scalar_lea.vmem [#allocation4], %s228
        // Predicated region
        $region29: #{tpu_custom_call.1} parent=27 // pred_check
          %p230 = pneg %p59
        $region30: #{tpu_custom_call.1} parent=27 // pred_check_branch
          %232 = sbr.rel (%p230) target = $region32
        $region31: #{tpu_custom_call.1} parent=27 // pred_region
          %234 = dma.done %s226, 8192
        $region32: #{tpu_custom_call.1} parent=27 // pred_fallthru
          _
        // Predicated region
        $region33: #{tpu_custom_call.1} parent=27 // pred_check
          %p235 = pneg %p80
        $region34: #{tpu_custom_call.1} parent=27 // pred_check_branch
          %237 = sbr.rel (%p235) target = $region36
        $region35: #{tpu_custom_call.1} parent=27 // pred_region
          %239 = dma.done [#allocation8], 16384
        $region36: #{tpu_custom_call.1} parent=27 // pred_fallthru
          _
        %s240 = sand.u32 %s46, 1
        %s241 = scalar_lea.sflag [#allocation5], %s240
        %s242 = sand.u32 %s46, 1
        %s243 = smul.addr %s242, 512
        %s244 = scalar_lea.vmem [#allocation4], %s243
        %p245 = pneg %p59
        %p246 = pneg %p56
        %p247 = pneg %p80
        %p248 = pneg %p77
        %p249 = pneg %p108
        %p250 = pneg %p105
        %s251 = sand.u32 %s95, 1
        %s252 = scalar_lea.sflag [#allocation6], %s251
        %s253 = sand.u32 %s95, 1
        %s254 = smul.addr %s253, 128
        %s255 = scalar_lea.vmem [#allocation9], %s254
        %p256 = pneg %p134
        %p257 = pneg %p131
        %p258 = pneg %p160
        %p259 = pneg %p157
        %s260 = smul.u32 16, %s29
        %s261 = smul.u32 16, %s29
        %p262 = scmp.eq.s32.totalorder %s29, 0
        // Predicated region
        $region37: #{tpu_custom_call.1} parent=27 // pred_check
          %p263 = pneg %p262
        $region38: #{tpu_custom_call.1} parent=27 // pred_check_branch
          %265 = sbr.rel (%p263) target = $region40
        $region39: #{tpu_custom_call.1} parent=27 // pred_region
          %266 = vst [vmem:[#allocation2] sm:$0xff] 0.0
          %267 = vst [vmem:[#allocation2 + $0x8] sm:$0xff] 0.0
          %268 = vst [vmem:[#allocation3] sm:$0xff] 0.0
          %269 = vst [vmem:[#allocation3 + $0x8] sm:$0xff] 0.0
        $region40: #{tpu_custom_call.1} parent=27 // pred_fallthru
          _
        %v270 = vld [vmem:[#allocation7] sm:$0xff]
        %v271 = vld [vmem:[#allocation7 + $0x8] sm:$0xff]
        %v272 = vld [vmem:[#allocation7 + $0x10] sm:$0xff]
        %v273 = vld [vmem:[#allocation7 + $0x18] sm:$0xff]
        %v274 = vld [vmem:[#allocation7 + $0x20] sm:$0xff]
        %v275 = vld [vmem:[#allocation7 + $0x28] sm:$0xff]
        %v276 = vld [vmem:[#allocation7 + $0x30] sm:$0xff]
        %v277 = vld [vmem:[#allocation7 + $0x38] sm:$0xff]
        %v278 = vld [vmem:[#allocation7 + $0x40] sm:$0xff]
        %v279 = vld [vmem:[#allocation7 + $0x48] sm:$0xff]
        %v280 = vld [vmem:[#allocation7 + $0x50] sm:$0xff]
        %v281 = vld [vmem:[#allocation7 + $0x58] sm:$0xff]
        %v282 = vld [vmem:[#allocation7 + $0x60] sm:$0xff]
        %v283 = vld [vmem:[#allocation7 + $0x68] sm:$0xff]
        %v284 = vld [vmem:[#allocation7 + $0x70] sm:$0xff]
        %v285 = vld [vmem:[#allocation7 + $0x78] sm:$0xff]
        %v286 = vld [vmem:[#allocation7 + $0x80] sm:$0xff]
        %v287 = vld [vmem:[#allocation7 + $0x88] sm:$0xff]
        %v288 = vld [vmem:[#allocation7 + $0x90] sm:$0xff]
        %v289 = vld [vmem:[#allocation7 + $0x98] sm:$0xff]
        %v290 = vld [vmem:[#allocation7 + $0xa0] sm:$0xff]
        %v291 = vld [vmem:[#allocation7 + $0xa8] sm:$0xff]
        %v292 = vld [vmem:[#allocation7 + $0xb0] sm:$0xff]
        %v293 = vld [vmem:[#allocation7 + $0xb8] sm:$0xff]
        %v294 = vld [vmem:[#allocation7 + $0xc0] sm:$0xff]
        %v295 = vld [vmem:[#allocation7 + $0xc8] sm:$0xff]
        %v296 = vld [vmem:[#allocation7 + $0xd0] sm:$0xff]
        %v297 = vld [vmem:[#allocation7 + $0xd8] sm:$0xff]
        %v298 = vld [vmem:[#allocation7 + $0xe0] sm:$0xff]
        %v299 = vld [vmem:[#allocation7 + $0xe8] sm:$0xff]
        %v300 = vld [vmem:[#allocation7 + $0xf0] sm:$0xff]
        %v301 = vld [vmem:[#allocation7 + $0xf8] sm:$0xff]
        %v302 = vld [vmem:[#allocation7 + $0x100] sm:$0xff]
        %v303 = vld [vmem:[#allocation7 + $0x108] sm:$0xff]
        %v304 = vld [vmem:[#allocation7 + $0x110] sm:$0xff]
        %v305 = vld [vmem:[#allocation7 + $0x118] sm:$0xff]
        %v306 = vld [vmem:[#allocation7 + $0x120] sm:$0xff]
        %v307 = vld [vmem:[#allocation7 + $0x128] sm:$0xff]
        %v308 = vld [vmem:[#allocation7 + $0x130] sm:$0xff]
        %v309 = vld [vmem:[#allocation7 + $0x138] sm:$0xff]
        %v310 = vld [vmem:[#allocation7 + $0x140] sm:$0xff]
        %v311 = vld [vmem:[#allocation7 + $0x148] sm:$0xff]
        %v312 = vld [vmem:[#allocation7 + $0x150] sm:$0xff]
        %v313 = vld [vmem:[#allocation7 + $0x158] sm:$0xff]
        %v314 = vld [vmem:[#allocation7 + $0x160] sm:$0xff]
        %v315 = vld [vmem:[#allocation7 + $0x168] sm:$0xff]
        %v316 = vld [vmem:[#allocation7 + $0x170] sm:$0xff]
        %v317 = vld [vmem:[#allocation7 + $0x178] sm:$0xff]
        %v318 = vld [vmem:[#allocation7 + $0x180] sm:$0xff]
        %v319 = vld [vmem:[#allocation7 + $0x188] sm:$0xff]
        %v320 = vld [vmem:[#allocation7 + $0x190] sm:$0xff]
        %v321 = vld [vmem:[#allocation7 + $0x198] sm:$0xff]
        %v322 = vld [vmem:[#allocation7 + $0x1a0] sm:$0xff]
        %v323 = vld [vmem:[#allocation7 + $0x1a8] sm:$0xff]
        %v324 = vld [vmem:[#allocation7 + $0x1b0] sm:$0xff]
        %v325 = vld [vmem:[#allocation7 + $0x1b8] sm:$0xff]
        %v326 = vld [vmem:[#allocation7 + $0x1c0] sm:$0xff]
        %v327 = vld [vmem:[#allocation7 + $0x1c8] sm:$0xff]
        %v328 = vld [vmem:[#allocation7 + $0x1d0] sm:$0xff]
        %v329 = vld [vmem:[#allocation7 + $0x1d8] sm:$0xff]
        %v330 = vld [vmem:[#allocation7 + $0x1e0] sm:$0xff]
        %v331 = vld [vmem:[#allocation7 + $0x1e8] sm:$0xff]
        %v332 = vld [vmem:[#allocation7 + $0x1f0] sm:$0xff]
        %v333 = vld [vmem:[#allocation7 + $0x1f8] sm:$0xff]
        %v334 = vld [vmem:[#allocation7 + $0x200] sm:$0xff]
        %v335 = vld [vmem:[#allocation7 + $0x208] sm:$0xff]
        %v336 = vld [vmem:[#allocation7 + $0x210] sm:$0xff]
        %v337 = vld [vmem:[#allocation7 + $0x218] sm:$0xff]
        %v338 = vld [vmem:[#allocation7 + $0x220] sm:$0xff]
        %v339 = vld [vmem:[#allocation7 + $0x228] sm:$0xff]
        %v340 = vld [vmem:[#allocation7 + $0x230] sm:$0xff]
        %v341 = vld [vmem:[#allocation7 + $0x238] sm:$0xff]
        %v342 = vld [vmem:[#allocation7 + $0x240] sm:$0xff]
        %v343 = vld [vmem:[#allocation7 + $0x248] sm:$0xff]
        %v344 = vld [vmem:[#allocation7 + $0x250] sm:$0xff]
        %v345 = vld [vmem:[#allocation7 + $0x258] sm:$0xff]
        %v346 = vld [vmem:[#allocation7 + $0x260] sm:$0xff]
        %v347 = vld [vmem:[#allocation7 + $0x268] sm:$0xff]
        %v348 = vld [vmem:[#allocation7 + $0x270] sm:$0xff]
        %v349 = vld [vmem:[#allocation7 + $0x278] sm:$0xff]
        %v350 = vld [vmem:[#allocation7 + $0x280] sm:$0xff]
        %v351 = vld [vmem:[#allocation7 + $0x288] sm:$0xff]
        %v352 = vld [vmem:[#allocation7 + $0x290] sm:$0xff]
        %v353 = vld [vmem:[#allocation7 + $0x298] sm:$0xff]
        %v354 = vld [vmem:[#allocation7 + $0x2a0] sm:$0xff]
        %v355 = vld [vmem:[#allocation7 + $0x2a8] sm:$0xff]
        %v356 = vld [vmem:[#allocation7 + $0x2b0] sm:$0xff]
        %v357 = vld [vmem:[#allocation7 + $0x2b8] sm:$0xff]
        %v358 = vld [vmem:[#allocation7 + $0x2c0] sm:$0xff]
        %v359 = vld [vmem:[#allocation7 + $0x2c8] sm:$0xff]
        %v360 = vld [vmem:[#allocation7 + $0x2d0] sm:$0xff]
        %v361 = vld [vmem:[#allocation7 + $0x2d8] sm:$0xff]
        %v362 = vld [vmem:[#allocation7 + $0x2e0] sm:$0xff]
        %v363 = vld [vmem:[#allocation7 + $0x2e8] sm:$0xff]
        %v364 = vld [vmem:[#allocation7 + $0x2f0] sm:$0xff]
        %v365 = vld [vmem:[#allocation7 + $0x2f8] sm:$0xff]
        %v366 = vld [vmem:[#allocation7 + $0x300] sm:$0xff]
        %v367 = vld [vmem:[#allocation7 + $0x308] sm:$0xff]
        %v368 = vld [vmem:[#allocation7 + $0x310] sm:$0xff]
        %v369 = vld [vmem:[#allocation7 + $0x318] sm:$0xff]
        %v370 = vld [vmem:[#allocation7 + $0x320] sm:$0xff]
        %v371 = vld [vmem:[#allocation7 + $0x328] sm:$0xff]
        %v372 = vld [vmem:[#allocation7 + $0x330] sm:$0xff]
        %v373 = vld [vmem:[#allocation7 + $0x338] sm:$0xff]
        %v374 = vld [vmem:[#allocation7 + $0x340] sm:$0xff]
        %v375 = vld [vmem:[#allocation7 + $0x348] sm:$0xff]
        %v376 = vld [vmem:[#allocation7 + $0x350] sm:$0xff]
        %v377 = vld [vmem:[#allocation7 + $0x358] sm:$0xff]
        %v378 = vld [vmem:[#allocation7 + $0x360] sm:$0xff]
        %v379 = vld [vmem:[#allocation7 + $0x368] sm:$0xff]
        %v380 = vld [vmem:[#allocation7 + $0x370] sm:$0xff]
        %v381 = vld [vmem:[#allocation7 + $0x378] sm:$0xff]
        %v382 = vld [vmem:[#allocation7 + $0x380] sm:$0xff]
        %v383 = vld [vmem:[#allocation7 + $0x388] sm:$0xff]
        %v384 = vld [vmem:[#allocation7 + $0x390] sm:$0xff]
        %v385 = vld [vmem:[#allocation7 + $0x398] sm:$0xff]
        %v386 = vld [vmem:[#allocation7 + $0x3a0] sm:$0xff]
        %v387 = vld [vmem:[#allocation7 + $0x3a8] sm:$0xff]
        %v388 = vld [vmem:[#allocation7 + $0x3b0] sm:$0xff]
        %v389 = vld [vmem:[#allocation7 + $0x3b8] sm:$0xff]
        %v390 = vld [vmem:[#allocation7 + $0x3c0] sm:$0xff]
        %v391 = vld [vmem:[#allocation7 + $0x3c8] sm:$0xff]
        %v392 = vld [vmem:[#allocation7 + $0x3d0] sm:$0xff]
        %v393 = vld [vmem:[#allocation7 + $0x3d8] sm:$0xff]
        %v394 = vld [vmem:[#allocation7 + $0x3e0] sm:$0xff]
        %v395 = vld [vmem:[#allocation7 + $0x3e8] sm:$0xff]
        %v396 = vld [vmem:[#allocation7 + $0x3f0] sm:$0xff]
        %v397 = vld [vmem:[#allocation7 + $0x3f8] sm:$0xff]
        %v398 = vld [vmem:[#allocation2] sm:$0xff]
        %v399 = vld [vmem:[#allocation2 + $0x8] sm:$0xff]
        %v400 = vld [vmem:[#allocation3] sm:$0xff]
        %v401 = vld [vmem:[#allocation3 + $0x8] sm:$0xff]
        %s402 = smul.u32 %s29, 16
        %v403 = vld [vmem:[%s229] sm:$0xff]
        %v404 = vld [vmem:[%s229 + $0x8] sm:$0xff]
        %v405 = vld [vmem:[%s229 + $0x10] sm:$0xff]
        %v406 = vld [vmem:[%s229 + $0x18] sm:$0xff]
        %v407 = vunpack.c.l.bf16 %v403
        %v408 = vunpack.c.h.bf16 %v403
        %v409 = vunpack.c.l.bf16 %v404
        %v410 = vunpack.c.h.bf16 %v404
        %v411 = vunpack.c.l.bf16 %v405
        %v412 = vunpack.c.h.bf16 %v405
        %v413 = vunpack.c.l.bf16 %v406
        %v414 = vunpack.c.h.bf16 %v406
        %v415 = vpack.c.bf16 %v398, %v398
        %v416 = vpack.c.bf16 %v399, %v399
        %v545 = vunpack.c.l.b16 %v270
        %v546 = vunpack.c.h.b16 %v270
        %v547 = vunpack.c.l.b16 %v271
        %v548 = vunpack.c.h.b16 %v271
        %v549 = vunpack.c.l.b16 %v272
        %v550 = vunpack.c.h.b16 %v272
        %v551 = vunpack.c.l.b16 %v273
        %v552 = vunpack.c.h.b16 %v273
        %v553 = vunpack.c.l.b16 %v274
        %v554 = vunpack.c.h.b16 %v274
        %v555 = vunpack.c.l.b16 %v275
        %v556 = vunpack.c.h.b16 %v275
        %v557 = vunpack.c.l.b16 %v276
        %v558 = vunpack.c.h.b16 %v276
        %v559 = vunpack.c.l.b16 %v277
        %v560 = vunpack.c.h.b16 %v277
        %v561 = vunpack.c.l.b16 %v278
        %v562 = vunpack.c.h.b16 %v278
        %v563 = vunpack.c.l.b16 %v279
        %v564 = vunpack.c.h.b16 %v279
        %v565 = vunpack.c.l.b16 %v280
        %v566 = vunpack.c.h.b16 %v280
        %v567 = vunpack.c.l.b16 %v281
        %v568 = vunpack.c.h.b16 %v281
        %v569 = vunpack.c.l.b16 %v282
        %v570 = vunpack.c.h.b16 %v282
        %v571 = vunpack.c.l.b16 %v283
        %v572 = vunpack.c.h.b16 %v283
        %v573 = vunpack.c.l.b16 %v284
        %v574 = vunpack.c.h.b16 %v284
        %v575 = vunpack.c.l.b16 %v285
        %v576 = vunpack.c.h.b16 %v285
        %v577 = vunpack.c.l.b16 %v286
        %v578 = vunpack.c.h.b16 %v286
        %v579 = vunpack.c.l.b16 %v287
        %v580 = vunpack.c.h.b16 %v287
        %v581 = vunpack.c.l.b16 %v288
        %v582 = vunpack.c.h.b16 %v288
        %v583 = vunpack.c.l.b16 %v289
        %v584 = vunpack.c.h.b16 %v289
        %v585 = vunpack.c.l.b16 %v290
        %v586 = vunpack.c.h.b16 %v290
        %v587 = vunpack.c.l.b16 %v291
        %v588 = vunpack.c.h.b16 %v291
        %v589 = vunpack.c.l.b16 %v292
        %v590 = vunpack.c.h.b16 %v292
        %v591 = vunpack.c.l.b16 %v293
        %v592 = vunpack.c.h.b16 %v293
        %v593 = vunpack.c.l.b16 %v294
        %v594 = vunpack.c.h.b16 %v294
        %v595 = vunpack.c.l.b16 %v295
        %v596 = vunpack.c.h.b16 %v295
        %v597 = vunpack.c.l.b16 %v296
        %v598 = vunpack.c.h.b16 %v296
        %v599 = vunpack.c.l.b16 %v297
        %v600 = vunpack.c.h.b16 %v297
        %v601 = vunpack.c.l.b16 %v298
        %v602 = vunpack.c.h.b16 %v298
        %v603 = vunpack.c.l.b16 %v299
        %v604 = vunpack.c.h.b16 %v299
        %v605 = vunpack.c.l.b16 %v300
        %v606 = vunpack.c.h.b16 %v300
        %v607 = vunpack.c.l.b16 %v301
        %v608 = vunpack.c.h.b16 %v301
        %v609 = vunpack.c.l.b16 %v302
        %v610 = vunpack.c.h.b16 %v302
        %v611 = vunpack.c.l.b16 %v303
        %v612 = vunpack.c.h.b16 %v303
        %v613 = vunpack.c.l.b16 %v304
        %v614 = vunpack.c.h.b16 %v304
        %v615 = vunpack.c.l.b16 %v305
        %v616 = vunpack.c.h.b16 %v305
        %v617 = vunpack.c.l.b16 %v306
        %v618 = vunpack.c.h.b16 %v306
        %v619 = vunpack.c.l.b16 %v307
        %v620 = vunpack.c.h.b16 %v307
        %v621 = vunpack.c.l.b16 %v308
        %v622 = vunpack.c.h.b16 %v308
        %v623 = vunpack.c.l.b16 %v309
        %v624 = vunpack.c.h.b16 %v309
        %v625 = vunpack.c.l.b16 %v310
        %v626 = vunpack.c.h.b16 %v310
        %v627 = vunpack.c.l.b16 %v311
        %v628 = vunpack.c.h.b16 %v311
        %v629 = vunpack.c.l.b16 %v312
        %v630 = vunpack.c.h.b16 %v312
        %v631 = vunpack.c.l.b16 %v313
        %v632 = vunpack.c.h.b16 %v313
        %v633 = vunpack.c.l.b16 %v314
        %v634 = vunpack.c.h.b16 %v314
        %v635 = vunpack.c.l.b16 %v315
        %v636 = vunpack.c.h.b16 %v315
        %v637 = vunpack.c.l.b16 %v316
        %v638 = vunpack.c.h.b16 %v316
        %v639 = vunpack.c.l.b16 %v317
        %v640 = vunpack.c.h.b16 %v317
        %v641 = vunpack.c.l.b16 %v318
        %v642 = vunpack.c.h.b16 %v318
        %v643 = vunpack.c.l.b16 %v319
        %v644 = vunpack.c.h.b16 %v319
        %v645 = vunpack.c.l.b16 %v320
        %v646 = vunpack.c.h.b16 %v320
        %v647 = vunpack.c.l.b16 %v321
        %v648 = vunpack.c.h.b16 %v321
        %v649 = vunpack.c.l.b16 %v322
        %v650 = vunpack.c.h.b16 %v322
        %v651 = vunpack.c.l.b16 %v323
        %v652 = vunpack.c.h.b16 %v323
        %v653 = vunpack.c.l.b16 %v324
        %v654 = vunpack.c.h.b16 %v324
        %v655 = vunpack.c.l.b16 %v325
        %v656 = vunpack.c.h.b16 %v325
        %v657 = vunpack.c.l.b16 %v326
        %v658 = vunpack.c.h.b16 %v326
        %v659 = vunpack.c.l.b16 %v327
        %v660 = vunpack.c.h.b16 %v327
        %v661 = vunpack.c.l.b16 %v328
        %v662 = vunpack.c.h.b16 %v328
        %v663 = vunpack.c.l.b16 %v329
        %v664 = vunpack.c.h.b16 %v329
        %v665 = vunpack.c.l.b16 %v330
        %v666 = vunpack.c.h.b16 %v330
        %v667 = vunpack.c.l.b16 %v331
        %v668 = vunpack.c.h.b16 %v331
        %v669 = vunpack.c.l.b16 %v332
        %v670 = vunpack.c.h.b16 %v332
        %v671 = vunpack.c.l.b16 %v333
        %v672 = vunpack.c.h.b16 %v333
        %v673 = vunpack.c.l.b16 %v334
        %v674 = vunpack.c.h.b16 %v334
        %v675 = vunpack.c.l.b16 %v335
        %v676 = vunpack.c.h.b16 %v335
        %v677 = vunpack.c.l.b16 %v336
        %v678 = vunpack.c.h.b16 %v336
        %v679 = vunpack.c.l.b16 %v337
        %v680 = vunpack.c.h.b16 %v337
        %v681 = vunpack.c.l.b16 %v338
        %v682 = vunpack.c.h.b16 %v338
        %v683 = vunpack.c.l.b16 %v339
        %v684 = vunpack.c.h.b16 %v339
        %v685 = vunpack.c.l.b16 %v340
        %v686 = vunpack.c.h.b16 %v340
        %v687 = vunpack.c.l.b16 %v341
        %v688 = vunpack.c.h.b16 %v341
        %v689 = vunpack.c.l.b16 %v342
        %v690 = vunpack.c.h.b16 %v342
        %v691 = vunpack.c.l.b16 %v343
        %v692 = vunpack.c.h.b16 %v343
        %v693 = vunpack.c.l.b16 %v344
        %v694 = vunpack.c.h.b16 %v344
        %v695 = vunpack.c.l.b16 %v345
        %v696 = vunpack.c.h.b16 %v345
        %v697 = vunpack.c.l.b16 %v346
        %v698 = vunpack.c.h.b16 %v346
        %v699 = vunpack.c.l.b16 %v347
        %v700 = vunpack.c.h.b16 %v347
        %v701 = vunpack.c.l.b16 %v348
        %v702 = vunpack.c.h.b16 %v348
        %v703 = vunpack.c.l.b16 %v349
        %v704 = vunpack.c.h.b16 %v349
        %v705 = vunpack.c.l.b16 %v350
        %v706 = vunpack.c.h.b16 %v350
        %v707 = vunpack.c.l.b16 %v351
        %v708 = vunpack.c.h.b16 %v351
        %v709 = vunpack.c.l.b16 %v352
        %v710 = vunpack.c.h.b16 %v352
        %v711 = vunpack.c.l.b16 %v353
        %v712 = vunpack.c.h.b16 %v353
        %v713 = vunpack.c.l.b16 %v354
        %v714 = vunpack.c.h.b16 %v354
        %v715 = vunpack.c.l.b16 %v355
        %v716 = vunpack.c.h.b16 %v355
        %v717 = vunpack.c.l.b16 %v356
        %v718 = vunpack.c.h.b16 %v356
        %v719 = vunpack.c.l.b16 %v357
        %v720 = vunpack.c.h.b16 %v357
        %v721 = vunpack.c.l.b16 %v358
        %v722 = vunpack.c.h.b16 %v358
        %v723 = vunpack.c.l.b16 %v359
        %v724 = vunpack.c.h.b16 %v359
        %v725 = vunpack.c.l.b16 %v360
        %v726 = vunpack.c.h.b16 %v360
        %v727 = vunpack.c.l.b16 %v361
        %v728 = vunpack.c.h.b16 %v361
        %v729 = vunpack.c.l.b16 %v362
        %v730 = vunpack.c.h.b16 %v362
        %v731 = vunpack.c.l.b16 %v363
        %v732 = vunpack.c.h.b16 %v363
        %v733 = vunpack.c.l.b16 %v364
        %v734 = vunpack.c.h.b16 %v364
        %v735 = vunpack.c.l.b16 %v365
        %v736 = vunpack.c.h.b16 %v365
        %v737 = vunpack.c.l.b16 %v366
        %v738 = vunpack.c.h.b16 %v366
        %v739 = vunpack.c.l.b16 %v367
        %v740 = vunpack.c.h.b16 %v367
        %v741 = vunpack.c.l.b16 %v368
        %v742 = vunpack.c.h.b16 %v368
        %v743 = vunpack.c.l.b16 %v369
        %v744 = vunpack.c.h.b16 %v369
        %v745 = vunpack.c.l.b16 %v370
        %v746 = vunpack.c.h.b16 %v370
        %v747 = vunpack.c.l.b16 %v371
        %v748 = vunpack.c.h.b16 %v371
        %v749 = vunpack.c.l.b16 %v372
        %v750 = vunpack.c.h.b16 %v372
        %v751 = vunpack.c.l.b16 %v373
        %v752 = vunpack.c.h.b16 %v373
        %v753 = vunpack.c.l.b16 %v374
        %v754 = vunpack.c.h.b16 %v374
        %v755 = vunpack.c.l.b16 %v375
        %v756 = vunpack.c.h.b16 %v375
        %v757 = vunpack.c.l.b16 %v376
        %v758 = vunpack.c.h.b16 %v376
        %v759 = vunpack.c.l.b16 %v377
        %v760 = vunpack.c.h.b16 %v377
        %v761 = vunpack.c.l.b16 %v378
        %v762 = vunpack.c.h.b16 %v378
        %v763 = vunpack.c.l.b16 %v379
        %v764 = vunpack.c.h.b16 %v379
        %v765 = vunpack.c.l.b16 %v380
        %v766 = vunpack.c.h.b16 %v380
        %v767 = vunpack.c.l.b16 %v381
        %v768 = vunpack.c.h.b16 %v381
        %v769 = vunpack.c.l.b16 %v382
        %v770 = vunpack.c.h.b16 %v382
        %v771 = vunpack.c.l.b16 %v383
        %v772 = vunpack.c.h.b16 %v383
        %v773 = vunpack.c.l.b16 %v384
        %v774 = vunpack.c.h.b16 %v384
        %v775 = vunpack.c.l.b16 %v385
        %v776 = vunpack.c.h.b16 %v385
        %v777 = vunpack.c.l.b16 %v386
        %v778 = vunpack.c.h.b16 %v386
        %v779 = vunpack.c.l.b16 %v387
        %v780 = vunpack.c.h.b16 %v387
        %v781 = vunpack.c.l.b16 %v388
        %v782 = vunpack.c.h.b16 %v388
        %v783 = vunpack.c.l.b16 %v389
        %v784 = vunpack.c.h.b16 %v389
        %v785 = vunpack.c.l.b16 %v390
        %v786 = vunpack.c.h.b16 %v390
        %v787 = vunpack.c.l.b16 %v391
        %v788 = vunpack.c.h.b16 %v391
        %v789 = vunpack.c.l.b16 %v392
        %v790 = vunpack.c.h.b16 %v392
        %v791 = vunpack.c.l.b16 %v393
        %v792 = vunpack.c.h.b16 %v393
        %v793 = vunpack.c.l.b16 %v394
        %v794 = vunpack.c.h.b16 %v394
        %v795 = vunpack.c.l.b16 %v395
        %v796 = vunpack.c.h.b16 %v395
        %v797 = vunpack.c.l.b16 %v396
        %v798 = vunpack.c.h.b16 %v396
        %v799 = vunpack.c.l.b16 %v397
        %v800 = vunpack.c.h.b16 %v397
        %v801 = vpack.c.b16 %v553, %v545
        %v802 = vpack.c.b16 %v554, %v546
        %v803 = vpack.c.b16 %v555, %v547
        %v804 = vpack.c.b16 %v556, %v548
        %v805 = vpack.c.b16 %v557, %v549
        %v806 = vpack.c.b16 %v558, %v550
        %v807 = vpack.c.b16 %v559, %v551
        %v808 = vpack.c.b16 %v560, %v552
        %v809 = vpack.c.b16 %v569, %v561
        %v810 = vpack.c.b16 %v570, %v562
        %v811 = vpack.c.b16 %v571, %v563
        %v812 = vpack.c.b16 %v572, %v564
        %v813 = vpack.c.b16 %v573, %v565
        %v814 = vpack.c.b16 %v574, %v566
        %v815 = vpack.c.b16 %v575, %v567
        %v816 = vpack.c.b16 %v576, %v568
        %v817 = vpack.c.b16 %v585, %v577
        %v818 = vpack.c.b16 %v586, %v578
        %v819 = vpack.c.b16 %v587, %v579
        %v820 = vpack.c.b16 %v588, %v580
        %v821 = vpack.c.b16 %v589, %v581
        %v822 = vpack.c.b16 %v590, %v582
        %v823 = vpack.c.b16 %v591, %v583
        %v824 = vpack.c.b16 %v592, %v584
        %v825 = vpack.c.b16 %v601, %v593
        %v826 = vpack.c.b16 %v602, %v594
        %v827 = vpack.c.b16 %v603, %v595
        %v828 = vpack.c.b16 %v604, %v596
        %v829 = vpack.c.b16 %v605, %v597
        %v830 = vpack.c.b16 %v606, %v598
        %v831 = vpack.c.b16 %v607, %v599
        %v832 = vpack.c.b16 %v608, %v600
        %v833 = vpack.c.b16 %v617, %v609
        %v834 = vpack.c.b16 %v618, %v610
        %v835 = vpack.c.b16 %v619, %v611
        %v836 = vpack.c.b16 %v620, %v612
        %v837 = vpack.c.b16 %v621, %v613
        %v838 = vpack.c.b16 %v622, %v614
        %v839 = vpack.c.b16 %v623, %v615
        %v840 = vpack.c.b16 %v624, %v616
        %v841 = vpack.c.b16 %v633, %v625
        %v842 = vpack.c.b16 %v634, %v626
        %v843 = vpack.c.b16 %v635, %v627
        %v844 = vpack.c.b16 %v636, %v628
        %v845 = vpack.c.b16 %v637, %v629
        %v846 = vpack.c.b16 %v638, %v630
        %v847 = vpack.c.b16 %v639, %v631
        %v848 = vpack.c.b16 %v640, %v632
        %v849 = vpack.c.b16 %v649, %v641
        %v850 = vpack.c.b16 %v650, %v642
        %v851 = vpack.c.b16 %v651, %v643
        %v852 = vpack.c.b16 %v652, %v644
        %v853 = vpack.c.b16 %v653, %v645
        %v854 = vpack.c.b16 %v654, %v646
        %v855 = vpack.c.b16 %v655, %v647
        %v856 = vpack.c.b16 %v656, %v648
        %v857 = vpack.c.b16 %v665, %v657
        %v858 = vpack.c.b16 %v666, %v658
        %v859 = vpack.c.b16 %v667, %v659
        %v860 = vpack.c.b16 %v668, %v660
        %v861 = vpack.c.b16 %v669, %v661
        %v862 = vpack.c.b16 %v670, %v662
        %v863 = vpack.c.b16 %v671, %v663
        %v864 = vpack.c.b16 %v672, %v664
        %v865 = vpack.c.b16 %v681, %v673
        %v866 = vpack.c.b16 %v682, %v674
        %v867 = vpack.c.b16 %v683, %v675
        %v868 = vpack.c.b16 %v684, %v676
        %v869 = vpack.c.b16 %v685, %v677
        %v870 = vpack.c.b16 %v686, %v678
        %v871 = vpack.c.b16 %v687, %v679
        %v872 = vpack.c.b16 %v688, %v680
        %v873 = vpack.c.b16 %v697, %v689
        %v874 = vpack.c.b16 %v698, %v690
        %v875 = vpack.c.b16 %v699, %v691
        %v876 = vpack.c.b16 %v700, %v692
        %v877 = vpack.c.b16 %v701, %v693
        %v878 = vpack.c.b16 %v702, %v694
        %v879 = vpack.c.b16 %v703, %v695
        %v880 = vpack.c.b16 %v704, %v696
        %v881 = vpack.c.b16 %v713, %v705
        %v882 = vpack.c.b16 %v714, %v706
        %v883 = vpack.c.b16 %v715, %v707
        %v884 = vpack.c.b16 %v716, %v708
        %v885 = vpack.c.b16 %v717, %v709
        %v886 = vpack.c.b16 %v718, %v710
        %v887 = vpack.c.b16 %v719, %v711
        %v888 = vpack.c.b16 %v720, %v712
        %v889 = vpack.c.b16 %v729, %v721
        %v890 = vpack.c.b16 %v730, %v722
        %v891 = vpack.c.b16 %v731, %v723
        %v892 = vpack.c.b16 %v732, %v724
        %v893 = vpack.c.b16 %v733, %v725
        %v894 = vpack.c.b16 %v734, %v726
        %v895 = vpack.c.b16 %v735, %v727
        %v896 = vpack.c.b16 %v736, %v728
        %v897 = vpack.c.b16 %v745, %v737
        %v898 = vpack.c.b16 %v746, %v738
        %v899 = vpack.c.b16 %v747, %v739
        %v900 = vpack.c.b16 %v748, %v740
        %v901 = vpack.c.b16 %v749, %v741
        %v902 = vpack.c.b16 %v750, %v742
        %v903 = vpack.c.b16 %v751, %v743
        %v904 = vpack.c.b16 %v752, %v744
        %v905 = vpack.c.b16 %v761, %v753
        %v906 = vpack.c.b16 %v762, %v754
        %v907 = vpack.c.b16 %v763, %v755
        %v908 = vpack.c.b16 %v764, %v756
        %v909 = vpack.c.b16 %v765, %v757
        %v910 = vpack.c.b16 %v766, %v758
        %v911 = vpack.c.b16 %v767, %v759
        %v912 = vpack.c.b16 %v768, %v760
        %v913 = vpack.c.b16 %v777, %v769
        %v914 = vpack.c.b16 %v778, %v770
        %v915 = vpack.c.b16 %v779, %v771
        %v916 = vpack.c.b16 %v780, %v772
        %v917 = vpack.c.b16 %v781, %v773
        %v918 = vpack.c.b16 %v782, %v774
        %v919 = vpack.c.b16 %v783, %v775
        %v920 = vpack.c.b16 %v784, %v776
        %v921 = vpack.c.b16 %v793, %v785
        %v922 = vpack.c.b16 %v794, %v786
        %v923 = vpack.c.b16 %v795, %v787
        %v924 = vpack.c.b16 %v796, %v788
        %v925 = vpack.c.b16 %v797, %v789
        %v926 = vpack.c.b16 %v798, %v790
        %v927 = vpack.c.b16 %v799, %v791
        %v928 = vpack.c.b16 %v800, %v792
        %1057 = vmatpush.bf16.msra.mxu0 %v857
        %1058 = vmatpush.bf16.msra.mxu0 %v849
        %1059 = vmatpush.bf16.msra.mxu0 %v841
        %1060 = vmatpush.bf16.msra.mxu0 %v833
        %1061 = vmatpush.bf16.msra.mxu0 %v825
        %1062 = vmatpush.bf16.msra.mxu0 %v817
        %1063 = vmatpush.bf16.msra.mxu0 %v809
        %1064 = vmatpush.bf16.msra.mxu0 %v801
        %1065 = vmatmul.bf16.gmra.mxu0 %v415
        %v1066 = vpop.f32.mrf.mxu0
        %v1067 = vadd.f32 0.0, %v1066
        %v1068 = vpop.f32.mrf.mxu0
        %1069 = vdwg.mxu0
        %1070 = vmatpush.bf16.msra.mxu0 %v921
        %1071 = vmatpush.bf16.msra.mxu0 %v913
        %1072 = vmatpush.bf16.msra.mxu0 %v905
        %1073 = vmatpush.bf16.msra.mxu0 %v897
        %1074 = vmatpush.bf16.msra.mxu0 %v889
        %1075 = vmatpush.bf16.msra.mxu0 %v881
        %1076 = vmatpush.bf16.msra.mxu0 %v873
        %1077 = vmatpush.bf16.msra.mxu0 %v865
        %1078 = vmatmul.bf16.gmra.mxu0 %v416
        %v1079 = vpop.f32.mrf.mxu0
        %v1080 = vadd.f32 %v1067, %v1079
        %v1081 = vpop.f32.mrf.mxu0
        %1082 = vdwg.mxu0
        %1083 = vmatpush.bf16.msra.mxu0 %v858
        %1084 = vmatpush.bf16.msra.mxu0 %v850
        %1085 = vmatpush.bf16.msra.mxu0 %v842
        %1086 = vmatpush.bf16.msra.mxu0 %v834
        %1087 = vmatpush.bf16.msra.mxu0 %v826
        %1088 = vmatpush.bf16.msra.mxu0 %v818
        %1089 = vmatpush.bf16.msra.mxu0 %v810
        %1090 = vmatpush.bf16.msra.mxu0 %v802
        %1091 = vmatmul.bf16.gmra.mxu0 %v415
        %v1092 = vpop.f32.mrf.mxu0
        %v1093 = vadd.f32 0.0, %v1092
        %v1094 = vpop.f32.mrf.mxu0
        %1095 = vdwg.mxu0
        %1096 = vmatpush.bf16.msra.mxu0 %v922
        %1097 = vmatpush.bf16.msra.mxu0 %v914
        %1098 = vmatpush.bf16.msra.mxu0 %v906
        %1099 = vmatpush.bf16.msra.mxu0 %v898
        %1100 = vmatpush.bf16.msra.mxu0 %v890
        %1101 = vmatpush.bf16.msra.mxu0 %v882
        %1102 = vmatpush.bf16.msra.mxu0 %v874
        %1103 = vmatpush.bf16.msra.mxu0 %v866
        %1104 = vmatmul.bf16.gmra.mxu0 %v416
        %v1105 = vpop.f32.mrf.mxu0
        %v1106 = vadd.f32 %v1093, %v1105
        %v1107 = vpop.f32.mrf.mxu0
        %1108 = vdwg.mxu0
        %1109 = vmatpush.bf16.msra.mxu0 %v859
        %1110 = vmatpush.bf16.msra.mxu0 %v851
        %1111 = vmatpush.bf16.msra.mxu0 %v843
        %1112 = vmatpush.bf16.msra.mxu0 %v835
        %1113 = vmatpush.bf16.msra.mxu0 %v827
        %1114 = vmatpush.bf16.msra.mxu0 %v819
        %1115 = vmatpush.bf16.msra.mxu0 %v811
        %1116 = vmatpush.bf16.msra.mxu0 %v803
        %1117 = vmatmul.bf16.gmra.mxu0 %v415
        %v1118 = vpop.f32.mrf.mxu0
        %v1119 = vadd.f32 0.0, %v1118
        %v1120 = vpop.f32.mrf.mxu0
        %1121 = vdwg.mxu0
        %1122 = vmatpush.bf16.msra.mxu0 %v923
        %1123 = vmatpush.bf16.msra.mxu0 %v915
        %1124 = vmatpush.bf16.msra.mxu0 %v907
        %1125 = vmatpush.bf16.msra.mxu0 %v899
        %1126 = vmatpush.bf16.msra.mxu0 %v891
        %1127 = vmatpush.bf16.msra.mxu0 %v883
        %1128 = vmatpush.bf16.msra.mxu0 %v875
        %1129 = vmatpush.bf16.msra.mxu0 %v867
        %1130 = vmatmul.bf16.gmra.mxu0 %v416
        %v1131 = vpop.f32.mrf.mxu0
        %v1132 = vadd.f32 %v1119, %v1131
        %v1133 = vpop.f32.mrf.mxu0
        %1134 = vdwg.mxu0
        %1135 = vmatpush.bf16.msra.mxu0 %v860
        %1136 = vmatpush.bf16.msra.mxu0 %v852
        %1137 = vmatpush.bf16.msra.mxu0 %v844
        %1138 = vmatpush.bf16.msra.mxu0 %v836
        %1139 = vmatpush.bf16.msra.mxu0 %v828
        %1140 = vmatpush.bf16.msra.mxu0 %v820
        %1141 = vmatpush.bf16.msra.mxu0 %v812
        %1142 = vmatpush.bf16.msra.mxu0 %v804
        %1143 = vmatmul.bf16.gmra.mxu0 %v415
        %v1144 = vpop.f32.mrf.mxu0
        %v1145 = vadd.f32 0.0, %v1144
        %v1146 = vpop.f32.mrf.mxu0
        %1147 = vdwg.mxu0
        %1148 = vmatpush.bf16.msra.mxu0 %v924
        %1149 = vmatpush.bf16.msra.mxu0 %v916
        %1150 = vmatpush.bf16.msra.mxu0 %v908
        %1151 = vmatpush.bf16.msra.mxu0 %v900
        %1152 = vmatpush.bf16.msra.mxu0 %v892
        %1153 = vmatpush.bf16.msra.mxu0 %v884
        %1154 = vmatpush.bf16.msra.mxu0 %v876
        %1155 = vmatpush.bf16.msra.mxu0 %v868
        %1156 = vmatmul.bf16.gmra.mxu0 %v416
        %v1157 = vpop.f32.mrf.mxu0
        %v1158 = vadd.f32 %v1145, %v1157
        %v1159 = vpop.f32.mrf.mxu0
        %1160 = vdwg.mxu0
        %1161 = vmatpush.bf16.msra.mxu0 %v861
        %1162 = vmatpush.bf16.msra.mxu0 %v853
        %1163 = vmatpush.bf16.msra.mxu0 %v845
        %1164 = vmatpush.bf16.msra.mxu0 %v837
        %1165 = vmatpush.bf16.msra.mxu0 %v829
        %1166 = vmatpush.bf16.msra.mxu0 %v821
        %1167 = vmatpush.bf16.msra.mxu0 %v813
        %1168 = vmatpush.bf16.msra.mxu0 %v805
        %1169 = vmatmul.bf16.gmra.mxu0 %v415
        %v1170 = vpop.f32.mrf.mxu0
        %v1171 = vadd.f32 0.0, %v1170
        %v1172 = vpop.f32.mrf.mxu0
        %1173 = vdwg.mxu0
        %1174 = vmatpush.bf16.msra.mxu0 %v925
        %1175 = vmatpush.bf16.msra.mxu0 %v917
        %1176 = vmatpush.bf16.msra.mxu0 %v909
        %1177 = vmatpush.bf16.msra.mxu0 %v901
        %1178 = vmatpush.bf16.msra.mxu0 %v893
        %1179 = vmatpush.bf16.msra.mxu0 %v885
        %1180 = vmatpush.bf16.msra.mxu0 %v877
        %1181 = vmatpush.bf16.msra.mxu0 %v869
        %1182 = vmatmul.bf16.gmra.mxu0 %v416
        %v1183 = vpop.f32.mrf.mxu0
        %v1184 = vadd.f32 %v1171, %v1183
        %v1185 = vpop.f32.mrf.mxu0
        %1186 = vdwg.mxu0
        %1187 = vmatpush.bf16.msra.mxu0 %v862
        %1188 = vmatpush.bf16.msra.mxu0 %v854
        %1189 = vmatpush.bf16.msra.mxu0 %v846
        %1190 = vmatpush.bf16.msra.mxu0 %v838
        %1191 = vmatpush.bf16.msra.mxu0 %v830
        %1192 = vmatpush.bf16.msra.mxu0 %v822
        %1193 = vmatpush.bf16.msra.mxu0 %v814
        %1194 = vmatpush.bf16.msra.mxu0 %v806
        %1195 = vmatmul.bf16.gmra.mxu0 %v415
        %v1196 = vpop.f32.mrf.mxu0
        %v1197 = vadd.f32 0.0, %v1196
        %v1198 = vpop.f32.mrf.mxu0
        %1199 = vdwg.mxu0
        %1200 = vmatpush.bf16.msra.mxu0 %v926
        %1201 = vmatpush.bf16.msra.mxu0 %v918
        %1202 = vmatpush.bf16.msra.mxu0 %v910
        %1203 = vmatpush.bf16.msra.mxu0 %v902
        %1204 = vmatpush.bf16.msra.mxu0 %v894
        %1205 = vmatpush.bf16.msra.mxu0 %v886
        %1206 = vmatpush.bf16.msra.mxu0 %v878
        %1207 = vmatpush.bf16.msra.mxu0 %v870
        %1208 = vmatmul.bf16.gmra.mxu0 %v416
        %v1209 = vpop.f32.mrf.mxu0
        %v1210 = vadd.f32 %v1197, %v1209
        %v1211 = vpop.f32.mrf.mxu0
        %1212 = vdwg.mxu0
        %1213 = vmatpush.bf16.msra.mxu0 %v863
        %1214 = vmatpush.bf16.msra.mxu0 %v855
        %1215 = vmatpush.bf16.msra.mxu0 %v847
        %1216 = vmatpush.bf16.msra.mxu0 %v839
        %1217 = vmatpush.bf16.msra.mxu0 %v831
        %1218 = vmatpush.bf16.msra.mxu0 %v823
        %1219 = vmatpush.bf16.msra.mxu0 %v815
        %1220 = vmatpush.bf16.msra.mxu0 %v807
        %1221 = vmatmul.bf16.gmra.mxu0 %v415
        %v1222 = vpop.f32.mrf.mxu0
        %v1223 = vadd.f32 0.0, %v1222
        %v1224 = vpop.f32.mrf.mxu0
        %1225 = vdwg.mxu0
        %1226 = vmatpush.bf16.msra.mxu0 %v927
        %1227 = vmatpush.bf16.msra.mxu0 %v919
        %1228 = vmatpush.bf16.msra.mxu0 %v911
        %1229 = vmatpush.bf16.msra.mxu0 %v903
        %1230 = vmatpush.bf16.msra.mxu0 %v895
        %1231 = vmatpush.bf16.msra.mxu0 %v887
        %1232 = vmatpush.bf16.msra.mxu0 %v879
        %1233 = vmatpush.bf16.msra.mxu0 %v871
        %1234 = vmatmul.bf16.gmra.mxu0 %v416
        %v1235 = vpop.f32.mrf.mxu0
        %v1236 = vadd.f32 %v1223, %v1235
        %v1237 = vpop.f32.mrf.mxu0
        %1238 = vdwg.mxu0
        %1239 = vmatpush.bf16.msra.mxu0 %v864
        %1240 = vmatpush.bf16.msra.mxu0 %v856
        %1241 = vmatpush.bf16.msra.mxu0 %v848
        %1242 = vmatpush.bf16.msra.mxu0 %v840
        %1243 = vmatpush.bf16.msra.mxu0 %v832
        %1244 = vmatpush.bf16.msra.mxu0 %v824
        %1245 = vmatpush.bf16.msra.mxu0 %v816
        %1246 = vmatpush.bf16.msra.mxu0 %v808
        %1247 = vmatmul.bf16.gmra.mxu0 %v415
        %v1248 = vpop.f32.mrf.mxu0
        %v1249 = vadd.f32 0.0, %v1248
        %v1250 = vpop.f32.mrf.mxu0
        %1251 = vdwg.mxu0
        %1252 = vmatpush.bf16.msra.mxu0 %v928
        %1253 = vmatpush.bf16.msra.mxu0 %v920
        %1254 = vmatpush.bf16.msra.mxu0 %v912
        %1255 = vmatpush.bf16.msra.mxu0 %v904
        %1256 = vmatpush.bf16.msra.mxu0 %v896
        %1257 = vmatpush.bf16.msra.mxu0 %v888
        %1258 = vmatpush.bf16.msra.mxu0 %v880
        %1259 = vmatpush.bf16.msra.mxu0 %v872
        %1260 = vmatmul.bf16.gmra.mxu0 %v416
        %v1261 = vpop.f32.mrf.mxu0
        %v1262 = vadd.f32 %v1249, %v1261
        %v1263 = vpop.f32.mrf.mxu0
        %1264 = vdwg.mxu0
        %v1265 = vadd.f32 %v407, %v1080
        %v1266 = vadd.f32 %v408, %v1106
        %v1267 = vadd.f32 %v409, %v1132
        %v1268 = vadd.f32 %v410, %v1158
        %v1269 = vadd.f32 %v411, %v1184
        %v1270 = vadd.f32 %v412, %v1210
        %v1271 = vadd.f32 %v413, %v1236
        %v1272 = vadd.f32 %v414, %v1262
        %v1273 = vxor.u32 %v1265, 2147483648
        %v1274 = vxor.u32 %v1266, 2147483648
        %v1275 = vmul.f32 %v1273, 1.442695
        %v1276 = vpow.pop %v1275
        %v1277 = vmul.f32 %v1274, 1.442695
        %v1278 = vpow.pop %v1277
        %v1279 = vadd.f32 %v1276, 1.0
        %v1280 = vadd.f32 %v1278, 1.0
        %v1281 = vrcp.pop %v1279
        %v1282 = vmul.f32 %v1279, %v1281
        %v1283 = vsub.f32 1.0, %v1282
        %v1284 = vmul.f32 %v1281, %v1283
        %v1285 = vadd.f32 %v1281, %v1284
        %vm1286 = vweird.f32 %v1279
        %vm1287 = vweird.f32 %v1281
        %vm1288 = vmor %vm1286, %vm1287
        %v1289 = vsel %vm1288, %v1281, %v1285
        %v1290 = vand.u32 2147483647, %v1279
        %vm1291 = vcmp.eq.f32.partialorder %v1290, 8.507059e+37
        %v1292 = vand.u32 %v1279, 2147483648
        %v1293 = vor.u32 1.1754944e-38, %v1292
        %v1294 = vsel %vm1291, %v1293, %v1289
        %v1295 = vmul.f32 1.0, %v1294
        %v1296 = vrcp.pop %v1280
        %v1297 = vmul.f32 %v1280, %v1296
        %v1298 = vsub.f32 1.0, %v1297
        %v1299 = vmul.f32 %v1296, %v1298
        %v1300 = vadd.f32 %v1296, %v1299
        %vm1301 = vweird.f32 %v1280
        %vm1302 = vweird.f32 %v1296
        %vm1303 = vmor %vm1301, %vm1302
        %v1304 = vsel %vm1303, %v1296, %v1300
        %v1305 = vand.u32 2147483647, %v1280
        %vm1306 = vcmp.eq.f32.partialorder %v1305, 8.507059e+37
        %v1307 = vand.u32 %v1280, 2147483648
        %v1308 = vor.u32 1.1754944e-38, %v1307
        %v1309 = vsel %vm1306, %v1308, %v1304
        %v1310 = vmul.f32 1.0, %v1309
        %v1311 = vxor.u32 %v1267, 2147483648
        %v1312 = vxor.u32 %v1268, 2147483648
        %v1313 = vmul.f32 %v1311, 1.442695
        %v1314 = vpow.pop %v1313
        %v1315 = vmul.f32 %v1312, 1.442695
        %v1316 = vpow.pop %v1315
        %v1317 = vadd.f32 %v1314, 1.0
        %v1318 = vadd.f32 %v1316, 1.0
        %v1319 = vrcp.pop %v1317
        %v1320 = vmul.f32 %v1317, %v1319
        %v1321 = vsub.f32 1.0, %v1320
        %v1322 = vmul.f32 %v1319, %v1321
        %v1323 = vadd.f32 %v1319, %v1322
        %vm1324 = vweird.f32 %v1317
        %vm1325 = vweird.f32 %v1319
        %vm1326 = vmor %vm1324, %vm1325
        %v1327 = vsel %vm1326, %v1319, %v1323
        %v1328 = vand.u32 2147483647, %v1317
        %vm1329 = vcmp.eq.f32.partialorder %v1328, 8.507059e+37
        %v1330 = vand.u32 %v1317, 2147483648
        %v1331 = vor.u32 1.1754944e-38, %v1330
        %v1332 = vsel %vm1329, %v1331, %v1327
        %v1333 = vmul.f32 1.0, %v1332
        %v1334 = vrcp.pop %v1318
        %v1335 = vmul.f32 %v1318, %v1334
        %v1336 = vsub.f32 1.0, %v1335
        %v1337 = vmul.f32 %v1334, %v1336
        %v1338 = vadd.f32 %v1334, %v1337
        %vm1339 = vweird.f32 %v1318
        %vm1340 = vweird.f32 %v1334
        %vm1341 = vmor %vm1339, %vm1340
        %v1342 = vsel %vm1341, %v1334, %v1338
        %v1343 = vand.u32 2147483647, %v1318
        %vm1344 = vcmp.eq.f32.partialorder %v1343, 8.507059e+37
        %v1345 = vand.u32 %v1318, 2147483648
        %v1346 = vor.u32 1.1754944e-38, %v1345
        %v1347 = vsel %vm1344, %v1346, %v1342
        %v1348 = vmul.f32 1.0, %v1347
        %v1349 = vtanh.pop %v1269
        %v1350 = vtanh.pop %v1270
        %v1351 = vxor.u32 %v1271, 2147483648
        %v1352 = vxor.u32 %v1272, 2147483648
        %v1353 = vmul.f32 %v1351, 1.442695
        %v1354 = vpow.pop %v1353
        %v1355 = vmul.f32 %v1352, 1.442695
        %v1356 = vpow.pop %v1355
        %v1357 = vadd.f32 %v1354, 1.0
        %v1358 = vadd.f32 %v1356, 1.0
        %v1359 = vrcp.pop %v1357
        %v1360 = vmul.f32 %v1357, %v1359
        %v1361 = vsub.f32 1.0, %v1360
        %v1362 = vmul.f32 %v1359, %v1361
        %v1363 = vadd.f32 %v1359, %v1362
        %vm1364 = vweird.f32 %v1357
        %vm1365 = vweird.f32 %v1359
        %vm1366 = vmor %vm1364, %vm1365
        %v1367 = vsel %vm1366, %v1359, %v1363
        %v1368 = vand.u32 2147483647, %v1357
        %vm1369 = vcmp.eq.f32.partialorder %v1368, 8.507059e+37
        %v1370 = vand.u32 %v1357, 2147483648
        %v1371 = vor.u32 1.1754944e-38, %v1370
        %v1372 = vsel %vm1369, %v1371, %v1367
        %v1373 = vmul.f32 1.0, %v1372
        %v1374 = vrcp.pop %v1358
        %v1375 = vmul.f32 %v1358, %v1374
        %v1376 = vsub.f32 1.0, %v1375
        %v1377 = vmul.f32 %v1374, %v1376
        %v1378 = vadd.f32 %v1374, %v1377
        %vm1379 = vweird.f32 %v1358
        %vm1380 = vweird.f32 %v1374
        %vm1381 = vmor %vm1379, %vm1380
        %v1382 = vsel %vm1381, %v1374, %v1378
        %v1383 = vand.u32 2147483647, %v1358
        %vm1384 = vcmp.eq.f32.partialorder %v1383, 8.507059e+37
        %v1385 = vand.u32 %v1358, 2147483648
        %v1386 = vor.u32 1.1754944e-38, %v1385
        %v1387 = vsel %vm1384, %v1386, %v1382
        %v1388 = vmul.f32 1.0, %v1387
        %v1389 = vmul.f32 %v1333, %v400
        %v1390 = vmul.f32 %v1348, %v401
        %v1391 = vmul.f32 %v1295, %v1349
        %v1392 = vmul.f32 %v1310, %v1350
        %v1393 = vadd.f32 %v1389, %v1391
        %v1394 = vadd.f32 %v1390, %v1392
        %v1395 = vtanh.pop %v1393
        %v1396 = vtanh.pop %v1394
        %v1397 = vmul.f32 %v1373, %v1395
        %v1398 = vmul.f32 %v1388, %v1396
        %p1399 = scmp.lt.s32.totalorder %s402, 24
        %s1400 = scalar_select %p1399, 1, 0
        %s1401 = scvt.s32.f32 %s1400
        %v1402 = vstv %s1401
        %v1403 = vmul.f32 %v1402, %v1393
        %v1404 = vmul.f32 %v1402, %v1394
        %s1405 = ssub.f32 1.0, %s1401
        %v1406 = vstv %s1405
        %v1407 = vmul.f32 %v1406, %v400
        %v1408 = vmul.f32 %v1406, %v401
        %v1409 = vadd.f32 %v1403, %v1407
        %v1410 = vadd.f32 %v1404, %v1408
        %v1411 = vmul.f32 %v1402, %v1397
        %v1412 = vmul.f32 %v1402, %v1398
        %v1413 = vmul.f32 %v1406, %v398
        %v1414 = vmul.f32 %v1406, %v399
        %v1415 = vadd.f32 %v1411, %v1413
        %v1416 = vadd.f32 %v1412, %v1414
        %v1417 = vpack.c.bf16 %v1416, %v1415
        %1418 = vst [vmem:[%s255] sm:$0xff] %v1417
        %s1419 = scalar_lea.vmem %s229, 32 [#allocation4]
        %v1420 = vld [vmem:[%s1419] sm:$0xff]
        %v1421 = vld [vmem:[%s1419 + $0x8] sm:$0xff]
        %v1422 = vld [vmem:[%s1419 + $0x10] sm:$0xff]
        %v1423 = vld [vmem:[%s1419 + $0x18] sm:$0xff]
        %v1424 = vunpack.c.l.bf16 %v1420
        %v1425 = vunpack.c.h.bf16 %v1420
        %v1426 = vunpack.c.l.bf16 %v1421
        %v1427 = vunpack.c.h.bf16 %v1421
        %v1428 = vunpack.c.l.bf16 %v1422
        %v1429 = vunpack.c.h.bf16 %v1422
        %v1430 = vunpack.c.l.bf16 %v1423
        %v1431 = vunpack.c.h.bf16 %v1423
        %v1433 = vunpack.c.l.b16 %v1417
        %v1434 = vunpack.c.h.b16 %v1417
        %v1435 = vpack.c.b16 %v1433, %v1433
        %v1436 = vpack.c.b16 %v1434, %v1434
        %1439 = vmatpush.bf16.msra.mxu0 %v857
        %1440 = vmatpush.bf16.msra.mxu0 %v849
        %1441 = vmatpush.bf16.msra.mxu0 %v841
        %1442 = vmatpush.bf16.msra.mxu0 %v833
        %1443 = vmatpush.bf16.msra.mxu0 %v825
        %1444 = vmatpush.bf16.msra.mxu0 %v817
        %1445 = vmatpush.bf16.msra.mxu0 %v809
        %1446 = vmatpush.bf16.msra.mxu0 %v801
        %1447 = vmatmul.bf16.gmra.mxu0 %v1435
        %v1448 = vpop.f32.mrf.mxu0
        %v1449 = vadd.f32 0.0, %v1448
        %v1450 = vpop.f32.mrf.mxu0
        %1451 = vdwg.mxu0
        %1452 = vmatpush.bf16.msra.mxu0 %v921
        %1453 = vmatpush.bf16.msra.mxu0 %v913
        %1454 = vmatpush.bf16.msra.mxu0 %v905
        %1455 = vmatpush.bf16.msra.mxu0 %v897
        %1456 = vmatpush.bf16.msra.mxu0 %v889
        %1457 = vmatpush.bf16.msra.mxu0 %v881
        %1458 = vmatpush.bf16.msra.mxu0 %v873
        %1459 = vmatpush.bf16.msra.mxu0 %v865
        %1460 = vmatmul.bf16.gmra.mxu0 %v1436
        %v1461 = vpop.f32.mrf.mxu0
        %v1462 = vadd.f32 %v1449, %v1461
        %v1463 = vpop.f32.mrf.mxu0
        %1464 = vdwg.mxu0
        %1465 = vmatpush.bf16.msra.mxu0 %v858
        %1466 = vmatpush.bf16.msra.mxu0 %v850
        %1467 = vmatpush.bf16.msra.mxu0 %v842
        %1468 = vmatpush.bf16.msra.mxu0 %v834
        %1469 = vmatpush.bf16.msra.mxu0 %v826
        %1470 = vmatpush.bf16.msra.mxu0 %v818
        %1471 = vmatpush.bf16.msra.mxu0 %v810
        %1472 = vmatpush.bf16.msra.mxu0 %v802
        %1473 = vmatmul.bf16.gmra.mxu0 %v1435
        %v1474 = vpop.f32.mrf.mxu0
        %v1475 = vadd.f32 0.0, %v1474
        %v1476 = vpop.f32.mrf.mxu0
        %1477 = vdwg.mxu0
        %1478 = vmatpush.bf16.msra.mxu0 %v922
        %1479 = vmatpush.bf16.msra.mxu0 %v914
        %1480 = vmatpush.bf16.msra.mxu0 %v906
        %1481 = vmatpush.bf16.msra.mxu0 %v898
        %1482 = vmatpush.bf16.msra.mxu0 %v890
        %1483 = vmatpush.bf16.msra.mxu0 %v882
        %1484 = vmatpush.bf16.msra.mxu0 %v874
        %1485 = vmatpush.bf16.msra.mxu0 %v866
        %1486 = vmatmul.bf16.gmra.mxu0 %v1436
        %v1487 = vpop.f32.mrf.mxu0
        %v1488 = vadd.f32 %v1475, %v1487
        %v1489 = vpop.f32.mrf.mxu0
        %1490 = vdwg.mxu0
        %1491 = vmatpush.bf16.msra.mxu0 %v859
        %1492 = vmatpush.bf16.msra.mxu0 %v851
        %1493 = vmatpush.bf16.msra.mxu0 %v843
        %1494 = vmatpush.bf16.msra.mxu0 %v835
        %1495 = vmatpush.bf16.msra.mxu0 %v827
        %1496 = vmatpush.bf16.msra.mxu0 %v819
        %1497 = vmatpush.bf16.msra.mxu0 %v811
        %1498 = vmatpush.bf16.msra.mxu0 %v803
        %1499 = vmatmul.bf16.gmra.mxu0 %v1435
        %v1500 = vpop.f32.mrf.mxu0
        %v1501 = vadd.f32 0.0, %v1500
        %v1502 = vpop.f32.mrf.mxu0
        %1503 = vdwg.mxu0
        %1504 = vmatpush.bf16.msra.mxu0 %v923
        %1505 = vmatpush.bf16.msra.mxu0 %v915
        %1506 = vmatpush.bf16.msra.mxu0 %v907
        %1507 = vmatpush.bf16.msra.mxu0 %v899
        %1508 = vmatpush.bf16.msra.mxu0 %v891
        %1509 = vmatpush.bf16.msra.mxu0 %v883
        %1510 = vmatpush.bf16.msra.mxu0 %v875
        %1511 = vmatpush.bf16.msra.mxu0 %v867
        %1512 = vmatmul.bf16.gmra.mxu0 %v1436
        %v1513 = vpop.f32.mrf.mxu0
        %v1514 = vadd.f32 %v1501, %v1513
        %v1515 = vpop.f32.mrf.mxu0
        %1516 = vdwg.mxu0
        %1517 = vmatpush.bf16.msra.mxu0 %v860
        %1518 = vmatpush.bf16.msra.mxu0 %v852
        %1519 = vmatpush.bf16.msra.mxu0 %v844
        %1520 = vmatpush.bf16.msra.mxu0 %v836
        %1521 = vmatpush.bf16.msra.mxu0 %v828
        %1522 = vmatpush.bf16.msra.mxu0 %v820
        %1523 = vmatpush.bf16.msra.mxu0 %v812
        %1524 = vmatpush.bf16.msra.mxu0 %v804
        %1525 = vmatmul.bf16.gmra.mxu0 %v1435
        %v1526 = vpop.f32.mrf.mxu0
        %v1527 = vadd.f32 0.0, %v1526
        %v1528 = vpop.f32.mrf.mxu0
        %1529 = vdwg.mxu0
        %1530 = vmatpush.bf16.msra.mxu0 %v924
        %1531 = vmatpush.bf16.msra.mxu0 %v916
        %1532 = vmatpush.bf16.msra.mxu0 %v908
        %1533 = vmatpush.bf16.msra.mxu0 %v900
        %1534 = vmatpush.bf16.msra.mxu0 %v892
        %1535 = vmatpush.bf16.msra.mxu0 %v884
        %1536 = vmatpush.bf16.msra.mxu0 %v876
        %1537 = vmatpush.bf16.msra.mxu0 %v868
        %1538 = vmatmul.bf16.gmra.mxu0 %v1436
        %v1539 = vpop.f32.mrf.mxu0
        %v1540 = vadd.f32 %v1527, %v1539
        %v1541 = vpop.f32.mrf.mxu0
        %1542 = vdwg.mxu0
        %1543 = vmatpush.bf16.msra.mxu0 %v861
        %1544 = vmatpush.bf16.msra.mxu0 %v853
        %1545 = vmatpush.bf16.msra.mxu0 %v845
        %1546 = vmatpush.bf16.msra.mxu0 %v837
        %1547 = vmatpush.bf16.msra.mxu0 %v829
        %1548 = vmatpush.bf16.msra.mxu0 %v821
        %1549 = vmatpush.bf16.msra.mxu0 %v813
        %1550 = vmatpush.bf16.msra.mxu0 %v805
        %1551 = vmatmul.bf16.gmra.mxu0 %v1435
        %v1552 = vpop.f32.mrf.mxu0
        %v1553 = vadd.f32 0.0, %v1552
        %v1554 = vpop.f32.mrf.mxu0
        %1555 = vdwg.mxu0
        %1556 = vmatpush.bf16.msra.mxu0 %v925
        %1557 = vmatpush.bf16.msra.mxu0 %v917
        %1558 = vmatpush.bf16.msra.mxu0 %v909
        %1559 = vmatpush.bf16.msra.mxu0 %v901
        %1560 = vmatpush.bf16.msra.mxu0 %v893
        %1561 = vmatpush.bf16.msra.mxu0 %v885
        %1562 = vmatpush.bf16.msra.mxu0 %v877
        %1563 = vmatpush.bf16.msra.mxu0 %v869
        %1564 = vmatmul.bf16.gmra.mxu0 %v1436
        %v1565 = vpop.f32.mrf.mxu0
        %v1566 = vadd.f32 %v1553, %v1565
        %v1567 = vpop.f32.mrf.mxu0
        %1568 = vdwg.mxu0
        %1569 = vmatpush.bf16.msra.mxu0 %v862
        %1570 = vmatpush.bf16.msra.mxu0 %v854
        %1571 = vmatpush.bf16.msra.mxu0 %v846
        %1572 = vmatpush.bf16.msra.mxu0 %v838
        %1573 = vmatpush.bf16.msra.mxu0 %v830
        %1574 = vmatpush.bf16.msra.mxu0 %v822
        %1575 = vmatpush.bf16.msra.mxu0 %v814
        %1576 = vmatpush.bf16.msra.mxu0 %v806
        %1577 = vmatmul.bf16.gmra.mxu0 %v1435
        %v1578 = vpop.f32.mrf.mxu0
        %v1579 = vadd.f32 0.0, %v1578
        %v1580 = vpop.f32.mrf.mxu0
        %1581 = vdwg.mxu0
        %1582 = vmatpush.bf16.msra.mxu0 %v926
        %1583 = vmatpush.bf16.msra.mxu0 %v918
        %1584 = vmatpush.bf16.msra.mxu0 %v910
        %1585 = vmatpush.bf16.msra.mxu0 %v902
        %1586 = vmatpush.bf16.msra.mxu0 %v894
        %1587 = vmatpush.bf16.msra.mxu0 %v886
        %1588 = vmatpush.bf16.msra.mxu0 %v878
        %1589 = vmatpush.bf16.msra.mxu0 %v870
        %1590 = vmatmul.bf16.gmra.mxu0 %v1436
        %v1591 = vpop.f32.mrf.mxu0
        %v1592 = vadd.f32 %v1579, %v1591
        %v1593 = vpop.f32.mrf.mxu0
        %1594 = vdwg.mxu0
        %1595 = vmatpush.bf16.msra.mxu0 %v863
        %1596 = vmatpush.bf16.msra.mxu0 %v855
        %1597 = vmatpush.bf16.msra.mxu0 %v847
        %1598 = vmatpush.bf16.msra.mxu0 %v839
        %1599 = vmatpush.bf16.msra.mxu0 %v831
        %1600 = vmatpush.bf16.msra.mxu0 %v823
        %1601 = vmatpush.bf16.msra.mxu0 %v815
        %1602 = vmatpush.bf16.msra.mxu0 %v807
        %1603 = vmatmul.bf16.gmra.mxu0 %v1435
        %v1604 = vpop.f32.mrf.mxu0
        %v1605 = vadd.f32 0.0, %v1604
        %v1606 = vpop.f32.mrf.mxu0
        %1607 = vdwg.mxu0
        %1608 = vmatpush.bf16.msra.mxu0 %v927
        %1609 = vmatpush.bf16.msra.mxu0 %v919
        %1610 = vmatpush.bf16.msra.mxu0 %v911
        %1611 = vmatpush.bf16.msra.mxu0 %v903
        %1612 = vmatpush.bf16.msra.mxu0 %v895
        %1613 = vmatpush.bf16.msra.mxu0 %v887
        %1614 = vmatpush.bf16.msra.mxu0 %v879
        %1615 = vmatpush.bf16.msra.mxu0 %v871
        %1616 = vmatmul.bf16.gmra.mxu0 %v1436
        %v1617 = vpop.f32.mrf.mxu0
        %v1618 = vadd.f32 %v1605, %v1617
        %v1619 = vpop.f32.mrf.mxu0
        %1620 = vdwg.mxu0
        %1621 = vmatpush.bf16.msra.mxu0 %v864
        %1622 = vmatpush.bf16.msra.mxu0 %v856
        %1623 = vmatpush.bf16.msra.mxu0 %v848
        %1624 = vmatpush.bf16.msra.mxu0 %v840
        %1625 = vmatpush.bf16.msra.mxu0 %v832
        %1626 = vmatpush.bf16.msra.mxu0 %v824
        %1627 = vmatpush.bf16.msra.mxu0 %v816
        %1628 = vmatpush.bf16.msra.mxu0 %v808
        %1629 = vmatmul.bf16.gmra.mxu0 %v1435
        %v1630 = vpop.f32.mrf.mxu0
        %v1631 = vadd.f32 0.0, %v1630
        %v1632 = vpop.f32.mrf.mxu0
        %1633 = vdwg.mxu0
        %1634 = vmatpush.bf16.msra.mxu0 %v928
        %1635 = vmatpush.bf16.msra.mxu0 %v920
        %1636 = vmatpush.bf16.msra.mxu0 %v912
        %1637 = vmatpush.bf16.msra.mxu0 %v904
        %1638 = vmatpush.bf16.msra.mxu0 %v896
        %1639 = vmatpush.bf16.msra.mxu0 %v888
        %1640 = vmatpush.bf16.msra.mxu0 %v880
        %1641 = vmatpush.bf16.msra.mxu0 %v872
        %1642 = vmatmul.bf16.gmra.mxu0 %v1436
        %v1643 = vpop.f32.mrf.mxu0
        %v1644 = vadd.f32 %v1631, %v1643
        %v1645 = vpop.f32.mrf.mxu0
        %1646 = vdwg.mxu0
        %v1647 = vadd.f32 %v1424, %v1462
        %v1648 = vadd.f32 %v1425, %v1488
        %v1649 = vadd.f32 %v1426, %v1514
        %v1650 = vadd.f32 %v1427, %v1540
        %v1651 = vadd.f32 %v1428, %v1566
        %v1652 = vadd.f32 %v1429, %v1592
        %v1653 = vadd.f32 %v1430, %v1618
        %v1654 = vadd.f32 %v1431, %v1644
        %v1655 = vxor.u32 %v1647, 2147483648
        %v1656 = vxor.u32 %v1648, 2147483648
        %v1657 = vmul.f32 %v1655, 1.442695
        %v1658 = vpow.pop %v1657
        %v1659 = vmul.f32 %v1656, 1.442695
        %v1660 = vpow.pop %v1659
        %v1661 = vadd.f32 %v1658, 1.0
        %v1662 = vadd.f32 %v1660, 1.0
        %v1663 = vrcp.pop %v1661
        %v1664 = vmul.f32 %v1661, %v1663
        %v1665 = vsub.f32 1.0, %v1664
        %v1666 = vmul.f32 %v1663, %v1665
        %v1667 = vadd.f32 %v1663, %v1666
        %vm1668 = vweird.f32 %v1661
        %vm1669 = vweird.f32 %v1663
        %vm1670 = vmor %vm1668, %vm1669
        %v1671 = vsel %vm1670, %v1663, %v1667
        %v1672 = vand.u32 2147483647, %v1661
        %vm1673 = vcmp.eq.f32.partialorder %v1672, 8.507059e+37
        %v1674 = vand.u32 %v1661, 2147483648
        %v1675 = vor.u32 1.1754944e-38, %v1674
        %v1676 = vsel %vm1673, %v1675, %v1671
        %v1677 = vmul.f32 1.0, %v1676
        %v1678 = vrcp.pop %v1662
        %v1679 = vmul.f32 %v1662, %v1678
        %v1680 = vsub.f32 1.0, %v1679
        %v1681 = vmul.f32 %v1678, %v1680
        %v1682 = vadd.f32 %v1678, %v1681
        %vm1683 = vweird.f32 %v1662
        %vm1684 = vweird.f32 %v1678
        %vm1685 = vmor %vm1683, %vm1684
        %v1686 = vsel %vm1685, %v1678, %v1682
        %v1687 = vand.u32 2147483647, %v1662
        %vm1688 = vcmp.eq.f32.partialorder %v1687, 8.507059e+37
        %v1689 = vand.u32 %v1662, 2147483648
        %v1690 = vor.u32 1.1754944e-38, %v1689
        %v1691 = vsel %vm1688, %v1690, %v1686
        %v1692 = vmul.f32 1.0, %v1691
        %v1693 = vxor.u32 %v1649, 2147483648
        %v1694 = vxor.u32 %v1650, 2147483648
        %v1695 = vmul.f32 %v1693, 1.442695
        %v1696 = vpow.pop %v1695
        %v1697 = vmul.f32 %v1694, 1.442695
        %v1698 = vpow.pop %v1697
        %v1699 = vadd.f32 %v1696, 1.0
        %v1700 = vadd.f32 %v1698, 1.0
        %v1701 = vrcp.pop %v1699
        %v1702 = vmul.f32 %v1699, %v1701
        %v1703 = vsub.f32 1.0, %v1702
        %v1704 = vmul.f32 %v1701, %v1703
        %v1705 = vadd.f32 %v1701, %v1704
        %vm1706 = vweird.f32 %v1699
        %vm1707 = vweird.f32 %v1701
        %vm1708 = vmor %vm1706, %vm1707
        %v1709 = vsel %vm1708, %v1701, %v1705
        %v1710 = vand.u32 2147483647, %v1699
        %vm1711 = vcmp.eq.f32.partialorder %v1710, 8.507059e+37
        %v1712 = vand.u32 %v1699, 2147483648
        %v1713 = vor.u32 1.1754944e-38, %v1712
        %v1714 = vsel %vm1711, %v1713, %v1709
        %v1715 = vmul.f32 1.0, %v1714
        %v1716 = vrcp.pop %v1700
        %v1717 = vmul.f32 %v1700, %v1716
        %v1718 = vsub.f32 1.0, %v1717
        %v1719 = vmul.f32 %v1716, %v1718
        %v1720 = vadd.f32 %v1716, %v1719
        %vm1721 = vweird.f32 %v1700
        %vm1722 = vweird.f32 %v1716
        %vm1723 = vmor %vm1721, %vm1722
        %v1724 = vsel %vm1723, %v1716, %v1720
        %v1725 = vand.u32 2147483647, %v1700
        %vm1726 = vcmp.eq.f32.partialorder %v1725, 8.507059e+37
        %v1727 = vand.u32 %v1700, 2147483648
        %v1728 = vor.u32 1.1754944e-38, %v1727
        %v1729 = vsel %vm1726, %v1728, %v1724
        %v1730 = vmul.f32 1.0, %v1729
        %v1731 = vtanh.pop %v1651
        %v1732 = vtanh.pop %v1652
        %v1733 = vxor.u32 %v1653, 2147483648
        %v1734 = vxor.u32 %v1654, 2147483648
        %v1735 = vmul.f32 %v1733, 1.442695
        %v1736 = vpow.pop %v1735
        %v1737 = vmul.f32 %v1734, 1.442695
        %v1738 = vpow.pop %v1737
        %v1739 = vadd.f32 %v1736, 1.0
        %v1740 = vadd.f32 %v1738, 1.0
        %v1741 = vrcp.pop %v1739
        %v1742 = vmul.f32 %v1739, %v1741
        %v1743 = vsub.f32 1.0, %v1742
        %v1744 = vmul.f32 %v1741, %v1743
        %v1745 = vadd.f32 %v1741, %v1744
        %vm1746 = vweird.f32 %v1739
        %vm1747 = vweird.f32 %v1741
        %vm1748 = vmor %vm1746, %vm1747
        %v1749 = vsel %vm1748, %v1741, %v1745
        %v1750 = vand.u32 2147483647, %v1739
        %vm1751 = vcmp.eq.f32.partialorder %v1750, 8.507059e+37
        %v1752 = vand.u32 %v1739, 2147483648
        %v1753 = vor.u32 1.1754944e-38, %v1752
        %v1754 = vsel %vm1751, %v1753, %v1749
        %v1755 = vmul.f32 1.0, %v1754
        %v1756 = vrcp.pop %v1740
        %v1757 = vmul.f32 %v1740, %v1756
        %v1758 = vsub.f32 1.0, %v1757
        %v1759 = vmul.f32 %v1756, %v1758
        %v1760 = vadd.f32 %v1756, %v1759
        %vm1761 = vweird.f32 %v1740
        %vm1762 = vweird.f32 %v1756
        %vm1763 = vmor %vm1761, %vm1762
        %v1764 = vsel %vm1763, %v1756, %v1760
        %v1765 = vand.u32 2147483647, %v1740
        %vm1766 = vcmp.eq.f32.partialorder %v1765, 8.507059e+37
        %v1767 = vand.u32 %v1740, 2147483648
        %v1768 = vor.u32 1.1754944e-38, %v1767
        %v1769 = vsel %vm1766, %v1768, %v1764
        %v1770 = vmul.f32 1.0, %v1769
        %v1771 = vmul.f32 %v1715, %v1409
        %v1772 = vmul.f32 %v1730, %v1410
        %v1773 = vmul.f32 %v1677, %v1731
        %v1774 = vmul.f32 %v1692, %v1732
        %v1775 = vadd.f32 %v1771, %v1773
        %v1776 = vadd.f32 %v1772, %v1774
        %v1777 = vtanh.pop %v1775
        %v1778 = vtanh.pop %v1776
        %v1779 = vmul.f32 %v1755, %v1777
        %v1780 = vmul.f32 %v1770, %v1778
        %s1781 = sadd.s32 %s402, 1
        %p1782 = scmp.lt.s32.totalorder %s1781, 24
        %s1783 = scalar_select %p1782, 1, 0
        %s1784 = scvt.s32.f32 %s1783
        %v1785 = vstv %s1784
        %v1786 = vmul.f32 %v1785, %v1775
        %v1787 = vmul.f32 %v1785, %v1776
        %s1788 = ssub.f32 1.0, %s1784
        %v1789 = vstv %s1788
        %v1790 = vmul.f32 %v1789, %v1409
        %v1791 = vmul.f32 %v1789, %v1410
        %v1792 = vadd.f32 %v1786, %v1790
        %v1793 = vadd.f32 %v1787, %v1791
        %v1794 = vmul.f32 %v1785, %v1779
        %v1795 = vmul.f32 %v1785, %v1780
        %v1796 = vmul.f32 %v1789, %v1415
        %v1797 = vmul.f32 %v1789, %v1416
        %v1798 = vadd.f32 %v1794, %v1796
        %v1799 = vadd.f32 %v1795, %v1797
        %v1800 = vpack.c.bf16 %v1799, %v1798
        %s1801 = scalar_lea.vmem %s255, 8 [#allocation9]
        %1802 = vst [vmem:[%s1801] sm:$0xff] %v1800
        %s1803 = scalar_lea.vmem %s229, 64 [#allocation4]
        %v1804 = vld [vmem:[%s1803] sm:$0xff]
        %v1805 = vld [vmem:[%s1803 + $0x8] sm:$0xff]
        %v1806 = vld [vmem:[%s1803 + $0x10] sm:$0xff]
        %v1807 = vld [vmem:[%s1803 + $0x18] sm:$0xff]
        %v1808 = vunpack.c.l.bf16 %v1804
        %v1809 = vunpack.c.h.bf16 %v1804
        %v1810 = vunpack.c.l.bf16 %v1805
        %v1811 = vunpack.c.h.bf16 %v1805
        %v1812 = vunpack.c.l.bf16 %v1806
        %v1813 = vunpack.c.h.bf16 %v1806
        %v1814 = vunpack.c.l.bf16 %v1807
        %v1815 = vunpack.c.h.bf16 %v1807
        %v1817 = vunpack.c.l.b16 %v1800
        %v1818 = vunpack.c.h.b16 %v1800
        %v1819 = vpack.c.b16 %v1817, %v1817
        %v1820 = vpack.c.b16 %v1818, %v1818
        %1823 = vmatpush.bf16.msra.mxu0 %v857
        %1824 = vmatpush.bf16.msra.mxu0 %v849
        %1825 = vmatpush.bf16.msra.mxu0 %v841
        %1826 = vmatpush.bf16.msra.mxu0 %v833
        %1827 = vmatpush.bf16.msra.mxu0 %v825
        %1828 = vmatpush.bf16.msra.mxu0 %v817
        %1829 = vmatpush.bf16.msra.mxu0 %v809
        %1830 = vmatpush.bf16.msra.mxu0 %v801
        %1831 = vmatmul.bf16.gmra.mxu0 %v1819
        %v1832 = vpop.f32.mrf.mxu0
        %v1833 = vadd.f32 0.0, %v1832
        %v1834 = vpop.f32.mrf.mxu0
        %1835 = vdwg.mxu0
        %1836 = vmatpush.bf16.msra.mxu0 %v921
        %1837 = vmatpush.bf16.msra.mxu0 %v913
        %1838 = vmatpush.bf16.msra.mxu0 %v905
        %1839 = vmatpush.bf16.msra.mxu0 %v897
        %1840 = vmatpush.bf16.msra.mxu0 %v889
        %1841 = vmatpush.bf16.msra.mxu0 %v881
        %1842 = vmatpush.bf16.msra.mxu0 %v873
        %1843 = vmatpush.bf16.msra.mxu0 %v865
        %1844 = vmatmul.bf16.gmra.mxu0 %v1820
        %v1845 = vpop.f32.mrf.mxu0
        %v1846 = vadd.f32 %v1833, %v1845
        %v1847 = vpop.f32.mrf.mxu0
        %1848 = vdwg.mxu0
        %1849 = vmatpush.bf16.msra.mxu0 %v858
        %1850 = vmatpush.bf16.msra.mxu0 %v850
        %1851 = vmatpush.bf16.msra.mxu0 %v842
        %1852 = vmatpush.bf16.msra.mxu0 %v834
        %1853 = vmatpush.bf16.msra.mxu0 %v826
        %1854 = vmatpush.bf16.msra.mxu0 %v818
        %1855 = vmatpush.bf16.msra.mxu0 %v810
        %1856 = vmatpush.bf16.msra.mxu0 %v802
        %1857 = vmatmul.bf16.gmra.mxu0 %v1819
        %v1858 = vpop.f32.mrf.mxu0
        %v1859 = vadd.f32 0.0, %v1858
        %v1860 = vpop.f32.mrf.mxu0
        %1861 = vdwg.mxu0
        %1862 = vmatpush.bf16.msra.mxu0 %v922
        %1863 = vmatpush.bf16.msra.mxu0 %v914
        %1864 = vmatpush.bf16.msra.mxu0 %v906
        %1865 = vmatpush.bf16.msra.mxu0 %v898
        %1866 = vmatpush.bf16.msra.mxu0 %v890
        %1867 = vmatpush.bf16.msra.mxu0 %v882
        %1868 = vmatpush.bf16.msra.mxu0 %v874
        %1869 = vmatpush.bf16.msra.mxu0 %v866
        %1870 = vmatmul.bf16.gmra.mxu0 %v1820
        %v1871 = vpop.f32.mrf.mxu0
        %v1872 = vadd.f32 %v1859, %v1871
        %v1873 = vpop.f32.mrf.mxu0
        %1874 = vdwg.mxu0
        %1875 = vmatpush.bf16.msra.mxu0 %v859
        %1876 = vmatpush.bf16.msra.mxu0 %v851
        %1877 = vmatpush.bf16.msra.mxu0 %v843
        %1878 = vmatpush.bf16.msra.mxu0 %v835
        %1879 = vmatpush.bf16.msra.mxu0 %v827
        %1880 = vmatpush.bf16.msra.mxu0 %v819
        %1881 = vmatpush.bf16.msra.mxu0 %v811
        %1882 = vmatpush.bf16.msra.mxu0 %v803
        %1883 = vmatmul.bf16.gmra.mxu0 %v1819
        %v1884 = vpop.f32.mrf.mxu0
        %v1885 = vadd.f32 0.0, %v1884
        %v1886 = vpop.f32.mrf.mxu0
        %1887 = vdwg.mxu0
        %1888 = vmatpush.bf16.msra.mxu0 %v923
        %1889 = vmatpush.bf16.msra.mxu0 %v915
        %1890 = vmatpush.bf16.msra.mxu0 %v907
        %1891 = vmatpush.bf16.msra.mxu0 %v899
        %1892 = vmatpush.bf16.msra.mxu0 %v891
        %1893 = vmatpush.bf16.msra.mxu0 %v883
        %1894 = vmatpush.bf16.msra.mxu0 %v875
        %1895 = vmatpush.bf16.msra.mxu0 %v867
        %1896 = vmatmul.bf16.gmra.mxu0 %v1820
        %v1897 = vpop.f32.mrf.mxu0
        %v1898 = vadd.f32 %v1885, %v1897
        %v1899 = vpop.f32.mrf.mxu0
        %1900 = vdwg.mxu0
        %1901 = vmatpush.bf16.msra.mxu0 %v860
        %1902 = vmatpush.bf16.msra.mxu0 %v852
        %1903 = vmatpush.bf16.msra.mxu0 %v844
        %1904 = vmatpush.bf16.msra.mxu0 %v836
        %1905 = vmatpush.bf16.msra.mxu0 %v828
        %1906 = vmatpush.bf16.msra.mxu0 %v820
        %1907 = vmatpush.bf16.msra.mxu0 %v812
        %1908 = vmatpush.bf16.msra.mxu0 %v804
        %1909 = vmatmul.bf16.gmra.mxu0 %v1819
        %v1910 = vpop.f32.mrf.mxu0
        %v1911 = vadd.f32 0.0, %v1910
        %v1912 = vpop.f32.mrf.mxu0
        %1913 = vdwg.mxu0
        %1914 = vmatpush.bf16.msra.mxu0 %v924
        %1915 = vmatpush.bf16.msra.mxu0 %v916
        %1916 = vmatpush.bf16.msra.mxu0 %v908
        %1917 = vmatpush.bf16.msra.mxu0 %v900
        %1918 = vmatpush.bf16.msra.mxu0 %v892
        %1919 = vmatpush.bf16.msra.mxu0 %v884
        %1920 = vmatpush.bf16.msra.mxu0 %v876
        %1921 = vmatpush.bf16.msra.mxu0 %v868
        %1922 = vmatmul.bf16.gmra.mxu0 %v1820
        %v1923 = vpop.f32.mrf.mxu0
        %v1924 = vadd.f32 %v1911, %v1923
        %v1925 = vpop.f32.mrf.mxu0
        %1926 = vdwg.mxu0
        %1927 = vmatpush.bf16.msra.mxu0 %v861
        %1928 = vmatpush.bf16.msra.mxu0 %v853
        %1929 = vmatpush.bf16.msra.mxu0 %v845
        %1930 = vmatpush.bf16.msra.mxu0 %v837
        %1931 = vmatpush.bf16.msra.mxu0 %v829
        %1932 = vmatpush.bf16.msra.mxu0 %v821
        %1933 = vmatpush.bf16.msra.mxu0 %v813
        %1934 = vmatpush.bf16.msra.mxu0 %v805
        %1935 = vmatmul.bf16.gmra.mxu0 %v1819
        %v1936 = vpop.f32.mrf.mxu0
        %v1937 = vadd.f32 0.0, %v1936
        %v1938 = vpop.f32.mrf.mxu0
        %1939 = vdwg.mxu0
        %1940 = vmatpush.bf16.msra.mxu0 %v925
        %1941 = vmatpush.bf16.msra.mxu0 %v917
        %1942 = vmatpush.bf16.msra.mxu0 %v909
        %1943 = vmatpush.bf16.msra.mxu0 %v901
        %1944 = vmatpush.bf16.msra.mxu0 %v893
        %1945 = vmatpush.bf16.msra.mxu0 %v885
        %1946 = vmatpush.bf16.msra.mxu0 %v877
        %1947 = vmatpush.bf16.msra.mxu0 %v869
        %1948 = vmatmul.bf16.gmra.mxu0 %v1820
        %v1949 = vpop.f32.mrf.mxu0
        %v1950 = vadd.f32 %v1937, %v1949
        %v1951 = vpop.f32.mrf.mxu0
        %1952 = vdwg.mxu0
        %1953 = vmatpush.bf16.msra.mxu0 %v862
        %1954 = vmatpush.bf16.msra.mxu0 %v854
        %1955 = vmatpush.bf16.msra.mxu0 %v846
        %1956 = vmatpush.bf16.msra.mxu0 %v838
        %1957 = vmatpush.bf16.msra.mxu0 %v830
        %1958 = vmatpush.bf16.msra.mxu0 %v822
        %1959 = vmatpush.bf16.msra.mxu0 %v814
        %1960 = vmatpush.bf16.msra.mxu0 %v806
        %1961 = vmatmul.bf16.gmra.mxu0 %v1819
        %v1962 = vpop.f32.mrf.mxu0
        %v1963 = vadd.f32 0.0, %v1962
        %v1964 = vpop.f32.mrf.mxu0
        %1965 = vdwg.mxu0
        %1966 = vmatpush.bf16.msra.mxu0 %v926
        %1967 = vmatpush.bf16.msra.mxu0 %v918
        %1968 = vmatpush.bf16.msra.mxu0 %v910
        %1969 = vmatpush.bf16.msra.mxu0 %v902
        %1970 = vmatpush.bf16.msra.mxu0 %v894
        %1971 = vmatpush.bf16.msra.mxu0 %v886
        %1972 = vmatpush.bf16.msra.mxu0 %v878
        %1973 = vmatpush.bf16.msra.mxu0 %v870
        %1974 = vmatmul.bf16.gmra.mxu0 %v1820
        %v1975 = vpop.f32.mrf.mxu0
        %v1976 = vadd.f32 %v1963, %v1975
        %v1977 = vpop.f32.mrf.mxu0
        %1978 = vdwg.mxu0
        %1979 = vmatpush.bf16.msra.mxu0 %v863
        %1980 = vmatpush.bf16.msra.mxu0 %v855
        %1981 = vmatpush.bf16.msra.mxu0 %v847
        %1982 = vmatpush.bf16.msra.mxu0 %v839
        %1983 = vmatpush.bf16.msra.mxu0 %v831
        %1984 = vmatpush.bf16.msra.mxu0 %v823
        %1985 = vmatpush.bf16.msra.mxu0 %v815
        %1986 = vmatpush.bf16.msra.mxu0 %v807
        %1987 = vmatmul.bf16.gmra.mxu0 %v1819
        %v1988 = vpop.f32.mrf.mxu0
        %v1989 = vadd.f32 0.0, %v1988
        %v1990 = vpop.f32.mrf.mxu0
        %1991 = vdwg.mxu0
        %1992 = vmatpush.bf16.msra.mxu0 %v927
        %1993 = vmatpush.bf16.msra.mxu0 %v919
        %1994 = vmatpush.bf16.msra.mxu0 %v911
        %1995 = vmatpush.bf16.msra.mxu0 %v903
        %1996 = vmatpush.bf16.msra.mxu0 %v895
        %1997 = vmatpush.bf16.msra.mxu0 %v887
        %1998 = vmatpush.bf16.msra.mxu0 %v879
        %1999 = vmatpush.bf16.msra.mxu0 %v871
        %2000 = vmatmul.bf16.gmra.mxu0 %v1820
        %v2001 = vpop.f32.mrf.mxu0
        %v2002 = vadd.f32 %v1989, %v2001
        %v2003 = vpop.f32.mrf.mxu0
        %2004 = vdwg.mxu0
        %2005 = vmatpush.bf16.msra.mxu0 %v864
        %2006 = vmatpush.bf16.msra.mxu0 %v856
        %2007 = vmatpush.bf16.msra.mxu0 %v848
        %2008 = vmatpush.bf16.msra.mxu0 %v840
        %2009 = vmatpush.bf16.msra.mxu0 %v832
        %2010 = vmatpush.bf16.msra.mxu0 %v824
        %2011 = vmatpush.bf16.msra.mxu0 %v816
        %2012 = vmatpush.bf16.msra.mxu0 %v808
        %2013 = vmatmul.bf16.gmra.mxu0 %v1819
        %v2014 = vpop.f32.mrf.mxu0
        %v2015 = vadd.f32 0.0, %v2014
        %v2016 = vpop.f32.mrf.mxu0
        %2017 = vdwg.mxu0
        %2018 = vmatpush.bf16.msra.mxu0 %v928
        %2019 = vmatpush.bf16.msra.mxu0 %v920
        %2020 = vmatpush.bf16.msra.mxu0 %v912
        %2021 = vmatpush.bf16.msra.mxu0 %v904
        %2022 = vmatpush.bf16.msra.mxu0 %v896
        %2023 = vmatpush.bf16.msra.mxu0 %v888
        %2024 = vmatpush.bf16.msra.mxu0 %v880
        %2025 = vmatpush.bf16.msra.mxu0 %v872
        %2026 = vmatmul.bf16.gmra.mxu0 %v1820
        %v2027 = vpop.f32.mrf.mxu0
        %v2028 = vadd.f32 %v2015, %v2027
        %v2029 = vpop.f32.mrf.mxu0
        %2030 = vdwg.mxu0
        %v2031 = vadd.f32 %v1808, %v1846
        %v2032 = vadd.f32 %v1809, %v1872
        %v2033 = vadd.f32 %v1810, %v1898
        %v2034 = vadd.f32 %v1811, %v1924
        %v2035 = vadd.f32 %v1812, %v1950
        %v2036 = vadd.f32 %v1813, %v1976
        %v2037 = vadd.f32 %v1814, %v2002
        %v2038 = vadd.f32 %v1815, %v2028
        %v2039 = vxor.u32 %v2031, 2147483648
        %v2040 = vxor.u32 %v2032, 2147483648
        %v2041 = vmul.f32 %v2039, 1.442695
        %v2042 = vpow.pop %v2041
        %v2043 = vmul.f32 %v2040, 1.442695
        %v2044 = vpow.pop %v2043
        %v2045 = vadd.f32 %v2042, 1.0
        %v2046 = vadd.f32 %v2044, 1.0
        %v2047 = vrcp.pop %v2045
        %v2048 = vmul.f32 %v2045, %v2047
        %v2049 = vsub.f32 1.0, %v2048
        %v2050 = vmul.f32 %v2047, %v2049
        %v2051 = vadd.f32 %v2047, %v2050
        %vm2052 = vweird.f32 %v2045
        %vm2053 = vweird.f32 %v2047
        %vm2054 = vmor %vm2052, %vm2053
        %v2055 = vsel %vm2054, %v2047, %v2051
        %v2056 = vand.u32 2147483647, %v2045
        %vm2057 = vcmp.eq.f32.partialorder %v2056, 8.507059e+37
        %v2058 = vand.u32 %v2045, 2147483648
        %v2059 = vor.u32 1.1754944e-38, %v2058
        %v2060 = vsel %vm2057, %v2059, %v2055
        %v2061 = vmul.f32 1.0, %v2060
        %v2062 = vrcp.pop %v2046
        %v2063 = vmul.f32 %v2046, %v2062
        %v2064 = vsub.f32 1.0, %v2063
        %v2065 = vmul.f32 %v2062, %v2064
        %v2066 = vadd.f32 %v2062, %v2065
        %vm2067 = vweird.f32 %v2046
        %vm2068 = vweird.f32 %v2062
        %vm2069 = vmor %vm2067, %vm2068
        %v2070 = vsel %vm2069, %v2062, %v2066
        %v2071 = vand.u32 2147483647, %v2046
        %vm2072 = vcmp.eq.f32.partialorder %v2071, 8.507059e+37
        %v2073 = vand.u32 %v2046, 2147483648
        %v2074 = vor.u32 1.1754944e-38, %v2073
        %v2075 = vsel %vm2072, %v2074, %v2070
        %v2076 = vmul.f32 1.0, %v2075
        %v2077 = vxor.u32 %v2033, 2147483648
        %v2078 = vxor.u32 %v2034, 2147483648
        %v2079 = vmul.f32 %v2077, 1.442695
        %v2080 = vpow.pop %v2079
        %v2081 = vmul.f32 %v2078, 1.442695
        %v2082 = vpow.pop %v2081
        %v2083 = vadd.f32 %v2080, 1.0
        %v2084 = vadd.f32 %v2082, 1.0
        %v2085 = vrcp.pop %v2083
        %v2086 = vmul.f32 %v2083, %v2085
        %v2087 = vsub.f32 1.0, %v2086
        %v2088 = vmul.f32 %v2085, %v2087
        %v2089 = vadd.f32 %v2085, %v2088
        %vm2090 = vweird.f32 %v2083
        %vm2091 = vweird.f32 %v2085
        %vm2092 = vmor %vm2090, %vm2091
        %v2093 = vsel %vm2092, %v2085, %v2089
        %v2094 = vand.u32 2147483647, %v2083
        %vm2095 = vcmp.eq.f32.partialorder %v2094, 8.507059e+37
        %v2096 = vand.u32 %v2083, 2147483648
        %v2097 = vor.u32 1.1754944e-38, %v2096
        %v2098 = vsel %vm2095, %v2097, %v2093
        %v2099 = vmul.f32 1.0, %v2098
        %v2100 = vrcp.pop %v2084
        %v2101 = vmul.f32 %v2084, %v2100
        %v2102 = vsub.f32 1.0, %v2101
        %v2103 = vmul.f32 %v2100, %v2102
        %v2104 = vadd.f32 %v2100, %v2103
        %vm2105 = vweird.f32 %v2084
        %vm2106 = vweird.f32 %v2100
        %vm2107 = vmor %vm2105, %vm2106
        %v2108 = vsel %vm2107, %v2100, %v2104
        %v2109 = vand.u32 2147483647, %v2084
        %vm2110 = vcmp.eq.f32.partialorder %v2109, 8.507059e+37
        %v2111 = vand.u32 %v2084, 2147483648
        %v2112 = vor.u32 1.1754944e-38, %v2111
        %v2113 = vsel %vm2110, %v2112, %v2108
        %v2114 = vmul.f32 1.0, %v2113
        %v2115 = vtanh.pop %v2035
        %v2116 = vtanh.pop %v2036
        %v2117 = vxor.u32 %v2037, 2147483648
        %v2118 = vxor.u32 %v2038, 2147483648
        %v2119 = vmul.f32 %v2117, 1.442695
        %v2120 = vpow.pop %v2119
        %v2121 = vmul.f32 %v2118, 1.442695
        %v2122 = vpow.pop %v2121
        %v2123 = vadd.f32 %v2120, 1.0
        %v2124 = vadd.f32 %v2122, 1.0
        %v2125 = vrcp.pop %v2123
        %v2126 = vmul.f32 %v2123, %v2125
        %v2127 = vsub.f32 1.0, %v2126
        %v2128 = vmul.f32 %v2125, %v2127
        %v2129 = vadd.f32 %v2125, %v2128
        %vm2130 = vweird.f32 %v2123
        %vm2131 = vweird.f32 %v2125
        %vm2132 = vmor %vm2130, %vm2131
        %v2133 = vsel %vm2132, %v2125, %v2129
        %v2134 = vand.u32 2147483647, %v2123
        %vm2135 = vcmp.eq.f32.partialorder %v2134, 8.507059e+37
        %v2136 = vand.u32 %v2123, 2147483648
        %v2137 = vor.u32 1.1754944e-38, %v2136
        %v2138 = vsel %vm2135, %v2137, %v2133
        %v2139 = vmul.f32 1.0, %v2138
        %v2140 = vrcp.pop %v2124
        %v2141 = vmul.f32 %v2124, %v2140
        %v2142 = vsub.f32 1.0, %v2141
        %v2143 = vmul.f32 %v2140, %v2142
        %v2144 = vadd.f32 %v2140, %v2143
        %vm2145 = vweird.f32 %v2124
        %vm2146 = vweird.f32 %v2140
        %vm2147 = vmor %vm2145, %vm2146
        %v2148 = vsel %vm2147, %v2140, %v2144
        %v2149 = vand.u32 2147483647, %v2124
        %vm2150 = vcmp.eq.f32.partialorder %v2149, 8.507059e+37
        %v2151 = vand.u32 %v2124, 2147483648
        %v2152 = vor.u32 1.1754944e-38, %v2151
        %v2153 = vsel %vm2150, %v2152, %v2148
        %v2154 = vmul.f32 1.0, %v2153
        %v2155 = vmul.f32 %v2099, %v1792
        %v2156 = vmul.f32 %v2114, %v1793
        %v2157 = vmul.f32 %v2061, %v2115
        %v2158 = vmul.f32 %v2076, %v2116
        %v2159 = vadd.f32 %v2155, %v2157
        %v2160 = vadd.f32 %v2156, %v2158
        %v2161 = vtanh.pop %v2159
        %v2162 = vtanh.pop %v2160
        %v2163 = vmul.f32 %v2139, %v2161
        %v2164 = vmul.f32 %v2154, %v2162
        %s2165 = sadd.s32 %s402, 2
        %p2166 = scmp.lt.s32.totalorder %s2165, 24
        %s2167 = scalar_select %p2166, 1, 0
        %s2168 = scvt.s32.f32 %s2167
        %v2169 = vstv %s2168
        %v2170 = vmul.f32 %v2169, %v2159
        %v2171 = vmul.f32 %v2169, %v2160
        %s2172 = ssub.f32 1.0, %s2168
        %v2173 = vstv %s2172
        %v2174 = vmul.f32 %v2173, %v1792
        %v2175 = vmul.f32 %v2173, %v1793
        %v2176 = vadd.f32 %v2170, %v2174
        %v2177 = vadd.f32 %v2171, %v2175
        %v2178 = vmul.f32 %v2169, %v2163
        %v2179 = vmul.f32 %v2169, %v2164
        %v2180 = vmul.f32 %v2173, %v1798
        %v2181 = vmul.f32 %v2173, %v1799
        %v2182 = vadd.f32 %v2178, %v2180
        %v2183 = vadd.f32 %v2179, %v2181
        %v2184 = vpack.c.bf16 %v2183, %v2182
        %s2185 = scalar_lea.vmem %s255, 16 [#allocation9]
        %2186 = vst [vmem:[%s2185] sm:$0xff] %v2184
        %s2187 = scalar_lea.vmem %s229, 96 [#allocation4]
        %v2188 = vld [vmem:[%s2187] sm:$0xff]
        %v2189 = vld [vmem:[%s2187 + $0x8] sm:$0xff]
        %v2190 = vld [vmem:[%s2187 + $0x10] sm:$0xff]
        %v2191 = vld [vmem:[%s2187 + $0x18] sm:$0xff]
        %v2192 = vunpack.c.l.bf16 %v2188
        %v2193 = vunpack.c.h.bf16 %v2188
        %v2194 = vunpack.c.l.bf16 %v2189
        %v2195 = vunpack.c.h.bf16 %v2189
        %v2196 = vunpack.c.l.bf16 %v2190
        %v2197 = vunpack.c.h.bf16 %v2190
        %v2198 = vunpack.c.l.bf16 %v2191
        %v2199 = vunpack.c.h.bf16 %v2191
        %v2201 = vunpack.c.l.b16 %v2184
        %v2202 = vunpack.c.h.b16 %v2184
        %v2203 = vpack.c.b16 %v2201, %v2201
        %v2204 = vpack.c.b16 %v2202, %v2202
        %2207 = vmatpush.bf16.msra.mxu0 %v857
        %2208 = vmatpush.bf16.msra.mxu0 %v849
        %2209 = vmatpush.bf16.msra.mxu0 %v841
        %2210 = vmatpush.bf16.msra.mxu0 %v833
        %2211 = vmatpush.bf16.msra.mxu0 %v825
        %2212 = vmatpush.bf16.msra.mxu0 %v817
        %2213 = vmatpush.bf16.msra.mxu0 %v809
        %2214 = vmatpush.bf16.msra.mxu0 %v801
        %2215 = vmatmul.bf16.gmra.mxu0 %v2203
        %v2216 = vpop.f32.mrf.mxu0
        %v2217 = vadd.f32 0.0, %v2216
        %v2218 = vpop.f32.mrf.mxu0
        %2219 = vdwg.mxu0
        %2220 = vmatpush.bf16.msra.mxu0 %v921
        %2221 = vmatpush.bf16.msra.mxu0 %v913
        %2222 = vmatpush.bf16.msra.mxu0 %v905
        %2223 = vmatpush.bf16.msra.mxu0 %v897
        %2224 = vmatpush.bf16.msra.mxu0 %v889
        %2225 = vmatpush.bf16.msra.mxu0 %v881
        %2226 = vmatpush.bf16.msra.mxu0 %v873
        %2227 = vmatpush.bf16.msra.mxu0 %v865
        %2228 = vmatmul.bf16.gmra.mxu0 %v2204
        %v2229 = vpop.f32.mrf.mxu0
        %v2230 = vadd.f32 %v2217, %v2229
        %v2231 = vpop.f32.mrf.mxu0
        %2232 = vdwg.mxu0
        %2233 = vmatpush.bf16.msra.mxu0 %v858
        %2234 = vmatpush.bf16.msra.mxu0 %v850
        %2235 = vmatpush.bf16.msra.mxu0 %v842
        %2236 = vmatpush.bf16.msra.mxu0 %v834
        %2237 = vmatpush.bf16.msra.mxu0 %v826
        %2238 = vmatpush.bf16.msra.mxu0 %v818
        %2239 = vmatpush.bf16.msra.mxu0 %v810
        %2240 = vmatpush.bf16.msra.mxu0 %v802
        %2241 = vmatmul.bf16.gmra.mxu0 %v2203
        %v2242 = vpop.f32.mrf.mxu0
        %v2243 = vadd.f32 0.0, %v2242
        %v2244 = vpop.f32.mrf.mxu0
        %2245 = vdwg.mxu0
        %2246 = vmatpush.bf16.msra.mxu0 %v922
        %2247 = vmatpush.bf16.msra.mxu0 %v914
        %2248 = vmatpush.bf16.msra.mxu0 %v906
        %2249 = vmatpush.bf16.msra.mxu0 %v898
        %2250 = vmatpush.bf16.msra.mxu0 %v890
        %2251 = vmatpush.bf16.msra.mxu0 %v882
        %2252 = vmatpush.bf16.msra.mxu0 %v874
        %2253 = vmatpush.bf16.msra.mxu0 %v866
        %2254 = vmatmul.bf16.gmra.mxu0 %v2204
        %v2255 = vpop.f32.mrf.mxu0
        %v2256 = vadd.f32 %v2243, %v2255
        %v2257 = vpop.f32.mrf.mxu0
        %2258 = vdwg.mxu0
        %2259 = vmatpush.bf16.msra.mxu0 %v859
        %2260 = vmatpush.bf16.msra.mxu0 %v851
        %2261 = vmatpush.bf16.msra.mxu0 %v843
        %2262 = vmatpush.bf16.msra.mxu0 %v835
        %2263 = vmatpush.bf16.msra.mxu0 %v827
        %2264 = vmatpush.bf16.msra.mxu0 %v819
        %2265 = vmatpush.bf16.msra.mxu0 %v811
        %2266 = vmatpush.bf16.msra.mxu0 %v803
        %2267 = vmatmul.bf16.gmra.mxu0 %v2203
        %v2268 = vpop.f32.mrf.mxu0
        %v2269 = vadd.f32 0.0, %v2268
        %v2270 = vpop.f32.mrf.mxu0
        %2271 = vdwg.mxu0
        %2272 = vmatpush.bf16.msra.mxu0 %v923
        %2273 = vmatpush.bf16.msra.mxu0 %v915
        %2274 = vmatpush.bf16.msra.mxu0 %v907
        %2275 = vmatpush.bf16.msra.mxu0 %v899
        %2276 = vmatpush.bf16.msra.mxu0 %v891
        %2277 = vmatpush.bf16.msra.mxu0 %v883
        %2278 = vmatpush.bf16.msra.mxu0 %v875
        %2279 = vmatpush.bf16.msra.mxu0 %v867
        %2280 = vmatmul.bf16.gmra.mxu0 %v2204
        %v2281 = vpop.f32.mrf.mxu0
        %v2282 = vadd.f32 %v2269, %v2281
        %v2283 = vpop.f32.mrf.mxu0
        %2284 = vdwg.mxu0
        %2285 = vmatpush.bf16.msra.mxu0 %v860
        %2286 = vmatpush.bf16.msra.mxu0 %v852
        %2287 = vmatpush.bf16.msra.mxu0 %v844
        %2288 = vmatpush.bf16.msra.mxu0 %v836
        %2289 = vmatpush.bf16.msra.mxu0 %v828
        %2290 = vmatpush.bf16.msra.mxu0 %v820
        %2291 = vmatpush.bf16.msra.mxu0 %v812
        %2292 = vmatpush.bf16.msra.mxu0 %v804
        %2293 = vmatmul.bf16.gmra.mxu0 %v2203
        %v2294 = vpop.f32.mrf.mxu0
        %v2295 = vadd.f32 0.0, %v2294
        %v2296 = vpop.f32.mrf.mxu0
        %2297 = vdwg.mxu0
        %2298 = vmatpush.bf16.msra.mxu0 %v924
        %2299 = vmatpush.bf16.msra.mxu0 %v916
        %2300 = vmatpush.bf16.msra.mxu0 %v908
        %2301 = vmatpush.bf16.msra.mxu0 %v900
        %2302 = vmatpush.bf16.msra.mxu0 %v892
        %2303 = vmatpush.bf16.msra.mxu0 %v884
        %2304 = vmatpush.bf16.msra.mxu0 %v876
        %2305 = vmatpush.bf16.msra.mxu0 %v868
        %2306 = vmatmul.bf16.gmra.mxu0 %v2204
        %v2307 = vpop.f32.mrf.mxu0
        %v2308 = vadd.f32 %v2295, %v2307
        %v2309 = vpop.f32.mrf.mxu0
        %2310 = vdwg.mxu0
        %2311 = vmatpush.bf16.msra.mxu0 %v861
        %2312 = vmatpush.bf16.msra.mxu0 %v853
        %2313 = vmatpush.bf16.msra.mxu0 %v845
        %2314 = vmatpush.bf16.msra.mxu0 %v837
        %2315 = vmatpush.bf16.msra.mxu0 %v829
        %2316 = vmatpush.bf16.msra.mxu0 %v821
        %2317 = vmatpush.bf16.msra.mxu0 %v813
        %2318 = vmatpush.bf16.msra.mxu0 %v805
        %2319 = vmatmul.bf16.gmra.mxu0 %v2203
        %v2320 = vpop.f32.mrf.mxu0
        %v2321 = vadd.f32 0.0, %v2320
        %v2322 = vpop.f32.mrf.mxu0
        %2323 = vdwg.mxu0
        %2324 = vmatpush.bf16.msra.mxu0 %v925
        %2325 = vmatpush.bf16.msra.mxu0 %v917
        %2326 = vmatpush.bf16.msra.mxu0 %v909
        %2327 = vmatpush.bf16.msra.mxu0 %v901
        %2328 = vmatpush.bf16.msra.mxu0 %v893
        %2329 = vmatpush.bf16.msra.mxu0 %v885
        %2330 = vmatpush.bf16.msra.mxu0 %v877
        %2331 = vmatpush.bf16.msra.mxu0 %v869
        %2332 = vmatmul.bf16.gmra.mxu0 %v2204
        %v2333 = vpop.f32.mrf.mxu0
        %v2334 = vadd.f32 %v2321, %v2333
        %v2335 = vpop.f32.mrf.mxu0
        %2336 = vdwg.mxu0
        %2337 = vmatpush.bf16.msra.mxu0 %v862
        %2338 = vmatpush.bf16.msra.mxu0 %v854
        %2339 = vmatpush.bf16.msra.mxu0 %v846
        %2340 = vmatpush.bf16.msra.mxu0 %v838
        %2341 = vmatpush.bf16.msra.mxu0 %v830
        %2342 = vmatpush.bf16.msra.mxu0 %v822
        %2343 = vmatpush.bf16.msra.mxu0 %v814
        %2344 = vmatpush.bf16.msra.mxu0 %v806
        %2345 = vmatmul.bf16.gmra.mxu0 %v2203
        %v2346 = vpop.f32.mrf.mxu0
        %v2347 = vadd.f32 0.0, %v2346
        %v2348 = vpop.f32.mrf.mxu0
        %2349 = vdwg.mxu0
        %2350 = vmatpush.bf16.msra.mxu0 %v926
        %2351 = vmatpush.bf16.msra.mxu0 %v918
        %2352 = vmatpush.bf16.msra.mxu0 %v910
        %2353 = vmatpush.bf16.msra.mxu0 %v902
        %2354 = vmatpush.bf16.msra.mxu0 %v894
        %2355 = vmatpush.bf16.msra.mxu0 %v886
        %2356 = vmatpush.bf16.msra.mxu0 %v878
        %2357 = vmatpush.bf16.msra.mxu0 %v870
        %2358 = vmatmul.bf16.gmra.mxu0 %v2204
        %v2359 = vpop.f32.mrf.mxu0
        %v2360 = vadd.f32 %v2347, %v2359
        %v2361 = vpop.f32.mrf.mxu0
        %2362 = vdwg.mxu0
        %2363 = vmatpush.bf16.msra.mxu0 %v863
        %2364 = vmatpush.bf16.msra.mxu0 %v855
        %2365 = vmatpush.bf16.msra.mxu0 %v847
        %2366 = vmatpush.bf16.msra.mxu0 %v839
        %2367 = vmatpush.bf16.msra.mxu0 %v831
        %2368 = vmatpush.bf16.msra.mxu0 %v823
        %2369 = vmatpush.bf16.msra.mxu0 %v815
        %2370 = vmatpush.bf16.msra.mxu0 %v807
        %2371 = vmatmul.bf16.gmra.mxu0 %v2203
        %v2372 = vpop.f32.mrf.mxu0
        %v2373 = vadd.f32 0.0, %v2372
        %v2374 = vpop.f32.mrf.mxu0
        %2375 = vdwg.mxu0
        %2376 = vmatpush.bf16.msra.mxu0 %v927
        %2377 = vmatpush.bf16.msra.mxu0 %v919
        %2378 = vmatpush.bf16.msra.mxu0 %v911
        %2379 = vmatpush.bf16.msra.mxu0 %v903
        %2380 = vmatpush.bf16.msra.mxu0 %v895
        %2381 = vmatpush.bf16.msra.mxu0 %v887
        %2382 = vmatpush.bf16.msra.mxu0 %v879
        %2383 = vmatpush.bf16.msra.mxu0 %v871
        %2384 = vmatmul.bf16.gmra.mxu0 %v2204
        %v2385 = vpop.f32.mrf.mxu0
        %v2386 = vadd.f32 %v2373, %v2385
        %v2387 = vpop.f32.mrf.mxu0
        %2388 = vdwg.mxu0
        %2389 = vmatpush.bf16.msra.mxu0 %v864
        %2390 = vmatpush.bf16.msra.mxu0 %v856
        %2391 = vmatpush.bf16.msra.mxu0 %v848
        %2392 = vmatpush.bf16.msra.mxu0 %v840
        %2393 = vmatpush.bf16.msra.mxu0 %v832
        %2394 = vmatpush.bf16.msra.mxu0 %v824
        %2395 = vmatpush.bf16.msra.mxu0 %v816
        %2396 = vmatpush.bf16.msra.mxu0 %v808
        %2397 = vmatmul.bf16.gmra.mxu0 %v2203
        %v2398 = vpop.f32.mrf.mxu0
        %v2399 = vadd.f32 0.0, %v2398
        %v2400 = vpop.f32.mrf.mxu0
        %2401 = vdwg.mxu0
        %2402 = vmatpush.bf16.msra.mxu0 %v928
        %2403 = vmatpush.bf16.msra.mxu0 %v920
        %2404 = vmatpush.bf16.msra.mxu0 %v912
        %2405 = vmatpush.bf16.msra.mxu0 %v904
        %2406 = vmatpush.bf16.msra.mxu0 %v896
        %2407 = vmatpush.bf16.msra.mxu0 %v888
        %2408 = vmatpush.bf16.msra.mxu0 %v880
        %2409 = vmatpush.bf16.msra.mxu0 %v872
        %2410 = vmatmul.bf16.gmra.mxu0 %v2204
        %v2411 = vpop.f32.mrf.mxu0
        %v2412 = vadd.f32 %v2399, %v2411
        %v2413 = vpop.f32.mrf.mxu0
        %2414 = vdwg.mxu0
        %v2415 = vadd.f32 %v2192, %v2230
        %v2416 = vadd.f32 %v2193, %v2256
        %v2417 = vadd.f32 %v2194, %v2282
        %v2418 = vadd.f32 %v2195, %v2308
        %v2419 = vadd.f32 %v2196, %v2334
        %v2420 = vadd.f32 %v2197, %v2360
        %v2421 = vadd.f32 %v2198, %v2386
        %v2422 = vadd.f32 %v2199, %v2412
        %v2423 = vxor.u32 %v2415, 2147483648
        %v2424 = vxor.u32 %v2416, 2147483648
        %v2425 = vmul.f32 %v2423, 1.442695
        %v2426 = vpow.pop %v2425
        %v2427 = vmul.f32 %v2424, 1.442695
        %v2428 = vpow.pop %v2427
        %v2429 = vadd.f32 %v2426, 1.0
        %v2430 = vadd.f32 %v2428, 1.0
        %v2431 = vrcp.pop %v2429
        %v2432 = vmul.f32 %v2429, %v2431
        %v2433 = vsub.f32 1.0, %v2432
        %v2434 = vmul.f32 %v2431, %v2433
        %v2435 = vadd.f32 %v2431, %v2434
        %vm2436 = vweird.f32 %v2429
        %vm2437 = vweird.f32 %v2431
        %vm2438 = vmor %vm2436, %vm2437
        %v2439 = vsel %vm2438, %v2431, %v2435
        %v2440 = vand.u32 2147483647, %v2429
        %vm2441 = vcmp.eq.f32.partialorder %v2440, 8.507059e+37
        %v2442 = vand.u32 %v2429, 2147483648
        %v2443 = vor.u32 1.1754944e-38, %v2442
        %v2444 = vsel %vm2441, %v2443, %v2439
        %v2445 = vmul.f32 1.0, %v2444
        %v2446 = vrcp.pop %v2430
        %v2447 = vmul.f32 %v2430, %v2446
        %v2448 = vsub.f32 1.0, %v2447
        %v2449 = vmul.f32 %v2446, %v2448
        %v2450 = vadd.f32 %v2446, %v2449
        %vm2451 = vweird.f32 %v2430
        %vm2452 = vweird.f32 %v2446
        %vm2453 = vmor %vm2451, %vm2452
        %v2454 = vsel %vm2453, %v2446, %v2450
        %v2455 = vand.u32 2147483647, %v2430
        %vm2456 = vcmp.eq.f32.partialorder %v2455, 8.507059e+37
        %v2457 = vand.u32 %v2430, 2147483648
        %v2458 = vor.u32 1.1754944e-38, %v2457
        %v2459 = vsel %vm2456, %v2458, %v2454
        %v2460 = vmul.f32 1.0, %v2459
        %v2461 = vxor.u32 %v2417, 2147483648
        %v2462 = vxor.u32 %v2418, 2147483648
        %v2463 = vmul.f32 %v2461, 1.442695
        %v2464 = vpow.pop %v2463
        %v2465 = vmul.f32 %v2462, 1.442695
        %v2466 = vpow.pop %v2465
        %v2467 = vadd.f32 %v2464, 1.0
        %v2468 = vadd.f32 %v2466, 1.0
        %v2469 = vrcp.pop %v2467
        %v2470 = vmul.f32 %v2467, %v2469
        %v2471 = vsub.f32 1.0, %v2470
        %v2472 = vmul.f32 %v2469, %v2471
        %v2473 = vadd.f32 %v2469, %v2472
        %vm2474 = vweird.f32 %v2467
        %vm2475 = vweird.f32 %v2469
        %vm2476 = vmor %vm2474, %vm2475
        %v2477 = vsel %vm2476, %v2469, %v2473
        %v2478 = vand.u32 2147483647, %v2467
        %vm2479 = vcmp.eq.f32.partialorder %v2478, 8.507059e+37
        %v2480 = vand.u32 %v2467, 2147483648
        %v2481 = vor.u32 1.1754944e-38, %v2480
        %v2482 = vsel %vm2479, %v2481, %v2477
        %v2483 = vmul.f32 1.0, %v2482
        %v2484 = vrcp.pop %v2468
        %v2485 = vmul.f32 %v2468, %v2484
        %v2486 = vsub.f32 1.0, %v2485
        %v2487 = vmul.f32 %v2484, %v2486
        %v2488 = vadd.f32 %v2484, %v2487
        %vm2489 = vweird.f32 %v2468
        %vm2490 = vweird.f32 %v2484
        %vm2491 = vmor %vm2489, %vm2490
        %v2492 = vsel %vm2491, %v2484, %v2488
        %v2493 = vand.u32 2147483647, %v2468
        %vm2494 = vcmp.eq.f32.partialorder %v2493, 8.507059e+37
        %v2495 = vand.u32 %v2468, 2147483648
        %v2496 = vor.u32 1.1754944e-38, %v2495
        %v2497 = vsel %vm2494, %v2496, %v2492
        %v2498 = vmul.f32 1.0, %v2497
        %v2499 = vtanh.pop %v2419
        %v2500 = vtanh.pop %v2420
        %v2501 = vxor.u32 %v2421, 2147483648
        %v2502 = vxor.u32 %v2422, 2147483648
        %v2503 = vmul.f32 %v2501, 1.442695
        %v2504 = vpow.pop %v2503
        %v2505 = vmul.f32 %v2502, 1.442695
        %v2506 = vpow.pop %v2505
        %v2507 = vadd.f32 %v2504, 1.0
        %v2508 = vadd.f32 %v2506, 1.0
        %v2509 = vrcp.pop %v2507
        %v2510 = vmul.f32 %v2507, %v2509
        %v2511 = vsub.f32 1.0, %v2510
        %v2512 = vmul.f32 %v2509, %v2511
        %v2513 = vadd.f32 %v2509, %v2512
        %vm2514 = vweird.f32 %v2507
        %vm2515 = vweird.f32 %v2509
        %vm2516 = vmor %vm2514, %vm2515
        %v2517 = vsel %vm2516, %v2509, %v2513
        %v2518 = vand.u32 2147483647, %v2507
        %vm2519 = vcmp.eq.f32.partialorder %v2518, 8.507059e+37
        %v2520 = vand.u32 %v2507, 2147483648
        %v2521 = vor.u32 1.1754944e-38, %v2520
        %v2522 = vsel %vm2519, %v2521, %v2517
        %v2523 = vmul.f32 1.0, %v2522
        %v2524 = vrcp.pop %v2508
        %v2525 = vmul.f32 %v2508, %v2524
        %v2526 = vsub.f32 1.0, %v2525
        %v2527 = vmul.f32 %v2524, %v2526
        %v2528 = vadd.f32 %v2524, %v2527
        %vm2529 = vweird.f32 %v2508
        %vm2530 = vweird.f32 %v2524
        %vm2531 = vmor %vm2529, %vm2530
        %v2532 = vsel %vm2531, %v2524, %v2528
        %v2533 = vand.u32 2147483647, %v2508
        %vm2534 = vcmp.eq.f32.partialorder %v2533, 8.507059e+37
        %v2535 = vand.u32 %v2508, 2147483648
        %v2536 = vor.u32 1.1754944e-38, %v2535
        %v2537 = vsel %vm2534, %v2536, %v2532
        %v2538 = vmul.f32 1.0, %v2537
        %v2539 = vmul.f32 %v2483, %v2176
        %v2540 = vmul.f32 %v2498, %v2177
        %v2541 = vmul.f32 %v2445, %v2499
        %v2542 = vmul.f32 %v2460, %v2500
        %v2543 = vadd.f32 %v2539, %v2541
        %v2544 = vadd.f32 %v2540, %v2542
        %v2545 = vtanh.pop %v2543
        %v2546 = vtanh.pop %v2544
        %v2547 = vmul.f32 %v2523, %v2545
        %v2548 = vmul.f32 %v2538, %v2546
        %s2549 = sadd.s32 %s402, 3
        %p2550 = scmp.lt.s32.totalorder %s2549, 24
        %s2551 = scalar_select %p2550, 1, 0
        %s2552 = scvt.s32.f32 %s2551
        %v2553 = vstv %s2552
        %v2554 = vmul.f32 %v2553, %v2543
        %v2555 = vmul.f32 %v2553, %v2544
        %s2556 = ssub.f32 1.0, %s2552
        %v2557 = vstv %s2556
        %v2558 = vmul.f32 %v2557, %v2176
        %v2559 = vmul.f32 %v2557, %v2177
        %v2560 = vadd.f32 %v2554, %v2558
        %v2561 = vadd.f32 %v2555, %v2559
        %v2562 = vmul.f32 %v2553, %v2547
        %v2563 = vmul.f32 %v2553, %v2548
        %v2564 = vmul.f32 %v2557, %v2182
        %v2565 = vmul.f32 %v2557, %v2183
        %v2566 = vadd.f32 %v2562, %v2564
        %v2567 = vadd.f32 %v2563, %v2565
        %v2568 = vpack.c.bf16 %v2567, %v2566
        %s2569 = scalar_lea.vmem %s255, 24 [#allocation9]
        %2570 = vst [vmem:[%s2569] sm:$0xff] %v2568
        %s2571 = scalar_lea.vmem %s229, 128 [#allocation4]
        %v2572 = vld [vmem:[%s2571] sm:$0xff]
        %v2573 = vld [vmem:[%s2571 + $0x8] sm:$0xff]
        %v2574 = vld [vmem:[%s2571 + $0x10] sm:$0xff]
        %v2575 = vld [vmem:[%s2571 + $0x18] sm:$0xff]
        %v2576 = vunpack.c.l.bf16 %v2572
        %v2577 = vunpack.c.h.bf16 %v2572
        %v2578 = vunpack.c.l.bf16 %v2573
        %v2579 = vunpack.c.h.bf16 %v2573
        %v2580 = vunpack.c.l.bf16 %v2574
        %v2581 = vunpack.c.h.bf16 %v2574
        %v2582 = vunpack.c.l.bf16 %v2575
        %v2583 = vunpack.c.h.bf16 %v2575
        %v2585 = vunpack.c.l.b16 %v2568
        %v2586 = vunpack.c.h.b16 %v2568
        %v2587 = vpack.c.b16 %v2585, %v2585
        %v2588 = vpack.c.b16 %v2586, %v2586
        %2591 = vmatpush.bf16.msra.mxu0 %v857
        %2592 = vmatpush.bf16.msra.mxu0 %v849
        %2593 = vmatpush.bf16.msra.mxu0 %v841
        %2594 = vmatpush.bf16.msra.mxu0 %v833
        %2595 = vmatpush.bf16.msra.mxu0 %v825
        %2596 = vmatpush.bf16.msra.mxu0 %v817
        %2597 = vmatpush.bf16.msra.mxu0 %v809
        %2598 = vmatpush.bf16.msra.mxu0 %v801
        %2599 = vmatmul.bf16.gmra.mxu0 %v2587
        %v2600 = vpop.f32.mrf.mxu0
        %v2601 = vadd.f32 0.0, %v2600
        %v2602 = vpop.f32.mrf.mxu0
        %2603 = vdwg.mxu0
        %2604 = vmatpush.bf16.msra.mxu0 %v921
        %2605 = vmatpush.bf16.msra.mxu0 %v913
        %2606 = vmatpush.bf16.msra.mxu0 %v905
        %2607 = vmatpush.bf16.msra.mxu0 %v897
        %2608 = vmatpush.bf16.msra.mxu0 %v889
        %2609 = vmatpush.bf16.msra.mxu0 %v881
        %2610 = vmatpush.bf16.msra.mxu0 %v873
        %2611 = vmatpush.bf16.msra.mxu0 %v865
        %2612 = vmatmul.bf16.gmra.mxu0 %v2588
        %v2613 = vpop.f32.mrf.mxu0
        %v2614 = vadd.f32 %v2601, %v2613
        %v2615 = vpop.f32.mrf.mxu0
        %2616 = vdwg.mxu0
        %2617 = vmatpush.bf16.msra.mxu0 %v858
        %2618 = vmatpush.bf16.msra.mxu0 %v850
        %2619 = vmatpush.bf16.msra.mxu0 %v842
        %2620 = vmatpush.bf16.msra.mxu0 %v834
        %2621 = vmatpush.bf16.msra.mxu0 %v826
        %2622 = vmatpush.bf16.msra.mxu0 %v818
        %2623 = vmatpush.bf16.msra.mxu0 %v810
        %2624 = vmatpush.bf16.msra.mxu0 %v802
        %2625 = vmatmul.bf16.gmra.mxu0 %v2587
        %v2626 = vpop.f32.mrf.mxu0
        %v2627 = vadd.f32 0.0, %v2626
        %v2628 = vpop.f32.mrf.mxu0
        %2629 = vdwg.mxu0
        %2630 = vmatpush.bf16.msra.mxu0 %v922
        %2631 = vmatpush.bf16.msra.mxu0 %v914
        %2632 = vmatpush.bf16.msra.mxu0 %v906
        %2633 = vmatpush.bf16.msra.mxu0 %v898
        %2634 = vmatpush.bf16.msra.mxu0 %v890
        %2635 = vmatpush.bf16.msra.mxu0 %v882
        %2636 = vmatpush.bf16.msra.mxu0 %v874
        %2637 = vmatpush.bf16.msra.mxu0 %v866
        %2638 = vmatmul.bf16.gmra.mxu0 %v2588
        %v2639 = vpop.f32.mrf.mxu0
        %v2640 = vadd.f32 %v2627, %v2639
        %v2641 = vpop.f32.mrf.mxu0
        %2642 = vdwg.mxu0
        %2643 = vmatpush.bf16.msra.mxu0 %v859
        %2644 = vmatpush.bf16.msra.mxu0 %v851
        %2645 = vmatpush.bf16.msra.mxu0 %v843
        %2646 = vmatpush.bf16.msra.mxu0 %v835
        %2647 = vmatpush.bf16.msra.mxu0 %v827
        %2648 = vmatpush.bf16.msra.mxu0 %v819
        %2649 = vmatpush.bf16.msra.mxu0 %v811
        %2650 = vmatpush.bf16.msra.mxu0 %v803
        %2651 = vmatmul.bf16.gmra.mxu0 %v2587
        %v2652 = vpop.f32.mrf.mxu0
        %v2653 = vadd.f32 0.0, %v2652
        %v2654 = vpop.f32.mrf.mxu0
        %2655 = vdwg.mxu0
        %2656 = vmatpush.bf16.msra.mxu0 %v923
        %2657 = vmatpush.bf16.msra.mxu0 %v915
        %2658 = vmatpush.bf16.msra.mxu0 %v907
        %2659 = vmatpush.bf16.msra.mxu0 %v899
        %2660 = vmatpush.bf16.msra.mxu0 %v891
        %2661 = vmatpush.bf16.msra.mxu0 %v883
        %2662 = vmatpush.bf16.msra.mxu0 %v875
        %2663 = vmatpush.bf16.msra.mxu0 %v867
        %2664 = vmatmul.bf16.gmra.mxu0 %v2588
        %v2665 = vpop.f32.mrf.mxu0
        %v2666 = vadd.f32 %v2653, %v2665
        %v2667 = vpop.f32.mrf.mxu0
        %2668 = vdwg.mxu0
        %2669 = vmatpush.bf16.msra.mxu0 %v860
        %2670 = vmatpush.bf16.msra.mxu0 %v852
        %2671 = vmatpush.bf16.msra.mxu0 %v844
        %2672 = vmatpush.bf16.msra.mxu0 %v836
        %2673 = vmatpush.bf16.msra.mxu0 %v828
        %2674 = vmatpush.bf16.msra.mxu0 %v820
        %2675 = vmatpush.bf16.msra.mxu0 %v812
        %2676 = vmatpush.bf16.msra.mxu0 %v804
        %2677 = vmatmul.bf16.gmra.mxu0 %v2587
        %v2678 = vpop.f32.mrf.mxu0
        %v2679 = vadd.f32 0.0, %v2678
        %v2680 = vpop.f32.mrf.mxu0
        %2681 = vdwg.mxu0
        %2682 = vmatpush.bf16.msra.mxu0 %v924
        %2683 = vmatpush.bf16.msra.mxu0 %v916
        %2684 = vmatpush.bf16.msra.mxu0 %v908
        %2685 = vmatpush.bf16.msra.mxu0 %v900
        %2686 = vmatpush.bf16.msra.mxu0 %v892
        %2687 = vmatpush.bf16.msra.mxu0 %v884
        %2688 = vmatpush.bf16.msra.mxu0 %v876
        %2689 = vmatpush.bf16.msra.mxu0 %v868
        %2690 = vmatmul.bf16.gmra.mxu0 %v2588
        %v2691 = vpop.f32.mrf.mxu0
        %v2692 = vadd.f32 %v2679, %v2691
        %v2693 = vpop.f32.mrf.mxu0
        %2694 = vdwg.mxu0
        %2695 = vmatpush.bf16.msra.mxu0 %v861
        %2696 = vmatpush.bf16.msra.mxu0 %v853
        %2697 = vmatpush.bf16.msra.mxu0 %v845
        %2698 = vmatpush.bf16.msra.mxu0 %v837
        %2699 = vmatpush.bf16.msra.mxu0 %v829
        %2700 = vmatpush.bf16.msra.mxu0 %v821
        %2701 = vmatpush.bf16.msra.mxu0 %v813
        %2702 = vmatpush.bf16.msra.mxu0 %v805
        %2703 = vmatmul.bf16.gmra.mxu0 %v2587
        %v2704 = vpop.f32.mrf.mxu0
        %v2705 = vadd.f32 0.0, %v2704
        %v2706 = vpop.f32.mrf.mxu0
        %2707 = vdwg.mxu0
        %2708 = vmatpush.bf16.msra.mxu0 %v925
        %2709 = vmatpush.bf16.msra.mxu0 %v917
        %2710 = vmatpush.bf16.msra.mxu0 %v909
        %2711 = vmatpush.bf16.msra.mxu0 %v901
        %2712 = vmatpush.bf16.msra.mxu0 %v893
        %2713 = vmatpush.bf16.msra.mxu0 %v885
        %2714 = vmatpush.bf16.msra.mxu0 %v877
        %2715 = vmatpush.bf16.msra.mxu0 %v869
        %2716 = vmatmul.bf16.gmra.mxu0 %v2588
        %v2717 = vpop.f32.mrf.mxu0
        %v2718 = vadd.f32 %v2705, %v2717
        %v2719 = vpop.f32.mrf.mxu0
        %2720 = vdwg.mxu0
        %2721 = vmatpush.bf16.msra.mxu0 %v862
        %2722 = vmatpush.bf16.msra.mxu0 %v854
        %2723 = vmatpush.bf16.msra.mxu0 %v846
        %2724 = vmatpush.bf16.msra.mxu0 %v838
        %2725 = vmatpush.bf16.msra.mxu0 %v830
        %2726 = vmatpush.bf16.msra.mxu0 %v822
        %2727 = vmatpush.bf16.msra.mxu0 %v814
        %2728 = vmatpush.bf16.msra.mxu0 %v806
        %2729 = vmatmul.bf16.gmra.mxu0 %v2587
        %v2730 = vpop.f32.mrf.mxu0
        %v2731 = vadd.f32 0.0, %v2730
        %v2732 = vpop.f32.mrf.mxu0
        %2733 = vdwg.mxu0
        %2734 = vmatpush.bf16.msra.mxu0 %v926
        %2735 = vmatpush.bf16.msra.mxu0 %v918
        %2736 = vmatpush.bf16.msra.mxu0 %v910
        %2737 = vmatpush.bf16.msra.mxu0 %v902
        %2738 = vmatpush.bf16.msra.mxu0 %v894
        %2739 = vmatpush.bf16.msra.mxu0 %v886
        %2740 = vmatpush.bf16.msra.mxu0 %v878
        %2741 = vmatpush.bf16.msra.mxu0 %v870
        %2742 = vmatmul.bf16.gmra.mxu0 %v2588
        %v2743 = vpop.f32.mrf.mxu0
        %v2744 = vadd.f32 %v2731, %v2743
        %v2745 = vpop.f32.mrf.mxu0
        %2746 = vdwg.mxu0
        %2747 = vmatpush.bf16.msra.mxu0 %v863
        %2748 = vmatpush.bf16.msra.mxu0 %v855
        %2749 = vmatpush.bf16.msra.mxu0 %v847
        %2750 = vmatpush.bf16.msra.mxu0 %v839
        %2751 = vmatpush.bf16.msra.mxu0 %v831
        %2752 = vmatpush.bf16.msra.mxu0 %v823
        %2753 = vmatpush.bf16.msra.mxu0 %v815
        %2754 = vmatpush.bf16.msra.mxu0 %v807
        %2755 = vmatmul.bf16.gmra.mxu0 %v2587
        %v2756 = vpop.f32.mrf.mxu0
        %v2757 = vadd.f32 0.0, %v2756
        %v2758 = vpop.f32.mrf.mxu0
        %2759 = vdwg.mxu0
        %2760 = vmatpush.bf16.msra.mxu0 %v927
        %2761 = vmatpush.bf16.msra.mxu0 %v919
        %2762 = vmatpush.bf16.msra.mxu0 %v911
        %2763 = vmatpush.bf16.msra.mxu0 %v903
        %2764 = vmatpush.bf16.msra.mxu0 %v895
        %2765 = vmatpush.bf16.msra.mxu0 %v887
        %2766 = vmatpush.bf16.msra.mxu0 %v879
        %2767 = vmatpush.bf16.msra.mxu0 %v871
        %2768 = vmatmul.bf16.gmra.mxu0 %v2588
        %v2769 = vpop.f32.mrf.mxu0
        %v2770 = vadd.f32 %v2757, %v2769
        %v2771 = vpop.f32.mrf.mxu0
        %2772 = vdwg.mxu0
        %2773 = vmatpush.bf16.msra.mxu0 %v864
        %2774 = vmatpush.bf16.msra.mxu0 %v856
        %2775 = vmatpush.bf16.msra.mxu0 %v848
        %2776 = vmatpush.bf16.msra.mxu0 %v840
        %2777 = vmatpush.bf16.msra.mxu0 %v832
        %2778 = vmatpush.bf16.msra.mxu0 %v824
        %2779 = vmatpush.bf16.msra.mxu0 %v816
        %2780 = vmatpush.bf16.msra.mxu0 %v808
        %2781 = vmatmul.bf16.gmra.mxu0 %v2587
        %v2782 = vpop.f32.mrf.mxu0
        %v2783 = vadd.f32 0.0, %v2782
        %v2784 = vpop.f32.mrf.mxu0
        %2785 = vdwg.mxu0
        %2786 = vmatpush.bf16.msra.mxu0 %v928
        %2787 = vmatpush.bf16.msra.mxu0 %v920
        %2788 = vmatpush.bf16.msra.mxu0 %v912
        %2789 = vmatpush.bf16.msra.mxu0 %v904
        %2790 = vmatpush.bf16.msra.mxu0 %v896
        %2791 = vmatpush.bf16.msra.mxu0 %v888
        %2792 = vmatpush.bf16.msra.mxu0 %v880
        %2793 = vmatpush.bf16.msra.mxu0 %v872
        %2794 = vmatmul.bf16.gmra.mxu0 %v2588
        %v2795 = vpop.f32.mrf.mxu0
        %v2796 = vadd.f32 %v2783, %v2795
        %v2797 = vpop.f32.mrf.mxu0
        %2798 = vdwg.mxu0
        %v2799 = vadd.f32 %v2576, %v2614
        %v2800 = vadd.f32 %v2577, %v2640
        %v2801 = vadd.f32 %v2578, %v2666
        %v2802 = vadd.f32 %v2579, %v2692
        %v2803 = vadd.f32 %v2580, %v2718
        %v2804 = vadd.f32 %v2581, %v2744
        %v2805 = vadd.f32 %v2582, %v2770
        %v2806 = vadd.f32 %v2583, %v2796
        %v2807 = vxor.u32 %v2799, 2147483648
        %v2808 = vxor.u32 %v2800, 2147483648
        %v2809 = vmul.f32 %v2807, 1.442695
        %v2810 = vpow.pop %v2809
        %v2811 = vmul.f32 %v2808, 1.442695
        %v2812 = vpow.pop %v2811
        %v2813 = vadd.f32 %v2810, 1.0
        %v2814 = vadd.f32 %v2812, 1.0
        %v2815 = vrcp.pop %v2813
        %v2816 = vmul.f32 %v2813, %v2815
        %v2817 = vsub.f32 1.0, %v2816
        %v2818 = vmul.f32 %v2815, %v2817
        %v2819 = vadd.f32 %v2815, %v2818
        %vm2820 = vweird.f32 %v2813
        %vm2821 = vweird.f32 %v2815
        %vm2822 = vmor %vm2820, %vm2821
        %v2823 = vsel %vm2822, %v2815, %v2819
        %v2824 = vand.u32 2147483647, %v2813
        %vm2825 = vcmp.eq.f32.partialorder %v2824, 8.507059e+37
        %v2826 = vand.u32 %v2813, 2147483648
        %v2827 = vor.u32 1.1754944e-38, %v2826
        %v2828 = vsel %vm2825, %v2827, %v2823
        %v2829 = vmul.f32 1.0, %v2828
        %v2830 = vrcp.pop %v2814
        %v2831 = vmul.f32 %v2814, %v2830
        %v2832 = vsub.f32 1.0, %v2831
        %v2833 = vmul.f32 %v2830, %v2832
        %v2834 = vadd.f32 %v2830, %v2833
        %vm2835 = vweird.f32 %v2814
        %vm2836 = vweird.f32 %v2830
        %vm2837 = vmor %vm2835, %vm2836
        %v2838 = vsel %vm2837, %v2830, %v2834
        %v2839 = vand.u32 2147483647, %v2814
        %vm2840 = vcmp.eq.f32.partialorder %v2839, 8.507059e+37
        %v2841 = vand.u32 %v2814, 2147483648
        %v2842 = vor.u32 1.1754944e-38, %v2841
        %v2843 = vsel %vm2840, %v2842, %v2838
        %v2844 = vmul.f32 1.0, %v2843
        %v2845 = vxor.u32 %v2801, 2147483648
        %v2846 = vxor.u32 %v2802, 2147483648
        %v2847 = vmul.f32 %v2845, 1.442695
        %v2848 = vpow.pop %v2847
        %v2849 = vmul.f32 %v2846, 1.442695
        %v2850 = vpow.pop %v2849
        %v2851 = vadd.f32 %v2848, 1.0
        %v2852 = vadd.f32 %v2850, 1.0
        %v2853 = vrcp.pop %v2851
        %v2854 = vmul.f32 %v2851, %v2853
        %v2855 = vsub.f32 1.0, %v2854
        %v2856 = vmul.f32 %v2853, %v2855
        %v2857 = vadd.f32 %v2853, %v2856
        %vm2858 = vweird.f32 %v2851
        %vm2859 = vweird.f32 %v2853
        %vm2860 = vmor %vm2858, %vm2859
        %v2861 = vsel %vm2860, %v2853, %v2857
        %v2862 = vand.u32 2147483647, %v2851
        %vm2863 = vcmp.eq.f32.partialorder %v2862, 8.507059e+37
        %v2864 = vand.u32 %v2851, 2147483648
        %v2865 = vor.u32 1.1754944e-38, %v2864
        %v2866 = vsel %vm2863, %v2865, %v2861
        %v2867 = vmul.f32 1.0, %v2866
        %v2868 = vrcp.pop %v2852
        %v2869 = vmul.f32 %v2852, %v2868
        %v2870 = vsub.f32 1.0, %v2869
        %v2871 = vmul.f32 %v2868, %v2870
        %v2872 = vadd.f32 %v2868, %v2871
        %vm2873 = vweird.f32 %v2852
        %vm2874 = vweird.f32 %v2868
        %vm2875 = vmor %vm2873, %vm2874
        %v2876 = vsel %vm2875, %v2868, %v2872
        %v2877 = vand.u32 2147483647, %v2852
        %vm2878 = vcmp.eq.f32.partialorder %v2877, 8.507059e+37
        %v2879 = vand.u32 %v2852, 2147483648
        %v2880 = vor.u32 1.1754944e-38, %v2879
        %v2881 = vsel %vm2878, %v2880, %v2876
        %v2882 = vmul.f32 1.0, %v2881
        %v2883 = vtanh.pop %v2803
        %v2884 = vtanh.pop %v2804
        %v2885 = vxor.u32 %v2805, 2147483648
        %v2886 = vxor.u32 %v2806, 2147483648
        %v2887 = vmul.f32 %v2885, 1.442695
        %v2888 = vpow.pop %v2887
        %v2889 = vmul.f32 %v2886, 1.442695
        %v2890 = vpow.pop %v2889
        %v2891 = vadd.f32 %v2888, 1.0
        %v2892 = vadd.f32 %v2890, 1.0
        %v2893 = vrcp.pop %v2891
        %v2894 = vmul.f32 %v2891, %v2893
        %v2895 = vsub.f32 1.0, %v2894
        %v2896 = vmul.f32 %v2893, %v2895
        %v2897 = vadd.f32 %v2893, %v2896
        %vm2898 = vweird.f32 %v2891
        %vm2899 = vweird.f32 %v2893
        %vm2900 = vmor %vm2898, %vm2899
        %v2901 = vsel %vm2900, %v2893, %v2897
        %v2902 = vand.u32 2147483647, %v2891
        %vm2903 = vcmp.eq.f32.partialorder %v2902, 8.507059e+37
        %v2904 = vand.u32 %v2891, 2147483648
        %v2905 = vor.u32 1.1754944e-38, %v2904
        %v2906 = vsel %vm2903, %v2905, %v2901
        %v2907 = vmul.f32 1.0, %v2906
        %v2908 = vrcp.pop %v2892
        %v2909 = vmul.f32 %v2892, %v2908
        %v2910 = vsub.f32 1.0, %v2909
        %v2911 = vmul.f32 %v2908, %v2910
        %v2912 = vadd.f32 %v2908, %v2911
        %vm2913 = vweird.f32 %v2892
        %vm2914 = vweird.f32 %v2908
        %vm2915 = vmor %vm2913, %vm2914
        %v2916 = vsel %vm2915, %v2908, %v2912
        %v2917 = vand.u32 2147483647, %v2892
        %vm2918 = vcmp.eq.f32.partialorder %v2917, 8.507059e+37
        %v2919 = vand.u32 %v2892, 2147483648
        %v2920 = vor.u32 1.1754944e-38, %v2919
        %v2921 = vsel %vm2918, %v2920, %v2916
        %v2922 = vmul.f32 1.0, %v2921
        %v2923 = vmul.f32 %v2867, %v2560
        %v2924 = vmul.f32 %v2882, %v2561
        %v2925 = vmul.f32 %v2829, %v2883
        %v2926 = vmul.f32 %v2844, %v2884
        %v2927 = vadd.f32 %v2923, %v2925
        %v2928 = vadd.f32 %v2924, %v2926
        %v2929 = vtanh.pop %v2927
        %v2930 = vtanh.pop %v2928
        %v2931 = vmul.f32 %v2907, %v2929
        %v2932 = vmul.f32 %v2922, %v2930
        %s2933 = sadd.s32 %s402, 4
        %p2934 = scmp.lt.s32.totalorder %s2933, 24
        %s2935 = scalar_select %p2934, 1, 0
        %s2936 = scvt.s32.f32 %s2935
        %v2937 = vstv %s2936
        %v2938 = vmul.f32 %v2937, %v2927
        %v2939 = vmul.f32 %v2937, %v2928
        %s2940 = ssub.f32 1.0, %s2936
        %v2941 = vstv %s2940
        %v2942 = vmul.f32 %v2941, %v2560
        %v2943 = vmul.f32 %v2941, %v2561
        %v2944 = vadd.f32 %v2938, %v2942
        %v2945 = vadd.f32 %v2939, %v2943
        %v2946 = vmul.f32 %v2937, %v2931
        %v2947 = vmul.f32 %v2937, %v2932
        %v2948 = vmul.f32 %v2941, %v2566
        %v2949 = vmul.f32 %v2941, %v2567
        %v2950 = vadd.f32 %v2946, %v2948
        %v2951 = vadd.f32 %v2947, %v2949
        %v2952 = vpack.c.bf16 %v2951, %v2950
        %s2953 = scalar_lea.vmem %s255, 32 [#allocation9]
        %2954 = vst [vmem:[%s2953] sm:$0xff] %v2952
        %s2955 = scalar_lea.vmem %s229, 160 [#allocation4]
        %v2956 = vld [vmem:[%s2955] sm:$0xff]
        %v2957 = vld [vmem:[%s2955 + $0x8] sm:$0xff]
        %v2958 = vld [vmem:[%s2955 + $0x10] sm:$0xff]
        %v2959 = vld [vmem:[%s2955 + $0x18] sm:$0xff]
        %v2960 = vunpack.c.l.bf16 %v2956
        %v2961 = vunpack.c.h.bf16 %v2956
        %v2962 = vunpack.c.l.bf16 %v2957
        %v2963 = vunpack.c.h.bf16 %v2957
        %v2964 = vunpack.c.l.bf16 %v2958
        %v2965 = vunpack.c.h.bf16 %v2958
        %v2966 = vunpack.c.l.bf16 %v2959
        %v2967 = vunpack.c.h.bf16 %v2959
        %v2969 = vunpack.c.l.b16 %v2952
        %v2970 = vunpack.c.h.b16 %v2952
        %v2971 = vpack.c.b16 %v2969, %v2969
        %v2972 = vpack.c.b16 %v2970, %v2970
        %2975 = vmatpush.bf16.msra.mxu0 %v857
        %2976 = vmatpush.bf16.msra.mxu0 %v849
        %2977 = vmatpush.bf16.msra.mxu0 %v841
        %2978 = vmatpush.bf16.msra.mxu0 %v833
        %2979 = vmatpush.bf16.msra.mxu0 %v825
        %2980 = vmatpush.bf16.msra.mxu0 %v817
        %2981 = vmatpush.bf16.msra.mxu0 %v809
        %2982 = vmatpush.bf16.msra.mxu0 %v801
        %2983 = vmatmul.bf16.gmra.mxu0 %v2971
        %v2984 = vpop.f32.mrf.mxu0
        %v2985 = vadd.f32 0.0, %v2984
        %v2986 = vpop.f32.mrf.mxu0
        %2987 = vdwg.mxu0
        %2988 = vmatpush.bf16.msra.mxu0 %v921
        %2989 = vmatpush.bf16.msra.mxu0 %v913
        %2990 = vmatpush.bf16.msra.mxu0 %v905
        %2991 = vmatpush.bf16.msra.mxu0 %v897
        %2992 = vmatpush.bf16.msra.mxu0 %v889
        %2993 = vmatpush.bf16.msra.mxu0 %v881
        %2994 = vmatpush.bf16.msra.mxu0 %v873
        %2995 = vmatpush.bf16.msra.mxu0 %v865
        %2996 = vmatmul.bf16.gmra.mxu0 %v2972
        %v2997 = vpop.f32.mrf.mxu0
        %v2998 = vadd.f32 %v2985, %v2997
        %v2999 = vpop.f32.mrf.mxu0
        %3000 = vdwg.mxu0
        %3001 = vmatpush.bf16.msra.mxu0 %v858
        %3002 = vmatpush.bf16.msra.mxu0 %v850
        %3003 = vmatpush.bf16.msra.mxu0 %v842
        %3004 = vmatpush.bf16.msra.mxu0 %v834
        %3005 = vmatpush.bf16.msra.mxu0 %v826
        %3006 = vmatpush.bf16.msra.mxu0 %v818
        %3007 = vmatpush.bf16.msra.mxu0 %v810
        %3008 = vmatpush.bf16.msra.mxu0 %v802
        %3009 = vmatmul.bf16.gmra.mxu0 %v2971
        %v3010 = vpop.f32.mrf.mxu0
        %v3011 = vadd.f32 0.0, %v3010
        %v3012 = vpop.f32.mrf.mxu0
        %3013 = vdwg.mxu0
        %3014 = vmatpush.bf16.msra.mxu0 %v922
        %3015 = vmatpush.bf16.msra.mxu0 %v914
        %3016 = vmatpush.bf16.msra.mxu0 %v906
        %3017 = vmatpush.bf16.msra.mxu0 %v898
        %3018 = vmatpush.bf16.msra.mxu0 %v890
        %3019 = vmatpush.bf16.msra.mxu0 %v882
        %3020 = vmatpush.bf16.msra.mxu0 %v874
        %3021 = vmatpush.bf16.msra.mxu0 %v866
        %3022 = vmatmul.bf16.gmra.mxu0 %v2972
        %v3023 = vpop.f32.mrf.mxu0
        %v3024 = vadd.f32 %v3011, %v3023
        %v3025 = vpop.f32.mrf.mxu0
        %3026 = vdwg.mxu0
        %3027 = vmatpush.bf16.msra.mxu0 %v859
        %3028 = vmatpush.bf16.msra.mxu0 %v851
        %3029 = vmatpush.bf16.msra.mxu0 %v843
        %3030 = vmatpush.bf16.msra.mxu0 %v835
        %3031 = vmatpush.bf16.msra.mxu0 %v827
        %3032 = vmatpush.bf16.msra.mxu0 %v819
        %3033 = vmatpush.bf16.msra.mxu0 %v811
        %3034 = vmatpush.bf16.msra.mxu0 %v803
        %3035 = vmatmul.bf16.gmra.mxu0 %v2971
        %v3036 = vpop.f32.mrf.mxu0
        %v3037 = vadd.f32 0.0, %v3036
        %v3038 = vpop.f32.mrf.mxu0
        %3039 = vdwg.mxu0
        %3040 = vmatpush.bf16.msra.mxu0 %v923
        %3041 = vmatpush.bf16.msra.mxu0 %v915
        %3042 = vmatpush.bf16.msra.mxu0 %v907
        %3043 = vmatpush.bf16.msra.mxu0 %v899
        %3044 = vmatpush.bf16.msra.mxu0 %v891
        %3045 = vmatpush.bf16.msra.mxu0 %v883
        %3046 = vmatpush.bf16.msra.mxu0 %v875
        %3047 = vmatpush.bf16.msra.mxu0 %v867
        %3048 = vmatmul.bf16.gmra.mxu0 %v2972
        %v3049 = vpop.f32.mrf.mxu0
        %v3050 = vadd.f32 %v3037, %v3049
        %v3051 = vpop.f32.mrf.mxu0
        %3052 = vdwg.mxu0
        %3053 = vmatpush.bf16.msra.mxu0 %v860
        %3054 = vmatpush.bf16.msra.mxu0 %v852
        %3055 = vmatpush.bf16.msra.mxu0 %v844
        %3056 = vmatpush.bf16.msra.mxu0 %v836
        %3057 = vmatpush.bf16.msra.mxu0 %v828
        %3058 = vmatpush.bf16.msra.mxu0 %v820
        %3059 = vmatpush.bf16.msra.mxu0 %v812
        %3060 = vmatpush.bf16.msra.mxu0 %v804
        %3061 = vmatmul.bf16.gmra.mxu0 %v2971
        %v3062 = vpop.f32.mrf.mxu0
        %v3063 = vadd.f32 0.0, %v3062
        %v3064 = vpop.f32.mrf.mxu0
        %3065 = vdwg.mxu0
        %3066 = vmatpush.bf16.msra.mxu0 %v924
        %3067 = vmatpush.bf16.msra.mxu0 %v916
        %3068 = vmatpush.bf16.msra.mxu0 %v908
        %3069 = vmatpush.bf16.msra.mxu0 %v900
        %3070 = vmatpush.bf16.msra.mxu0 %v892
        %3071 = vmatpush.bf16.msra.mxu0 %v884
        %3072 = vmatpush.bf16.msra.mxu0 %v876
        %3073 = vmatpush.bf16.msra.mxu0 %v868
        %3074 = vmatmul.bf16.gmra.mxu0 %v2972
        %v3075 = vpop.f32.mrf.mxu0
        %v3076 = vadd.f32 %v3063, %v3075
        %v3077 = vpop.f32.mrf.mxu0
        %3078 = vdwg.mxu0
        %3079 = vmatpush.bf16.msra.mxu0 %v861
        %3080 = vmatpush.bf16.msra.mxu0 %v853
        %3081 = vmatpush.bf16.msra.mxu0 %v845
        %3082 = vmatpush.bf16.msra.mxu0 %v837
        %3083 = vmatpush.bf16.msra.mxu0 %v829
        %3084 = vmatpush.bf16.msra.mxu0 %v821
        %3085 = vmatpush.bf16.msra.mxu0 %v813
        %3086 = vmatpush.bf16.msra.mxu0 %v805
        %3087 = vmatmul.bf16.gmra.mxu0 %v2971
        %v3088 = vpop.f32.mrf.mxu0
        %v3089 = vadd.f32 0.0, %v3088
        %v3090 = vpop.f32.mrf.mxu0
        %3091 = vdwg.mxu0
        %3092 = vmatpush.bf16.msra.mxu0 %v925
        %3093 = vmatpush.bf16.msra.mxu0 %v917
        %3094 = vmatpush.bf16.msra.mxu0 %v909
        %3095 = vmatpush.bf16.msra.mxu0 %v901
        %3096 = vmatpush.bf16.msra.mxu0 %v893
        %3097 = vmatpush.bf16.msra.mxu0 %v885
        %3098 = vmatpush.bf16.msra.mxu0 %v877
        %3099 = vmatpush.bf16.msra.mxu0 %v869
        %3100 = vmatmul.bf16.gmra.mxu0 %v2972
        %v3101 = vpop.f32.mrf.mxu0
        %v3102 = vadd.f32 %v3089, %v3101
        %v3103 = vpop.f32.mrf.mxu0
        %3104 = vdwg.mxu0
        %3105 = vmatpush.bf16.msra.mxu0 %v862
        %3106 = vmatpush.bf16.msra.mxu0 %v854
        %3107 = vmatpush.bf16.msra.mxu0 %v846
        %3108 = vmatpush.bf16.msra.mxu0 %v838
        %3109 = vmatpush.bf16.msra.mxu0 %v830
        %3110 = vmatpush.bf16.msra.mxu0 %v822
        %3111 = vmatpush.bf16.msra.mxu0 %v814
        %3112 = vmatpush.bf16.msra.mxu0 %v806
        %3113 = vmatmul.bf16.gmra.mxu0 %v2971
        %v3114 = vpop.f32.mrf.mxu0
        %v3115 = vadd.f32 0.0, %v3114
        %v3116 = vpop.f32.mrf.mxu0
        %3117 = vdwg.mxu0
        %3118 = vmatpush.bf16.msra.mxu0 %v926
        %3119 = vmatpush.bf16.msra.mxu0 %v918
        %3120 = vmatpush.bf16.msra.mxu0 %v910
        %3121 = vmatpush.bf16.msra.mxu0 %v902
        %3122 = vmatpush.bf16.msra.mxu0 %v894
        %3123 = vmatpush.bf16.msra.mxu0 %v886
        %3124 = vmatpush.bf16.msra.mxu0 %v878
        %3125 = vmatpush.bf16.msra.mxu0 %v870
        %3126 = vmatmul.bf16.gmra.mxu0 %v2972
        %v3127 = vpop.f32.mrf.mxu0
        %v3128 = vadd.f32 %v3115, %v3127
        %v3129 = vpop.f32.mrf.mxu0
        %3130 = vdwg.mxu0
        %3131 = vmatpush.bf16.msra.mxu0 %v863
        %3132 = vmatpush.bf16.msra.mxu0 %v855
        %3133 = vmatpush.bf16.msra.mxu0 %v847
        %3134 = vmatpush.bf16.msra.mxu0 %v839
        %3135 = vmatpush.bf16.msra.mxu0 %v831
        %3136 = vmatpush.bf16.msra.mxu0 %v823
        %3137 = vmatpush.bf16.msra.mxu0 %v815
        %3138 = vmatpush.bf16.msra.mxu0 %v807
        %3139 = vmatmul.bf16.gmra.mxu0 %v2971
        %v3140 = vpop.f32.mrf.mxu0
        %v3141 = vadd.f32 0.0, %v3140
        %v3142 = vpop.f32.mrf.mxu0
        %3143 = vdwg.mxu0
        %3144 = vmatpush.bf16.msra.mxu0 %v927
        %3145 = vmatpush.bf16.msra.mxu0 %v919
        %3146 = vmatpush.bf16.msra.mxu0 %v911
        %3147 = vmatpush.bf16.msra.mxu0 %v903
        %3148 = vmatpush.bf16.msra.mxu0 %v895
        %3149 = vmatpush.bf16.msra.mxu0 %v887
        %3150 = vmatpush.bf16.msra.mxu0 %v879
        %3151 = vmatpush.bf16.msra.mxu0 %v871
        %3152 = vmatmul.bf16.gmra.mxu0 %v2972
        %v3153 = vpop.f32.mrf.mxu0
        %v3154 = vadd.f32 %v3141, %v3153
        %v3155 = vpop.f32.mrf.mxu0
        %3156 = vdwg.mxu0
        %3157 = vmatpush.bf16.msra.mxu0 %v864
        %3158 = vmatpush.bf16.msra.mxu0 %v856
        %3159 = vmatpush.bf16.msra.mxu0 %v848
        %3160 = vmatpush.bf16.msra.mxu0 %v840
        %3161 = vmatpush.bf16.msra.mxu0 %v832
        %3162 = vmatpush.bf16.msra.mxu0 %v824
        %3163 = vmatpush.bf16.msra.mxu0 %v816
        %3164 = vmatpush.bf16.msra.mxu0 %v808
        %3165 = vmatmul.bf16.gmra.mxu0 %v2971
        %v3166 = vpop.f32.mrf.mxu0
        %v3167 = vadd.f32 0.0, %v3166
        %v3168 = vpop.f32.mrf.mxu0
        %3169 = vdwg.mxu0
        %3170 = vmatpush.bf16.msra.mxu0 %v928
        %3171 = vmatpush.bf16.msra.mxu0 %v920
        %3172 = vmatpush.bf16.msra.mxu0 %v912
        %3173 = vmatpush.bf16.msra.mxu0 %v904
        %3174 = vmatpush.bf16.msra.mxu0 %v896
        %3175 = vmatpush.bf16.msra.mxu0 %v888
        %3176 = vmatpush.bf16.msra.mxu0 %v880
        %3177 = vmatpush.bf16.msra.mxu0 %v872
        %3178 = vmatmul.bf16.gmra.mxu0 %v2972
        %v3179 = vpop.f32.mrf.mxu0
        %v3180 = vadd.f32 %v3167, %v3179
        %v3181 = vpop.f32.mrf.mxu0
        %3182 = vdwg.mxu0
        %v3183 = vadd.f32 %v2960, %v2998
        %v3184 = vadd.f32 %v2961, %v3024
        %v3185 = vadd.f32 %v2962, %v3050
        %v3186 = vadd.f32 %v2963, %v3076
        %v3187 = vadd.f32 %v2964, %v3102
        %v3188 = vadd.f32 %v2965, %v3128
        %v3189 = vadd.f32 %v2966, %v3154
        %v3190 = vadd.f32 %v2967, %v3180
        %v3191 = vxor.u32 %v3183, 2147483648
        %v3192 = vxor.u32 %v3184, 2147483648
        %v3193 = vmul.f32 %v3191, 1.442695
        %v3194 = vpow.pop %v3193
        %v3195 = vmul.f32 %v3192, 1.442695
        %v3196 = vpow.pop %v3195
        %v3197 = vadd.f32 %v3194, 1.0
        %v3198 = vadd.f32 %v3196, 1.0
        %v3199 = vrcp.pop %v3197
        %v3200 = vmul.f32 %v3197, %v3199
        %v3201 = vsub.f32 1.0, %v3200
        %v3202 = vmul.f32 %v3199, %v3201
        %v3203 = vadd.f32 %v3199, %v3202
        %vm3204 = vweird.f32 %v3197
        %vm3205 = vweird.f32 %v3199
        %vm3206 = vmor %vm3204, %vm3205
        %v3207 = vsel %vm3206, %v3199, %v3203
        %v3208 = vand.u32 2147483647, %v3197
        %vm3209 = vcmp.eq.f32.partialorder %v3208, 8.507059e+37
        %v3210 = vand.u32 %v3197, 2147483648
        %v3211 = vor.u32 1.1754944e-38, %v3210
        %v3212 = vsel %vm3209, %v3211, %v3207
        %v3213 = vmul.f32 1.0, %v3212
        %v3214 = vrcp.pop %v3198
        %v3215 = vmul.f32 %v3198, %v3214
        %v3216 = vsub.f32 1.0, %v3215
        %v3217 = vmul.f32 %v3214, %v3216
        %v3218 = vadd.f32 %v3214, %v3217
        %vm3219 = vweird.f32 %v3198
        %vm3220 = vweird.f32 %v3214
        %vm3221 = vmor %vm3219, %vm3220
        %v3222 = vsel %vm3221, %v3214, %v3218
        %v3223 = vand.u32 2147483647, %v3198
        %vm3224 = vcmp.eq.f32.partialorder %v3223, 8.507059e+37
        %v3225 = vand.u32 %v3198, 2147483648
        %v3226 = vor.u32 1.1754944e-38, %v3225
        %v3227 = vsel %vm3224, %v3226, %v3222
        %v3228 = vmul.f32 1.0, %v3227
        %v3229 = vxor.u32 %v3185, 2147483648
        %v3230 = vxor.u32 %v3186, 2147483648
        %v3231 = vmul.f32 %v3229, 1.442695
        %v3232 = vpow.pop %v3231
        %v3233 = vmul.f32 %v3230, 1.442695
        %v3234 = vpow.pop %v3233
        %v3235 = vadd.f32 %v3232, 1.0
        %v3236 = vadd.f32 %v3234, 1.0
        %v3237 = vrcp.pop %v3235
        %v3238 = vmul.f32 %v3235, %v3237
        %v3239 = vsub.f32 1.0, %v3238
        %v3240 = vmul.f32 %v3237, %v3239
        %v3241 = vadd.f32 %v3237, %v3240
        %vm3242 = vweird.f32 %v3235
        %vm3243 = vweird.f32 %v3237
        %vm3244 = vmor %vm3242, %vm3243
        %v3245 = vsel %vm3244, %v3237, %v3241
        %v3246 = vand.u32 2147483647, %v3235
        %vm3247 = vcmp.eq.f32.partialorder %v3246, 8.507059e+37
        %v3248 = vand.u32 %v3235, 2147483648
        %v3249 = vor.u32 1.1754944e-38, %v3248
        %v3250 = vsel %vm3247, %v3249, %v3245
        %v3251 = vmul.f32 1.0, %v3250
        %v3252 = vrcp.pop %v3236
        %v3253 = vmul.f32 %v3236, %v3252
        %v3254 = vsub.f32 1.0, %v3253
        %v3255 = vmul.f32 %v3252, %v3254
        %v3256 = vadd.f32 %v3252, %v3255
        %vm3257 = vweird.f32 %v3236
        %vm3258 = vweird.f32 %v3252
        %vm3259 = vmor %vm3257, %vm3258
        %v3260 = vsel %vm3259, %v3252, %v3256
        %v3261 = vand.u32 2147483647, %v3236
        %vm3262 = vcmp.eq.f32.partialorder %v3261, 8.507059e+37
        %v3263 = vand.u32 %v3236, 2147483648
        %v3264 = vor.u32 1.1754944e-38, %v3263
        %v3265 = vsel %vm3262, %v3264, %v3260
        %v3266 = vmul.f32 1.0, %v3265
        %v3267 = vtanh.pop %v3187
        %v3268 = vtanh.pop %v3188
        %v3269 = vxor.u32 %v3189, 2147483648
        %v3270 = vxor.u32 %v3190, 2147483648
        %v3271 = vmul.f32 %v3269, 1.442695
        %v3272 = vpow.pop %v3271
        %v3273 = vmul.f32 %v3270, 1.442695
        %v3274 = vpow.pop %v3273
        %v3275 = vadd.f32 %v3272, 1.0
        %v3276 = vadd.f32 %v3274, 1.0
        %v3277 = vrcp.pop %v3275
        %v3278 = vmul.f32 %v3275, %v3277
        %v3279 = vsub.f32 1.0, %v3278
        %v3280 = vmul.f32 %v3277, %v3279
        %v3281 = vadd.f32 %v3277, %v3280
        %vm3282 = vweird.f32 %v3275
        %vm3283 = vweird.f32 %v3277
        %vm3284 = vmor %vm3282, %vm3283
        %v3285 = vsel %vm3284, %v3277, %v3281
        %v3286 = vand.u32 2147483647, %v3275
        %vm3287 = vcmp.eq.f32.partialorder %v3286, 8.507059e+37
        %v3288 = vand.u32 %v3275, 2147483648
        %v3289 = vor.u32 1.1754944e-38, %v3288
        %v3290 = vsel %vm3287, %v3289, %v3285
        %v3291 = vmul.f32 1.0, %v3290
        %v3292 = vrcp.pop %v3276
        %v3293 = vmul.f32 %v3276, %v3292
        %v3294 = vsub.f32 1.0, %v3293
        %v3295 = vmul.f32 %v3292, %v3294
        %v3296 = vadd.f32 %v3292, %v3295
        %vm3297 = vweird.f32 %v3276
        %vm3298 = vweird.f32 %v3292
        %vm3299 = vmor %vm3297, %vm3298
        %v3300 = vsel %vm3299, %v3292, %v3296
        %v3301 = vand.u32 2147483647, %v3276
        %vm3302 = vcmp.eq.f32.partialorder %v3301, 8.507059e+37
        %v3303 = vand.u32 %v3276, 2147483648
        %v3304 = vor.u32 1.1754944e-38, %v3303
        %v3305 = vsel %vm3302, %v3304, %v3300
        %v3306 = vmul.f32 1.0, %v3305
        %v3307 = vmul.f32 %v3251, %v2944
        %v3308 = vmul.f32 %v3266, %v2945
        %v3309 = vmul.f32 %v3213, %v3267
        %v3310 = vmul.f32 %v3228, %v3268
        %v3311 = vadd.f32 %v3307, %v3309
        %v3312 = vadd.f32 %v3308, %v3310
        %v3313 = vtanh.pop %v3311
        %v3314 = vtanh.pop %v3312
        %v3315 = vmul.f32 %v3291, %v3313
        %v3316 = vmul.f32 %v3306, %v3314
        %s3317 = sadd.s32 %s402, 5
        %p3318 = scmp.lt.s32.totalorder %s3317, 24
        %s3319 = scalar_select %p3318, 1, 0
        %s3320 = scvt.s32.f32 %s3319
        %v3321 = vstv %s3320
        %v3322 = vmul.f32 %v3321, %v3311
        %v3323 = vmul.f32 %v3321, %v3312
        %s3324 = ssub.f32 1.0, %s3320
        %v3325 = vstv %s3324
        %v3326 = vmul.f32 %v3325, %v2944
        %v3327 = vmul.f32 %v3325, %v2945
        %v3328 = vadd.f32 %v3322, %v3326
        %v3329 = vadd.f32 %v3323, %v3327
        %v3330 = vmul.f32 %v3321, %v3315
        %v3331 = vmul.f32 %v3321, %v3316
        %v3332 = vmul.f32 %v3325, %v2950
        %v3333 = vmul.f32 %v3325, %v2951
        %v3334 = vadd.f32 %v3330, %v3332
        %v3335 = vadd.f32 %v3331, %v3333
        %v3336 = vpack.c.bf16 %v3335, %v3334
        %s3337 = scalar_lea.vmem %s255, 40 [#allocation9]
        %3338 = vst [vmem:[%s3337] sm:$0xff] %v3336
        %s3339 = scalar_lea.vmem %s229, 192 [#allocation4]
        %v3340 = vld [vmem:[%s3339] sm:$0xff]
        %v3341 = vld [vmem:[%s3339 + $0x8] sm:$0xff]
        %v3342 = vld [vmem:[%s3339 + $0x10] sm:$0xff]
        %v3343 = vld [vmem:[%s3339 + $0x18] sm:$0xff]
        %v3344 = vunpack.c.l.bf16 %v3340
        %v3345 = vunpack.c.h.bf16 %v3340
        %v3346 = vunpack.c.l.bf16 %v3341
        %v3347 = vunpack.c.h.bf16 %v3341
        %v3348 = vunpack.c.l.bf16 %v3342
        %v3349 = vunpack.c.h.bf16 %v3342
        %v3350 = vunpack.c.l.bf16 %v3343
        %v3351 = vunpack.c.h.bf16 %v3343
        %v3353 = vunpack.c.l.b16 %v3336
        %v3354 = vunpack.c.h.b16 %v3336
        %v3355 = vpack.c.b16 %v3353, %v3353
        %v3356 = vpack.c.b16 %v3354, %v3354
        %3359 = vmatpush.bf16.msra.mxu0 %v857
        %3360 = vmatpush.bf16.msra.mxu0 %v849
        %3361 = vmatpush.bf16.msra.mxu0 %v841
        %3362 = vmatpush.bf16.msra.mxu0 %v833
        %3363 = vmatpush.bf16.msra.mxu0 %v825
        %3364 = vmatpush.bf16.msra.mxu0 %v817
        %3365 = vmatpush.bf16.msra.mxu0 %v809
        %3366 = vmatpush.bf16.msra.mxu0 %v801
        %3367 = vmatmul.bf16.gmra.mxu0 %v3355
        %v3368 = vpop.f32.mrf.mxu0
        %v3369 = vadd.f32 0.0, %v3368
        %v3370 = vpop.f32.mrf.mxu0
        %3371 = vdwg.mxu0
        %3372 = vmatpush.bf16.msra.mxu0 %v921
        %3373 = vmatpush.bf16.msra.mxu0 %v913
        %3374 = vmatpush.bf16.msra.mxu0 %v905
        %3375 = vmatpush.bf16.msra.mxu0 %v897
        %3376 = vmatpush.bf16.msra.mxu0 %v889
        %3377 = vmatpush.bf16.msra.mxu0 %v881
        %3378 = vmatpush.bf16.msra.mxu0 %v873
        %3379 = vmatpush.bf16.msra.mxu0 %v865
        %3380 = vmatmul.bf16.gmra.mxu0 %v3356
        %v3381 = vpop.f32.mrf.mxu0
        %v3382 = vadd.f32 %v3369, %v3381
        %v3383 = vpop.f32.mrf.mxu0
        %3384 = vdwg.mxu0
        %3385 = vmatpush.bf16.msra.mxu0 %v858
        %3386 = vmatpush.bf16.msra.mxu0 %v850
        %3387 = vmatpush.bf16.msra.mxu0 %v842
        %3388 = vmatpush.bf16.msra.mxu0 %v834
        %3389 = vmatpush.bf16.msra.mxu0 %v826
        %3390 = vmatpush.bf16.msra.mxu0 %v818
        %3391 = vmatpush.bf16.msra.mxu0 %v810
        %3392 = vmatpush.bf16.msra.mxu0 %v802
        %3393 = vmatmul.bf16.gmra.mxu0 %v3355
        %v3394 = vpop.f32.mrf.mxu0
        %v3395 = vadd.f32 0.0, %v3394
        %v3396 = vpop.f32.mrf.mxu0
        %3397 = vdwg.mxu0
        %3398 = vmatpush.bf16.msra.mxu0 %v922
        %3399 = vmatpush.bf16.msra.mxu0 %v914
        %3400 = vmatpush.bf16.msra.mxu0 %v906
        %3401 = vmatpush.bf16.msra.mxu0 %v898
        %3402 = vmatpush.bf16.msra.mxu0 %v890
        %3403 = vmatpush.bf16.msra.mxu0 %v882
        %3404 = vmatpush.bf16.msra.mxu0 %v874
        %3405 = vmatpush.bf16.msra.mxu0 %v866
        %3406 = vmatmul.bf16.gmra.mxu0 %v3356
        %v3407 = vpop.f32.mrf.mxu0
        %v3408 = vadd.f32 %v3395, %v3407
        %v3409 = vpop.f32.mrf.mxu0
        %3410 = vdwg.mxu0
        %3411 = vmatpush.bf16.msra.mxu0 %v859
        %3412 = vmatpush.bf16.msra.mxu0 %v851
        %3413 = vmatpush.bf16.msra.mxu0 %v843
        %3414 = vmatpush.bf16.msra.mxu0 %v835
        %3415 = vmatpush.bf16.msra.mxu0 %v827
        %3416 = vmatpush.bf16.msra.mxu0 %v819
        %3417 = vmatpush.bf16.msra.mxu0 %v811
        %3418 = vmatpush.bf16.msra.mxu0 %v803
        %3419 = vmatmul.bf16.gmra.mxu0 %v3355
        %v3420 = vpop.f32.mrf.mxu0
        %v3421 = vadd.f32 0.0, %v3420
        %v3422 = vpop.f32.mrf.mxu0
        %3423 = vdwg.mxu0
        %3424 = vmatpush.bf16.msra.mxu0 %v923
        %3425 = vmatpush.bf16.msra.mxu0 %v915
        %3426 = vmatpush.bf16.msra.mxu0 %v907
        %3427 = vmatpush.bf16.msra.mxu0 %v899
        %3428 = vmatpush.bf16.msra.mxu0 %v891
        %3429 = vmatpush.bf16.msra.mxu0 %v883
        %3430 = vmatpush.bf16.msra.mxu0 %v875
        %3431 = vmatpush.bf16.msra.mxu0 %v867
        %3432 = vmatmul.bf16.gmra.mxu0 %v3356
        %v3433 = vpop.f32.mrf.mxu0
        %v3434 = vadd.f32 %v3421, %v3433
        %v3435 = vpop.f32.mrf.mxu0
        %3436 = vdwg.mxu0
        %3437 = vmatpush.bf16.msra.mxu0 %v860
        %3438 = vmatpush.bf16.msra.mxu0 %v852
        %3439 = vmatpush.bf16.msra.mxu0 %v844
        %3440 = vmatpush.bf16.msra.mxu0 %v836
        %3441 = vmatpush.bf16.msra.mxu0 %v828
        %3442 = vmatpush.bf16.msra.mxu0 %v820
        %3443 = vmatpush.bf16.msra.mxu0 %v812
        %3444 = vmatpush.bf16.msra.mxu0 %v804
        %3445 = vmatmul.bf16.gmra.mxu0 %v3355
        %v3446 = vpop.f32.mrf.mxu0
        %v3447 = vadd.f32 0.0, %v3446
        %v3448 = vpop.f32.mrf.mxu0
        %3449 = vdwg.mxu0
        %3450 = vmatpush.bf16.msra.mxu0 %v924
        %3451 = vmatpush.bf16.msra.mxu0 %v916
        %3452 = vmatpush.bf16.msra.mxu0 %v908
        %3453 = vmatpush.bf16.msra.mxu0 %v900
        %3454 = vmatpush.bf16.msra.mxu0 %v892
        %3455 = vmatpush.bf16.msra.mxu0 %v884
        %3456 = vmatpush.bf16.msra.mxu0 %v876
        %3457 = vmatpush.bf16.msra.mxu0 %v868
        %3458 = vmatmul.bf16.gmra.mxu0 %v3356
        %v3459 = vpop.f32.mrf.mxu0
        %v3460 = vadd.f32 %v3447, %v3459
        %v3461 = vpop.f32.mrf.mxu0
        %3462 = vdwg.mxu0
        %3463 = vmatpush.bf16.msra.mxu0 %v861
        %3464 = vmatpush.bf16.msra.mxu0 %v853
        %3465 = vmatpush.bf16.msra.mxu0 %v845
        %3466 = vmatpush.bf16.msra.mxu0 %v837
        %3467 = vmatpush.bf16.msra.mxu0 %v829
        %3468 = vmatpush.bf16.msra.mxu0 %v821
        %3469 = vmatpush.bf16.msra.mxu0 %v813
        %3470 = vmatpush.bf16.msra.mxu0 %v805
        %3471 = vmatmul.bf16.gmra.mxu0 %v3355
        %v3472 = vpop.f32.mrf.mxu0
        %v3473 = vadd.f32 0.0, %v3472
        %v3474 = vpop.f32.mrf.mxu0
        %3475 = vdwg.mxu0
        %3476 = vmatpush.bf16.msra.mxu0 %v925
        %3477 = vmatpush.bf16.msra.mxu0 %v917
        %3478 = vmatpush.bf16.msra.mxu0 %v909
        %3479 = vmatpush.bf16.msra.mxu0 %v901
        %3480 = vmatpush.bf16.msra.mxu0 %v893
        %3481 = vmatpush.bf16.msra.mxu0 %v885
        %3482 = vmatpush.bf16.msra.mxu0 %v877
        %3483 = vmatpush.bf16.msra.mxu0 %v869
        %3484 = vmatmul.bf16.gmra.mxu0 %v3356
        %v3485 = vpop.f32.mrf.mxu0
        %v3486 = vadd.f32 %v3473, %v3485
        %v3487 = vpop.f32.mrf.mxu0
        %3488 = vdwg.mxu0
        %3489 = vmatpush.bf16.msra.mxu0 %v862
        %3490 = vmatpush.bf16.msra.mxu0 %v854
        %3491 = vmatpush.bf16.msra.mxu0 %v846
        %3492 = vmatpush.bf16.msra.mxu0 %v838
        %3493 = vmatpush.bf16.msra.mxu0 %v830
        %3494 = vmatpush.bf16.msra.mxu0 %v822
        %3495 = vmatpush.bf16.msra.mxu0 %v814
        %3496 = vmatpush.bf16.msra.mxu0 %v806
        %3497 = vmatmul.bf16.gmra.mxu0 %v3355
        %v3498 = vpop.f32.mrf.mxu0
        %v3499 = vadd.f32 0.0, %v3498
        %v3500 = vpop.f32.mrf.mxu0
        %3501 = vdwg.mxu0
        %3502 = vmatpush.bf16.msra.mxu0 %v926
        %3503 = vmatpush.bf16.msra.mxu0 %v918
        %3504 = vmatpush.bf16.msra.mxu0 %v910
        %3505 = vmatpush.bf16.msra.mxu0 %v902
        %3506 = vmatpush.bf16.msra.mxu0 %v894
        %3507 = vmatpush.bf16.msra.mxu0 %v886
        %3508 = vmatpush.bf16.msra.mxu0 %v878
        %3509 = vmatpush.bf16.msra.mxu0 %v870
        %3510 = vmatmul.bf16.gmra.mxu0 %v3356
        %v3511 = vpop.f32.mrf.mxu0
        %v3512 = vadd.f32 %v3499, %v3511
        %v3513 = vpop.f32.mrf.mxu0
        %3514 = vdwg.mxu0
        %3515 = vmatpush.bf16.msra.mxu0 %v863
        %3516 = vmatpush.bf16.msra.mxu0 %v855
        %3517 = vmatpush.bf16.msra.mxu0 %v847
        %3518 = vmatpush.bf16.msra.mxu0 %v839
        %3519 = vmatpush.bf16.msra.mxu0 %v831
        %3520 = vmatpush.bf16.msra.mxu0 %v823
        %3521 = vmatpush.bf16.msra.mxu0 %v815
        %3522 = vmatpush.bf16.msra.mxu0 %v807
        %3523 = vmatmul.bf16.gmra.mxu0 %v3355
        %v3524 = vpop.f32.mrf.mxu0
        %v3525 = vadd.f32 0.0, %v3524
        %v3526 = vpop.f32.mrf.mxu0
        %3527 = vdwg.mxu0
        %3528 = vmatpush.bf16.msra.mxu0 %v927
        %3529 = vmatpush.bf16.msra.mxu0 %v919
        %3530 = vmatpush.bf16.msra.mxu0 %v911
        %3531 = vmatpush.bf16.msra.mxu0 %v903
        %3532 = vmatpush.bf16.msra.mxu0 %v895
        %3533 = vmatpush.bf16.msra.mxu0 %v887
        %3534 = vmatpush.bf16.msra.mxu0 %v879
        %3535 = vmatpush.bf16.msra.mxu0 %v871
        %3536 = vmatmul.bf16.gmra.mxu0 %v3356
        %v3537 = vpop.f32.mrf.mxu0
        %v3538 = vadd.f32 %v3525, %v3537
        %v3539 = vpop.f32.mrf.mxu0
        %3540 = vdwg.mxu0
        %3541 = vmatpush.bf16.msra.mxu0 %v864
        %3542 = vmatpush.bf16.msra.mxu0 %v856
        %3543 = vmatpush.bf16.msra.mxu0 %v848
        %3544 = vmatpush.bf16.msra.mxu0 %v840
        %3545 = vmatpush.bf16.msra.mxu0 %v832
        %3546 = vmatpush.bf16.msra.mxu0 %v824
        %3547 = vmatpush.bf16.msra.mxu0 %v816
        %3548 = vmatpush.bf16.msra.mxu0 %v808
        %3549 = vmatmul.bf16.gmra.mxu0 %v3355
        %v3550 = vpop.f32.mrf.mxu0
        %v3551 = vadd.f32 0.0, %v3550
        %v3552 = vpop.f32.mrf.mxu0
        %3553 = vdwg.mxu0
        %3554 = vmatpush.bf16.msra.mxu0 %v928
        %3555 = vmatpush.bf16.msra.mxu0 %v920
        %3556 = vmatpush.bf16.msra.mxu0 %v912
        %3557 = vmatpush.bf16.msra.mxu0 %v904
        %3558 = vmatpush.bf16.msra.mxu0 %v896
        %3559 = vmatpush.bf16.msra.mxu0 %v888
        %3560 = vmatpush.bf16.msra.mxu0 %v880
        %3561 = vmatpush.bf16.msra.mxu0 %v872
        %3562 = vmatmul.bf16.gmra.mxu0 %v3356
        %v3563 = vpop.f32.mrf.mxu0
        %v3564 = vadd.f32 %v3551, %v3563
        %v3565 = vpop.f32.mrf.mxu0
        %3566 = vdwg.mxu0
        %v3567 = vadd.f32 %v3344, %v3382
        %v3568 = vadd.f32 %v3345, %v3408
        %v3569 = vadd.f32 %v3346, %v3434
        %v3570 = vadd.f32 %v3347, %v3460
        %v3571 = vadd.f32 %v3348, %v3486
        %v3572 = vadd.f32 %v3349, %v3512
        %v3573 = vadd.f32 %v3350, %v3538
        %v3574 = vadd.f32 %v3351, %v3564
        %v3575 = vxor.u32 %v3567, 2147483648
        %v3576 = vxor.u32 %v3568, 2147483648
        %v3577 = vmul.f32 %v3575, 1.442695
        %v3578 = vpow.pop %v3577
        %v3579 = vmul.f32 %v3576, 1.442695
        %v3580 = vpow.pop %v3579
        %v3581 = vadd.f32 %v3578, 1.0
        %v3582 = vadd.f32 %v3580, 1.0
        %v3583 = vrcp.pop %v3581
        %v3584 = vmul.f32 %v3581, %v3583
        %v3585 = vsub.f32 1.0, %v3584
        %v3586 = vmul.f32 %v3583, %v3585
        %v3587 = vadd.f32 %v3583, %v3586
        %vm3588 = vweird.f32 %v3581
        %vm3589 = vweird.f32 %v3583
        %vm3590 = vmor %vm3588, %vm3589
        %v3591 = vsel %vm3590, %v3583, %v3587
        %v3592 = vand.u32 2147483647, %v3581
        %vm3593 = vcmp.eq.f32.partialorder %v3592, 8.507059e+37
        %v3594 = vand.u32 %v3581, 2147483648
        %v3595 = vor.u32 1.1754944e-38, %v3594
        %v3596 = vsel %vm3593, %v3595, %v3591
        %v3597 = vmul.f32 1.0, %v3596
        %v3598 = vrcp.pop %v3582
        %v3599 = vmul.f32 %v3582, %v3598
        %v3600 = vsub.f32 1.0, %v3599
        %v3601 = vmul.f32 %v3598, %v3600
        %v3602 = vadd.f32 %v3598, %v3601
        %vm3603 = vweird.f32 %v3582
        %vm3604 = vweird.f32 %v3598
        %vm3605 = vmor %vm3603, %vm3604
        %v3606 = vsel %vm3605, %v3598, %v3602
        %v3607 = vand.u32 2147483647, %v3582
        %vm3608 = vcmp.eq.f32.partialorder %v3607, 8.507059e+37
        %v3609 = vand.u32 %v3582, 2147483648
        %v3610 = vor.u32 1.1754944e-38, %v3609
        %v3611 = vsel %vm3608, %v3610, %v3606
        %v3612 = vmul.f32 1.0, %v3611
        %v3613 = vxor.u32 %v3569, 2147483648
        %v3614 = vxor.u32 %v3570, 2147483648
        %v3615 = vmul.f32 %v3613, 1.442695
        %v3616 = vpow.pop %v3615
        %v3617 = vmul.f32 %v3614, 1.442695
        %v3618 = vpow.pop %v3617
        %v3619 = vadd.f32 %v3616, 1.0
        %v3620 = vadd.f32 %v3618, 1.0
        %v3621 = vrcp.pop %v3619
        %v3622 = vmul.f32 %v3619, %v3621
        %v3623 = vsub.f32 1.0, %v3622
        %v3624 = vmul.f32 %v3621, %v3623
        %v3625 = vadd.f32 %v3621, %v3624
        %vm3626 = vweird.f32 %v3619
        %vm3627 = vweird.f32 %v3621
        %vm3628 = vmor %vm3626, %vm3627
        %v3629 = vsel %vm3628, %v3621, %v3625
        %v3630 = vand.u32 2147483647, %v3619
        %vm3631 = vcmp.eq.f32.partialorder %v3630, 8.507059e+37
        %v3632 = vand.u32 %v3619, 2147483648
        %v3633 = vor.u32 1.1754944e-38, %v3632
        %v3634 = vsel %vm3631, %v3633, %v3629
        %v3635 = vmul.f32 1.0, %v3634
        %v3636 = vrcp.pop %v3620
        %v3637 = vmul.f32 %v3620, %v3636
        %v3638 = vsub.f32 1.0, %v3637
        %v3639 = vmul.f32 %v3636, %v3638
        %v3640 = vadd.f32 %v3636, %v3639
        %vm3641 = vweird.f32 %v3620
        %vm3642 = vweird.f32 %v3636
        %vm3643 = vmor %vm3641, %vm3642
        %v3644 = vsel %vm3643, %v3636, %v3640
        %v3645 = vand.u32 2147483647, %v3620
        %vm3646 = vcmp.eq.f32.partialorder %v3645, 8.507059e+37
        %v3647 = vand.u32 %v3620, 2147483648
        %v3648 = vor.u32 1.1754944e-38, %v3647
        %v3649 = vsel %vm3646, %v3648, %v3644
        %v3650 = vmul.f32 1.0, %v3649
        %v3651 = vtanh.pop %v3571
        %v3652 = vtanh.pop %v3572
        %v3653 = vxor.u32 %v3573, 2147483648
        %v3654 = vxor.u32 %v3574, 2147483648
        %v3655 = vmul.f32 %v3653, 1.442695
        %v3656 = vpow.pop %v3655
        %v3657 = vmul.f32 %v3654, 1.442695
        %v3658 = vpow.pop %v3657
        %v3659 = vadd.f32 %v3656, 1.0
        %v3660 = vadd.f32 %v3658, 1.0
        %v3661 = vrcp.pop %v3659
        %v3662 = vmul.f32 %v3659, %v3661
        %v3663 = vsub.f32 1.0, %v3662
        %v3664 = vmul.f32 %v3661, %v3663
        %v3665 = vadd.f32 %v3661, %v3664
        %vm3666 = vweird.f32 %v3659
        %vm3667 = vweird.f32 %v3661
        %vm3668 = vmor %vm3666, %vm3667
        %v3669 = vsel %vm3668, %v3661, %v3665
        %v3670 = vand.u32 2147483647, %v3659
        %vm3671 = vcmp.eq.f32.partialorder %v3670, 8.507059e+37
        %v3672 = vand.u32 %v3659, 2147483648
        %v3673 = vor.u32 1.1754944e-38, %v3672
        %v3674 = vsel %vm3671, %v3673, %v3669
        %v3675 = vmul.f32 1.0, %v3674
        %v3676 = vrcp.pop %v3660
        %v3677 = vmul.f32 %v3660, %v3676
        %v3678 = vsub.f32 1.0, %v3677
        %v3679 = vmul.f32 %v3676, %v3678
        %v3680 = vadd.f32 %v3676, %v3679
        %vm3681 = vweird.f32 %v3660
        %vm3682 = vweird.f32 %v3676
        %vm3683 = vmor %vm3681, %vm3682
        %v3684 = vsel %vm3683, %v3676, %v3680
        %v3685 = vand.u32 2147483647, %v3660
        %vm3686 = vcmp.eq.f32.partialorder %v3685, 8.507059e+37
        %v3687 = vand.u32 %v3660, 2147483648
        %v3688 = vor.u32 1.1754944e-38, %v3687
        %v3689 = vsel %vm3686, %v3688, %v3684
        %v3690 = vmul.f32 1.0, %v3689
        %v3691 = vmul.f32 %v3635, %v3328
        %v3692 = vmul.f32 %v3650, %v3329
        %v3693 = vmul.f32 %v3597, %v3651
        %v3694 = vmul.f32 %v3612, %v3652
        %v3695 = vadd.f32 %v3691, %v3693
        %v3696 = vadd.f32 %v3692, %v3694
        %v3697 = vtanh.pop %v3695
        %v3698 = vtanh.pop %v3696
        %v3699 = vmul.f32 %v3675, %v3697
        %v3700 = vmul.f32 %v3690, %v3698
        %s3701 = sadd.s32 %s402, 6
        %p3702 = scmp.lt.s32.totalorder %s3701, 24
        %s3703 = scalar_select %p3702, 1, 0
        %s3704 = scvt.s32.f32 %s3703
        %v3705 = vstv %s3704
        %v3706 = vmul.f32 %v3705, %v3695
        %v3707 = vmul.f32 %v3705, %v3696
        %s3708 = ssub.f32 1.0, %s3704
        %v3709 = vstv %s3708
        %v3710 = vmul.f32 %v3709, %v3328
        %v3711 = vmul.f32 %v3709, %v3329
        %v3712 = vadd.f32 %v3706, %v3710
        %v3713 = vadd.f32 %v3707, %v3711
        %v3714 = vmul.f32 %v3705, %v3699
        %v3715 = vmul.f32 %v3705, %v3700
        %v3716 = vmul.f32 %v3709, %v3334
        %v3717 = vmul.f32 %v3709, %v3335
        %v3718 = vadd.f32 %v3714, %v3716
        %v3719 = vadd.f32 %v3715, %v3717
        %v3720 = vpack.c.bf16 %v3719, %v3718
        %s3721 = scalar_lea.vmem %s255, 48 [#allocation9]
        %3722 = vst [vmem:[%s3721] sm:$0xff] %v3720
        %s3723 = scalar_lea.vmem %s229, 224 [#allocation4]
        %v3724 = vld [vmem:[%s3723] sm:$0xff]
        %v3725 = vld [vmem:[%s3723 + $0x8] sm:$0xff]
        %v3726 = vld [vmem:[%s3723 + $0x10] sm:$0xff]
        %v3727 = vld [vmem:[%s3723 + $0x18] sm:$0xff]
        %v3728 = vunpack.c.l.bf16 %v3724
        %v3729 = vunpack.c.h.bf16 %v3724
        %v3730 = vunpack.c.l.bf16 %v3725
        %v3731 = vunpack.c.h.bf16 %v3725
        %v3732 = vunpack.c.l.bf16 %v3726
        %v3733 = vunpack.c.h.bf16 %v3726
        %v3734 = vunpack.c.l.bf16 %v3727
        %v3735 = vunpack.c.h.bf16 %v3727
        %v3737 = vunpack.c.l.b16 %v3720
        %v3738 = vunpack.c.h.b16 %v3720
        %v3739 = vpack.c.b16 %v3737, %v3737
        %v3740 = vpack.c.b16 %v3738, %v3738
        %3743 = vmatpush.bf16.msra.mxu0 %v857
        %3744 = vmatpush.bf16.msra.mxu0 %v849
        %3745 = vmatpush.bf16.msra.mxu0 %v841
        %3746 = vmatpush.bf16.msra.mxu0 %v833
        %3747 = vmatpush.bf16.msra.mxu0 %v825
        %3748 = vmatpush.bf16.msra.mxu0 %v817
        %3749 = vmatpush.bf16.msra.mxu0 %v809
        %3750 = vmatpush.bf16.msra.mxu0 %v801
        %3751 = vmatmul.bf16.gmra.mxu0 %v3739
        %v3752 = vpop.f32.mrf.mxu0
        %v3753 = vadd.f32 0.0, %v3752
        %v3754 = vpop.f32.mrf.mxu0
        %3755 = vdwg.mxu0
        %3756 = vmatpush.bf16.msra.mxu0 %v921
        %3757 = vmatpush.bf16.msra.mxu0 %v913
        %3758 = vmatpush.bf16.msra.mxu0 %v905
        %3759 = vmatpush.bf16.msra.mxu0 %v897
        %3760 = vmatpush.bf16.msra.mxu0 %v889
        %3761 = vmatpush.bf16.msra.mxu0 %v881
        %3762 = vmatpush.bf16.msra.mxu0 %v873
        %3763 = vmatpush.bf16.msra.mxu0 %v865
        %3764 = vmatmul.bf16.gmra.mxu0 %v3740
        %v3765 = vpop.f32.mrf.mxu0
        %v3766 = vadd.f32 %v3753, %v3765
        %v3767 = vpop.f32.mrf.mxu0
        %3768 = vdwg.mxu0
        %3769 = vmatpush.bf16.msra.mxu0 %v858
        %3770 = vmatpush.bf16.msra.mxu0 %v850
        %3771 = vmatpush.bf16.msra.mxu0 %v842
        %3772 = vmatpush.bf16.msra.mxu0 %v834
        %3773 = vmatpush.bf16.msra.mxu0 %v826
        %3774 = vmatpush.bf16.msra.mxu0 %v818
        %3775 = vmatpush.bf16.msra.mxu0 %v810
        %3776 = vmatpush.bf16.msra.mxu0 %v802
        %3777 = vmatmul.bf16.gmra.mxu0 %v3739
        %v3778 = vpop.f32.mrf.mxu0
        %v3779 = vadd.f32 0.0, %v3778
        %v3780 = vpop.f32.mrf.mxu0
        %3781 = vdwg.mxu0
        %3782 = vmatpush.bf16.msra.mxu0 %v922
        %3783 = vmatpush.bf16.msra.mxu0 %v914
        %3784 = vmatpush.bf16.msra.mxu0 %v906
        %3785 = vmatpush.bf16.msra.mxu0 %v898
        %3786 = vmatpush.bf16.msra.mxu0 %v890
        %3787 = vmatpush.bf16.msra.mxu0 %v882
        %3788 = vmatpush.bf16.msra.mxu0 %v874
        %3789 = vmatpush.bf16.msra.mxu0 %v866
        %3790 = vmatmul.bf16.gmra.mxu0 %v3740
        %v3791 = vpop.f32.mrf.mxu0
        %v3792 = vadd.f32 %v3779, %v3791
        %v3793 = vpop.f32.mrf.mxu0
        %3794 = vdwg.mxu0
        %3795 = vmatpush.bf16.msra.mxu0 %v859
        %3796 = vmatpush.bf16.msra.mxu0 %v851
        %3797 = vmatpush.bf16.msra.mxu0 %v843
        %3798 = vmatpush.bf16.msra.mxu0 %v835
        %3799 = vmatpush.bf16.msra.mxu0 %v827
        %3800 = vmatpush.bf16.msra.mxu0 %v819
        %3801 = vmatpush.bf16.msra.mxu0 %v811
        %3802 = vmatpush.bf16.msra.mxu0 %v803
        %3803 = vmatmul.bf16.gmra.mxu0 %v3739
        %v3804 = vpop.f32.mrf.mxu0
        %v3805 = vadd.f32 0.0, %v3804
        %v3806 = vpop.f32.mrf.mxu0
        %3807 = vdwg.mxu0
        %3808 = vmatpush.bf16.msra.mxu0 %v923
        %3809 = vmatpush.bf16.msra.mxu0 %v915
        %3810 = vmatpush.bf16.msra.mxu0 %v907
        %3811 = vmatpush.bf16.msra.mxu0 %v899
        %3812 = vmatpush.bf16.msra.mxu0 %v891
        %3813 = vmatpush.bf16.msra.mxu0 %v883
        %3814 = vmatpush.bf16.msra.mxu0 %v875
        %3815 = vmatpush.bf16.msra.mxu0 %v867
        %3816 = vmatmul.bf16.gmra.mxu0 %v3740
        %v3817 = vpop.f32.mrf.mxu0
        %v3818 = vadd.f32 %v3805, %v3817
        %v3819 = vpop.f32.mrf.mxu0
        %3820 = vdwg.mxu0
        %3821 = vmatpush.bf16.msra.mxu0 %v860
        %3822 = vmatpush.bf16.msra.mxu0 %v852
        %3823 = vmatpush.bf16.msra.mxu0 %v844
        %3824 = vmatpush.bf16.msra.mxu0 %v836
        %3825 = vmatpush.bf16.msra.mxu0 %v828
        %3826 = vmatpush.bf16.msra.mxu0 %v820
        %3827 = vmatpush.bf16.msra.mxu0 %v812
        %3828 = vmatpush.bf16.msra.mxu0 %v804
        %3829 = vmatmul.bf16.gmra.mxu0 %v3739
        %v3830 = vpop.f32.mrf.mxu0
        %v3831 = vadd.f32 0.0, %v3830
        %v3832 = vpop.f32.mrf.mxu0
        %3833 = vdwg.mxu0
        %3834 = vmatpush.bf16.msra.mxu0 %v924
        %3835 = vmatpush.bf16.msra.mxu0 %v916
        %3836 = vmatpush.bf16.msra.mxu0 %v908
        %3837 = vmatpush.bf16.msra.mxu0 %v900
        %3838 = vmatpush.bf16.msra.mxu0 %v892
        %3839 = vmatpush.bf16.msra.mxu0 %v884
        %3840 = vmatpush.bf16.msra.mxu0 %v876
        %3841 = vmatpush.bf16.msra.mxu0 %v868
        %3842 = vmatmul.bf16.gmra.mxu0 %v3740
        %v3843 = vpop.f32.mrf.mxu0
        %v3844 = vadd.f32 %v3831, %v3843
        %v3845 = vpop.f32.mrf.mxu0
        %3846 = vdwg.mxu0
        %3847 = vmatpush.bf16.msra.mxu0 %v861
        %3848 = vmatpush.bf16.msra.mxu0 %v853
        %3849 = vmatpush.bf16.msra.mxu0 %v845
        %3850 = vmatpush.bf16.msra.mxu0 %v837
        %3851 = vmatpush.bf16.msra.mxu0 %v829
        %3852 = vmatpush.bf16.msra.mxu0 %v821
        %3853 = vmatpush.bf16.msra.mxu0 %v813
        %3854 = vmatpush.bf16.msra.mxu0 %v805
        %3855 = vmatmul.bf16.gmra.mxu0 %v3739
        %v3856 = vpop.f32.mrf.mxu0
        %v3857 = vadd.f32 0.0, %v3856
        %v3858 = vpop.f32.mrf.mxu0
        %3859 = vdwg.mxu0
        %3860 = vmatpush.bf16.msra.mxu0 %v925
        %3861 = vmatpush.bf16.msra.mxu0 %v917
        %3862 = vmatpush.bf16.msra.mxu0 %v909
        %3863 = vmatpush.bf16.msra.mxu0 %v901
        %3864 = vmatpush.bf16.msra.mxu0 %v893
        %3865 = vmatpush.bf16.msra.mxu0 %v885
        %3866 = vmatpush.bf16.msra.mxu0 %v877
        %3867 = vmatpush.bf16.msra.mxu0 %v869
        %3868 = vmatmul.bf16.gmra.mxu0 %v3740
        %v3869 = vpop.f32.mrf.mxu0
        %v3870 = vadd.f32 %v3857, %v3869
        %v3871 = vpop.f32.mrf.mxu0
        %3872 = vdwg.mxu0
        %3873 = vmatpush.bf16.msra.mxu0 %v862
        %3874 = vmatpush.bf16.msra.mxu0 %v854
        %3875 = vmatpush.bf16.msra.mxu0 %v846
        %3876 = vmatpush.bf16.msra.mxu0 %v838
        %3877 = vmatpush.bf16.msra.mxu0 %v830
        %3878 = vmatpush.bf16.msra.mxu0 %v822
        %3879 = vmatpush.bf16.msra.mxu0 %v814
        %3880 = vmatpush.bf16.msra.mxu0 %v806
        %3881 = vmatmul.bf16.gmra.mxu0 %v3739
        %v3882 = vpop.f32.mrf.mxu0
        %v3883 = vadd.f32 0.0, %v3882
        %v3884 = vpop.f32.mrf.mxu0
        %3885 = vdwg.mxu0
        %3886 = vmatpush.bf16.msra.mxu0 %v926
        %3887 = vmatpush.bf16.msra.mxu0 %v918
        %3888 = vmatpush.bf16.msra.mxu0 %v910
        %3889 = vmatpush.bf16.msra.mxu0 %v902
        %3890 = vmatpush.bf16.msra.mxu0 %v894
        %3891 = vmatpush.bf16.msra.mxu0 %v886
        %3892 = vmatpush.bf16.msra.mxu0 %v878
        %3893 = vmatpush.bf16.msra.mxu0 %v870
        %3894 = vmatmul.bf16.gmra.mxu0 %v3740
        %v3895 = vpop.f32.mrf.mxu0
        %v3896 = vadd.f32 %v3883, %v3895
        %v3897 = vpop.f32.mrf.mxu0
        %3898 = vdwg.mxu0
        %3899 = vmatpush.bf16.msra.mxu0 %v863
        %3900 = vmatpush.bf16.msra.mxu0 %v855
        %3901 = vmatpush.bf16.msra.mxu0 %v847
        %3902 = vmatpush.bf16.msra.mxu0 %v839
        %3903 = vmatpush.bf16.msra.mxu0 %v831
        %3904 = vmatpush.bf16.msra.mxu0 %v823
        %3905 = vmatpush.bf16.msra.mxu0 %v815
        %3906 = vmatpush.bf16.msra.mxu0 %v807
        %3907 = vmatmul.bf16.gmra.mxu0 %v3739
        %v3908 = vpop.f32.mrf.mxu0
        %v3909 = vadd.f32 0.0, %v3908
        %v3910 = vpop.f32.mrf.mxu0
        %3911 = vdwg.mxu0
        %3912 = vmatpush.bf16.msra.mxu0 %v927
        %3913 = vmatpush.bf16.msra.mxu0 %v919
        %3914 = vmatpush.bf16.msra.mxu0 %v911
        %3915 = vmatpush.bf16.msra.mxu0 %v903
        %3916 = vmatpush.bf16.msra.mxu0 %v895
        %3917 = vmatpush.bf16.msra.mxu0 %v887
        %3918 = vmatpush.bf16.msra.mxu0 %v879
        %3919 = vmatpush.bf16.msra.mxu0 %v871
        %3920 = vmatmul.bf16.gmra.mxu0 %v3740
        %v3921 = vpop.f32.mrf.mxu0
        %v3922 = vadd.f32 %v3909, %v3921
        %v3923 = vpop.f32.mrf.mxu0
        %3924 = vdwg.mxu0
        %3925 = vmatpush.bf16.msra.mxu0 %v864
        %3926 = vmatpush.bf16.msra.mxu0 %v856
        %3927 = vmatpush.bf16.msra.mxu0 %v848
        %3928 = vmatpush.bf16.msra.mxu0 %v840
        %3929 = vmatpush.bf16.msra.mxu0 %v832
        %3930 = vmatpush.bf16.msra.mxu0 %v824
        %3931 = vmatpush.bf16.msra.mxu0 %v816
        %3932 = vmatpush.bf16.msra.mxu0 %v808
        %3933 = vmatmul.bf16.gmra.mxu0 %v3739
        %v3934 = vpop.f32.mrf.mxu0
        %v3935 = vadd.f32 0.0, %v3934
        %v3936 = vpop.f32.mrf.mxu0
        %3937 = vdwg.mxu0
        %3938 = vmatpush.bf16.msra.mxu0 %v928
        %3939 = vmatpush.bf16.msra.mxu0 %v920
        %3940 = vmatpush.bf16.msra.mxu0 %v912
        %3941 = vmatpush.bf16.msra.mxu0 %v904
        %3942 = vmatpush.bf16.msra.mxu0 %v896
        %3943 = vmatpush.bf16.msra.mxu0 %v888
        %3944 = vmatpush.bf16.msra.mxu0 %v880
        %3945 = vmatpush.bf16.msra.mxu0 %v872
        %3946 = vmatmul.bf16.gmra.mxu0 %v3740
        %v3947 = vpop.f32.mrf.mxu0
        %v3948 = vadd.f32 %v3935, %v3947
        %v3949 = vpop.f32.mrf.mxu0
        %3950 = vdwg.mxu0
        %v3951 = vadd.f32 %v3728, %v3766
        %v3952 = vadd.f32 %v3729, %v3792
        %v3953 = vadd.f32 %v3730, %v3818
        %v3954 = vadd.f32 %v3731, %v3844
        %v3955 = vadd.f32 %v3732, %v3870
        %v3956 = vadd.f32 %v3733, %v3896
        %v3957 = vadd.f32 %v3734, %v3922
        %v3958 = vadd.f32 %v3735, %v3948
        %v3959 = vxor.u32 %v3951, 2147483648
        %v3960 = vxor.u32 %v3952, 2147483648
        %v3961 = vmul.f32 %v3959, 1.442695
        %v3962 = vpow.pop %v3961
        %v3963 = vmul.f32 %v3960, 1.442695
        %v3964 = vpow.pop %v3963
        %v3965 = vadd.f32 %v3962, 1.0
        %v3966 = vadd.f32 %v3964, 1.0
        %v3967 = vrcp.pop %v3965
        %v3968 = vmul.f32 %v3965, %v3967
        %v3969 = vsub.f32 1.0, %v3968
        %v3970 = vmul.f32 %v3967, %v3969
        %v3971 = vadd.f32 %v3967, %v3970
        %vm3972 = vweird.f32 %v3965
        %vm3973 = vweird.f32 %v3967
        %vm3974 = vmor %vm3972, %vm3973
        %v3975 = vsel %vm3974, %v3967, %v3971
        %v3976 = vand.u32 2147483647, %v3965
        %vm3977 = vcmp.eq.f32.partialorder %v3976, 8.507059e+37
        %v3978 = vand.u32 %v3965, 2147483648
        %v3979 = vor.u32 1.1754944e-38, %v3978
        %v3980 = vsel %vm3977, %v3979, %v3975
        %v3981 = vmul.f32 1.0, %v3980
        %v3982 = vrcp.pop %v3966
        %v3983 = vmul.f32 %v3966, %v3982
        %v3984 = vsub.f32 1.0, %v3983
        %v3985 = vmul.f32 %v3982, %v3984
        %v3986 = vadd.f32 %v3982, %v3985
        %vm3987 = vweird.f32 %v3966
        %vm3988 = vweird.f32 %v3982
        %vm3989 = vmor %vm3987, %vm3988
        %v3990 = vsel %vm3989, %v3982, %v3986
        %v3991 = vand.u32 2147483647, %v3966
        %vm3992 = vcmp.eq.f32.partialorder %v3991, 8.507059e+37
        %v3993 = vand.u32 %v3966, 2147483648
        %v3994 = vor.u32 1.1754944e-38, %v3993
        %v3995 = vsel %vm3992, %v3994, %v3990
        %v3996 = vmul.f32 1.0, %v3995
        %v3997 = vxor.u32 %v3953, 2147483648
        %v3998 = vxor.u32 %v3954, 2147483648
        %v3999 = vmul.f32 %v3997, 1.442695
        %v4000 = vpow.pop %v3999
        %v4001 = vmul.f32 %v3998, 1.442695
        %v4002 = vpow.pop %v4001
        %v4003 = vadd.f32 %v4000, 1.0
        %v4004 = vadd.f32 %v4002, 1.0
        %v4005 = vrcp.pop %v4003
        %v4006 = vmul.f32 %v4003, %v4005
        %v4007 = vsub.f32 1.0, %v4006
        %v4008 = vmul.f32 %v4005, %v4007
        %v4009 = vadd.f32 %v4005, %v4008
        %vm4010 = vweird.f32 %v4003
        %vm4011 = vweird.f32 %v4005
        %vm4012 = vmor %vm4010, %vm4011
        %v4013 = vsel %vm4012, %v4005, %v4009
        %v4014 = vand.u32 2147483647, %v4003
        %vm4015 = vcmp.eq.f32.partialorder %v4014, 8.507059e+37
        %v4016 = vand.u32 %v4003, 2147483648
        %v4017 = vor.u32 1.1754944e-38, %v4016
        %v4018 = vsel %vm4015, %v4017, %v4013
        %v4019 = vmul.f32 1.0, %v4018
        %v4020 = vrcp.pop %v4004
        %v4021 = vmul.f32 %v4004, %v4020
        %v4022 = vsub.f32 1.0, %v4021
        %v4023 = vmul.f32 %v4020, %v4022
        %v4024 = vadd.f32 %v4020, %v4023
        %vm4025 = vweird.f32 %v4004
        %vm4026 = vweird.f32 %v4020
        %vm4027 = vmor %vm4025, %vm4026
        %v4028 = vsel %vm4027, %v4020, %v4024
        %v4029 = vand.u32 2147483647, %v4004
        %vm4030 = vcmp.eq.f32.partialorder %v4029, 8.507059e+37
        %v4031 = vand.u32 %v4004, 2147483648
        %v4032 = vor.u32 1.1754944e-38, %v4031
        %v4033 = vsel %vm4030, %v4032, %v4028
        %v4034 = vmul.f32 1.0, %v4033
        %v4035 = vtanh.pop %v3955
        %v4036 = vtanh.pop %v3956
        %v4037 = vxor.u32 %v3957, 2147483648
        %v4038 = vxor.u32 %v3958, 2147483648
        %v4039 = vmul.f32 %v4037, 1.442695
        %v4040 = vpow.pop %v4039
        %v4041 = vmul.f32 %v4038, 1.442695
        %v4042 = vpow.pop %v4041
        %v4043 = vadd.f32 %v4040, 1.0
        %v4044 = vadd.f32 %v4042, 1.0
        %v4045 = vrcp.pop %v4043
        %v4046 = vmul.f32 %v4043, %v4045
        %v4047 = vsub.f32 1.0, %v4046
        %v4048 = vmul.f32 %v4045, %v4047
        %v4049 = vadd.f32 %v4045, %v4048
        %vm4050 = vweird.f32 %v4043
        %vm4051 = vweird.f32 %v4045
        %vm4052 = vmor %vm4050, %vm4051
        %v4053 = vsel %vm4052, %v4045, %v4049
        %v4054 = vand.u32 2147483647, %v4043
        %vm4055 = vcmp.eq.f32.partialorder %v4054, 8.507059e+37
        %v4056 = vand.u32 %v4043, 2147483648
        %v4057 = vor.u32 1.1754944e-38, %v4056
        %v4058 = vsel %vm4055, %v4057, %v4053
        %v4059 = vmul.f32 1.0, %v4058
        %v4060 = vrcp.pop %v4044
        %v4061 = vmul.f32 %v4044, %v4060
        %v4062 = vsub.f32 1.0, %v4061
        %v4063 = vmul.f32 %v4060, %v4062
        %v4064 = vadd.f32 %v4060, %v4063
        %vm4065 = vweird.f32 %v4044
        %vm4066 = vweird.f32 %v4060
        %vm4067 = vmor %vm4065, %vm4066
        %v4068 = vsel %vm4067, %v4060, %v4064
        %v4069 = vand.u32 2147483647, %v4044
        %vm4070 = vcmp.eq.f32.partialorder %v4069, 8.507059e+37
        %v4071 = vand.u32 %v4044, 2147483648
        %v4072 = vor.u32 1.1754944e-38, %v4071
        %v4073 = vsel %vm4070, %v4072, %v4068
        %v4074 = vmul.f32 1.0, %v4073
        %v4075 = vmul.f32 %v4019, %v3712
        %v4076 = vmul.f32 %v4034, %v3713
        %v4077 = vmul.f32 %v3981, %v4035
        %v4078 = vmul.f32 %v3996, %v4036
        %v4079 = vadd.f32 %v4075, %v4077
        %v4080 = vadd.f32 %v4076, %v4078
        %v4081 = vtanh.pop %v4079
        %v4082 = vtanh.pop %v4080
        %v4083 = vmul.f32 %v4059, %v4081
        %v4084 = vmul.f32 %v4074, %v4082
        %s4085 = sadd.s32 %s402, 7
        %p4086 = scmp.lt.s32.totalorder %s4085, 24
        %s4087 = scalar_select %p4086, 1, 0
        %s4088 = scvt.s32.f32 %s4087
        %v4089 = vstv %s4088
        %v4090 = vmul.f32 %v4089, %v4079
        %v4091 = vmul.f32 %v4089, %v4080
        %s4092 = ssub.f32 1.0, %s4088
        %v4093 = vstv %s4092
        %v4094 = vmul.f32 %v4093, %v3712
        %v4095 = vmul.f32 %v4093, %v3713
        %v4096 = vadd.f32 %v4090, %v4094
        %v4097 = vadd.f32 %v4091, %v4095
        %v4098 = vmul.f32 %v4089, %v4083
        %v4099 = vmul.f32 %v4089, %v4084
        %v4100 = vmul.f32 %v4093, %v3718
        %v4101 = vmul.f32 %v4093, %v3719
        %v4102 = vadd.f32 %v4098, %v4100
        %v4103 = vadd.f32 %v4099, %v4101
        %v4104 = vpack.c.bf16 %v4103, %v4102
        %s4105 = scalar_lea.vmem %s255, 56 [#allocation9]
        %4106 = vst [vmem:[%s4105] sm:$0xff] %v4104
        %s4107 = scalar_lea.vmem %s229, 256 [#allocation4]
        %v4108 = vld [vmem:[%s4107] sm:$0xff]
        %v4109 = vld [vmem:[%s4107 + $0x8] sm:$0xff]
        %v4110 = vld [vmem:[%s4107 + $0x10] sm:$0xff]
        %v4111 = vld [vmem:[%s4107 + $0x18] sm:$0xff]
        %v4112 = vunpack.c.l.bf16 %v4108
        %v4113 = vunpack.c.h.bf16 %v4108
        %v4114 = vunpack.c.l.bf16 %v4109
        %v4115 = vunpack.c.h.bf16 %v4109
        %v4116 = vunpack.c.l.bf16 %v4110
        %v4117 = vunpack.c.h.bf16 %v4110
        %v4118 = vunpack.c.l.bf16 %v4111
        %v4119 = vunpack.c.h.bf16 %v4111
        %v4121 = vunpack.c.l.b16 %v4104
        %v4122 = vunpack.c.h.b16 %v4104
        %v4123 = vpack.c.b16 %v4121, %v4121
        %v4124 = vpack.c.b16 %v4122, %v4122
        %4127 = vmatpush.bf16.msra.mxu0 %v857
        %4128 = vmatpush.bf16.msra.mxu0 %v849
        %4129 = vmatpush.bf16.msra.mxu0 %v841
        %4130 = vmatpush.bf16.msra.mxu0 %v833
        %4131 = vmatpush.bf16.msra.mxu0 %v825
        %4132 = vmatpush.bf16.msra.mxu0 %v817
        %4133 = vmatpush.bf16.msra.mxu0 %v809
        %4134 = vmatpush.bf16.msra.mxu0 %v801
        %4135 = vmatmul.bf16.gmra.mxu0 %v4123
        %v4136 = vpop.f32.mrf.mxu0
        %v4137 = vadd.f32 0.0, %v4136
        %v4138 = vpop.f32.mrf.mxu0
        %4139 = vdwg.mxu0
        %4140 = vmatpush.bf16.msra.mxu0 %v921
        %4141 = vmatpush.bf16.msra.mxu0 %v913
        %4142 = vmatpush.bf16.msra.mxu0 %v905
        %4143 = vmatpush.bf16.msra.mxu0 %v897
        %4144 = vmatpush.bf16.msra.mxu0 %v889
        %4145 = vmatpush.bf16.msra.mxu0 %v881
        %4146 = vmatpush.bf16.msra.mxu0 %v873
        %4147 = vmatpush.bf16.msra.mxu0 %v865
        %4148 = vmatmul.bf16.gmra.mxu0 %v4124
        %v4149 = vpop.f32.mrf.mxu0
        %v4150 = vadd.f32 %v4137, %v4149
        %v4151 = vpop.f32.mrf.mxu0
        %4152 = vdwg.mxu0
        %4153 = vmatpush.bf16.msra.mxu0 %v858
        %4154 = vmatpush.bf16.msra.mxu0 %v850
        %4155 = vmatpush.bf16.msra.mxu0 %v842
        %4156 = vmatpush.bf16.msra.mxu0 %v834
        %4157 = vmatpush.bf16.msra.mxu0 %v826
        %4158 = vmatpush.bf16.msra.mxu0 %v818
        %4159 = vmatpush.bf16.msra.mxu0 %v810
        %4160 = vmatpush.bf16.msra.mxu0 %v802
        %4161 = vmatmul.bf16.gmra.mxu0 %v4123
        %v4162 = vpop.f32.mrf.mxu0
        %v4163 = vadd.f32 0.0, %v4162
        %v4164 = vpop.f32.mrf.mxu0
        %4165 = vdwg.mxu0
        %4166 = vmatpush.bf16.msra.mxu0 %v922
        %4167 = vmatpush.bf16.msra.mxu0 %v914
        %4168 = vmatpush.bf16.msra.mxu0 %v906
        %4169 = vmatpush.bf16.msra.mxu0 %v898
        %4170 = vmatpush.bf16.msra.mxu0 %v890
        %4171 = vmatpush.bf16.msra.mxu0 %v882
        %4172 = vmatpush.bf16.msra.mxu0 %v874
        %4173 = vmatpush.bf16.msra.mxu0 %v866
        %4174 = vmatmul.bf16.gmra.mxu0 %v4124
        %v4175 = vpop.f32.mrf.mxu0
        %v4176 = vadd.f32 %v4163, %v4175
        %v4177 = vpop.f32.mrf.mxu0
        %4178 = vdwg.mxu0
        %4179 = vmatpush.bf16.msra.mxu0 %v859
        %4180 = vmatpush.bf16.msra.mxu0 %v851
        %4181 = vmatpush.bf16.msra.mxu0 %v843
        %4182 = vmatpush.bf16.msra.mxu0 %v835
        %4183 = vmatpush.bf16.msra.mxu0 %v827
        %4184 = vmatpush.bf16.msra.mxu0 %v819
        %4185 = vmatpush.bf16.msra.mxu0 %v811
        %4186 = vmatpush.bf16.msra.mxu0 %v803
        %4187 = vmatmul.bf16.gmra.mxu0 %v4123
        %v4188 = vpop.f32.mrf.mxu0
        %v4189 = vadd.f32 0.0, %v4188
        %v4190 = vpop.f32.mrf.mxu0
        %4191 = vdwg.mxu0
        %4192 = vmatpush.bf16.msra.mxu0 %v923
        %4193 = vmatpush.bf16.msra.mxu0 %v915
        %4194 = vmatpush.bf16.msra.mxu0 %v907
        %4195 = vmatpush.bf16.msra.mxu0 %v899
        %4196 = vmatpush.bf16.msra.mxu0 %v891
        %4197 = vmatpush.bf16.msra.mxu0 %v883
        %4198 = vmatpush.bf16.msra.mxu0 %v875
        %4199 = vmatpush.bf16.msra.mxu0 %v867
        %4200 = vmatmul.bf16.gmra.mxu0 %v4124
        %v4201 = vpop.f32.mrf.mxu0
        %v4202 = vadd.f32 %v4189, %v4201
        %v4203 = vpop.f32.mrf.mxu0
        %4204 = vdwg.mxu0
        %4205 = vmatpush.bf16.msra.mxu0 %v860
        %4206 = vmatpush.bf16.msra.mxu0 %v852
        %4207 = vmatpush.bf16.msra.mxu0 %v844
        %4208 = vmatpush.bf16.msra.mxu0 %v836
        %4209 = vmatpush.bf16.msra.mxu0 %v828
        %4210 = vmatpush.bf16.msra.mxu0 %v820
        %4211 = vmatpush.bf16.msra.mxu0 %v812
        %4212 = vmatpush.bf16.msra.mxu0 %v804
        %4213 = vmatmul.bf16.gmra.mxu0 %v4123
        %v4214 = vpop.f32.mrf.mxu0
        %v4215 = vadd.f32 0.0, %v4214
        %v4216 = vpop.f32.mrf.mxu0
        %4217 = vdwg.mxu0
        %4218 = vmatpush.bf16.msra.mxu0 %v924
        %4219 = vmatpush.bf16.msra.mxu0 %v916
        %4220 = vmatpush.bf16.msra.mxu0 %v908
        %4221 = vmatpush.bf16.msra.mxu0 %v900
        %4222 = vmatpush.bf16.msra.mxu0 %v892
        %4223 = vmatpush.bf16.msra.mxu0 %v884
        %4224 = vmatpush.bf16.msra.mxu0 %v876
        %4225 = vmatpush.bf16.msra.mxu0 %v868
        %4226 = vmatmul.bf16.gmra.mxu0 %v4124
        %v4227 = vpop.f32.mrf.mxu0
        %v4228 = vadd.f32 %v4215, %v4227
        %v4229 = vpop.f32.mrf.mxu0
        %4230 = vdwg.mxu0
        %4231 = vmatpush.bf16.msra.mxu0 %v861
        %4232 = vmatpush.bf16.msra.mxu0 %v853
        %4233 = vmatpush.bf16.msra.mxu0 %v845
        %4234 = vmatpush.bf16.msra.mxu0 %v837
        %4235 = vmatpush.bf16.msra.mxu0 %v829
        %4236 = vmatpush.bf16.msra.mxu0 %v821
        %4237 = vmatpush.bf16.msra.mxu0 %v813
        %4238 = vmatpush.bf16.msra.mxu0 %v805
        %4239 = vmatmul.bf16.gmra.mxu0 %v4123
        %v4240 = vpop.f32.mrf.mxu0
        %v4241 = vadd.f32 0.0, %v4240
        %v4242 = vpop.f32.mrf.mxu0
        %4243 = vdwg.mxu0
        %4244 = vmatpush.bf16.msra.mxu0 %v925
        %4245 = vmatpush.bf16.msra.mxu0 %v917
        %4246 = vmatpush.bf16.msra.mxu0 %v909
        %4247 = vmatpush.bf16.msra.mxu0 %v901
        %4248 = vmatpush.bf16.msra.mxu0 %v893
        %4249 = vmatpush.bf16.msra.mxu0 %v885
        %4250 = vmatpush.bf16.msra.mxu0 %v877
        %4251 = vmatpush.bf16.msra.mxu0 %v869
        %4252 = vmatmul.bf16.gmra.mxu0 %v4124
        %v4253 = vpop.f32.mrf.mxu0
        %v4254 = vadd.f32 %v4241, %v4253
        %v4255 = vpop.f32.mrf.mxu0
        %4256 = vdwg.mxu0
        %4257 = vmatpush.bf16.msra.mxu0 %v862
        %4258 = vmatpush.bf16.msra.mxu0 %v854
        %4259 = vmatpush.bf16.msra.mxu0 %v846
        %4260 = vmatpush.bf16.msra.mxu0 %v838
        %4261 = vmatpush.bf16.msra.mxu0 %v830
        %4262 = vmatpush.bf16.msra.mxu0 %v822
        %4263 = vmatpush.bf16.msra.mxu0 %v814
        %4264 = vmatpush.bf16.msra.mxu0 %v806
        %4265 = vmatmul.bf16.gmra.mxu0 %v4123
        %v4266 = vpop.f32.mrf.mxu0
        %v4267 = vadd.f32 0.0, %v4266
        %v4268 = vpop.f32.mrf.mxu0
        %4269 = vdwg.mxu0
        %4270 = vmatpush.bf16.msra.mxu0 %v926
        %4271 = vmatpush.bf16.msra.mxu0 %v918
        %4272 = vmatpush.bf16.msra.mxu0 %v910
        %4273 = vmatpush.bf16.msra.mxu0 %v902
        %4274 = vmatpush.bf16.msra.mxu0 %v894
        %4275 = vmatpush.bf16.msra.mxu0 %v886
        %4276 = vmatpush.bf16.msra.mxu0 %v878
        %4277 = vmatpush.bf16.msra.mxu0 %v870
        %4278 = vmatmul.bf16.gmra.mxu0 %v4124
        %v4279 = vpop.f32.mrf.mxu0
        %v4280 = vadd.f32 %v4267, %v4279
        %v4281 = vpop.f32.mrf.mxu0
        %4282 = vdwg.mxu0
        %4283 = vmatpush.bf16.msra.mxu0 %v863
        %4284 = vmatpush.bf16.msra.mxu0 %v855
        %4285 = vmatpush.bf16.msra.mxu0 %v847
        %4286 = vmatpush.bf16.msra.mxu0 %v839
        %4287 = vmatpush.bf16.msra.mxu0 %v831
        %4288 = vmatpush.bf16.msra.mxu0 %v823
        %4289 = vmatpush.bf16.msra.mxu0 %v815
        %4290 = vmatpush.bf16.msra.mxu0 %v807
        %4291 = vmatmul.bf16.gmra.mxu0 %v4123
        %v4292 = vpop.f32.mrf.mxu0
        %v4293 = vadd.f32 0.0, %v4292
        %v4294 = vpop.f32.mrf.mxu0
        %4295 = vdwg.mxu0
        %4296 = vmatpush.bf16.msra.mxu0 %v927
        %4297 = vmatpush.bf16.msra.mxu0 %v919
        %4298 = vmatpush.bf16.msra.mxu0 %v911
        %4299 = vmatpush.bf16.msra.mxu0 %v903
        %4300 = vmatpush.bf16.msra.mxu0 %v895
        %4301 = vmatpush.bf16.msra.mxu0 %v887
        %4302 = vmatpush.bf16.msra.mxu0 %v879
        %4303 = vmatpush.bf16.msra.mxu0 %v871
        %4304 = vmatmul.bf16.gmra.mxu0 %v4124
        %v4305 = vpop.f32.mrf.mxu0
        %v4306 = vadd.f32 %v4293, %v4305
        %v4307 = vpop.f32.mrf.mxu0
        %4308 = vdwg.mxu0
        %4309 = vmatpush.bf16.msra.mxu0 %v864
        %4310 = vmatpush.bf16.msra.mxu0 %v856
        %4311 = vmatpush.bf16.msra.mxu0 %v848
        %4312 = vmatpush.bf16.msra.mxu0 %v840
        %4313 = vmatpush.bf16.msra.mxu0 %v832
        %4314 = vmatpush.bf16.msra.mxu0 %v824
        %4315 = vmatpush.bf16.msra.mxu0 %v816
        %4316 = vmatpush.bf16.msra.mxu0 %v808
        %4317 = vmatmul.bf16.gmra.mxu0 %v4123
        %v4318 = vpop.f32.mrf.mxu0
        %v4319 = vadd.f32 0.0, %v4318
        %v4320 = vpop.f32.mrf.mxu0
        %4321 = vdwg.mxu0
        %4322 = vmatpush.bf16.msra.mxu0 %v928
        %4323 = vmatpush.bf16.msra.mxu0 %v920
        %4324 = vmatpush.bf16.msra.mxu0 %v912
        %4325 = vmatpush.bf16.msra.mxu0 %v904
        %4326 = vmatpush.bf16.msra.mxu0 %v896
        %4327 = vmatpush.bf16.msra.mxu0 %v888
        %4328 = vmatpush.bf16.msra.mxu0 %v880
        %4329 = vmatpush.bf16.msra.mxu0 %v872
        %4330 = vmatmul.bf16.gmra.mxu0 %v4124
        %v4331 = vpop.f32.mrf.mxu0
        %v4332 = vadd.f32 %v4319, %v4331
        %v4333 = vpop.f32.mrf.mxu0
        %4334 = vdwg.mxu0
        %v4335 = vadd.f32 %v4112, %v4150
        %v4336 = vadd.f32 %v4113, %v4176
        %v4337 = vadd.f32 %v4114, %v4202
        %v4338 = vadd.f32 %v4115, %v4228
        %v4339 = vadd.f32 %v4116, %v4254
        %v4340 = vadd.f32 %v4117, %v4280
        %v4341 = vadd.f32 %v4118, %v4306
        %v4342 = vadd.f32 %v4119, %v4332
        %v4343 = vxor.u32 %v4335, 2147483648
        %v4344 = vxor.u32 %v4336, 2147483648
        %v4345 = vmul.f32 %v4343, 1.442695
        %v4346 = vpow.pop %v4345
        %v4347 = vmul.f32 %v4344, 1.442695
        %v4348 = vpow.pop %v4347
        %v4349 = vadd.f32 %v4346, 1.0
        %v4350 = vadd.f32 %v4348, 1.0
        %v4351 = vrcp.pop %v4349
        %v4352 = vmul.f32 %v4349, %v4351
        %v4353 = vsub.f32 1.0, %v4352
        %v4354 = vmul.f32 %v4351, %v4353
        %v4355 = vadd.f32 %v4351, %v4354
        %vm4356 = vweird.f32 %v4349
        %vm4357 = vweird.f32 %v4351
        %vm4358 = vmor %vm4356, %vm4357
        %v4359 = vsel %vm4358, %v4351, %v4355
        %v4360 = vand.u32 2147483647, %v4349
        %vm4361 = vcmp.eq.f32.partialorder %v4360, 8.507059e+37
        %v4362 = vand.u32 %v4349, 2147483648
        %v4363 = vor.u32 1.1754944e-38, %v4362
        %v4364 = vsel %vm4361, %v4363, %v4359
        %v4365 = vmul.f32 1.0, %v4364
        %v4366 = vrcp.pop %v4350
        %v4367 = vmul.f32 %v4350, %v4366
        %v4368 = vsub.f32 1.0, %v4367
        %v4369 = vmul.f32 %v4366, %v4368
        %v4370 = vadd.f32 %v4366, %v4369
        %vm4371 = vweird.f32 %v4350
        %vm4372 = vweird.f32 %v4366
        %vm4373 = vmor %vm4371, %vm4372
        %v4374 = vsel %vm4373, %v4366, %v4370
        %v4375 = vand.u32 2147483647, %v4350
        %vm4376 = vcmp.eq.f32.partialorder %v4375, 8.507059e+37
        %v4377 = vand.u32 %v4350, 2147483648
        %v4378 = vor.u32 1.1754944e-38, %v4377
        %v4379 = vsel %vm4376, %v4378, %v4374
        %v4380 = vmul.f32 1.0, %v4379
        %v4381 = vxor.u32 %v4337, 2147483648
        %v4382 = vxor.u32 %v4338, 2147483648
        %v4383 = vmul.f32 %v4381, 1.442695
        %v4384 = vpow.pop %v4383
        %v4385 = vmul.f32 %v4382, 1.442695
        %v4386 = vpow.pop %v4385
        %v4387 = vadd.f32 %v4384, 1.0
        %v4388 = vadd.f32 %v4386, 1.0
        %v4389 = vrcp.pop %v4387
        %v4390 = vmul.f32 %v4387, %v4389
        %v4391 = vsub.f32 1.0, %v4390
        %v4392 = vmul.f32 %v4389, %v4391
        %v4393 = vadd.f32 %v4389, %v4392
        %vm4394 = vweird.f32 %v4387
        %vm4395 = vweird.f32 %v4389
        %vm4396 = vmor %vm4394, %vm4395
        %v4397 = vsel %vm4396, %v4389, %v4393
        %v4398 = vand.u32 2147483647, %v4387
        %vm4399 = vcmp.eq.f32.partialorder %v4398, 8.507059e+37
        %v4400 = vand.u32 %v4387, 2147483648
        %v4401 = vor.u32 1.1754944e-38, %v4400
        %v4402 = vsel %vm4399, %v4401, %v4397
        %v4403 = vmul.f32 1.0, %v4402
        %v4404 = vrcp.pop %v4388
        %v4405 = vmul.f32 %v4388, %v4404
        %v4406 = vsub.f32 1.0, %v4405
        %v4407 = vmul.f32 %v4404, %v4406
        %v4408 = vadd.f32 %v4404, %v4407
        %vm4409 = vweird.f32 %v4388
        %vm4410 = vweird.f32 %v4404
        %vm4411 = vmor %vm4409, %vm4410
        %v4412 = vsel %vm4411, %v4404, %v4408
        %v4413 = vand.u32 2147483647, %v4388
        %vm4414 = vcmp.eq.f32.partialorder %v4413, 8.507059e+37
        %v4415 = vand.u32 %v4388, 2147483648
        %v4416 = vor.u32 1.1754944e-38, %v4415
        %v4417 = vsel %vm4414, %v4416, %v4412
        %v4418 = vmul.f32 1.0, %v4417
        %v4419 = vtanh.pop %v4339
        %v4420 = vtanh.pop %v4340
        %v4421 = vxor.u32 %v4341, 2147483648
        %v4422 = vxor.u32 %v4342, 2147483648
        %v4423 = vmul.f32 %v4421, 1.442695
        %v4424 = vpow.pop %v4423
        %v4425 = vmul.f32 %v4422, 1.442695
        %v4426 = vpow.pop %v4425
        %v4427 = vadd.f32 %v4424, 1.0
        %v4428 = vadd.f32 %v4426, 1.0
        %v4429 = vrcp.pop %v4427
        %v4430 = vmul.f32 %v4427, %v4429
        %v4431 = vsub.f32 1.0, %v4430
        %v4432 = vmul.f32 %v4429, %v4431
        %v4433 = vadd.f32 %v4429, %v4432
        %vm4434 = vweird.f32 %v4427
        %vm4435 = vweird.f32 %v4429
        %vm4436 = vmor %vm4434, %vm4435
        %v4437 = vsel %vm4436, %v4429, %v4433
        %v4438 = vand.u32 2147483647, %v4427
        %vm4439 = vcmp.eq.f32.partialorder %v4438, 8.507059e+37
        %v4440 = vand.u32 %v4427, 2147483648
        %v4441 = vor.u32 1.1754944e-38, %v4440
        %v4442 = vsel %vm4439, %v4441, %v4437
        %v4443 = vmul.f32 1.0, %v4442
        %v4444 = vrcp.pop %v4428
        %v4445 = vmul.f32 %v4428, %v4444
        %v4446 = vsub.f32 1.0, %v4445
        %v4447 = vmul.f32 %v4444, %v4446
        %v4448 = vadd.f32 %v4444, %v4447
        %vm4449 = vweird.f32 %v4428
        %vm4450 = vweird.f32 %v4444
        %vm4451 = vmor %vm4449, %vm4450
        %v4452 = vsel %vm4451, %v4444, %v4448
        %v4453 = vand.u32 2147483647, %v4428
        %vm4454 = vcmp.eq.f32.partialorder %v4453, 8.507059e+37
        %v4455 = vand.u32 %v4428, 2147483648
        %v4456 = vor.u32 1.1754944e-38, %v4455
        %v4457 = vsel %vm4454, %v4456, %v4452
        %v4458 = vmul.f32 1.0, %v4457
        %v4459 = vmul.f32 %v4403, %v4096
        %v4460 = vmul.f32 %v4418, %v4097
        %v4461 = vmul.f32 %v4365, %v4419
        %v4462 = vmul.f32 %v4380, %v4420
        %v4463 = vadd.f32 %v4459, %v4461
        %v4464 = vadd.f32 %v4460, %v4462
        %v4465 = vtanh.pop %v4463
        %v4466 = vtanh.pop %v4464
        %v4467 = vmul.f32 %v4443, %v4465
        %v4468 = vmul.f32 %v4458, %v4466
        %s4469 = sadd.s32 %s402, 8
        %p4470 = scmp.lt.s32.totalorder %s4469, 24
        %s4471 = scalar_select %p4470, 1, 0
        %s4472 = scvt.s32.f32 %s4471
        %v4473 = vstv %s4472
        %v4474 = vmul.f32 %v4473, %v4463
        %v4475 = vmul.f32 %v4473, %v4464
        %s4476 = ssub.f32 1.0, %s4472
        %v4477 = vstv %s4476
        %v4478 = vmul.f32 %v4477, %v4096
        %v4479 = vmul.f32 %v4477, %v4097
        %v4480 = vadd.f32 %v4474, %v4478
        %v4481 = vadd.f32 %v4475, %v4479
        %v4482 = vmul.f32 %v4473, %v4467
        %v4483 = vmul.f32 %v4473, %v4468
        %v4484 = vmul.f32 %v4477, %v4102
        %v4485 = vmul.f32 %v4477, %v4103
        %v4486 = vadd.f32 %v4482, %v4484
        %v4487 = vadd.f32 %v4483, %v4485
        %v4488 = vpack.c.bf16 %v4487, %v4486
        %s4489 = scalar_lea.vmem %s255, 64 [#allocation9]
        %4490 = vst [vmem:[%s4489] sm:$0xff] %v4488
        %s4491 = scalar_lea.vmem %s229, 288 [#allocation4]
        %v4492 = vld [vmem:[%s4491] sm:$0xff]
        %v4493 = vld [vmem:[%s4491 + $0x8] sm:$0xff]
        %v4494 = vld [vmem:[%s4491 + $0x10] sm:$0xff]
        %v4495 = vld [vmem:[%s4491 + $0x18] sm:$0xff]
        %v4496 = vunpack.c.l.bf16 %v4492
        %v4497 = vunpack.c.h.bf16 %v4492
        %v4498 = vunpack.c.l.bf16 %v4493
        %v4499 = vunpack.c.h.bf16 %v4493
        %v4500 = vunpack.c.l.bf16 %v4494
        %v4501 = vunpack.c.h.bf16 %v4494
        %v4502 = vunpack.c.l.bf16 %v4495
        %v4503 = vunpack.c.h.bf16 %v4495
        %v4505 = vunpack.c.l.b16 %v4488
        %v4506 = vunpack.c.h.b16 %v4488
        %v4507 = vpack.c.b16 %v4505, %v4505
        %v4508 = vpack.c.b16 %v4506, %v4506
        %4511 = vmatpush.bf16.msra.mxu0 %v857
        %4512 = vmatpush.bf16.msra.mxu0 %v849
        %4513 = vmatpush.bf16.msra.mxu0 %v841
        %4514 = vmatpush.bf16.msra.mxu0 %v833
        %4515 = vmatpush.bf16.msra.mxu0 %v825
        %4516 = vmatpush.bf16.msra.mxu0 %v817
        %4517 = vmatpush.bf16.msra.mxu0 %v809
        %4518 = vmatpush.bf16.msra.mxu0 %v801
        %4519 = vmatmul.bf16.gmra.mxu0 %v4507
        %v4520 = vpop.f32.mrf.mxu0
        %v4521 = vadd.f32 0.0, %v4520
        %v4522 = vpop.f32.mrf.mxu0
        %4523 = vdwg.mxu0
        %4524 = vmatpush.bf16.msra.mxu0 %v921
        %4525 = vmatpush.bf16.msra.mxu0 %v913
        %4526 = vmatpush.bf16.msra.mxu0 %v905
        %4527 = vmatpush.bf16.msra.mxu0 %v897
        %4528 = vmatpush.bf16.msra.mxu0 %v889
        %4529 = vmatpush.bf16.msra.mxu0 %v881
        %4530 = vmatpush.bf16.msra.mxu0 %v873
        %4531 = vmatpush.bf16.msra.mxu0 %v865
        %4532 = vmatmul.bf16.gmra.mxu0 %v4508
        %v4533 = vpop.f32.mrf.mxu0
        %v4534 = vadd.f32 %v4521, %v4533
        %v4535 = vpop.f32.mrf.mxu0
        %4536 = vdwg.mxu0
        %4537 = vmatpush.bf16.msra.mxu0 %v858
        %4538 = vmatpush.bf16.msra.mxu0 %v850
        %4539 = vmatpush.bf16.msra.mxu0 %v842
        %4540 = vmatpush.bf16.msra.mxu0 %v834
        %4541 = vmatpush.bf16.msra.mxu0 %v826
        %4542 = vmatpush.bf16.msra.mxu0 %v818
        %4543 = vmatpush.bf16.msra.mxu0 %v810
        %4544 = vmatpush.bf16.msra.mxu0 %v802
        %4545 = vmatmul.bf16.gmra.mxu0 %v4507
        %v4546 = vpop.f32.mrf.mxu0
        %v4547 = vadd.f32 0.0, %v4546
        %v4548 = vpop.f32.mrf.mxu0
        %4549 = vdwg.mxu0
        %4550 = vmatpush.bf16.msra.mxu0 %v922
        %4551 = vmatpush.bf16.msra.mxu0 %v914
        %4552 = vmatpush.bf16.msra.mxu0 %v906
        %4553 = vmatpush.bf16.msra.mxu0 %v898
        %4554 = vmatpush.bf16.msra.mxu0 %v890
        %4555 = vmatpush.bf16.msra.mxu0 %v882
        %4556 = vmatpush.bf16.msra.mxu0 %v874
        %4557 = vmatpush.bf16.msra.mxu0 %v866
        %4558 = vmatmul.bf16.gmra.mxu0 %v4508
        %v4559 = vpop.f32.mrf.mxu0
        %v4560 = vadd.f32 %v4547, %v4559
        %v4561 = vpop.f32.mrf.mxu0
        %4562 = vdwg.mxu0
        %4563 = vmatpush.bf16.msra.mxu0 %v859
        %4564 = vmatpush.bf16.msra.mxu0 %v851
        %4565 = vmatpush.bf16.msra.mxu0 %v843
        %4566 = vmatpush.bf16.msra.mxu0 %v835
        %4567 = vmatpush.bf16.msra.mxu0 %v827
        %4568 = vmatpush.bf16.msra.mxu0 %v819
        %4569 = vmatpush.bf16.msra.mxu0 %v811
        %4570 = vmatpush.bf16.msra.mxu0 %v803
        %4571 = vmatmul.bf16.gmra.mxu0 %v4507
        %v4572 = vpop.f32.mrf.mxu0
        %v4573 = vadd.f32 0.0, %v4572
        %v4574 = vpop.f32.mrf.mxu0
        %4575 = vdwg.mxu0
        %4576 = vmatpush.bf16.msra.mxu0 %v923
        %4577 = vmatpush.bf16.msra.mxu0 %v915
        %4578 = vmatpush.bf16.msra.mxu0 %v907
        %4579 = vmatpush.bf16.msra.mxu0 %v899
        %4580 = vmatpush.bf16.msra.mxu0 %v891
        %4581 = vmatpush.bf16.msra.mxu0 %v883
        %4582 = vmatpush.bf16.msra.mxu0 %v875
        %4583 = vmatpush.bf16.msra.mxu0 %v867
        %4584 = vmatmul.bf16.gmra.mxu0 %v4508
        %v4585 = vpop.f32.mrf.mxu0
        %v4586 = vadd.f32 %v4573, %v4585
        %v4587 = vpop.f32.mrf.mxu0
        %4588 = vdwg.mxu0
        %4589 = vmatpush.bf16.msra.mxu0 %v860
        %4590 = vmatpush.bf16.msra.mxu0 %v852
        %4591 = vmatpush.bf16.msra.mxu0 %v844
        %4592 = vmatpush.bf16.msra.mxu0 %v836
        %4593 = vmatpush.bf16.msra.mxu0 %v828
        %4594 = vmatpush.bf16.msra.mxu0 %v820
        %4595 = vmatpush.bf16.msra.mxu0 %v812
        %4596 = vmatpush.bf16.msra.mxu0 %v804
        %4597 = vmatmul.bf16.gmra.mxu0 %v4507
        %v4598 = vpop.f32.mrf.mxu0
        %v4599 = vadd.f32 0.0, %v4598
        %v4600 = vpop.f32.mrf.mxu0
        %4601 = vdwg.mxu0
        %4602 = vmatpush.bf16.msra.mxu0 %v924
        %4603 = vmatpush.bf16.msra.mxu0 %v916
        %4604 = vmatpush.bf16.msra.mxu0 %v908
        %4605 = vmatpush.bf16.msra.mxu0 %v900
        %4606 = vmatpush.bf16.msra.mxu0 %v892
        %4607 = vmatpush.bf16.msra.mxu0 %v884
        %4608 = vmatpush.bf16.msra.mxu0 %v876
        %4609 = vmatpush.bf16.msra.mxu0 %v868
        %4610 = vmatmul.bf16.gmra.mxu0 %v4508
        %v4611 = vpop.f32.mrf.mxu0
        %v4612 = vadd.f32 %v4599, %v4611
        %v4613 = vpop.f32.mrf.mxu0
        %4614 = vdwg.mxu0
        %4615 = vmatpush.bf16.msra.mxu0 %v861
        %4616 = vmatpush.bf16.msra.mxu0 %v853
        %4617 = vmatpush.bf16.msra.mxu0 %v845
        %4618 = vmatpush.bf16.msra.mxu0 %v837
        %4619 = vmatpush.bf16.msra.mxu0 %v829
        %4620 = vmatpush.bf16.msra.mxu0 %v821
        %4621 = vmatpush.bf16.msra.mxu0 %v813
        %4622 = vmatpush.bf16.msra.mxu0 %v805
        %4623 = vmatmul.bf16.gmra.mxu0 %v4507
        %v4624 = vpop.f32.mrf.mxu0
        %v4625 = vadd.f32 0.0, %v4624
        %v4626 = vpop.f32.mrf.mxu0
        %4627 = vdwg.mxu0
        %4628 = vmatpush.bf16.msra.mxu0 %v925
        %4629 = vmatpush.bf16.msra.mxu0 %v917
        %4630 = vmatpush.bf16.msra.mxu0 %v909
        %4631 = vmatpush.bf16.msra.mxu0 %v901
        %4632 = vmatpush.bf16.msra.mxu0 %v893
        %4633 = vmatpush.bf16.msra.mxu0 %v885
        %4634 = vmatpush.bf16.msra.mxu0 %v877
        %4635 = vmatpush.bf16.msra.mxu0 %v869
        %4636 = vmatmul.bf16.gmra.mxu0 %v4508
        %v4637 = vpop.f32.mrf.mxu0
        %v4638 = vadd.f32 %v4625, %v4637
        %v4639 = vpop.f32.mrf.mxu0
        %4640 = vdwg.mxu0
        %4641 = vmatpush.bf16.msra.mxu0 %v862
        %4642 = vmatpush.bf16.msra.mxu0 %v854
        %4643 = vmatpush.bf16.msra.mxu0 %v846
        %4644 = vmatpush.bf16.msra.mxu0 %v838
        %4645 = vmatpush.bf16.msra.mxu0 %v830
        %4646 = vmatpush.bf16.msra.mxu0 %v822
        %4647 = vmatpush.bf16.msra.mxu0 %v814
        %4648 = vmatpush.bf16.msra.mxu0 %v806
        %4649 = vmatmul.bf16.gmra.mxu0 %v4507
        %v4650 = vpop.f32.mrf.mxu0
        %v4651 = vadd.f32 0.0, %v4650
        %v4652 = vpop.f32.mrf.mxu0
        %4653 = vdwg.mxu0
        %4654 = vmatpush.bf16.msra.mxu0 %v926
        %4655 = vmatpush.bf16.msra.mxu0 %v918
        %4656 = vmatpush.bf16.msra.mxu0 %v910
        %4657 = vmatpush.bf16.msra.mxu0 %v902
        %4658 = vmatpush.bf16.msra.mxu0 %v894
        %4659 = vmatpush.bf16.msra.mxu0 %v886
        %4660 = vmatpush.bf16.msra.mxu0 %v878
        %4661 = vmatpush.bf16.msra.mxu0 %v870
        %4662 = vmatmul.bf16.gmra.mxu0 %v4508
        %v4663 = vpop.f32.mrf.mxu0
        %v4664 = vadd.f32 %v4651, %v4663
        %v4665 = vpop.f32.mrf.mxu0
        %4666 = vdwg.mxu0
        %4667 = vmatpush.bf16.msra.mxu0 %v863
        %4668 = vmatpush.bf16.msra.mxu0 %v855
        %4669 = vmatpush.bf16.msra.mxu0 %v847
        %4670 = vmatpush.bf16.msra.mxu0 %v839
        %4671 = vmatpush.bf16.msra.mxu0 %v831
        %4672 = vmatpush.bf16.msra.mxu0 %v823
        %4673 = vmatpush.bf16.msra.mxu0 %v815
        %4674 = vmatpush.bf16.msra.mxu0 %v807
        %4675 = vmatmul.bf16.gmra.mxu0 %v4507
        %v4676 = vpop.f32.mrf.mxu0
        %v4677 = vadd.f32 0.0, %v4676
        %v4678 = vpop.f32.mrf.mxu0
        %4679 = vdwg.mxu0
        %4680 = vmatpush.bf16.msra.mxu0 %v927
        %4681 = vmatpush.bf16.msra.mxu0 %v919
        %4682 = vmatpush.bf16.msra.mxu0 %v911
        %4683 = vmatpush.bf16.msra.mxu0 %v903
        %4684 = vmatpush.bf16.msra.mxu0 %v895
        %4685 = vmatpush.bf16.msra.mxu0 %v887
        %4686 = vmatpush.bf16.msra.mxu0 %v879
        %4687 = vmatpush.bf16.msra.mxu0 %v871
        %4688 = vmatmul.bf16.gmra.mxu0 %v4508
        %v4689 = vpop.f32.mrf.mxu0
        %v4690 = vadd.f32 %v4677, %v4689
        %v4691 = vpop.f32.mrf.mxu0
        %4692 = vdwg.mxu0
        %4693 = vmatpush.bf16.msra.mxu0 %v864
        %4694 = vmatpush.bf16.msra.mxu0 %v856
        %4695 = vmatpush.bf16.msra.mxu0 %v848
        %4696 = vmatpush.bf16.msra.mxu0 %v840
        %4697 = vmatpush.bf16.msra.mxu0 %v832
        %4698 = vmatpush.bf16.msra.mxu0 %v824
        %4699 = vmatpush.bf16.msra.mxu0 %v816
        %4700 = vmatpush.bf16.msra.mxu0 %v808
        %4701 = vmatmul.bf16.gmra.mxu0 %v4507
        %v4702 = vpop.f32.mrf.mxu0
        %v4703 = vadd.f32 0.0, %v4702
        %v4704 = vpop.f32.mrf.mxu0
        %4705 = vdwg.mxu0
        %4706 = vmatpush.bf16.msra.mxu0 %v928
        %4707 = vmatpush.bf16.msra.mxu0 %v920
        %4708 = vmatpush.bf16.msra.mxu0 %v912
        %4709 = vmatpush.bf16.msra.mxu0 %v904
        %4710 = vmatpush.bf16.msra.mxu0 %v896
        %4711 = vmatpush.bf16.msra.mxu0 %v888
        %4712 = vmatpush.bf16.msra.mxu0 %v880
        %4713 = vmatpush.bf16.msra.mxu0 %v872
        %4714 = vmatmul.bf16.gmra.mxu0 %v4508
        %v4715 = vpop.f32.mrf.mxu0
        %v4716 = vadd.f32 %v4703, %v4715
        %v4717 = vpop.f32.mrf.mxu0
        %4718 = vdwg.mxu0
        %v4719 = vadd.f32 %v4496, %v4534
        %v4720 = vadd.f32 %v4497, %v4560
        %v4721 = vadd.f32 %v4498, %v4586
        %v4722 = vadd.f32 %v4499, %v4612
        %v4723 = vadd.f32 %v4500, %v4638
        %v4724 = vadd.f32 %v4501, %v4664
        %v4725 = vadd.f32 %v4502, %v4690
        %v4726 = vadd.f32 %v4503, %v4716
        %v4727 = vxor.u32 %v4719, 2147483648
        %v4728 = vxor.u32 %v4720, 2147483648
        %v4729 = vmul.f32 %v4727, 1.442695
        %v4730 = vpow.pop %v4729
        %v4731 = vmul.f32 %v4728, 1.442695
        %v4732 = vpow.pop %v4731
        %v4733 = vadd.f32 %v4730, 1.0
        %v4734 = vadd.f32 %v4732, 1.0
        %v4735 = vrcp.pop %v4733
        %v4736 = vmul.f32 %v4733, %v4735
        %v4737 = vsub.f32 1.0, %v4736
        %v4738 = vmul.f32 %v4735, %v4737
        %v4739 = vadd.f32 %v4735, %v4738
        %vm4740 = vweird.f32 %v4733
        %vm4741 = vweird.f32 %v4735
        %vm4742 = vmor %vm4740, %vm4741
        %v4743 = vsel %vm4742, %v4735, %v4739
        %v4744 = vand.u32 2147483647, %v4733
        %vm4745 = vcmp.eq.f32.partialorder %v4744, 8.507059e+37
        %v4746 = vand.u32 %v4733, 2147483648
        %v4747 = vor.u32 1.1754944e-38, %v4746
        %v4748 = vsel %vm4745, %v4747, %v4743
        %v4749 = vmul.f32 1.0, %v4748
        %v4750 = vrcp.pop %v4734
        %v4751 = vmul.f32 %v4734, %v4750
        %v4752 = vsub.f32 1.0, %v4751
        %v4753 = vmul.f32 %v4750, %v4752
        %v4754 = vadd.f32 %v4750, %v4753
        %vm4755 = vweird.f32 %v4734
        %vm4756 = vweird.f32 %v4750
        %vm4757 = vmor %vm4755, %vm4756
        %v4758 = vsel %vm4757, %v4750, %v4754
        %v4759 = vand.u32 2147483647, %v4734
        %vm4760 = vcmp.eq.f32.partialorder %v4759, 8.507059e+37
        %v4761 = vand.u32 %v4734, 2147483648
        %v4762 = vor.u32 1.1754944e-38, %v4761
        %v4763 = vsel %vm4760, %v4762, %v4758
        %v4764 = vmul.f32 1.0, %v4763
        %v4765 = vxor.u32 %v4721, 2147483648
        %v4766 = vxor.u32 %v4722, 2147483648
        %v4767 = vmul.f32 %v4765, 1.442695
        %v4768 = vpow.pop %v4767
        %v4769 = vmul.f32 %v4766, 1.442695
        %v4770 = vpow.pop %v4769
        %v4771 = vadd.f32 %v4768, 1.0
        %v4772 = vadd.f32 %v4770, 1.0
        %v4773 = vrcp.pop %v4771
        %v4774 = vmul.f32 %v4771, %v4773
        %v4775 = vsub.f32 1.0, %v4774
        %v4776 = vmul.f32 %v4773, %v4775
        %v4777 = vadd.f32 %v4773, %v4776
        %vm4778 = vweird.f32 %v4771
        %vm4779 = vweird.f32 %v4773
        %vm4780 = vmor %vm4778, %vm4779
        %v4781 = vsel %vm4780, %v4773, %v4777
        %v4782 = vand.u32 2147483647, %v4771
        %vm4783 = vcmp.eq.f32.partialorder %v4782, 8.507059e+37
        %v4784 = vand.u32 %v4771, 2147483648
        %v4785 = vor.u32 1.1754944e-38, %v4784
        %v4786 = vsel %vm4783, %v4785, %v4781
        %v4787 = vmul.f32 1.0, %v4786
        %v4788 = vrcp.pop %v4772
        %v4789 = vmul.f32 %v4772, %v4788
        %v4790 = vsub.f32 1.0, %v4789
        %v4791 = vmul.f32 %v4788, %v4790
        %v4792 = vadd.f32 %v4788, %v4791
        %vm4793 = vweird.f32 %v4772
        %vm4794 = vweird.f32 %v4788
        %vm4795 = vmor %vm4793, %vm4794
        %v4796 = vsel %vm4795, %v4788, %v4792
        %v4797 = vand.u32 2147483647, %v4772
        %vm4798 = vcmp.eq.f32.partialorder %v4797, 8.507059e+37
        %v4799 = vand.u32 %v4772, 2147483648
        %v4800 = vor.u32 1.1754944e-38, %v4799
        %v4801 = vsel %vm4798, %v4800, %v4796
        %v4802 = vmul.f32 1.0, %v4801
        %v4803 = vtanh.pop %v4723
        %v4804 = vtanh.pop %v4724
        %v4805 = vxor.u32 %v4725, 2147483648
        %v4806 = vxor.u32 %v4726, 2147483648
        %v4807 = vmul.f32 %v4805, 1.442695
        %v4808 = vpow.pop %v4807
        %v4809 = vmul.f32 %v4806, 1.442695
        %v4810 = vpow.pop %v4809
        %v4811 = vadd.f32 %v4808, 1.0
        %v4812 = vadd.f32 %v4810, 1.0
        %v4813 = vrcp.pop %v4811
        %v4814 = vmul.f32 %v4811, %v4813
        %v4815 = vsub.f32 1.0, %v4814
        %v4816 = vmul.f32 %v4813, %v4815
        %v4817 = vadd.f32 %v4813, %v4816
        %vm4818 = vweird.f32 %v4811
        %vm4819 = vweird.f32 %v4813
        %vm4820 = vmor %vm4818, %vm4819
        %v4821 = vsel %vm4820, %v4813, %v4817
        %v4822 = vand.u32 2147483647, %v4811
        %vm4823 = vcmp.eq.f32.partialorder %v4822, 8.507059e+37
        %v4824 = vand.u32 %v4811, 2147483648
        %v4825 = vor.u32 1.1754944e-38, %v4824
        %v4826 = vsel %vm4823, %v4825, %v4821
        %v4827 = vmul.f32 1.0, %v4826
        %v4828 = vrcp.pop %v4812
        %v4829 = vmul.f32 %v4812, %v4828
        %v4830 = vsub.f32 1.0, %v4829
        %v4831 = vmul.f32 %v4828, %v4830
        %v4832 = vadd.f32 %v4828, %v4831
        %vm4833 = vweird.f32 %v4812
        %vm4834 = vweird.f32 %v4828
        %vm4835 = vmor %vm4833, %vm4834
        %v4836 = vsel %vm4835, %v4828, %v4832
        %v4837 = vand.u32 2147483647, %v4812
        %vm4838 = vcmp.eq.f32.partialorder %v4837, 8.507059e+37
        %v4839 = vand.u32 %v4812, 2147483648
        %v4840 = vor.u32 1.1754944e-38, %v4839
        %v4841 = vsel %vm4838, %v4840, %v4836
        %v4842 = vmul.f32 1.0, %v4841
        %v4843 = vmul.f32 %v4787, %v4480
        %v4844 = vmul.f32 %v4802, %v4481
        %v4845 = vmul.f32 %v4749, %v4803
        %v4846 = vmul.f32 %v4764, %v4804
        %v4847 = vadd.f32 %v4843, %v4845
        %v4848 = vadd.f32 %v4844, %v4846
        %v4849 = vtanh.pop %v4847
        %v4850 = vtanh.pop %v4848
        %v4851 = vmul.f32 %v4827, %v4849
        %v4852 = vmul.f32 %v4842, %v4850
        %s4853 = sadd.s32 %s402, 9
        %p4854 = scmp.lt.s32.totalorder %s4853, 24
        %s4855 = scalar_select %p4854, 1, 0
        %s4856 = scvt.s32.f32 %s4855
        %v4857 = vstv %s4856
        %v4858 = vmul.f32 %v4857, %v4847
        %v4859 = vmul.f32 %v4857, %v4848
        %s4860 = ssub.f32 1.0, %s4856
        %v4861 = vstv %s4860
        %v4862 = vmul.f32 %v4861, %v4480
        %v4863 = vmul.f32 %v4861, %v4481
        %v4864 = vadd.f32 %v4858, %v4862
        %v4865 = vadd.f32 %v4859, %v4863
        %v4866 = vmul.f32 %v4857, %v4851
        %v4867 = vmul.f32 %v4857, %v4852
        %v4868 = vmul.f32 %v4861, %v4486
        %v4869 = vmul.f32 %v4861, %v4487
        %v4870 = vadd.f32 %v4866, %v4868
        %v4871 = vadd.f32 %v4867, %v4869
        %v4872 = vpack.c.bf16 %v4871, %v4870
        %s4873 = scalar_lea.vmem %s255, 72 [#allocation9]
        %4874 = vst [vmem:[%s4873] sm:$0xff] %v4872
        %s4875 = scalar_lea.vmem %s229, 320 [#allocation4]
        %v4876 = vld [vmem:[%s4875] sm:$0xff]
        %v4877 = vld [vmem:[%s4875 + $0x8] sm:$0xff]
        %v4878 = vld [vmem:[%s4875 + $0x10] sm:$0xff]
        %v4879 = vld [vmem:[%s4875 + $0x18] sm:$0xff]
        %v4880 = vunpack.c.l.bf16 %v4876
        %v4881 = vunpack.c.h.bf16 %v4876
        %v4882 = vunpack.c.l.bf16 %v4877
        %v4883 = vunpack.c.h.bf16 %v4877
        %v4884 = vunpack.c.l.bf16 %v4878
        %v4885 = vunpack.c.h.bf16 %v4878
        %v4886 = vunpack.c.l.bf16 %v4879
        %v4887 = vunpack.c.h.bf16 %v4879
        %v4889 = vunpack.c.l.b16 %v4872
        %v4890 = vunpack.c.h.b16 %v4872
        %v4891 = vpack.c.b16 %v4889, %v4889
        %v4892 = vpack.c.b16 %v4890, %v4890
        %4895 = vmatpush.bf16.msra.mxu0 %v857
        %4896 = vmatpush.bf16.msra.mxu0 %v849
        %4897 = vmatpush.bf16.msra.mxu0 %v841
        %4898 = vmatpush.bf16.msra.mxu0 %v833
        %4899 = vmatpush.bf16.msra.mxu0 %v825
        %4900 = vmatpush.bf16.msra.mxu0 %v817
        %4901 = vmatpush.bf16.msra.mxu0 %v809
        %4902 = vmatpush.bf16.msra.mxu0 %v801
        %4903 = vmatmul.bf16.gmra.mxu0 %v4891
        %v4904 = vpop.f32.mrf.mxu0
        %v4905 = vadd.f32 0.0, %v4904
        %v4906 = vpop.f32.mrf.mxu0
        %4907 = vdwg.mxu0
        %4908 = vmatpush.bf16.msra.mxu0 %v921
        %4909 = vmatpush.bf16.msra.mxu0 %v913
        %4910 = vmatpush.bf16.msra.mxu0 %v905
        %4911 = vmatpush.bf16.msra.mxu0 %v897
        %4912 = vmatpush.bf16.msra.mxu0 %v889
        %4913 = vmatpush.bf16.msra.mxu0 %v881
        %4914 = vmatpush.bf16.msra.mxu0 %v873
        %4915 = vmatpush.bf16.msra.mxu0 %v865
        %4916 = vmatmul.bf16.gmra.mxu0 %v4892
        %v4917 = vpop.f32.mrf.mxu0
        %v4918 = vadd.f32 %v4905, %v4917
        %v4919 = vpop.f32.mrf.mxu0
        %4920 = vdwg.mxu0
        %4921 = vmatpush.bf16.msra.mxu0 %v858
        %4922 = vmatpush.bf16.msra.mxu0 %v850
        %4923 = vmatpush.bf16.msra.mxu0 %v842
        %4924 = vmatpush.bf16.msra.mxu0 %v834
        %4925 = vmatpush.bf16.msra.mxu0 %v826
        %4926 = vmatpush.bf16.msra.mxu0 %v818
        %4927 = vmatpush.bf16.msra.mxu0 %v810
        %4928 = vmatpush.bf16.msra.mxu0 %v802
        %4929 = vmatmul.bf16.gmra.mxu0 %v4891
        %v4930 = vpop.f32.mrf.mxu0
        %v4931 = vadd.f32 0.0, %v4930
        %v4932 = vpop.f32.mrf.mxu0
        %4933 = vdwg.mxu0
        %4934 = vmatpush.bf16.msra.mxu0 %v922
        %4935 = vmatpush.bf16.msra.mxu0 %v914
        %4936 = vmatpush.bf16.msra.mxu0 %v906
        %4937 = vmatpush.bf16.msra.mxu0 %v898
        %4938 = vmatpush.bf16.msra.mxu0 %v890
        %4939 = vmatpush.bf16.msra.mxu0 %v882
        %4940 = vmatpush.bf16.msra.mxu0 %v874
        %4941 = vmatpush.bf16.msra.mxu0 %v866
        %4942 = vmatmul.bf16.gmra.mxu0 %v4892
        %v4943 = vpop.f32.mrf.mxu0
        %v4944 = vadd.f32 %v4931, %v4943
        %v4945 = vpop.f32.mrf.mxu0
        %4946 = vdwg.mxu0
        %4947 = vmatpush.bf16.msra.mxu0 %v859
        %4948 = vmatpush.bf16.msra.mxu0 %v851
        %4949 = vmatpush.bf16.msra.mxu0 %v843
        %4950 = vmatpush.bf16.msra.mxu0 %v835
        %4951 = vmatpush.bf16.msra.mxu0 %v827
        %4952 = vmatpush.bf16.msra.mxu0 %v819
        %4953 = vmatpush.bf16.msra.mxu0 %v811
        %4954 = vmatpush.bf16.msra.mxu0 %v803
        %4955 = vmatmul.bf16.gmra.mxu0 %v4891
        %v4956 = vpop.f32.mrf.mxu0
        %v4957 = vadd.f32 0.0, %v4956
        %v4958 = vpop.f32.mrf.mxu0
        %4959 = vdwg.mxu0
        %4960 = vmatpush.bf16.msra.mxu0 %v923
        %4961 = vmatpush.bf16.msra.mxu0 %v915
        %4962 = vmatpush.bf16.msra.mxu0 %v907
        %4963 = vmatpush.bf16.msra.mxu0 %v899
        %4964 = vmatpush.bf16.msra.mxu0 %v891
        %4965 = vmatpush.bf16.msra.mxu0 %v883
        %4966 = vmatpush.bf16.msra.mxu0 %v875
        %4967 = vmatpush.bf16.msra.mxu0 %v867
        %4968 = vmatmul.bf16.gmra.mxu0 %v4892
        %v4969 = vpop.f32.mrf.mxu0
        %v4970 = vadd.f32 %v4957, %v4969
        %v4971 = vpop.f32.mrf.mxu0
        %4972 = vdwg.mxu0
        %4973 = vmatpush.bf16.msra.mxu0 %v860
        %4974 = vmatpush.bf16.msra.mxu0 %v852
        %4975 = vmatpush.bf16.msra.mxu0 %v844
        %4976 = vmatpush.bf16.msra.mxu0 %v836
        %4977 = vmatpush.bf16.msra.mxu0 %v828
        %4978 = vmatpush.bf16.msra.mxu0 %v820
        %4979 = vmatpush.bf16.msra.mxu0 %v812
        %4980 = vmatpush.bf16.msra.mxu0 %v804
        %4981 = vmatmul.bf16.gmra.mxu0 %v4891
        %v4982 = vpop.f32.mrf.mxu0
        %v4983 = vadd.f32 0.0, %v4982
        %v4984 = vpop.f32.mrf.mxu0
        %4985 = vdwg.mxu0
        %4986 = vmatpush.bf16.msra.mxu0 %v924
        %4987 = vmatpush.bf16.msra.mxu0 %v916
        %4988 = vmatpush.bf16.msra.mxu0 %v908
        %4989 = vmatpush.bf16.msra.mxu0 %v900
        %4990 = vmatpush.bf16.msra.mxu0 %v892
        %4991 = vmatpush.bf16.msra.mxu0 %v884
        %4992 = vmatpush.bf16.msra.mxu0 %v876
        %4993 = vmatpush.bf16.msra.mxu0 %v868
        %4994 = vmatmul.bf16.gmra.mxu0 %v4892
        %v4995 = vpop.f32.mrf.mxu0
        %v4996 = vadd.f32 %v4983, %v4995
        %v4997 = vpop.f32.mrf.mxu0
        %4998 = vdwg.mxu0
        %4999 = vmatpush.bf16.msra.mxu0 %v861
        %5000 = vmatpush.bf16.msra.mxu0 %v853
        %5001 = vmatpush.bf16.msra.mxu0 %v845
        %5002 = vmatpush.bf16.msra.mxu0 %v837
        %5003 = vmatpush.bf16.msra.mxu0 %v829
        %5004 = vmatpush.bf16.msra.mxu0 %v821
        %5005 = vmatpush.bf16.msra.mxu0 %v813
        %5006 = vmatpush.bf16.msra.mxu0 %v805
        %5007 = vmatmul.bf16.gmra.mxu0 %v4891
        %v5008 = vpop.f32.mrf.mxu0
        %v5009 = vadd.f32 0.0, %v5008
        %v5010 = vpop.f32.mrf.mxu0
        %5011 = vdwg.mxu0
        %5012 = vmatpush.bf16.msra.mxu0 %v925
        %5013 = vmatpush.bf16.msra.mxu0 %v917
        %5014 = vmatpush.bf16.msra.mxu0 %v909
        %5015 = vmatpush.bf16.msra.mxu0 %v901
        %5016 = vmatpush.bf16.msra.mxu0 %v893
        %5017 = vmatpush.bf16.msra.mxu0 %v885
        %5018 = vmatpush.bf16.msra.mxu0 %v877
        %5019 = vmatpush.bf16.msra.mxu0 %v869
        %5020 = vmatmul.bf16.gmra.mxu0 %v4892
        %v5021 = vpop.f32.mrf.mxu0
        %v5022 = vadd.f32 %v5009, %v5021
        %v5023 = vpop.f32.mrf.mxu0
        %5024 = vdwg.mxu0
        %5025 = vmatpush.bf16.msra.mxu0 %v862
        %5026 = vmatpush.bf16.msra.mxu0 %v854
        %5027 = vmatpush.bf16.msra.mxu0 %v846
        %5028 = vmatpush.bf16.msra.mxu0 %v838
        %5029 = vmatpush.bf16.msra.mxu0 %v830
        %5030 = vmatpush.bf16.msra.mxu0 %v822
        %5031 = vmatpush.bf16.msra.mxu0 %v814
        %5032 = vmatpush.bf16.msra.mxu0 %v806
        %5033 = vmatmul.bf16.gmra.mxu0 %v4891
        %v5034 = vpop.f32.mrf.mxu0
        %v5035 = vadd.f32 0.0, %v5034
        %v5036 = vpop.f32.mrf.mxu0
        %5037 = vdwg.mxu0
        %5038 = vmatpush.bf16.msra.mxu0 %v926
        %5039 = vmatpush.bf16.msra.mxu0 %v918
        %5040 = vmatpush.bf16.msra.mxu0 %v910
        %5041 = vmatpush.bf16.msra.mxu0 %v902
        %5042 = vmatpush.bf16.msra.mxu0 %v894
        %5043 = vmatpush.bf16.msra.mxu0 %v886
        %5044 = vmatpush.bf16.msra.mxu0 %v878
        %5045 = vmatpush.bf16.msra.mxu0 %v870
        %5046 = vmatmul.bf16.gmra.mxu0 %v4892
        %v5047 = vpop.f32.mrf.mxu0
        %v5048 = vadd.f32 %v5035, %v5047
        %v5049 = vpop.f32.mrf.mxu0
        %5050 = vdwg.mxu0
        %5051 = vmatpush.bf16.msra.mxu0 %v863
        %5052 = vmatpush.bf16.msra.mxu0 %v855
        %5053 = vmatpush.bf16.msra.mxu0 %v847
        %5054 = vmatpush.bf16.msra.mxu0 %v839
        %5055 = vmatpush.bf16.msra.mxu0 %v831
        %5056 = vmatpush.bf16.msra.mxu0 %v823
        %5057 = vmatpush.bf16.msra.mxu0 %v815
        %5058 = vmatpush.bf16.msra.mxu0 %v807
        %5059 = vmatmul.bf16.gmra.mxu0 %v4891
        %v5060 = vpop.f32.mrf.mxu0
        %v5061 = vadd.f32 0.0, %v5060
        %v5062 = vpop.f32.mrf.mxu0
        %5063 = vdwg.mxu0
        %5064 = vmatpush.bf16.msra.mxu0 %v927
        %5065 = vmatpush.bf16.msra.mxu0 %v919
        %5066 = vmatpush.bf16.msra.mxu0 %v911
        %5067 = vmatpush.bf16.msra.mxu0 %v903
        %5068 = vmatpush.bf16.msra.mxu0 %v895
        %5069 = vmatpush.bf16.msra.mxu0 %v887
        %5070 = vmatpush.bf16.msra.mxu0 %v879
        %5071 = vmatpush.bf16.msra.mxu0 %v871
        %5072 = vmatmul.bf16.gmra.mxu0 %v4892
        %v5073 = vpop.f32.mrf.mxu0
        %v5074 = vadd.f32 %v5061, %v5073
        %v5075 = vpop.f32.mrf.mxu0
        %5076 = vdwg.mxu0
        %5077 = vmatpush.bf16.msra.mxu0 %v864
        %5078 = vmatpush.bf16.msra.mxu0 %v856
        %5079 = vmatpush.bf16.msra.mxu0 %v848
        %5080 = vmatpush.bf16.msra.mxu0 %v840
        %5081 = vmatpush.bf16.msra.mxu0 %v832
        %5082 = vmatpush.bf16.msra.mxu0 %v824
        %5083 = vmatpush.bf16.msra.mxu0 %v816
        %5084 = vmatpush.bf16.msra.mxu0 %v808
        %5085 = vmatmul.bf16.gmra.mxu0 %v4891
        %v5086 = vpop.f32.mrf.mxu0
        %v5087 = vadd.f32 0.0, %v5086
        %v5088 = vpop.f32.mrf.mxu0
        %5089 = vdwg.mxu0
        %5090 = vmatpush.bf16.msra.mxu0 %v928
        %5091 = vmatpush.bf16.msra.mxu0 %v920
        %5092 = vmatpush.bf16.msra.mxu0 %v912
        %5093 = vmatpush.bf16.msra.mxu0 %v904
        %5094 = vmatpush.bf16.msra.mxu0 %v896
        %5095 = vmatpush.bf16.msra.mxu0 %v888
        %5096 = vmatpush.bf16.msra.mxu0 %v880
        %5097 = vmatpush.bf16.msra.mxu0 %v872
        %5098 = vmatmul.bf16.gmra.mxu0 %v4892
        %v5099 = vpop.f32.mrf.mxu0
        %v5100 = vadd.f32 %v5087, %v5099
        %v5101 = vpop.f32.mrf.mxu0
        %5102 = vdwg.mxu0
        %v5103 = vadd.f32 %v4880, %v4918
        %v5104 = vadd.f32 %v4881, %v4944
        %v5105 = vadd.f32 %v4882, %v4970
        %v5106 = vadd.f32 %v4883, %v4996
        %v5107 = vadd.f32 %v4884, %v5022
        %v5108 = vadd.f32 %v4885, %v5048
        %v5109 = vadd.f32 %v4886, %v5074
        %v5110 = vadd.f32 %v4887, %v5100
        %v5111 = vxor.u32 %v5103, 2147483648
        %v5112 = vxor.u32 %v5104, 2147483648
        %v5113 = vmul.f32 %v5111, 1.442695
        %v5114 = vpow.pop %v5113
        %v5115 = vmul.f32 %v5112, 1.442695
        %v5116 = vpow.pop %v5115
        %v5117 = vadd.f32 %v5114, 1.0
        %v5118 = vadd.f32 %v5116, 1.0
        %v5119 = vrcp.pop %v5117
        %v5120 = vmul.f32 %v5117, %v5119
        %v5121 = vsub.f32 1.0, %v5120
        %v5122 = vmul.f32 %v5119, %v5121
        %v5123 = vadd.f32 %v5119, %v5122
        %vm5124 = vweird.f32 %v5117
        %vm5125 = vweird.f32 %v5119
        %vm5126 = vmor %vm5124, %vm5125
        %v5127 = vsel %vm5126, %v5119, %v5123
        %v5128 = vand.u32 2147483647, %v5117
        %vm5129 = vcmp.eq.f32.partialorder %v5128, 8.507059e+37
        %v5130 = vand.u32 %v5117, 2147483648
        %v5131 = vor.u32 1.1754944e-38, %v5130
        %v5132 = vsel %vm5129, %v5131, %v5127
        %v5133 = vmul.f32 1.0, %v5132
        %v5134 = vrcp.pop %v5118
        %v5135 = vmul.f32 %v5118, %v5134
        %v5136 = vsub.f32 1.0, %v5135
        %v5137 = vmul.f32 %v5134, %v5136
        %v5138 = vadd.f32 %v5134, %v5137
        %vm5139 = vweird.f32 %v5118
        %vm5140 = vweird.f32 %v5134
        %vm5141 = vmor %vm5139, %vm5140
        %v5142 = vsel %vm5141, %v5134, %v5138
        %v5143 = vand.u32 2147483647, %v5118
        %vm5144 = vcmp.eq.f32.partialorder %v5143, 8.507059e+37
        %v5145 = vand.u32 %v5118, 2147483648
        %v5146 = vor.u32 1.1754944e-38, %v5145
        %v5147 = vsel %vm5144, %v5146, %v5142
        %v5148 = vmul.f32 1.0, %v5147
        %v5149 = vxor.u32 %v5105, 2147483648
        %v5150 = vxor.u32 %v5106, 2147483648
        %v5151 = vmul.f32 %v5149, 1.442695
        %v5152 = vpow.pop %v5151
        %v5153 = vmul.f32 %v5150, 1.442695
        %v5154 = vpow.pop %v5153
        %v5155 = vadd.f32 %v5152, 1.0
        %v5156 = vadd.f32 %v5154, 1.0
        %v5157 = vrcp.pop %v5155
        %v5158 = vmul.f32 %v5155, %v5157
        %v5159 = vsub.f32 1.0, %v5158
        %v5160 = vmul.f32 %v5157, %v5159
        %v5161 = vadd.f32 %v5157, %v5160
        %vm5162 = vweird.f32 %v5155
        %vm5163 = vweird.f32 %v5157
        %vm5164 = vmor %vm5162, %vm5163
        %v5165 = vsel %vm5164, %v5157, %v5161
        %v5166 = vand.u32 2147483647, %v5155
        %vm5167 = vcmp.eq.f32.partialorder %v5166, 8.507059e+37
        %v5168 = vand.u32 %v5155, 2147483648
        %v5169 = vor.u32 1.1754944e-38, %v5168
        %v5170 = vsel %vm5167, %v5169, %v5165
        %v5171 = vmul.f32 1.0, %v5170
        %v5172 = vrcp.pop %v5156
        %v5173 = vmul.f32 %v5156, %v5172
        %v5174 = vsub.f32 1.0, %v5173
        %v5175 = vmul.f32 %v5172, %v5174
        %v5176 = vadd.f32 %v5172, %v5175
        %vm5177 = vweird.f32 %v5156
        %vm5178 = vweird.f32 %v5172
        %vm5179 = vmor %vm5177, %vm5178
        %v5180 = vsel %vm5179, %v5172, %v5176
        %v5181 = vand.u32 2147483647, %v5156
        %vm5182 = vcmp.eq.f32.partialorder %v5181, 8.507059e+37
        %v5183 = vand.u32 %v5156, 2147483648
        %v5184 = vor.u32 1.1754944e-38, %v5183
        %v5185 = vsel %vm5182, %v5184, %v5180
        %v5186 = vmul.f32 1.0, %v5185
        %v5187 = vtanh.pop %v5107
        %v5188 = vtanh.pop %v5108
        %v5189 = vxor.u32 %v5109, 2147483648
        %v5190 = vxor.u32 %v5110, 2147483648
        %v5191 = vmul.f32 %v5189, 1.442695
        %v5192 = vpow.pop %v5191
        %v5193 = vmul.f32 %v5190, 1.442695
        %v5194 = vpow.pop %v5193
        %v5195 = vadd.f32 %v5192, 1.0
        %v5196 = vadd.f32 %v5194, 1.0
        %v5197 = vrcp.pop %v5195
        %v5198 = vmul.f32 %v5195, %v5197
        %v5199 = vsub.f32 1.0, %v5198
        %v5200 = vmul.f32 %v5197, %v5199
        %v5201 = vadd.f32 %v5197, %v5200
        %vm5202 = vweird.f32 %v5195
        %vm5203 = vweird.f32 %v5197
        %vm5204 = vmor %vm5202, %vm5203
        %v5205 = vsel %vm5204, %v5197, %v5201
        %v5206 = vand.u32 2147483647, %v5195
        %vm5207 = vcmp.eq.f32.partialorder %v5206, 8.507059e+37
        %v5208 = vand.u32 %v5195, 2147483648
        %v5209 = vor.u32 1.1754944e-38, %v5208
        %v5210 = vsel %vm5207, %v5209, %v5205
        %v5211 = vmul.f32 1.0, %v5210
        %v5212 = vrcp.pop %v5196
        %v5213 = vmul.f32 %v5196, %v5212
        %v5214 = vsub.f32 1.0, %v5213
        %v5215 = vmul.f32 %v5212, %v5214
        %v5216 = vadd.f32 %v5212, %v5215
        %vm5217 = vweird.f32 %v5196
        %vm5218 = vweird.f32 %v5212
        %vm5219 = vmor %vm5217, %vm5218
        %v5220 = vsel %vm5219, %v5212, %v5216
        %v5221 = vand.u32 2147483647, %v5196
        %vm5222 = vcmp.eq.f32.partialorder %v5221, 8.507059e+37
        %v5223 = vand.u32 %v5196, 2147483648
        %v5224 = vor.u32 1.1754944e-38, %v5223
        %v5225 = vsel %vm5222, %v5224, %v5220
        %v5226 = vmul.f32 1.0, %v5225
        %v5227 = vmul.f32 %v5171, %v4864
        %v5228 = vmul.f32 %v5186, %v4865
        %v5229 = vmul.f32 %v5133, %v5187
        %v5230 = vmul.f32 %v5148, %v5188
        %v5231 = vadd.f32 %v5227, %v5229
        %v5232 = vadd.f32 %v5228, %v5230
        %v5233 = vtanh.pop %v5231
        %v5234 = vtanh.pop %v5232
        %v5235 = vmul.f32 %v5211, %v5233
        %v5236 = vmul.f32 %v5226, %v5234
        %s5237 = sadd.s32 %s402, 10
        %p5238 = scmp.lt.s32.totalorder %s5237, 24
        %s5239 = scalar_select %p5238, 1, 0
        %s5240 = scvt.s32.f32 %s5239
        %v5241 = vstv %s5240
        %v5242 = vmul.f32 %v5241, %v5231
        %v5243 = vmul.f32 %v5241, %v5232
        %s5244 = ssub.f32 1.0, %s5240
        %v5245 = vstv %s5244
        %v5246 = vmul.f32 %v5245, %v4864
        %v5247 = vmul.f32 %v5245, %v4865
        %v5248 = vadd.f32 %v5242, %v5246
        %v5249 = vadd.f32 %v5243, %v5247
        %v5250 = vmul.f32 %v5241, %v5235
        %v5251 = vmul.f32 %v5241, %v5236
        %v5252 = vmul.f32 %v5245, %v4870
        %v5253 = vmul.f32 %v5245, %v4871
        %v5254 = vadd.f32 %v5250, %v5252
        %v5255 = vadd.f32 %v5251, %v5253
        %v5256 = vpack.c.bf16 %v5255, %v5254
        %s5257 = scalar_lea.vmem %s255, 80 [#allocation9]
        %5258 = vst [vmem:[%s5257] sm:$0xff] %v5256
        %s5259 = scalar_lea.vmem %s229, 352 [#allocation4]
        %v5260 = vld [vmem:[%s5259] sm:$0xff]
        %v5261 = vld [vmem:[%s5259 + $0x8] sm:$0xff]
        %v5262 = vld [vmem:[%s5259 + $0x10] sm:$0xff]
        %v5263 = vld [vmem:[%s5259 + $0x18] sm:$0xff]
        %v5264 = vunpack.c.l.bf16 %v5260
        %v5265 = vunpack.c.h.bf16 %v5260
        %v5266 = vunpack.c.l.bf16 %v5261
        %v5267 = vunpack.c.h.bf16 %v5261
        %v5268 = vunpack.c.l.bf16 %v5262
        %v5269 = vunpack.c.h.bf16 %v5262
        %v5270 = vunpack.c.l.bf16 %v5263
        %v5271 = vunpack.c.h.bf16 %v5263
        %v5273 = vunpack.c.l.b16 %v5256
        %v5274 = vunpack.c.h.b16 %v5256
        %v5275 = vpack.c.b16 %v5273, %v5273
        %v5276 = vpack.c.b16 %v5274, %v5274
        %5279 = vmatpush.bf16.msra.mxu0 %v857
        %5280 = vmatpush.bf16.msra.mxu0 %v849
        %5281 = vmatpush.bf16.msra.mxu0 %v841
        %5282 = vmatpush.bf16.msra.mxu0 %v833
        %5283 = vmatpush.bf16.msra.mxu0 %v825
        %5284 = vmatpush.bf16.msra.mxu0 %v817
        %5285 = vmatpush.bf16.msra.mxu0 %v809
        %5286 = vmatpush.bf16.msra.mxu0 %v801
        %5287 = vmatmul.bf16.gmra.mxu0 %v5275
        %v5288 = vpop.f32.mrf.mxu0
        %v5289 = vadd.f32 0.0, %v5288
        %v5290 = vpop.f32.mrf.mxu0
        %5291 = vdwg.mxu0
        %5292 = vmatpush.bf16.msra.mxu0 %v921
        %5293 = vmatpush.bf16.msra.mxu0 %v913
        %5294 = vmatpush.bf16.msra.mxu0 %v905
        %5295 = vmatpush.bf16.msra.mxu0 %v897
        %5296 = vmatpush.bf16.msra.mxu0 %v889
        %5297 = vmatpush.bf16.msra.mxu0 %v881
        %5298 = vmatpush.bf16.msra.mxu0 %v873
        %5299 = vmatpush.bf16.msra.mxu0 %v865
        %5300 = vmatmul.bf16.gmra.mxu0 %v5276
        %v5301 = vpop.f32.mrf.mxu0
        %v5302 = vadd.f32 %v5289, %v5301
        %v5303 = vpop.f32.mrf.mxu0
        %5304 = vdwg.mxu0
        %5305 = vmatpush.bf16.msra.mxu0 %v858
        %5306 = vmatpush.bf16.msra.mxu0 %v850
        %5307 = vmatpush.bf16.msra.mxu0 %v842
        %5308 = vmatpush.bf16.msra.mxu0 %v834
        %5309 = vmatpush.bf16.msra.mxu0 %v826
        %5310 = vmatpush.bf16.msra.mxu0 %v818
        %5311 = vmatpush.bf16.msra.mxu0 %v810
        %5312 = vmatpush.bf16.msra.mxu0 %v802
        %5313 = vmatmul.bf16.gmra.mxu0 %v5275
        %v5314 = vpop.f32.mrf.mxu0
        %v5315 = vadd.f32 0.0, %v5314
        %v5316 = vpop.f32.mrf.mxu0
        %5317 = vdwg.mxu0
        %5318 = vmatpush.bf16.msra.mxu0 %v922
        %5319 = vmatpush.bf16.msra.mxu0 %v914
        %5320 = vmatpush.bf16.msra.mxu0 %v906
        %5321 = vmatpush.bf16.msra.mxu0 %v898
        %5322 = vmatpush.bf16.msra.mxu0 %v890
        %5323 = vmatpush.bf16.msra.mxu0 %v882
        %5324 = vmatpush.bf16.msra.mxu0 %v874
        %5325 = vmatpush.bf16.msra.mxu0 %v866
        %5326 = vmatmul.bf16.gmra.mxu0 %v5276
        %v5327 = vpop.f32.mrf.mxu0
        %v5328 = vadd.f32 %v5315, %v5327
        %v5329 = vpop.f32.mrf.mxu0
        %5330 = vdwg.mxu0
        %5331 = vmatpush.bf16.msra.mxu0 %v859
        %5332 = vmatpush.bf16.msra.mxu0 %v851
        %5333 = vmatpush.bf16.msra.mxu0 %v843
        %5334 = vmatpush.bf16.msra.mxu0 %v835
        %5335 = vmatpush.bf16.msra.mxu0 %v827
        %5336 = vmatpush.bf16.msra.mxu0 %v819
        %5337 = vmatpush.bf16.msra.mxu0 %v811
        %5338 = vmatpush.bf16.msra.mxu0 %v803
        %5339 = vmatmul.bf16.gmra.mxu0 %v5275
        %v5340 = vpop.f32.mrf.mxu0
        %v5341 = vadd.f32 0.0, %v5340
        %v5342 = vpop.f32.mrf.mxu0
        %5343 = vdwg.mxu0
        %5344 = vmatpush.bf16.msra.mxu0 %v923
        %5345 = vmatpush.bf16.msra.mxu0 %v915
        %5346 = vmatpush.bf16.msra.mxu0 %v907
        %5347 = vmatpush.bf16.msra.mxu0 %v899
        %5348 = vmatpush.bf16.msra.mxu0 %v891
        %5349 = vmatpush.bf16.msra.mxu0 %v883
        %5350 = vmatpush.bf16.msra.mxu0 %v875
        %5351 = vmatpush.bf16.msra.mxu0 %v867
        %5352 = vmatmul.bf16.gmra.mxu0 %v5276
        %v5353 = vpop.f32.mrf.mxu0
        %v5354 = vadd.f32 %v5341, %v5353
        %v5355 = vpop.f32.mrf.mxu0
        %5356 = vdwg.mxu0
        %5357 = vmatpush.bf16.msra.mxu0 %v860
        %5358 = vmatpush.bf16.msra.mxu0 %v852
        %5359 = vmatpush.bf16.msra.mxu0 %v844
        %5360 = vmatpush.bf16.msra.mxu0 %v836
        %5361 = vmatpush.bf16.msra.mxu0 %v828
        %5362 = vmatpush.bf16.msra.mxu0 %v820
        %5363 = vmatpush.bf16.msra.mxu0 %v812
        %5364 = vmatpush.bf16.msra.mxu0 %v804
        %5365 = vmatmul.bf16.gmra.mxu0 %v5275
        %v5366 = vpop.f32.mrf.mxu0
        %v5367 = vadd.f32 0.0, %v5366
        %v5368 = vpop.f32.mrf.mxu0
        %5369 = vdwg.mxu0
        %5370 = vmatpush.bf16.msra.mxu0 %v924
        %5371 = vmatpush.bf16.msra.mxu0 %v916
        %5372 = vmatpush.bf16.msra.mxu0 %v908
        %5373 = vmatpush.bf16.msra.mxu0 %v900
        %5374 = vmatpush.bf16.msra.mxu0 %v892
        %5375 = vmatpush.bf16.msra.mxu0 %v884
        %5376 = vmatpush.bf16.msra.mxu0 %v876
        %5377 = vmatpush.bf16.msra.mxu0 %v868
        %5378 = vmatmul.bf16.gmra.mxu0 %v5276
        %v5379 = vpop.f32.mrf.mxu0
        %v5380 = vadd.f32 %v5367, %v5379
        %v5381 = vpop.f32.mrf.mxu0
        %5382 = vdwg.mxu0
        %5383 = vmatpush.bf16.msra.mxu0 %v861
        %5384 = vmatpush.bf16.msra.mxu0 %v853
        %5385 = vmatpush.bf16.msra.mxu0 %v845
        %5386 = vmatpush.bf16.msra.mxu0 %v837
        %5387 = vmatpush.bf16.msra.mxu0 %v829
        %5388 = vmatpush.bf16.msra.mxu0 %v821
        %5389 = vmatpush.bf16.msra.mxu0 %v813
        %5390 = vmatpush.bf16.msra.mxu0 %v805
        %5391 = vmatmul.bf16.gmra.mxu0 %v5275
        %v5392 = vpop.f32.mrf.mxu0
        %v5393 = vadd.f32 0.0, %v5392
        %v5394 = vpop.f32.mrf.mxu0
        %5395 = vdwg.mxu0
        %5396 = vmatpush.bf16.msra.mxu0 %v925
        %5397 = vmatpush.bf16.msra.mxu0 %v917
        %5398 = vmatpush.bf16.msra.mxu0 %v909
        %5399 = vmatpush.bf16.msra.mxu0 %v901
        %5400 = vmatpush.bf16.msra.mxu0 %v893
        %5401 = vmatpush.bf16.msra.mxu0 %v885
        %5402 = vmatpush.bf16.msra.mxu0 %v877
        %5403 = vmatpush.bf16.msra.mxu0 %v869
        %5404 = vmatmul.bf16.gmra.mxu0 %v5276
        %v5405 = vpop.f32.mrf.mxu0
        %v5406 = vadd.f32 %v5393, %v5405
        %v5407 = vpop.f32.mrf.mxu0
        %5408 = vdwg.mxu0
        %5409 = vmatpush.bf16.msra.mxu0 %v862
        %5410 = vmatpush.bf16.msra.mxu0 %v854
        %5411 = vmatpush.bf16.msra.mxu0 %v846
        %5412 = vmatpush.bf16.msra.mxu0 %v838
        %5413 = vmatpush.bf16.msra.mxu0 %v830
        %5414 = vmatpush.bf16.msra.mxu0 %v822
        %5415 = vmatpush.bf16.msra.mxu0 %v814
        %5416 = vmatpush.bf16.msra.mxu0 %v806
        %5417 = vmatmul.bf16.gmra.mxu0 %v5275
        %v5418 = vpop.f32.mrf.mxu0
        %v5419 = vadd.f32 0.0, %v5418
        %v5420 = vpop.f32.mrf.mxu0
        %5421 = vdwg.mxu0
        %5422 = vmatpush.bf16.msra.mxu0 %v926
        %5423 = vmatpush.bf16.msra.mxu0 %v918
        %5424 = vmatpush.bf16.msra.mxu0 %v910
        %5425 = vmatpush.bf16.msra.mxu0 %v902
        %5426 = vmatpush.bf16.msra.mxu0 %v894
        %5427 = vmatpush.bf16.msra.mxu0 %v886
        %5428 = vmatpush.bf16.msra.mxu0 %v878
        %5429 = vmatpush.bf16.msra.mxu0 %v870
        %5430 = vmatmul.bf16.gmra.mxu0 %v5276
        %v5431 = vpop.f32.mrf.mxu0
        %v5432 = vadd.f32 %v5419, %v5431
        %v5433 = vpop.f32.mrf.mxu0
        %5434 = vdwg.mxu0
        %5435 = vmatpush.bf16.msra.mxu0 %v863
        %5436 = vmatpush.bf16.msra.mxu0 %v855
        %5437 = vmatpush.bf16.msra.mxu0 %v847
        %5438 = vmatpush.bf16.msra.mxu0 %v839
        %5439 = vmatpush.bf16.msra.mxu0 %v831
        %5440 = vmatpush.bf16.msra.mxu0 %v823
        %5441 = vmatpush.bf16.msra.mxu0 %v815
        %5442 = vmatpush.bf16.msra.mxu0 %v807
        %5443 = vmatmul.bf16.gmra.mxu0 %v5275
        %v5444 = vpop.f32.mrf.mxu0
        %v5445 = vadd.f32 0.0, %v5444
        %v5446 = vpop.f32.mrf.mxu0
        %5447 = vdwg.mxu0
        %5448 = vmatpush.bf16.msra.mxu0 %v927
        %5449 = vmatpush.bf16.msra.mxu0 %v919
        %5450 = vmatpush.bf16.msra.mxu0 %v911
        %5451 = vmatpush.bf16.msra.mxu0 %v903
        %5452 = vmatpush.bf16.msra.mxu0 %v895
        %5453 = vmatpush.bf16.msra.mxu0 %v887
        %5454 = vmatpush.bf16.msra.mxu0 %v879
        %5455 = vmatpush.bf16.msra.mxu0 %v871
        %5456 = vmatmul.bf16.gmra.mxu0 %v5276
        %v5457 = vpop.f32.mrf.mxu0
        %v5458 = vadd.f32 %v5445, %v5457
        %v5459 = vpop.f32.mrf.mxu0
        %5460 = vdwg.mxu0
        %5461 = vmatpush.bf16.msra.mxu0 %v864
        %5462 = vmatpush.bf16.msra.mxu0 %v856
        %5463 = vmatpush.bf16.msra.mxu0 %v848
        %5464 = vmatpush.bf16.msra.mxu0 %v840
        %5465 = vmatpush.bf16.msra.mxu0 %v832
        %5466 = vmatpush.bf16.msra.mxu0 %v824
        %5467 = vmatpush.bf16.msra.mxu0 %v816
        %5468 = vmatpush.bf16.msra.mxu0 %v808
        %5469 = vmatmul.bf16.gmra.mxu0 %v5275
        %v5470 = vpop.f32.mrf.mxu0
        %v5471 = vadd.f32 0.0, %v5470
        %v5472 = vpop.f32.mrf.mxu0
        %5473 = vdwg.mxu0
        %5474 = vmatpush.bf16.msra.mxu0 %v928
        %5475 = vmatpush.bf16.msra.mxu0 %v920
        %5476 = vmatpush.bf16.msra.mxu0 %v912
        %5477 = vmatpush.bf16.msra.mxu0 %v904
        %5478 = vmatpush.bf16.msra.mxu0 %v896
        %5479 = vmatpush.bf16.msra.mxu0 %v888
        %5480 = vmatpush.bf16.msra.mxu0 %v880
        %5481 = vmatpush.bf16.msra.mxu0 %v872
        %5482 = vmatmul.bf16.gmra.mxu0 %v5276
        %v5483 = vpop.f32.mrf.mxu0
        %v5484 = vadd.f32 %v5471, %v5483
        %v5485 = vpop.f32.mrf.mxu0
        %5486 = vdwg.mxu0
        %v5487 = vadd.f32 %v5264, %v5302
        %v5488 = vadd.f32 %v5265, %v5328
        %v5489 = vadd.f32 %v5266, %v5354
        %v5490 = vadd.f32 %v5267, %v5380
        %v5491 = vadd.f32 %v5268, %v5406
        %v5492 = vadd.f32 %v5269, %v5432
        %v5493 = vadd.f32 %v5270, %v5458
        %v5494 = vadd.f32 %v5271, %v5484
        %v5495 = vxor.u32 %v5487, 2147483648
        %v5496 = vxor.u32 %v5488, 2147483648
        %v5497 = vmul.f32 %v5495, 1.442695
        %v5498 = vpow.pop %v5497
        %v5499 = vmul.f32 %v5496, 1.442695
        %v5500 = vpow.pop %v5499
        %v5501 = vadd.f32 %v5498, 1.0
        %v5502 = vadd.f32 %v5500, 1.0
        %v5503 = vrcp.pop %v5501
        %v5504 = vmul.f32 %v5501, %v5503
        %v5505 = vsub.f32 1.0, %v5504
        %v5506 = vmul.f32 %v5503, %v5505
        %v5507 = vadd.f32 %v5503, %v5506
        %vm5508 = vweird.f32 %v5501
        %vm5509 = vweird.f32 %v5503
        %vm5510 = vmor %vm5508, %vm5509
        %v5511 = vsel %vm5510, %v5503, %v5507
        %v5512 = vand.u32 2147483647, %v5501
        %vm5513 = vcmp.eq.f32.partialorder %v5512, 8.507059e+37
        %v5514 = vand.u32 %v5501, 2147483648
        %v5515 = vor.u32 1.1754944e-38, %v5514
        %v5516 = vsel %vm5513, %v5515, %v5511
        %v5517 = vmul.f32 1.0, %v5516
        %v5518 = vrcp.pop %v5502
        %v5519 = vmul.f32 %v5502, %v5518
        %v5520 = vsub.f32 1.0, %v5519
        %v5521 = vmul.f32 %v5518, %v5520
        %v5522 = vadd.f32 %v5518, %v5521
        %vm5523 = vweird.f32 %v5502
        %vm5524 = vweird.f32 %v5518
        %vm5525 = vmor %vm5523, %vm5524
        %v5526 = vsel %vm5525, %v5518, %v5522
        %v5527 = vand.u32 2147483647, %v5502
        %vm5528 = vcmp.eq.f32.partialorder %v5527, 8.507059e+37
        %v5529 = vand.u32 %v5502, 2147483648
        %v5530 = vor.u32 1.1754944e-38, %v5529
        %v5531 = vsel %vm5528, %v5530, %v5526
        %v5532 = vmul.f32 1.0, %v5531
        %v5533 = vxor.u32 %v5489, 2147483648
        %v5534 = vxor.u32 %v5490, 2147483648
        %v5535 = vmul.f32 %v5533, 1.442695
        %v5536 = vpow.pop %v5535
        %v5537 = vmul.f32 %v5534, 1.442695
        %v5538 = vpow.pop %v5537
        %v5539 = vadd.f32 %v5536, 1.0
        %v5540 = vadd.f32 %v5538, 1.0
        %v5541 = vrcp.pop %v5539
        %v5542 = vmul.f32 %v5539, %v5541
        %v5543 = vsub.f32 1.0, %v5542
        %v5544 = vmul.f32 %v5541, %v5543
        %v5545 = vadd.f32 %v5541, %v5544
        %vm5546 = vweird.f32 %v5539
        %vm5547 = vweird.f32 %v5541
        %vm5548 = vmor %vm5546, %vm5547
        %v5549 = vsel %vm5548, %v5541, %v5545
        %v5550 = vand.u32 2147483647, %v5539
        %vm5551 = vcmp.eq.f32.partialorder %v5550, 8.507059e+37
        %v5552 = vand.u32 %v5539, 2147483648
        %v5553 = vor.u32 1.1754944e-38, %v5552
        %v5554 = vsel %vm5551, %v5553, %v5549
        %v5555 = vmul.f32 1.0, %v5554
        %v5556 = vrcp.pop %v5540
        %v5557 = vmul.f32 %v5540, %v5556
        %v5558 = vsub.f32 1.0, %v5557
        %v5559 = vmul.f32 %v5556, %v5558
        %v5560 = vadd.f32 %v5556, %v5559
        %vm5561 = vweird.f32 %v5540
        %vm5562 = vweird.f32 %v5556
        %vm5563 = vmor %vm5561, %vm5562
        %v5564 = vsel %vm5563, %v5556, %v5560
        %v5565 = vand.u32 2147483647, %v5540
        %vm5566 = vcmp.eq.f32.partialorder %v5565, 8.507059e+37
        %v5567 = vand.u32 %v5540, 2147483648
        %v5568 = vor.u32 1.1754944e-38, %v5567
        %v5569 = vsel %vm5566, %v5568, %v5564
        %v5570 = vmul.f32 1.0, %v5569
        %v5571 = vtanh.pop %v5491
        %v5572 = vtanh.pop %v5492
        %v5573 = vxor.u32 %v5493, 2147483648
        %v5574 = vxor.u32 %v5494, 2147483648
        %v5575 = vmul.f32 %v5573, 1.442695
        %v5576 = vpow.pop %v5575
        %v5577 = vmul.f32 %v5574, 1.442695
        %v5578 = vpow.pop %v5577
        %v5579 = vadd.f32 %v5576, 1.0
        %v5580 = vadd.f32 %v5578, 1.0
        %v5581 = vrcp.pop %v5579
        %v5582 = vmul.f32 %v5579, %v5581
        %v5583 = vsub.f32 1.0, %v5582
        %v5584 = vmul.f32 %v5581, %v5583
        %v5585 = vadd.f32 %v5581, %v5584
        %vm5586 = vweird.f32 %v5579
        %vm5587 = vweird.f32 %v5581
        %vm5588 = vmor %vm5586, %vm5587
        %v5589 = vsel %vm5588, %v5581, %v5585
        %v5590 = vand.u32 2147483647, %v5579
        %vm5591 = vcmp.eq.f32.partialorder %v5590, 8.507059e+37
        %v5592 = vand.u32 %v5579, 2147483648
        %v5593 = vor.u32 1.1754944e-38, %v5592
        %v5594 = vsel %vm5591, %v5593, %v5589
        %v5595 = vmul.f32 1.0, %v5594
        %v5596 = vrcp.pop %v5580
        %v5597 = vmul.f32 %v5580, %v5596
        %v5598 = vsub.f32 1.0, %v5597
        %v5599 = vmul.f32 %v5596, %v5598
        %v5600 = vadd.f32 %v5596, %v5599
        %vm5601 = vweird.f32 %v5580
        %vm5602 = vweird.f32 %v5596
        %vm5603 = vmor %vm5601, %vm5602
        %v5604 = vsel %vm5603, %v5596, %v5600
        %v5605 = vand.u32 2147483647, %v5580
        %vm5606 = vcmp.eq.f32.partialorder %v5605, 8.507059e+37
        %v5607 = vand.u32 %v5580, 2147483648
        %v5608 = vor.u32 1.1754944e-38, %v5607
        %v5609 = vsel %vm5606, %v5608, %v5604
        %v5610 = vmul.f32 1.0, %v5609
        %v5611 = vmul.f32 %v5555, %v5248
        %v5612 = vmul.f32 %v5570, %v5249
        %v5613 = vmul.f32 %v5517, %v5571
        %v5614 = vmul.f32 %v5532, %v5572
        %v5615 = vadd.f32 %v5611, %v5613
        %v5616 = vadd.f32 %v5612, %v5614
        %v5617 = vtanh.pop %v5615
        %v5618 = vtanh.pop %v5616
        %v5619 = vmul.f32 %v5595, %v5617
        %v5620 = vmul.f32 %v5610, %v5618
        %s5621 = sadd.s32 %s402, 11
        %p5622 = scmp.lt.s32.totalorder %s5621, 24
        %s5623 = scalar_select %p5622, 1, 0
        %s5624 = scvt.s32.f32 %s5623
        %v5625 = vstv %s5624
        %v5626 = vmul.f32 %v5625, %v5615
        %v5627 = vmul.f32 %v5625, %v5616
        %s5628 = ssub.f32 1.0, %s5624
        %v5629 = vstv %s5628
        %v5630 = vmul.f32 %v5629, %v5248
        %v5631 = vmul.f32 %v5629, %v5249
        %v5632 = vadd.f32 %v5626, %v5630
        %v5633 = vadd.f32 %v5627, %v5631
        %v5634 = vmul.f32 %v5625, %v5619
        %v5635 = vmul.f32 %v5625, %v5620
        %v5636 = vmul.f32 %v5629, %v5254
        %v5637 = vmul.f32 %v5629, %v5255
        %v5638 = vadd.f32 %v5634, %v5636
        %v5639 = vadd.f32 %v5635, %v5637
        %v5640 = vpack.c.bf16 %v5639, %v5638
        %s5641 = scalar_lea.vmem %s255, 88 [#allocation9]
        %5642 = vst [vmem:[%s5641] sm:$0xff] %v5640
        %s5643 = scalar_lea.vmem %s229, 384 [#allocation4]
        %v5644 = vld [vmem:[%s5643] sm:$0xff]
        %v5645 = vld [vmem:[%s5643 + $0x8] sm:$0xff]
        %v5646 = vld [vmem:[%s5643 + $0x10] sm:$0xff]
        %v5647 = vld [vmem:[%s5643 + $0x18] sm:$0xff]
        %v5648 = vunpack.c.l.bf16 %v5644
        %v5649 = vunpack.c.h.bf16 %v5644
        %v5650 = vunpack.c.l.bf16 %v5645
        %v5651 = vunpack.c.h.bf16 %v5645
        %v5652 = vunpack.c.l.bf16 %v5646
        %v5653 = vunpack.c.h.bf16 %v5646
        %v5654 = vunpack.c.l.bf16 %v5647
        %v5655 = vunpack.c.h.bf16 %v5647
        %v5657 = vunpack.c.l.b16 %v5640
        %v5658 = vunpack.c.h.b16 %v5640
        %v5659 = vpack.c.b16 %v5657, %v5657
        %v5660 = vpack.c.b16 %v5658, %v5658
        %5663 = vmatpush.bf16.msra.mxu0 %v857
        %5664 = vmatpush.bf16.msra.mxu0 %v849
        %5665 = vmatpush.bf16.msra.mxu0 %v841
        %5666 = vmatpush.bf16.msra.mxu0 %v833
        %5667 = vmatpush.bf16.msra.mxu0 %v825
        %5668 = vmatpush.bf16.msra.mxu0 %v817
        %5669 = vmatpush.bf16.msra.mxu0 %v809
        %5670 = vmatpush.bf16.msra.mxu0 %v801
        %5671 = vmatmul.bf16.gmra.mxu0 %v5659
        %v5672 = vpop.f32.mrf.mxu0
        %v5673 = vadd.f32 0.0, %v5672
        %v5674 = vpop.f32.mrf.mxu0
        %5675 = vdwg.mxu0
        %5676 = vmatpush.bf16.msra.mxu0 %v921
        %5677 = vmatpush.bf16.msra.mxu0 %v913
        %5678 = vmatpush.bf16.msra.mxu0 %v905
        %5679 = vmatpush.bf16.msra.mxu0 %v897
        %5680 = vmatpush.bf16.msra.mxu0 %v889
        %5681 = vmatpush.bf16.msra.mxu0 %v881
        %5682 = vmatpush.bf16.msra.mxu0 %v873
        %5683 = vmatpush.bf16.msra.mxu0 %v865
        %5684 = vmatmul.bf16.gmra.mxu0 %v5660
        %v5685 = vpop.f32.mrf.mxu0
        %v5686 = vadd.f32 %v5673, %v5685
        %v5687 = vpop.f32.mrf.mxu0
        %5688 = vdwg.mxu0
        %5689 = vmatpush.bf16.msra.mxu0 %v858
        %5690 = vmatpush.bf16.msra.mxu0 %v850
        %5691 = vmatpush.bf16.msra.mxu0 %v842
        %5692 = vmatpush.bf16.msra.mxu0 %v834
        %5693 = vmatpush.bf16.msra.mxu0 %v826
        %5694 = vmatpush.bf16.msra.mxu0 %v818
        %5695 = vmatpush.bf16.msra.mxu0 %v810
        %5696 = vmatpush.bf16.msra.mxu0 %v802
        %5697 = vmatmul.bf16.gmra.mxu0 %v5659
        %v5698 = vpop.f32.mrf.mxu0
        %v5699 = vadd.f32 0.0, %v5698
        %v5700 = vpop.f32.mrf.mxu0
        %5701 = vdwg.mxu0
        %5702 = vmatpush.bf16.msra.mxu0 %v922
        %5703 = vmatpush.bf16.msra.mxu0 %v914
        %5704 = vmatpush.bf16.msra.mxu0 %v906
        %5705 = vmatpush.bf16.msra.mxu0 %v898
        %5706 = vmatpush.bf16.msra.mxu0 %v890
        %5707 = vmatpush.bf16.msra.mxu0 %v882
        %5708 = vmatpush.bf16.msra.mxu0 %v874
        %5709 = vmatpush.bf16.msra.mxu0 %v866
        %5710 = vmatmul.bf16.gmra.mxu0 %v5660
        %v5711 = vpop.f32.mrf.mxu0
        %v5712 = vadd.f32 %v5699, %v5711
        %v5713 = vpop.f32.mrf.mxu0
        %5714 = vdwg.mxu0
        %5715 = vmatpush.bf16.msra.mxu0 %v859
        %5716 = vmatpush.bf16.msra.mxu0 %v851
        %5717 = vmatpush.bf16.msra.mxu0 %v843
        %5718 = vmatpush.bf16.msra.mxu0 %v835
        %5719 = vmatpush.bf16.msra.mxu0 %v827
        %5720 = vmatpush.bf16.msra.mxu0 %v819
        %5721 = vmatpush.bf16.msra.mxu0 %v811
        %5722 = vmatpush.bf16.msra.mxu0 %v803
        %5723 = vmatmul.bf16.gmra.mxu0 %v5659
        %v5724 = vpop.f32.mrf.mxu0
        %v5725 = vadd.f32 0.0, %v5724
        %v5726 = vpop.f32.mrf.mxu0
        %5727 = vdwg.mxu0
        %5728 = vmatpush.bf16.msra.mxu0 %v923
        %5729 = vmatpush.bf16.msra.mxu0 %v915
        %5730 = vmatpush.bf16.msra.mxu0 %v907
        %5731 = vmatpush.bf16.msra.mxu0 %v899
        %5732 = vmatpush.bf16.msra.mxu0 %v891
        %5733 = vmatpush.bf16.msra.mxu0 %v883
        %5734 = vmatpush.bf16.msra.mxu0 %v875
        %5735 = vmatpush.bf16.msra.mxu0 %v867
        %5736 = vmatmul.bf16.gmra.mxu0 %v5660
        %v5737 = vpop.f32.mrf.mxu0
        %v5738 = vadd.f32 %v5725, %v5737
        %v5739 = vpop.f32.mrf.mxu0
        %5740 = vdwg.mxu0
        %5741 = vmatpush.bf16.msra.mxu0 %v860
        %5742 = vmatpush.bf16.msra.mxu0 %v852
        %5743 = vmatpush.bf16.msra.mxu0 %v844
        %5744 = vmatpush.bf16.msra.mxu0 %v836
        %5745 = vmatpush.bf16.msra.mxu0 %v828
        %5746 = vmatpush.bf16.msra.mxu0 %v820
        %5747 = vmatpush.bf16.msra.mxu0 %v812
        %5748 = vmatpush.bf16.msra.mxu0 %v804
        %5749 = vmatmul.bf16.gmra.mxu0 %v5659
        %v5750 = vpop.f32.mrf.mxu0
        %v5751 = vadd.f32 0.0, %v5750
        %v5752 = vpop.f32.mrf.mxu0
        %5753 = vdwg.mxu0
        %5754 = vmatpush.bf16.msra.mxu0 %v924
        %5755 = vmatpush.bf16.msra.mxu0 %v916
        %5756 = vmatpush.bf16.msra.mxu0 %v908
        %5757 = vmatpush.bf16.msra.mxu0 %v900
        %5758 = vmatpush.bf16.msra.mxu0 %v892
        %5759 = vmatpush.bf16.msra.mxu0 %v884
        %5760 = vmatpush.bf16.msra.mxu0 %v876
        %5761 = vmatpush.bf16.msra.mxu0 %v868
        %5762 = vmatmul.bf16.gmra.mxu0 %v5660
        %v5763 = vpop.f32.mrf.mxu0
        %v5764 = vadd.f32 %v5751, %v5763
        %v5765 = vpop.f32.mrf.mxu0
        %5766 = vdwg.mxu0
        %5767 = vmatpush.bf16.msra.mxu0 %v861
        %5768 = vmatpush.bf16.msra.mxu0 %v853
        %5769 = vmatpush.bf16.msra.mxu0 %v845
        %5770 = vmatpush.bf16.msra.mxu0 %v837
        %5771 = vmatpush.bf16.msra.mxu0 %v829
        %5772 = vmatpush.bf16.msra.mxu0 %v821
        %5773 = vmatpush.bf16.msra.mxu0 %v813
        %5774 = vmatpush.bf16.msra.mxu0 %v805
        %5775 = vmatmul.bf16.gmra.mxu0 %v5659
        %v5776 = vpop.f32.mrf.mxu0
        %v5777 = vadd.f32 0.0, %v5776
        %v5778 = vpop.f32.mrf.mxu0
        %5779 = vdwg.mxu0
        %5780 = vmatpush.bf16.msra.mxu0 %v925
        %5781 = vmatpush.bf16.msra.mxu0 %v917
        %5782 = vmatpush.bf16.msra.mxu0 %v909
        %5783 = vmatpush.bf16.msra.mxu0 %v901
        %5784 = vmatpush.bf16.msra.mxu0 %v893
        %5785 = vmatpush.bf16.msra.mxu0 %v885
        %5786 = vmatpush.bf16.msra.mxu0 %v877
        %5787 = vmatpush.bf16.msra.mxu0 %v869
        %5788 = vmatmul.bf16.gmra.mxu0 %v5660
        %v5789 = vpop.f32.mrf.mxu0
        %v5790 = vadd.f32 %v5777, %v5789
        %v5791 = vpop.f32.mrf.mxu0
        %5792 = vdwg.mxu0
        %5793 = vmatpush.bf16.msra.mxu0 %v862
        %5794 = vmatpush.bf16.msra.mxu0 %v854
        %5795 = vmatpush.bf16.msra.mxu0 %v846
        %5796 = vmatpush.bf16.msra.mxu0 %v838
        %5797 = vmatpush.bf16.msra.mxu0 %v830
        %5798 = vmatpush.bf16.msra.mxu0 %v822
        %5799 = vmatpush.bf16.msra.mxu0 %v814
        %5800 = vmatpush.bf16.msra.mxu0 %v806
        %5801 = vmatmul.bf16.gmra.mxu0 %v5659
        %v5802 = vpop.f32.mrf.mxu0
        %v5803 = vadd.f32 0.0, %v5802
        %v5804 = vpop.f32.mrf.mxu0
        %5805 = vdwg.mxu0
        %5806 = vmatpush.bf16.msra.mxu0 %v926
        %5807 = vmatpush.bf16.msra.mxu0 %v918
        %5808 = vmatpush.bf16.msra.mxu0 %v910
        %5809 = vmatpush.bf16.msra.mxu0 %v902
        %5810 = vmatpush.bf16.msra.mxu0 %v894
        %5811 = vmatpush.bf16.msra.mxu0 %v886
        %5812 = vmatpush.bf16.msra.mxu0 %v878
        %5813 = vmatpush.bf16.msra.mxu0 %v870
        %5814 = vmatmul.bf16.gmra.mxu0 %v5660
        %v5815 = vpop.f32.mrf.mxu0
        %v5816 = vadd.f32 %v5803, %v5815
        %v5817 = vpop.f32.mrf.mxu0
        %5818 = vdwg.mxu0
        %5819 = vmatpush.bf16.msra.mxu0 %v863
        %5820 = vmatpush.bf16.msra.mxu0 %v855
        %5821 = vmatpush.bf16.msra.mxu0 %v847
        %5822 = vmatpush.bf16.msra.mxu0 %v839
        %5823 = vmatpush.bf16.msra.mxu0 %v831
        %5824 = vmatpush.bf16.msra.mxu0 %v823
        %5825 = vmatpush.bf16.msra.mxu0 %v815
        %5826 = vmatpush.bf16.msra.mxu0 %v807
        %5827 = vmatmul.bf16.gmra.mxu0 %v5659
        %v5828 = vpop.f32.mrf.mxu0
        %v5829 = vadd.f32 0.0, %v5828
        %v5830 = vpop.f32.mrf.mxu0
        %5831 = vdwg.mxu0
        %5832 = vmatpush.bf16.msra.mxu0 %v927
        %5833 = vmatpush.bf16.msra.mxu0 %v919
        %5834 = vmatpush.bf16.msra.mxu0 %v911
        %5835 = vmatpush.bf16.msra.mxu0 %v903
        %5836 = vmatpush.bf16.msra.mxu0 %v895
        %5837 = vmatpush.bf16.msra.mxu0 %v887
        %5838 = vmatpush.bf16.msra.mxu0 %v879
        %5839 = vmatpush.bf16.msra.mxu0 %v871
        %5840 = vmatmul.bf16.gmra.mxu0 %v5660
        %v5841 = vpop.f32.mrf.mxu0
        %v5842 = vadd.f32 %v5829, %v5841
        %v5843 = vpop.f32.mrf.mxu0
        %5844 = vdwg.mxu0
        %5845 = vmatpush.bf16.msra.mxu0 %v864
        %5846 = vmatpush.bf16.msra.mxu0 %v856
        %5847 = vmatpush.bf16.msra.mxu0 %v848
        %5848 = vmatpush.bf16.msra.mxu0 %v840
        %5849 = vmatpush.bf16.msra.mxu0 %v832
        %5850 = vmatpush.bf16.msra.mxu0 %v824
        %5851 = vmatpush.bf16.msra.mxu0 %v816
        %5852 = vmatpush.bf16.msra.mxu0 %v808
        %5853 = vmatmul.bf16.gmra.mxu0 %v5659
        %v5854 = vpop.f32.mrf.mxu0
        %v5855 = vadd.f32 0.0, %v5854
        %v5856 = vpop.f32.mrf.mxu0
        %5857 = vdwg.mxu0
        %5858 = vmatpush.bf16.msra.mxu0 %v928
        %5859 = vmatpush.bf16.msra.mxu0 %v920
        %5860 = vmatpush.bf16.msra.mxu0 %v912
        %5861 = vmatpush.bf16.msra.mxu0 %v904
        %5862 = vmatpush.bf16.msra.mxu0 %v896
        %5863 = vmatpush.bf16.msra.mxu0 %v888
        %5864 = vmatpush.bf16.msra.mxu0 %v880
        %5865 = vmatpush.bf16.msra.mxu0 %v872
        %5866 = vmatmul.bf16.gmra.mxu0 %v5660
        %v5867 = vpop.f32.mrf.mxu0
        %v5868 = vadd.f32 %v5855, %v5867
        %v5869 = vpop.f32.mrf.mxu0
        %5870 = vdwg.mxu0
        %v5871 = vadd.f32 %v5648, %v5686
        %v5872 = vadd.f32 %v5649, %v5712
        %v5873 = vadd.f32 %v5650, %v5738
        %v5874 = vadd.f32 %v5651, %v5764
        %v5875 = vadd.f32 %v5652, %v5790
        %v5876 = vadd.f32 %v5653, %v5816
        %v5877 = vadd.f32 %v5654, %v5842
        %v5878 = vadd.f32 %v5655, %v5868
        %v5879 = vxor.u32 %v5871, 2147483648
        %v5880 = vxor.u32 %v5872, 2147483648
        %v5881 = vmul.f32 %v5879, 1.442695
        %v5882 = vpow.pop %v5881
        %v5883 = vmul.f32 %v5880, 1.442695
        %v5884 = vpow.pop %v5883
        %v5885 = vadd.f32 %v5882, 1.0
        %v5886 = vadd.f32 %v5884, 1.0
        %v5887 = vrcp.pop %v5885
        %v5888 = vmul.f32 %v5885, %v5887
        %v5889 = vsub.f32 1.0, %v5888
        %v5890 = vmul.f32 %v5887, %v5889
        %v5891 = vadd.f32 %v5887, %v5890
        %vm5892 = vweird.f32 %v5885
        %vm5893 = vweird.f32 %v5887
        %vm5894 = vmor %vm5892, %vm5893
        %v5895 = vsel %vm5894, %v5887, %v5891
        %v5896 = vand.u32 2147483647, %v5885
        %vm5897 = vcmp.eq.f32.partialorder %v5896, 8.507059e+37
        %v5898 = vand.u32 %v5885, 2147483648
        %v5899 = vor.u32 1.1754944e-38, %v5898
        %v5900 = vsel %vm5897, %v5899, %v5895
        %v5901 = vmul.f32 1.0, %v5900
        %v5902 = vrcp.pop %v5886
        %v5903 = vmul.f32 %v5886, %v5902
        %v5904 = vsub.f32 1.0, %v5903
        %v5905 = vmul.f32 %v5902, %v5904
        %v5906 = vadd.f32 %v5902, %v5905
        %vm5907 = vweird.f32 %v5886
        %vm5908 = vweird.f32 %v5902
        %vm5909 = vmor %vm5907, %vm5908
        %v5910 = vsel %vm5909, %v5902, %v5906
        %v5911 = vand.u32 2147483647, %v5886
        %vm5912 = vcmp.eq.f32.partialorder %v5911, 8.507059e+37
        %v5913 = vand.u32 %v5886, 2147483648
        %v5914 = vor.u32 1.1754944e-38, %v5913
        %v5915 = vsel %vm5912, %v5914, %v5910
        %v5916 = vmul.f32 1.0, %v5915
        %v5917 = vxor.u32 %v5873, 2147483648
        %v5918 = vxor.u32 %v5874, 2147483648
        %v5919 = vmul.f32 %v5917, 1.442695
        %v5920 = vpow.pop %v5919
        %v5921 = vmul.f32 %v5918, 1.442695
        %v5922 = vpow.pop %v5921
        %v5923 = vadd.f32 %v5920, 1.0
        %v5924 = vadd.f32 %v5922, 1.0
        %v5925 = vrcp.pop %v5923
        %v5926 = vmul.f32 %v5923, %v5925
        %v5927 = vsub.f32 1.0, %v5926
        %v5928 = vmul.f32 %v5925, %v5927
        %v5929 = vadd.f32 %v5925, %v5928
        %vm5930 = vweird.f32 %v5923
        %vm5931 = vweird.f32 %v5925
        %vm5932 = vmor %vm5930, %vm5931
        %v5933 = vsel %vm5932, %v5925, %v5929
        %v5934 = vand.u32 2147483647, %v5923
        %vm5935 = vcmp.eq.f32.partialorder %v5934, 8.507059e+37
        %v5936 = vand.u32 %v5923, 2147483648
        %v5937 = vor.u32 1.1754944e-38, %v5936
        %v5938 = vsel %vm5935, %v5937, %v5933
        %v5939 = vmul.f32 1.0, %v5938
        %v5940 = vrcp.pop %v5924
        %v5941 = vmul.f32 %v5924, %v5940
        %v5942 = vsub.f32 1.0, %v5941
        %v5943 = vmul.f32 %v5940, %v5942
        %v5944 = vadd.f32 %v5940, %v5943
        %vm5945 = vweird.f32 %v5924
        %vm5946 = vweird.f32 %v5940
        %vm5947 = vmor %vm5945, %vm5946
        %v5948 = vsel %vm5947, %v5940, %v5944
        %v5949 = vand.u32 2147483647, %v5924
        %vm5950 = vcmp.eq.f32.partialorder %v5949, 8.507059e+37
        %v5951 = vand.u32 %v5924, 2147483648
        %v5952 = vor.u32 1.1754944e-38, %v5951
        %v5953 = vsel %vm5950, %v5952, %v5948
        %v5954 = vmul.f32 1.0, %v5953
        %v5955 = vtanh.pop %v5875
        %v5956 = vtanh.pop %v5876
        %v5957 = vxor.u32 %v5877, 2147483648
        %v5958 = vxor.u32 %v5878, 2147483648
        %v5959 = vmul.f32 %v5957, 1.442695
        %v5960 = vpow.pop %v5959
        %v5961 = vmul.f32 %v5958, 1.442695
        %v5962 = vpow.pop %v5961
        %v5963 = vadd.f32 %v5960, 1.0
        %v5964 = vadd.f32 %v5962, 1.0
        %v5965 = vrcp.pop %v5963
        %v5966 = vmul.f32 %v5963, %v5965
        %v5967 = vsub.f32 1.0, %v5966
        %v5968 = vmul.f32 %v5965, %v5967
        %v5969 = vadd.f32 %v5965, %v5968
        %vm5970 = vweird.f32 %v5963
        %vm5971 = vweird.f32 %v5965
        %vm5972 = vmor %vm5970, %vm5971
        %v5973 = vsel %vm5972, %v5965, %v5969
        %v5974 = vand.u32 2147483647, %v5963
        %vm5975 = vcmp.eq.f32.partialorder %v5974, 8.507059e+37
        %v5976 = vand.u32 %v5963, 2147483648
        %v5977 = vor.u32 1.1754944e-38, %v5976
        %v5978 = vsel %vm5975, %v5977, %v5973
        %v5979 = vmul.f32 1.0, %v5978
        %v5980 = vrcp.pop %v5964
        %v5981 = vmul.f32 %v5964, %v5980
        %v5982 = vsub.f32 1.0, %v5981
        %v5983 = vmul.f32 %v5980, %v5982
        %v5984 = vadd.f32 %v5980, %v5983
        %vm5985 = vweird.f32 %v5964
        %vm5986 = vweird.f32 %v5980
        %vm5987 = vmor %vm5985, %vm5986
        %v5988 = vsel %vm5987, %v5980, %v5984
        %v5989 = vand.u32 2147483647, %v5964
        %vm5990 = vcmp.eq.f32.partialorder %v5989, 8.507059e+37
        %v5991 = vand.u32 %v5964, 2147483648
        %v5992 = vor.u32 1.1754944e-38, %v5991
        %v5993 = vsel %vm5990, %v5992, %v5988
        %v5994 = vmul.f32 1.0, %v5993
        %v5995 = vmul.f32 %v5939, %v5632
        %v5996 = vmul.f32 %v5954, %v5633
        %v5997 = vmul.f32 %v5901, %v5955
        %v5998 = vmul.f32 %v5916, %v5956
        %v5999 = vadd.f32 %v5995, %v5997
        %v6000 = vadd.f32 %v5996, %v5998
        %v6001 = vtanh.pop %v5999
        %v6002 = vtanh.pop %v6000
        %v6003 = vmul.f32 %v5979, %v6001
        %v6004 = vmul.f32 %v5994, %v6002
        %s6005 = sadd.s32 %s402, 12
        %p6006 = scmp.lt.s32.totalorder %s6005, 24
        %s6007 = scalar_select %p6006, 1, 0
        %s6008 = scvt.s32.f32 %s6007
        %v6009 = vstv %s6008
        %v6010 = vmul.f32 %v6009, %v5999
        %v6011 = vmul.f32 %v6009, %v6000
        %s6012 = ssub.f32 1.0, %s6008
        %v6013 = vstv %s6012
        %v6014 = vmul.f32 %v6013, %v5632
        %v6015 = vmul.f32 %v6013, %v5633
        %v6016 = vadd.f32 %v6010, %v6014
        %v6017 = vadd.f32 %v6011, %v6015
        %v6018 = vmul.f32 %v6009, %v6003
        %v6019 = vmul.f32 %v6009, %v6004
        %v6020 = vmul.f32 %v6013, %v5638
        %v6021 = vmul.f32 %v6013, %v5639
        %v6022 = vadd.f32 %v6018, %v6020
        %v6023 = vadd.f32 %v6019, %v6021
        %v6024 = vpack.c.bf16 %v6023, %v6022
        %s6025 = scalar_lea.vmem %s255, 96 [#allocation9]
        %6026 = vst [vmem:[%s6025] sm:$0xff] %v6024
        %s6027 = scalar_lea.vmem %s229, 416 [#allocation4]
        %v6028 = vld [vmem:[%s6027] sm:$0xff]
        %v6029 = vld [vmem:[%s6027 + $0x8] sm:$0xff]
        %v6030 = vld [vmem:[%s6027 + $0x10] sm:$0xff]
        %v6031 = vld [vmem:[%s6027 + $0x18] sm:$0xff]
        %v6032 = vunpack.c.l.bf16 %v6028
        %v6033 = vunpack.c.h.bf16 %v6028
        %v6034 = vunpack.c.l.bf16 %v6029
        %v6035 = vunpack.c.h.bf16 %v6029
        %v6036 = vunpack.c.l.bf16 %v6030
        %v6037 = vunpack.c.h.bf16 %v6030
        %v6038 = vunpack.c.l.bf16 %v6031
        %v6039 = vunpack.c.h.bf16 %v6031
        %v6041 = vunpack.c.l.b16 %v6024
        %v6042 = vunpack.c.h.b16 %v6024
        %v6043 = vpack.c.b16 %v6041, %v6041
        %v6044 = vpack.c.b16 %v6042, %v6042
        %6047 = vmatpush.bf16.msra.mxu0 %v857
        %6048 = vmatpush.bf16.msra.mxu0 %v849
        %6049 = vmatpush.bf16.msra.mxu0 %v841
        %6050 = vmatpush.bf16.msra.mxu0 %v833
        %6051 = vmatpush.bf16.msra.mxu0 %v825
        %6052 = vmatpush.bf16.msra.mxu0 %v817
        %6053 = vmatpush.bf16.msra.mxu0 %v809
        %6054 = vmatpush.bf16.msra.mxu0 %v801
        %6055 = vmatmul.bf16.gmra.mxu0 %v6043
        %v6056 = vpop.f32.mrf.mxu0
        %v6057 = vadd.f32 0.0, %v6056
        %v6058 = vpop.f32.mrf.mxu0
        %6059 = vdwg.mxu0
        %6060 = vmatpush.bf16.msra.mxu0 %v921
        %6061 = vmatpush.bf16.msra.mxu0 %v913
        %6062 = vmatpush.bf16.msra.mxu0 %v905
        %6063 = vmatpush.bf16.msra.mxu0 %v897
        %6064 = vmatpush.bf16.msra.mxu0 %v889
        %6065 = vmatpush.bf16.msra.mxu0 %v881
        %6066 = vmatpush.bf16.msra.mxu0 %v873
        %6067 = vmatpush.bf16.msra.mxu0 %v865
        %6068 = vmatmul.bf16.gmra.mxu0 %v6044
        %v6069 = vpop.f32.mrf.mxu0
        %v6070 = vadd.f32 %v6057, %v6069
        %v6071 = vpop.f32.mrf.mxu0
        %6072 = vdwg.mxu0
        %6073 = vmatpush.bf16.msra.mxu0 %v858
        %6074 = vmatpush.bf16.msra.mxu0 %v850
        %6075 = vmatpush.bf16.msra.mxu0 %v842
        %6076 = vmatpush.bf16.msra.mxu0 %v834
        %6077 = vmatpush.bf16.msra.mxu0 %v826
        %6078 = vmatpush.bf16.msra.mxu0 %v818
        %6079 = vmatpush.bf16.msra.mxu0 %v810
        %6080 = vmatpush.bf16.msra.mxu0 %v802
        %6081 = vmatmul.bf16.gmra.mxu0 %v6043
        %v6082 = vpop.f32.mrf.mxu0
        %v6083 = vadd.f32 0.0, %v6082
        %v6084 = vpop.f32.mrf.mxu0
        %6085 = vdwg.mxu0
        %6086 = vmatpush.bf16.msra.mxu0 %v922
        %6087 = vmatpush.bf16.msra.mxu0 %v914
        %6088 = vmatpush.bf16.msra.mxu0 %v906
        %6089 = vmatpush.bf16.msra.mxu0 %v898
        %6090 = vmatpush.bf16.msra.mxu0 %v890
        %6091 = vmatpush.bf16.msra.mxu0 %v882
        %6092 = vmatpush.bf16.msra.mxu0 %v874
        %6093 = vmatpush.bf16.msra.mxu0 %v866
        %6094 = vmatmul.bf16.gmra.mxu0 %v6044
        %v6095 = vpop.f32.mrf.mxu0
        %v6096 = vadd.f32 %v6083, %v6095
        %v6097 = vpop.f32.mrf.mxu0
        %6098 = vdwg.mxu0
        %6099 = vmatpush.bf16.msra.mxu0 %v859
        %6100 = vmatpush.bf16.msra.mxu0 %v851
        %6101 = vmatpush.bf16.msra.mxu0 %v843
        %6102 = vmatpush.bf16.msra.mxu0 %v835
        %6103 = vmatpush.bf16.msra.mxu0 %v827
        %6104 = vmatpush.bf16.msra.mxu0 %v819
        %6105 = vmatpush.bf16.msra.mxu0 %v811
        %6106 = vmatpush.bf16.msra.mxu0 %v803
        %6107 = vmatmul.bf16.gmra.mxu0 %v6043
        %v6108 = vpop.f32.mrf.mxu0
        %v6109 = vadd.f32 0.0, %v6108
        %v6110 = vpop.f32.mrf.mxu0
        %6111 = vdwg.mxu0
        %6112 = vmatpush.bf16.msra.mxu0 %v923
        %6113 = vmatpush.bf16.msra.mxu0 %v915
        %6114 = vmatpush.bf16.msra.mxu0 %v907
        %6115 = vmatpush.bf16.msra.mxu0 %v899
        %6116 = vmatpush.bf16.msra.mxu0 %v891
        %6117 = vmatpush.bf16.msra.mxu0 %v883
        %6118 = vmatpush.bf16.msra.mxu0 %v875
        %6119 = vmatpush.bf16.msra.mxu0 %v867
        %6120 = vmatmul.bf16.gmra.mxu0 %v6044
        %v6121 = vpop.f32.mrf.mxu0
        %v6122 = vadd.f32 %v6109, %v6121
        %v6123 = vpop.f32.mrf.mxu0
        %6124 = vdwg.mxu0
        %6125 = vmatpush.bf16.msra.mxu0 %v860
        %6126 = vmatpush.bf16.msra.mxu0 %v852
        %6127 = vmatpush.bf16.msra.mxu0 %v844
        %6128 = vmatpush.bf16.msra.mxu0 %v836
        %6129 = vmatpush.bf16.msra.mxu0 %v828
        %6130 = vmatpush.bf16.msra.mxu0 %v820
        %6131 = vmatpush.bf16.msra.mxu0 %v812
        %6132 = vmatpush.bf16.msra.mxu0 %v804
        %6133 = vmatmul.bf16.gmra.mxu0 %v6043
        %v6134 = vpop.f32.mrf.mxu0
        %v6135 = vadd.f32 0.0, %v6134
        %v6136 = vpop.f32.mrf.mxu0
        %6137 = vdwg.mxu0
        %6138 = vmatpush.bf16.msra.mxu0 %v924
        %6139 = vmatpush.bf16.msra.mxu0 %v916
        %6140 = vmatpush.bf16.msra.mxu0 %v908
        %6141 = vmatpush.bf16.msra.mxu0 %v900
        %6142 = vmatpush.bf16.msra.mxu0 %v892
        %6143 = vmatpush.bf16.msra.mxu0 %v884
        %6144 = vmatpush.bf16.msra.mxu0 %v876
        %6145 = vmatpush.bf16.msra.mxu0 %v868
        %6146 = vmatmul.bf16.gmra.mxu0 %v6044
        %v6147 = vpop.f32.mrf.mxu0
        %v6148 = vadd.f32 %v6135, %v6147
        %v6149 = vpop.f32.mrf.mxu0
        %6150 = vdwg.mxu0
        %6151 = vmatpush.bf16.msra.mxu0 %v861
        %6152 = vmatpush.bf16.msra.mxu0 %v853
        %6153 = vmatpush.bf16.msra.mxu0 %v845
        %6154 = vmatpush.bf16.msra.mxu0 %v837
        %6155 = vmatpush.bf16.msra.mxu0 %v829
        %6156 = vmatpush.bf16.msra.mxu0 %v821
        %6157 = vmatpush.bf16.msra.mxu0 %v813
        %6158 = vmatpush.bf16.msra.mxu0 %v805
        %6159 = vmatmul.bf16.gmra.mxu0 %v6043
        %v6160 = vpop.f32.mrf.mxu0
        %v6161 = vadd.f32 0.0, %v6160
        %v6162 = vpop.f32.mrf.mxu0
        %6163 = vdwg.mxu0
        %6164 = vmatpush.bf16.msra.mxu0 %v925
        %6165 = vmatpush.bf16.msra.mxu0 %v917
        %6166 = vmatpush.bf16.msra.mxu0 %v909
        %6167 = vmatpush.bf16.msra.mxu0 %v901
        %6168 = vmatpush.bf16.msra.mxu0 %v893
        %6169 = vmatpush.bf16.msra.mxu0 %v885
        %6170 = vmatpush.bf16.msra.mxu0 %v877
        %6171 = vmatpush.bf16.msra.mxu0 %v869
        %6172 = vmatmul.bf16.gmra.mxu0 %v6044
        %v6173 = vpop.f32.mrf.mxu0
        %v6174 = vadd.f32 %v6161, %v6173
        %v6175 = vpop.f32.mrf.mxu0
        %6176 = vdwg.mxu0
        %6177 = vmatpush.bf16.msra.mxu0 %v862
        %6178 = vmatpush.bf16.msra.mxu0 %v854
        %6179 = vmatpush.bf16.msra.mxu0 %v846
        %6180 = vmatpush.bf16.msra.mxu0 %v838
        %6181 = vmatpush.bf16.msra.mxu0 %v830
        %6182 = vmatpush.bf16.msra.mxu0 %v822
        %6183 = vmatpush.bf16.msra.mxu0 %v814
        %6184 = vmatpush.bf16.msra.mxu0 %v806
        %6185 = vmatmul.bf16.gmra.mxu0 %v6043
        %v6186 = vpop.f32.mrf.mxu0
        %v6187 = vadd.f32 0.0, %v6186
        %v6188 = vpop.f32.mrf.mxu0
        %6189 = vdwg.mxu0
        %6190 = vmatpush.bf16.msra.mxu0 %v926
        %6191 = vmatpush.bf16.msra.mxu0 %v918
        %6192 = vmatpush.bf16.msra.mxu0 %v910
        %6193 = vmatpush.bf16.msra.mxu0 %v902
        %6194 = vmatpush.bf16.msra.mxu0 %v894
        %6195 = vmatpush.bf16.msra.mxu0 %v886
        %6196 = vmatpush.bf16.msra.mxu0 %v878
        %6197 = vmatpush.bf16.msra.mxu0 %v870
        %6198 = vmatmul.bf16.gmra.mxu0 %v6044
        %v6199 = vpop.f32.mrf.mxu0
        %v6200 = vadd.f32 %v6187, %v6199
        %v6201 = vpop.f32.mrf.mxu0
        %6202 = vdwg.mxu0
        %6203 = vmatpush.bf16.msra.mxu0 %v863
        %6204 = vmatpush.bf16.msra.mxu0 %v855
        %6205 = vmatpush.bf16.msra.mxu0 %v847
        %6206 = vmatpush.bf16.msra.mxu0 %v839
        %6207 = vmatpush.bf16.msra.mxu0 %v831
        %6208 = vmatpush.bf16.msra.mxu0 %v823
        %6209 = vmatpush.bf16.msra.mxu0 %v815
        %6210 = vmatpush.bf16.msra.mxu0 %v807
        %6211 = vmatmul.bf16.gmra.mxu0 %v6043
        %v6212 = vpop.f32.mrf.mxu0
        %v6213 = vadd.f32 0.0, %v6212
        %v6214 = vpop.f32.mrf.mxu0
        %6215 = vdwg.mxu0
        %6216 = vmatpush.bf16.msra.mxu0 %v927
        %6217 = vmatpush.bf16.msra.mxu0 %v919
        %6218 = vmatpush.bf16.msra.mxu0 %v911
        %6219 = vmatpush.bf16.msra.mxu0 %v903
        %6220 = vmatpush.bf16.msra.mxu0 %v895
        %6221 = vmatpush.bf16.msra.mxu0 %v887
        %6222 = vmatpush.bf16.msra.mxu0 %v879
        %6223 = vmatpush.bf16.msra.mxu0 %v871
        %6224 = vmatmul.bf16.gmra.mxu0 %v6044
        %v6225 = vpop.f32.mrf.mxu0
        %v6226 = vadd.f32 %v6213, %v6225
        %v6227 = vpop.f32.mrf.mxu0
        %6228 = vdwg.mxu0
        %6229 = vmatpush.bf16.msra.mxu0 %v864
        %6230 = vmatpush.bf16.msra.mxu0 %v856
        %6231 = vmatpush.bf16.msra.mxu0 %v848
        %6232 = vmatpush.bf16.msra.mxu0 %v840
        %6233 = vmatpush.bf16.msra.mxu0 %v832
        %6234 = vmatpush.bf16.msra.mxu0 %v824
        %6235 = vmatpush.bf16.msra.mxu0 %v816
        %6236 = vmatpush.bf16.msra.mxu0 %v808
        %6237 = vmatmul.bf16.gmra.mxu0 %v6043
        %v6238 = vpop.f32.mrf.mxu0
        %v6239 = vadd.f32 0.0, %v6238
        %v6240 = vpop.f32.mrf.mxu0
        %6241 = vdwg.mxu0
        %6242 = vmatpush.bf16.msra.mxu0 %v928
        %6243 = vmatpush.bf16.msra.mxu0 %v920
        %6244 = vmatpush.bf16.msra.mxu0 %v912
        %6245 = vmatpush.bf16.msra.mxu0 %v904
        %6246 = vmatpush.bf16.msra.mxu0 %v896
        %6247 = vmatpush.bf16.msra.mxu0 %v888
        %6248 = vmatpush.bf16.msra.mxu0 %v880
        %6249 = vmatpush.bf16.msra.mxu0 %v872
        %6250 = vmatmul.bf16.gmra.mxu0 %v6044
        %v6251 = vpop.f32.mrf.mxu0
        %v6252 = vadd.f32 %v6239, %v6251
        %v6253 = vpop.f32.mrf.mxu0
        %6254 = vdwg.mxu0
        %v6255 = vadd.f32 %v6032, %v6070
        %v6256 = vadd.f32 %v6033, %v6096
        %v6257 = vadd.f32 %v6034, %v6122
        %v6258 = vadd.f32 %v6035, %v6148
        %v6259 = vadd.f32 %v6036, %v6174
        %v6260 = vadd.f32 %v6037, %v6200
        %v6261 = vadd.f32 %v6038, %v6226
        %v6262 = vadd.f32 %v6039, %v6252
        %v6263 = vxor.u32 %v6255, 2147483648
        %v6264 = vxor.u32 %v6256, 2147483648
        %v6265 = vmul.f32 %v6263, 1.442695
        %v6266 = vpow.pop %v6265
        %v6267 = vmul.f32 %v6264, 1.442695
        %v6268 = vpow.pop %v6267
        %v6269 = vadd.f32 %v6266, 1.0
        %v6270 = vadd.f32 %v6268, 1.0
        %v6271 = vrcp.pop %v6269
        %v6272 = vmul.f32 %v6269, %v6271
        %v6273 = vsub.f32 1.0, %v6272
        %v6274 = vmul.f32 %v6271, %v6273
        %v6275 = vadd.f32 %v6271, %v6274
        %vm6276 = vweird.f32 %v6269
        %vm6277 = vweird.f32 %v6271
        %vm6278 = vmor %vm6276, %vm6277
        %v6279 = vsel %vm6278, %v6271, %v6275
        %v6280 = vand.u32 2147483647, %v6269
        %vm6281 = vcmp.eq.f32.partialorder %v6280, 8.507059e+37
        %v6282 = vand.u32 %v6269, 2147483648
        %v6283 = vor.u32 1.1754944e-38, %v6282
        %v6284 = vsel %vm6281, %v6283, %v6279
        %v6285 = vmul.f32 1.0, %v6284
        %v6286 = vrcp.pop %v6270
        %v6287 = vmul.f32 %v6270, %v6286
        %v6288 = vsub.f32 1.0, %v6287
        %v6289 = vmul.f32 %v6286, %v6288
        %v6290 = vadd.f32 %v6286, %v6289
        %vm6291 = vweird.f32 %v6270
        %vm6292 = vweird.f32 %v6286
        %vm6293 = vmor %vm6291, %vm6292
        %v6294 = vsel %vm6293, %v6286, %v6290
        %v6295 = vand.u32 2147483647, %v6270
        %vm6296 = vcmp.eq.f32.partialorder %v6295, 8.507059e+37
        %v6297 = vand.u32 %v6270, 2147483648
        %v6298 = vor.u32 1.1754944e-38, %v6297
        %v6299 = vsel %vm6296, %v6298, %v6294
        %v6300 = vmul.f32 1.0, %v6299
        %v6301 = vxor.u32 %v6257, 2147483648
        %v6302 = vxor.u32 %v6258, 2147483648
        %v6303 = vmul.f32 %v6301, 1.442695
        %v6304 = vpow.pop %v6303
        %v6305 = vmul.f32 %v6302, 1.442695
        %v6306 = vpow.pop %v6305
        %v6307 = vadd.f32 %v6304, 1.0
        %v6308 = vadd.f32 %v6306, 1.0
        %v6309 = vrcp.pop %v6307
        %v6310 = vmul.f32 %v6307, %v6309
        %v6311 = vsub.f32 1.0, %v6310
        %v6312 = vmul.f32 %v6309, %v6311
        %v6313 = vadd.f32 %v6309, %v6312
        %vm6314 = vweird.f32 %v6307
        %vm6315 = vweird.f32 %v6309
        %vm6316 = vmor %vm6314, %vm6315
        %v6317 = vsel %vm6316, %v6309, %v6313
        %v6318 = vand.u32 2147483647, %v6307
        %vm6319 = vcmp.eq.f32.partialorder %v6318, 8.507059e+37
        %v6320 = vand.u32 %v6307, 2147483648
        %v6321 = vor.u32 1.1754944e-38, %v6320
        %v6322 = vsel %vm6319, %v6321, %v6317
        %v6323 = vmul.f32 1.0, %v6322
        %v6324 = vrcp.pop %v6308
        %v6325 = vmul.f32 %v6308, %v6324
        %v6326 = vsub.f32 1.0, %v6325
        %v6327 = vmul.f32 %v6324, %v6326
        %v6328 = vadd.f32 %v6324, %v6327
        %vm6329 = vweird.f32 %v6308
        %vm6330 = vweird.f32 %v6324
        %vm6331 = vmor %vm6329, %vm6330
        %v6332 = vsel %vm6331, %v6324, %v6328
        %v6333 = vand.u32 2147483647, %v6308
        %vm6334 = vcmp.eq.f32.partialorder %v6333, 8.507059e+37
        %v6335 = vand.u32 %v6308, 2147483648
        %v6336 = vor.u32 1.1754944e-38, %v6335
        %v6337 = vsel %vm6334, %v6336, %v6332
        %v6338 = vmul.f32 1.0, %v6337
        %v6339 = vtanh.pop %v6259
        %v6340 = vtanh.pop %v6260
        %v6341 = vxor.u32 %v6261, 2147483648
        %v6342 = vxor.u32 %v6262, 2147483648
        %v6343 = vmul.f32 %v6341, 1.442695
        %v6344 = vpow.pop %v6343
        %v6345 = vmul.f32 %v6342, 1.442695
        %v6346 = vpow.pop %v6345
        %v6347 = vadd.f32 %v6344, 1.0
        %v6348 = vadd.f32 %v6346, 1.0
        %v6349 = vrcp.pop %v6347
        %v6350 = vmul.f32 %v6347, %v6349
        %v6351 = vsub.f32 1.0, %v6350
        %v6352 = vmul.f32 %v6349, %v6351
        %v6353 = vadd.f32 %v6349, %v6352
        %vm6354 = vweird.f32 %v6347
        %vm6355 = vweird.f32 %v6349
        %vm6356 = vmor %vm6354, %vm6355
        %v6357 = vsel %vm6356, %v6349, %v6353
        %v6358 = vand.u32 2147483647, %v6347
        %vm6359 = vcmp.eq.f32.partialorder %v6358, 8.507059e+37
        %v6360 = vand.u32 %v6347, 2147483648
        %v6361 = vor.u32 1.1754944e-38, %v6360
        %v6362 = vsel %vm6359, %v6361, %v6357
        %v6363 = vmul.f32 1.0, %v6362
        %v6364 = vrcp.pop %v6348
        %v6365 = vmul.f32 %v6348, %v6364
        %v6366 = vsub.f32 1.0, %v6365
        %v6367 = vmul.f32 %v6364, %v6366
        %v6368 = vadd.f32 %v6364, %v6367
        %vm6369 = vweird.f32 %v6348
        %vm6370 = vweird.f32 %v6364
        %vm6371 = vmor %vm6369, %vm6370
        %v6372 = vsel %vm6371, %v6364, %v6368
        %v6373 = vand.u32 2147483647, %v6348
        %vm6374 = vcmp.eq.f32.partialorder %v6373, 8.507059e+37
        %v6375 = vand.u32 %v6348, 2147483648
        %v6376 = vor.u32 1.1754944e-38, %v6375
        %v6377 = vsel %vm6374, %v6376, %v6372
        %v6378 = vmul.f32 1.0, %v6377
        %v6379 = vmul.f32 %v6323, %v6016
        %v6380 = vmul.f32 %v6338, %v6017
        %v6381 = vmul.f32 %v6285, %v6339
        %v6382 = vmul.f32 %v6300, %v6340
        %v6383 = vadd.f32 %v6379, %v6381
        %v6384 = vadd.f32 %v6380, %v6382
        %v6385 = vtanh.pop %v6383
        %v6386 = vtanh.pop %v6384
        %v6387 = vmul.f32 %v6363, %v6385
        %v6388 = vmul.f32 %v6378, %v6386
        %s6389 = sadd.s32 %s402, 13
        %p6390 = scmp.lt.s32.totalorder %s6389, 24
        %s6391 = scalar_select %p6390, 1, 0
        %s6392 = scvt.s32.f32 %s6391
        %v6393 = vstv %s6392
        %v6394 = vmul.f32 %v6393, %v6383
        %v6395 = vmul.f32 %v6393, %v6384
        %s6396 = ssub.f32 1.0, %s6392
        %v6397 = vstv %s6396
        %v6398 = vmul.f32 %v6397, %v6016
        %v6399 = vmul.f32 %v6397, %v6017
        %v6400 = vadd.f32 %v6394, %v6398
        %v6401 = vadd.f32 %v6395, %v6399
        %v6402 = vmul.f32 %v6393, %v6387
        %v6403 = vmul.f32 %v6393, %v6388
        %v6404 = vmul.f32 %v6397, %v6022
        %v6405 = vmul.f32 %v6397, %v6023
        %v6406 = vadd.f32 %v6402, %v6404
        %v6407 = vadd.f32 %v6403, %v6405
        %v6408 = vpack.c.bf16 %v6407, %v6406
        %s6409 = scalar_lea.vmem %s255, 104 [#allocation9]
        %6410 = vst [vmem:[%s6409] sm:$0xff] %v6408
        %s6411 = scalar_lea.vmem %s229, 448 [#allocation4]
        %v6412 = vld [vmem:[%s6411] sm:$0xff]
        %v6413 = vld [vmem:[%s6411 + $0x8] sm:$0xff]
        %v6414 = vld [vmem:[%s6411 + $0x10] sm:$0xff]
        %v6415 = vld [vmem:[%s6411 + $0x18] sm:$0xff]
        %v6416 = vunpack.c.l.bf16 %v6412
        %v6417 = vunpack.c.h.bf16 %v6412
        %v6418 = vunpack.c.l.bf16 %v6413
        %v6419 = vunpack.c.h.bf16 %v6413
        %v6420 = vunpack.c.l.bf16 %v6414
        %v6421 = vunpack.c.h.bf16 %v6414
        %v6422 = vunpack.c.l.bf16 %v6415
        %v6423 = vunpack.c.h.bf16 %v6415
        %v6425 = vunpack.c.l.b16 %v6408
        %v6426 = vunpack.c.h.b16 %v6408
        %v6427 = vpack.c.b16 %v6425, %v6425
        %v6428 = vpack.c.b16 %v6426, %v6426
        %6431 = vmatpush.bf16.msra.mxu0 %v857
        %6432 = vmatpush.bf16.msra.mxu0 %v849
        %6433 = vmatpush.bf16.msra.mxu0 %v841
        %6434 = vmatpush.bf16.msra.mxu0 %v833
        %6435 = vmatpush.bf16.msra.mxu0 %v825
        %6436 = vmatpush.bf16.msra.mxu0 %v817
        %6437 = vmatpush.bf16.msra.mxu0 %v809
        %6438 = vmatpush.bf16.msra.mxu0 %v801
        %6439 = vmatmul.bf16.gmra.mxu0 %v6427
        %v6440 = vpop.f32.mrf.mxu0
        %v6441 = vadd.f32 0.0, %v6440
        %v6442 = vpop.f32.mrf.mxu0
        %6443 = vdwg.mxu0
        %6444 = vmatpush.bf16.msra.mxu0 %v921
        %6445 = vmatpush.bf16.msra.mxu0 %v913
        %6446 = vmatpush.bf16.msra.mxu0 %v905
        %6447 = vmatpush.bf16.msra.mxu0 %v897
        %6448 = vmatpush.bf16.msra.mxu0 %v889
        %6449 = vmatpush.bf16.msra.mxu0 %v881
        %6450 = vmatpush.bf16.msra.mxu0 %v873
        %6451 = vmatpush.bf16.msra.mxu0 %v865
        %6452 = vmatmul.bf16.gmra.mxu0 %v6428
        %v6453 = vpop.f32.mrf.mxu0
        %v6454 = vadd.f32 %v6441, %v6453
        %v6455 = vpop.f32.mrf.mxu0
        %6456 = vdwg.mxu0
        %6457 = vmatpush.bf16.msra.mxu0 %v858
        %6458 = vmatpush.bf16.msra.mxu0 %v850
        %6459 = vmatpush.bf16.msra.mxu0 %v842
        %6460 = vmatpush.bf16.msra.mxu0 %v834
        %6461 = vmatpush.bf16.msra.mxu0 %v826
        %6462 = vmatpush.bf16.msra.mxu0 %v818
        %6463 = vmatpush.bf16.msra.mxu0 %v810
        %6464 = vmatpush.bf16.msra.mxu0 %v802
        %6465 = vmatmul.bf16.gmra.mxu0 %v6427
        %v6466 = vpop.f32.mrf.mxu0
        %v6467 = vadd.f32 0.0, %v6466
        %v6468 = vpop.f32.mrf.mxu0
        %6469 = vdwg.mxu0
        %6470 = vmatpush.bf16.msra.mxu0 %v922
        %6471 = vmatpush.bf16.msra.mxu0 %v914
        %6472 = vmatpush.bf16.msra.mxu0 %v906
        %6473 = vmatpush.bf16.msra.mxu0 %v898
        %6474 = vmatpush.bf16.msra.mxu0 %v890
        %6475 = vmatpush.bf16.msra.mxu0 %v882
        %6476 = vmatpush.bf16.msra.mxu0 %v874
        %6477 = vmatpush.bf16.msra.mxu0 %v866
        %6478 = vmatmul.bf16.gmra.mxu0 %v6428
        %v6479 = vpop.f32.mrf.mxu0
        %v6480 = vadd.f32 %v6467, %v6479
        %v6481 = vpop.f32.mrf.mxu0
        %6482 = vdwg.mxu0
        %6483 = vmatpush.bf16.msra.mxu0 %v859
        %6484 = vmatpush.bf16.msra.mxu0 %v851
        %6485 = vmatpush.bf16.msra.mxu0 %v843
        %6486 = vmatpush.bf16.msra.mxu0 %v835
        %6487 = vmatpush.bf16.msra.mxu0 %v827
        %6488 = vmatpush.bf16.msra.mxu0 %v819
        %6489 = vmatpush.bf16.msra.mxu0 %v811
        %6490 = vmatpush.bf16.msra.mxu0 %v803
        %6491 = vmatmul.bf16.gmra.mxu0 %v6427
        %v6492 = vpop.f32.mrf.mxu0
        %v6493 = vadd.f32 0.0, %v6492
        %v6494 = vpop.f32.mrf.mxu0
        %6495 = vdwg.mxu0
        %6496 = vmatpush.bf16.msra.mxu0 %v923
        %6497 = vmatpush.bf16.msra.mxu0 %v915
        %6498 = vmatpush.bf16.msra.mxu0 %v907
        %6499 = vmatpush.bf16.msra.mxu0 %v899
        %6500 = vmatpush.bf16.msra.mxu0 %v891
        %6501 = vmatpush.bf16.msra.mxu0 %v883
        %6502 = vmatpush.bf16.msra.mxu0 %v875
        %6503 = vmatpush.bf16.msra.mxu0 %v867
        %6504 = vmatmul.bf16.gmra.mxu0 %v6428
        %v6505 = vpop.f32.mrf.mxu0
        %v6506 = vadd.f32 %v6493, %v6505
        %v6507 = vpop.f32.mrf.mxu0
        %6508 = vdwg.mxu0
        %6509 = vmatpush.bf16.msra.mxu0 %v860
        %6510 = vmatpush.bf16.msra.mxu0 %v852
        %6511 = vmatpush.bf16.msra.mxu0 %v844
        %6512 = vmatpush.bf16.msra.mxu0 %v836
        %6513 = vmatpush.bf16.msra.mxu0 %v828
        %6514 = vmatpush.bf16.msra.mxu0 %v820
        %6515 = vmatpush.bf16.msra.mxu0 %v812
        %6516 = vmatpush.bf16.msra.mxu0 %v804
        %6517 = vmatmul.bf16.gmra.mxu0 %v6427
        %v6518 = vpop.f32.mrf.mxu0
        %v6519 = vadd.f32 0.0, %v6518
        %v6520 = vpop.f32.mrf.mxu0
        %6521 = vdwg.mxu0
        %6522 = vmatpush.bf16.msra.mxu0 %v924
        %6523 = vmatpush.bf16.msra.mxu0 %v916
        %6524 = vmatpush.bf16.msra.mxu0 %v908
        %6525 = vmatpush.bf16.msra.mxu0 %v900
        %6526 = vmatpush.bf16.msra.mxu0 %v892
        %6527 = vmatpush.bf16.msra.mxu0 %v884
        %6528 = vmatpush.bf16.msra.mxu0 %v876
        %6529 = vmatpush.bf16.msra.mxu0 %v868
        %6530 = vmatmul.bf16.gmra.mxu0 %v6428
        %v6531 = vpop.f32.mrf.mxu0
        %v6532 = vadd.f32 %v6519, %v6531
        %v6533 = vpop.f32.mrf.mxu0
        %6534 = vdwg.mxu0
        %6535 = vmatpush.bf16.msra.mxu0 %v861
        %6536 = vmatpush.bf16.msra.mxu0 %v853
        %6537 = vmatpush.bf16.msra.mxu0 %v845
        %6538 = vmatpush.bf16.msra.mxu0 %v837
        %6539 = vmatpush.bf16.msra.mxu0 %v829
        %6540 = vmatpush.bf16.msra.mxu0 %v821
        %6541 = vmatpush.bf16.msra.mxu0 %v813
        %6542 = vmatpush.bf16.msra.mxu0 %v805
        %6543 = vmatmul.bf16.gmra.mxu0 %v6427
        %v6544 = vpop.f32.mrf.mxu0
        %v6545 = vadd.f32 0.0, %v6544
        %v6546 = vpop.f32.mrf.mxu0
        %6547 = vdwg.mxu0
        %6548 = vmatpush.bf16.msra.mxu0 %v925
        %6549 = vmatpush.bf16.msra.mxu0 %v917
        %6550 = vmatpush.bf16.msra.mxu0 %v909
        %6551 = vmatpush.bf16.msra.mxu0 %v901
        %6552 = vmatpush.bf16.msra.mxu0 %v893
        %6553 = vmatpush.bf16.msra.mxu0 %v885
        %6554 = vmatpush.bf16.msra.mxu0 %v877
        %6555 = vmatpush.bf16.msra.mxu0 %v869
        %6556 = vmatmul.bf16.gmra.mxu0 %v6428
        %v6557 = vpop.f32.mrf.mxu0
        %v6558 = vadd.f32 %v6545, %v6557
        %v6559 = vpop.f32.mrf.mxu0
        %6560 = vdwg.mxu0
        %6561 = vmatpush.bf16.msra.mxu0 %v862
        %6562 = vmatpush.bf16.msra.mxu0 %v854
        %6563 = vmatpush.bf16.msra.mxu0 %v846
        %6564 = vmatpush.bf16.msra.mxu0 %v838
        %6565 = vmatpush.bf16.msra.mxu0 %v830
        %6566 = vmatpush.bf16.msra.mxu0 %v822
        %6567 = vmatpush.bf16.msra.mxu0 %v814
        %6568 = vmatpush.bf16.msra.mxu0 %v806
        %6569 = vmatmul.bf16.gmra.mxu0 %v6427
        %v6570 = vpop.f32.mrf.mxu0
        %v6571 = vadd.f32 0.0, %v6570
        %v6572 = vpop.f32.mrf.mxu0
        %6573 = vdwg.mxu0
        %6574 = vmatpush.bf16.msra.mxu0 %v926
        %6575 = vmatpush.bf16.msra.mxu0 %v918
        %6576 = vmatpush.bf16.msra.mxu0 %v910
        %6577 = vmatpush.bf16.msra.mxu0 %v902
        %6578 = vmatpush.bf16.msra.mxu0 %v894
        %6579 = vmatpush.bf16.msra.mxu0 %v886
        %6580 = vmatpush.bf16.msra.mxu0 %v878
        %6581 = vmatpush.bf16.msra.mxu0 %v870
        %6582 = vmatmul.bf16.gmra.mxu0 %v6428
        %v6583 = vpop.f32.mrf.mxu0
        %v6584 = vadd.f32 %v6571, %v6583
        %v6585 = vpop.f32.mrf.mxu0
        %6586 = vdwg.mxu0
        %6587 = vmatpush.bf16.msra.mxu0 %v863
        %6588 = vmatpush.bf16.msra.mxu0 %v855
        %6589 = vmatpush.bf16.msra.mxu0 %v847
        %6590 = vmatpush.bf16.msra.mxu0 %v839
        %6591 = vmatpush.bf16.msra.mxu0 %v831
        %6592 = vmatpush.bf16.msra.mxu0 %v823
        %6593 = vmatpush.bf16.msra.mxu0 %v815
        %6594 = vmatpush.bf16.msra.mxu0 %v807
        %6595 = vmatmul.bf16.gmra.mxu0 %v6427
        %v6596 = vpop.f32.mrf.mxu0
        %v6597 = vadd.f32 0.0, %v6596
        %v6598 = vpop.f32.mrf.mxu0
        %6599 = vdwg.mxu0
        %6600 = vmatpush.bf16.msra.mxu0 %v927
        %6601 = vmatpush.bf16.msra.mxu0 %v919
        %6602 = vmatpush.bf16.msra.mxu0 %v911
        %6603 = vmatpush.bf16.msra.mxu0 %v903
        %6604 = vmatpush.bf16.msra.mxu0 %v895
        %6605 = vmatpush.bf16.msra.mxu0 %v887
        %6606 = vmatpush.bf16.msra.mxu0 %v879
        %6607 = vmatpush.bf16.msra.mxu0 %v871
        %6608 = vmatmul.bf16.gmra.mxu0 %v6428
        %v6609 = vpop.f32.mrf.mxu0
        %v6610 = vadd.f32 %v6597, %v6609
        %v6611 = vpop.f32.mrf.mxu0
        %6612 = vdwg.mxu0
        %6613 = vmatpush.bf16.msra.mxu0 %v864
        %6614 = vmatpush.bf16.msra.mxu0 %v856
        %6615 = vmatpush.bf16.msra.mxu0 %v848
        %6616 = vmatpush.bf16.msra.mxu0 %v840
        %6617 = vmatpush.bf16.msra.mxu0 %v832
        %6618 = vmatpush.bf16.msra.mxu0 %v824
        %6619 = vmatpush.bf16.msra.mxu0 %v816
        %6620 = vmatpush.bf16.msra.mxu0 %v808
        %6621 = vmatmul.bf16.gmra.mxu0 %v6427
        %v6622 = vpop.f32.mrf.mxu0
        %v6623 = vadd.f32 0.0, %v6622
        %v6624 = vpop.f32.mrf.mxu0
        %6625 = vdwg.mxu0
        %6626 = vmatpush.bf16.msra.mxu0 %v928
        %6627 = vmatpush.bf16.msra.mxu0 %v920
        %6628 = vmatpush.bf16.msra.mxu0 %v912
        %6629 = vmatpush.bf16.msra.mxu0 %v904
        %6630 = vmatpush.bf16.msra.mxu0 %v896
        %6631 = vmatpush.bf16.msra.mxu0 %v888
        %6632 = vmatpush.bf16.msra.mxu0 %v880
        %6633 = vmatpush.bf16.msra.mxu0 %v872
        %6634 = vmatmul.bf16.gmra.mxu0 %v6428
        %v6635 = vpop.f32.mrf.mxu0
        %v6636 = vadd.f32 %v6623, %v6635
        %v6637 = vpop.f32.mrf.mxu0
        %6638 = vdwg.mxu0
        %v6639 = vadd.f32 %v6416, %v6454
        %v6640 = vadd.f32 %v6417, %v6480
        %v6641 = vadd.f32 %v6418, %v6506
        %v6642 = vadd.f32 %v6419, %v6532
        %v6643 = vadd.f32 %v6420, %v6558
        %v6644 = vadd.f32 %v6421, %v6584
        %v6645 = vadd.f32 %v6422, %v6610
        %v6646 = vadd.f32 %v6423, %v6636
        %v6647 = vxor.u32 %v6639, 2147483648
        %v6648 = vxor.u32 %v6640, 2147483648
        %v6649 = vmul.f32 %v6647, 1.442695
        %v6650 = vpow.pop %v6649
        %v6651 = vmul.f32 %v6648, 1.442695
        %v6652 = vpow.pop %v6651
        %v6653 = vadd.f32 %v6650, 1.0
        %v6654 = vadd.f32 %v6652, 1.0
        %v6655 = vrcp.pop %v6653
        %v6656 = vmul.f32 %v6653, %v6655
        %v6657 = vsub.f32 1.0, %v6656
        %v6658 = vmul.f32 %v6655, %v6657
        %v6659 = vadd.f32 %v6655, %v6658
        %vm6660 = vweird.f32 %v6653
        %vm6661 = vweird.f32 %v6655
        %vm6662 = vmor %vm6660, %vm6661
        %v6663 = vsel %vm6662, %v6655, %v6659
        %v6664 = vand.u32 2147483647, %v6653
        %vm6665 = vcmp.eq.f32.partialorder %v6664, 8.507059e+37
        %v6666 = vand.u32 %v6653, 2147483648
        %v6667 = vor.u32 1.1754944e-38, %v6666
        %v6668 = vsel %vm6665, %v6667, %v6663
        %v6669 = vmul.f32 1.0, %v6668
        %v6670 = vrcp.pop %v6654
        %v6671 = vmul.f32 %v6654, %v6670
        %v6672 = vsub.f32 1.0, %v6671
        %v6673 = vmul.f32 %v6670, %v6672
        %v6674 = vadd.f32 %v6670, %v6673
        %vm6675 = vweird.f32 %v6654
        %vm6676 = vweird.f32 %v6670
        %vm6677 = vmor %vm6675, %vm6676
        %v6678 = vsel %vm6677, %v6670, %v6674
        %v6679 = vand.u32 2147483647, %v6654
        %vm6680 = vcmp.eq.f32.partialorder %v6679, 8.507059e+37
        %v6681 = vand.u32 %v6654, 2147483648
        %v6682 = vor.u32 1.1754944e-38, %v6681
        %v6683 = vsel %vm6680, %v6682, %v6678
        %v6684 = vmul.f32 1.0, %v6683
        %v6685 = vxor.u32 %v6641, 2147483648
        %v6686 = vxor.u32 %v6642, 2147483648
        %v6687 = vmul.f32 %v6685, 1.442695
        %v6688 = vpow.pop %v6687
        %v6689 = vmul.f32 %v6686, 1.442695
        %v6690 = vpow.pop %v6689
        %v6691 = vadd.f32 %v6688, 1.0
        %v6692 = vadd.f32 %v6690, 1.0
        %v6693 = vrcp.pop %v6691
        %v6694 = vmul.f32 %v6691, %v6693
        %v6695 = vsub.f32 1.0, %v6694
        %v6696 = vmul.f32 %v6693, %v6695
        %v6697 = vadd.f32 %v6693, %v6696
        %vm6698 = vweird.f32 %v6691
        %vm6699 = vweird.f32 %v6693
        %vm6700 = vmor %vm6698, %vm6699
        %v6701 = vsel %vm6700, %v6693, %v6697
        %v6702 = vand.u32 2147483647, %v6691
        %vm6703 = vcmp.eq.f32.partialorder %v6702, 8.507059e+37
        %v6704 = vand.u32 %v6691, 2147483648
        %v6705 = vor.u32 1.1754944e-38, %v6704
        %v6706 = vsel %vm6703, %v6705, %v6701
        %v6707 = vmul.f32 1.0, %v6706
        %v6708 = vrcp.pop %v6692
        %v6709 = vmul.f32 %v6692, %v6708
        %v6710 = vsub.f32 1.0, %v6709
        %v6711 = vmul.f32 %v6708, %v6710
        %v6712 = vadd.f32 %v6708, %v6711
        %vm6713 = vweird.f32 %v6692
        %vm6714 = vweird.f32 %v6708
        %vm6715 = vmor %vm6713, %vm6714
        %v6716 = vsel %vm6715, %v6708, %v6712
        %v6717 = vand.u32 2147483647, %v6692
        %vm6718 = vcmp.eq.f32.partialorder %v6717, 8.507059e+37
        %v6719 = vand.u32 %v6692, 2147483648
        %v6720 = vor.u32 1.1754944e-38, %v6719
        %v6721 = vsel %vm6718, %v6720, %v6716
        %v6722 = vmul.f32 1.0, %v6721
        %v6723 = vtanh.pop %v6643
        %v6724 = vtanh.pop %v6644
        %v6725 = vxor.u32 %v6645, 2147483648
        %v6726 = vxor.u32 %v6646, 2147483648
        %v6727 = vmul.f32 %v6725, 1.442695
        %v6728 = vpow.pop %v6727
        %v6729 = vmul.f32 %v6726, 1.442695
        %v6730 = vpow.pop %v6729
        %v6731 = vadd.f32 %v6728, 1.0
        %v6732 = vadd.f32 %v6730, 1.0
        %v6733 = vrcp.pop %v6731
        %v6734 = vmul.f32 %v6731, %v6733
        %v6735 = vsub.f32 1.0, %v6734
        %v6736 = vmul.f32 %v6733, %v6735
        %v6737 = vadd.f32 %v6733, %v6736
        %vm6738 = vweird.f32 %v6731
        %vm6739 = vweird.f32 %v6733
        %vm6740 = vmor %vm6738, %vm6739
        %v6741 = vsel %vm6740, %v6733, %v6737
        %v6742 = vand.u32 2147483647, %v6731
        %vm6743 = vcmp.eq.f32.partialorder %v6742, 8.507059e+37
        %v6744 = vand.u32 %v6731, 2147483648
        %v6745 = vor.u32 1.1754944e-38, %v6744
        %v6746 = vsel %vm6743, %v6745, %v6741
        %v6747 = vmul.f32 1.0, %v6746
        %v6748 = vrcp.pop %v6732
        %v6749 = vmul.f32 %v6732, %v6748
        %v6750 = vsub.f32 1.0, %v6749
        %v6751 = vmul.f32 %v6748, %v6750
        %v6752 = vadd.f32 %v6748, %v6751
        %vm6753 = vweird.f32 %v6732
        %vm6754 = vweird.f32 %v6748
        %vm6755 = vmor %vm6753, %vm6754
        %v6756 = vsel %vm6755, %v6748, %v6752
        %v6757 = vand.u32 2147483647, %v6732
        %vm6758 = vcmp.eq.f32.partialorder %v6757, 8.507059e+37
        %v6759 = vand.u32 %v6732, 2147483648
        %v6760 = vor.u32 1.1754944e-38, %v6759
        %v6761 = vsel %vm6758, %v6760, %v6756
        %v6762 = vmul.f32 1.0, %v6761
        %v6763 = vmul.f32 %v6707, %v6400
        %v6764 = vmul.f32 %v6722, %v6401
        %v6765 = vmul.f32 %v6669, %v6723
        %v6766 = vmul.f32 %v6684, %v6724
        %v6767 = vadd.f32 %v6763, %v6765
        %v6768 = vadd.f32 %v6764, %v6766
        %v6769 = vtanh.pop %v6767
        %v6770 = vtanh.pop %v6768
        %v6771 = vmul.f32 %v6747, %v6769
        %v6772 = vmul.f32 %v6762, %v6770
        %s6773 = sadd.s32 %s402, 14
        %p6774 = scmp.lt.s32.totalorder %s6773, 24
        %s6775 = scalar_select %p6774, 1, 0
        %s6776 = scvt.s32.f32 %s6775
        %v6777 = vstv %s6776
        %v6778 = vmul.f32 %v6777, %v6767
        %v6779 = vmul.f32 %v6777, %v6768
        %s6780 = ssub.f32 1.0, %s6776
        %v6781 = vstv %s6780
        %v6782 = vmul.f32 %v6781, %v6400
        %v6783 = vmul.f32 %v6781, %v6401
        %v6784 = vadd.f32 %v6778, %v6782
        %v6785 = vadd.f32 %v6779, %v6783
        %v6786 = vmul.f32 %v6777, %v6771
        %v6787 = vmul.f32 %v6777, %v6772
        %v6788 = vmul.f32 %v6781, %v6406
        %v6789 = vmul.f32 %v6781, %v6407
        %v6790 = vadd.f32 %v6786, %v6788
        %v6791 = vadd.f32 %v6787, %v6789
        %v6792 = vpack.c.bf16 %v6791, %v6790
        %s6793 = scalar_lea.vmem %s255, 112 [#allocation9]
        %6794 = vst [vmem:[%s6793] sm:$0xff] %v6792
        %s6795 = scalar_lea.vmem %s229, 480 [#allocation4]
        %v6796 = vld [vmem:[%s6795] sm:$0xff]
        %v6797 = vld [vmem:[%s6795 + $0x8] sm:$0xff]
        %v6798 = vld [vmem:[%s6795 + $0x10] sm:$0xff]
        %v6799 = vld [vmem:[%s6795 + $0x18] sm:$0xff]
        %v6800 = vunpack.c.l.bf16 %v6796
        %v6801 = vunpack.c.h.bf16 %v6796
        %v6802 = vunpack.c.l.bf16 %v6797
        %v6803 = vunpack.c.h.bf16 %v6797
        %v6804 = vunpack.c.l.bf16 %v6798
        %v6805 = vunpack.c.h.bf16 %v6798
        %v6806 = vunpack.c.l.bf16 %v6799
        %v6807 = vunpack.c.h.bf16 %v6799
        %v6809 = vunpack.c.l.b16 %v6792
        %v6810 = vunpack.c.h.b16 %v6792
        %v6811 = vpack.c.b16 %v6809, %v6809
        %v6812 = vpack.c.b16 %v6810, %v6810
        %6815 = vmatpush.bf16.msra.mxu0 %v857
        %6816 = vmatpush.bf16.msra.mxu0 %v849
        %6817 = vmatpush.bf16.msra.mxu0 %v841
        %6818 = vmatpush.bf16.msra.mxu0 %v833
        %6819 = vmatpush.bf16.msra.mxu0 %v825
        %6820 = vmatpush.bf16.msra.mxu0 %v817
        %6821 = vmatpush.bf16.msra.mxu0 %v809
        %6822 = vmatpush.bf16.msra.mxu0 %v801
        %6823 = vmatmul.bf16.gmra.mxu0 %v6811
        %v6824 = vpop.f32.mrf.mxu0
        %v6825 = vadd.f32 0.0, %v6824
        %v6826 = vpop.f32.mrf.mxu0
        %6827 = vdwg.mxu0
        %6828 = vmatpush.bf16.msra.mxu0 %v921
        %6829 = vmatpush.bf16.msra.mxu0 %v913
        %6830 = vmatpush.bf16.msra.mxu0 %v905
        %6831 = vmatpush.bf16.msra.mxu0 %v897
        %6832 = vmatpush.bf16.msra.mxu0 %v889
        %6833 = vmatpush.bf16.msra.mxu0 %v881
        %6834 = vmatpush.bf16.msra.mxu0 %v873
        %6835 = vmatpush.bf16.msra.mxu0 %v865
        %6836 = vmatmul.bf16.gmra.mxu0 %v6812
        %v6837 = vpop.f32.mrf.mxu0
        %v6838 = vadd.f32 %v6825, %v6837
        %v6839 = vpop.f32.mrf.mxu0
        %6840 = vdwg.mxu0
        %6841 = vmatpush.bf16.msra.mxu0 %v858
        %6842 = vmatpush.bf16.msra.mxu0 %v850
        %6843 = vmatpush.bf16.msra.mxu0 %v842
        %6844 = vmatpush.bf16.msra.mxu0 %v834
        %6845 = vmatpush.bf16.msra.mxu0 %v826
        %6846 = vmatpush.bf16.msra.mxu0 %v818
        %6847 = vmatpush.bf16.msra.mxu0 %v810
        %6848 = vmatpush.bf16.msra.mxu0 %v802
        %6849 = vmatmul.bf16.gmra.mxu0 %v6811
        %v6850 = vpop.f32.mrf.mxu0
        %v6851 = vadd.f32 0.0, %v6850
        %v6852 = vpop.f32.mrf.mxu0
        %6853 = vdwg.mxu0
        %6854 = vmatpush.bf16.msra.mxu0 %v922
        %6855 = vmatpush.bf16.msra.mxu0 %v914
        %6856 = vmatpush.bf16.msra.mxu0 %v906
        %6857 = vmatpush.bf16.msra.mxu0 %v898
        %6858 = vmatpush.bf16.msra.mxu0 %v890
        %6859 = vmatpush.bf16.msra.mxu0 %v882
        %6860 = vmatpush.bf16.msra.mxu0 %v874
        %6861 = vmatpush.bf16.msra.mxu0 %v866
        %6862 = vmatmul.bf16.gmra.mxu0 %v6812
        %v6863 = vpop.f32.mrf.mxu0
        %v6864 = vadd.f32 %v6851, %v6863
        %v6865 = vpop.f32.mrf.mxu0
        %6866 = vdwg.mxu0
        %6867 = vmatpush.bf16.msra.mxu0 %v859
        %6868 = vmatpush.bf16.msra.mxu0 %v851
        %6869 = vmatpush.bf16.msra.mxu0 %v843
        %6870 = vmatpush.bf16.msra.mxu0 %v835
        %6871 = vmatpush.bf16.msra.mxu0 %v827
        %6872 = vmatpush.bf16.msra.mxu0 %v819
        %6873 = vmatpush.bf16.msra.mxu0 %v811
        %6874 = vmatpush.bf16.msra.mxu0 %v803
        %6875 = vmatmul.bf16.gmra.mxu0 %v6811
        %v6876 = vpop.f32.mrf.mxu0
        %v6877 = vadd.f32 0.0, %v6876
        %v6878 = vpop.f32.mrf.mxu0
        %6879 = vdwg.mxu0
        %6880 = vmatpush.bf16.msra.mxu0 %v923
        %6881 = vmatpush.bf16.msra.mxu0 %v915
        %6882 = vmatpush.bf16.msra.mxu0 %v907
        %6883 = vmatpush.bf16.msra.mxu0 %v899
        %6884 = vmatpush.bf16.msra.mxu0 %v891
        %6885 = vmatpush.bf16.msra.mxu0 %v883
        %6886 = vmatpush.bf16.msra.mxu0 %v875
        %6887 = vmatpush.bf16.msra.mxu0 %v867
        %6888 = vmatmul.bf16.gmra.mxu0 %v6812
        %v6889 = vpop.f32.mrf.mxu0
        %v6890 = vadd.f32 %v6877, %v6889
        %v6891 = vpop.f32.mrf.mxu0
        %6892 = vdwg.mxu0
        %6893 = vmatpush.bf16.msra.mxu0 %v860
        %6894 = vmatpush.bf16.msra.mxu0 %v852
        %6895 = vmatpush.bf16.msra.mxu0 %v844
        %6896 = vmatpush.bf16.msra.mxu0 %v836
        %6897 = vmatpush.bf16.msra.mxu0 %v828
        %6898 = vmatpush.bf16.msra.mxu0 %v820
        %6899 = vmatpush.bf16.msra.mxu0 %v812
        %6900 = vmatpush.bf16.msra.mxu0 %v804
        %6901 = vmatmul.bf16.gmra.mxu0 %v6811
        %v6902 = vpop.f32.mrf.mxu0
        %v6903 = vadd.f32 0.0, %v6902
        %v6904 = vpop.f32.mrf.mxu0
        %6905 = vdwg.mxu0
        %6906 = vmatpush.bf16.msra.mxu0 %v924
        %6907 = vmatpush.bf16.msra.mxu0 %v916
        %6908 = vmatpush.bf16.msra.mxu0 %v908
        %6909 = vmatpush.bf16.msra.mxu0 %v900
        %6910 = vmatpush.bf16.msra.mxu0 %v892
        %6911 = vmatpush.bf16.msra.mxu0 %v884
        %6912 = vmatpush.bf16.msra.mxu0 %v876
        %6913 = vmatpush.bf16.msra.mxu0 %v868
        %6914 = vmatmul.bf16.gmra.mxu0 %v6812
        %v6915 = vpop.f32.mrf.mxu0
        %v6916 = vadd.f32 %v6903, %v6915
        %v6917 = vpop.f32.mrf.mxu0
        %6918 = vdwg.mxu0
        %6919 = vmatpush.bf16.msra.mxu0 %v861
        %6920 = vmatpush.bf16.msra.mxu0 %v853
        %6921 = vmatpush.bf16.msra.mxu0 %v845
        %6922 = vmatpush.bf16.msra.mxu0 %v837
        %6923 = vmatpush.bf16.msra.mxu0 %v829
        %6924 = vmatpush.bf16.msra.mxu0 %v821
        %6925 = vmatpush.bf16.msra.mxu0 %v813
        %6926 = vmatpush.bf16.msra.mxu0 %v805
        %6927 = vmatmul.bf16.gmra.mxu0 %v6811
        %v6928 = vpop.f32.mrf.mxu0
        %v6929 = vadd.f32 0.0, %v6928
        %v6930 = vpop.f32.mrf.mxu0
        %6931 = vdwg.mxu0
        %6932 = vmatpush.bf16.msra.mxu0 %v925
        %6933 = vmatpush.bf16.msra.mxu0 %v917
        %6934 = vmatpush.bf16.msra.mxu0 %v909
        %6935 = vmatpush.bf16.msra.mxu0 %v901
        %6936 = vmatpush.bf16.msra.mxu0 %v893
        %6937 = vmatpush.bf16.msra.mxu0 %v885
        %6938 = vmatpush.bf16.msra.mxu0 %v877
        %6939 = vmatpush.bf16.msra.mxu0 %v869
        %6940 = vmatmul.bf16.gmra.mxu0 %v6812
        %v6941 = vpop.f32.mrf.mxu0
        %v6942 = vadd.f32 %v6929, %v6941
        %v6943 = vpop.f32.mrf.mxu0
        %6944 = vdwg.mxu0
        %6945 = vmatpush.bf16.msra.mxu0 %v862
        %6946 = vmatpush.bf16.msra.mxu0 %v854
        %6947 = vmatpush.bf16.msra.mxu0 %v846
        %6948 = vmatpush.bf16.msra.mxu0 %v838
        %6949 = vmatpush.bf16.msra.mxu0 %v830
        %6950 = vmatpush.bf16.msra.mxu0 %v822
        %6951 = vmatpush.bf16.msra.mxu0 %v814
        %6952 = vmatpush.bf16.msra.mxu0 %v806
        %6953 = vmatmul.bf16.gmra.mxu0 %v6811
        %v6954 = vpop.f32.mrf.mxu0
        %v6955 = vadd.f32 0.0, %v6954
        %v6956 = vpop.f32.mrf.mxu0
        %6957 = vdwg.mxu0
        %6958 = vmatpush.bf16.msra.mxu0 %v926
        %6959 = vmatpush.bf16.msra.mxu0 %v918
        %6960 = vmatpush.bf16.msra.mxu0 %v910
        %6961 = vmatpush.bf16.msra.mxu0 %v902
        %6962 = vmatpush.bf16.msra.mxu0 %v894
        %6963 = vmatpush.bf16.msra.mxu0 %v886
        %6964 = vmatpush.bf16.msra.mxu0 %v878
        %6965 = vmatpush.bf16.msra.mxu0 %v870
        %6966 = vmatmul.bf16.gmra.mxu0 %v6812
        %v6967 = vpop.f32.mrf.mxu0
        %v6968 = vadd.f32 %v6955, %v6967
        %v6969 = vpop.f32.mrf.mxu0
        %6970 = vdwg.mxu0
        %6971 = vmatpush.bf16.msra.mxu0 %v863
        %6972 = vmatpush.bf16.msra.mxu0 %v855
        %6973 = vmatpush.bf16.msra.mxu0 %v847
        %6974 = vmatpush.bf16.msra.mxu0 %v839
        %6975 = vmatpush.bf16.msra.mxu0 %v831
        %6976 = vmatpush.bf16.msra.mxu0 %v823
        %6977 = vmatpush.bf16.msra.mxu0 %v815
        %6978 = vmatpush.bf16.msra.mxu0 %v807
        %6979 = vmatmul.bf16.gmra.mxu0 %v6811
        %v6980 = vpop.f32.mrf.mxu0
        %v6981 = vadd.f32 0.0, %v6980
        %v6982 = vpop.f32.mrf.mxu0
        %6983 = vdwg.mxu0
        %6984 = vmatpush.bf16.msra.mxu0 %v927
        %6985 = vmatpush.bf16.msra.mxu0 %v919
        %6986 = vmatpush.bf16.msra.mxu0 %v911
        %6987 = vmatpush.bf16.msra.mxu0 %v903
        %6988 = vmatpush.bf16.msra.mxu0 %v895
        %6989 = vmatpush.bf16.msra.mxu0 %v887
        %6990 = vmatpush.bf16.msra.mxu0 %v879
        %6991 = vmatpush.bf16.msra.mxu0 %v871
        %6992 = vmatmul.bf16.gmra.mxu0 %v6812
        %v6993 = vpop.f32.mrf.mxu0
        %v6994 = vadd.f32 %v6981, %v6993
        %v6995 = vpop.f32.mrf.mxu0
        %6996 = vdwg.mxu0
        %6997 = vmatpush.bf16.msra.mxu0 %v864
        %6998 = vmatpush.bf16.msra.mxu0 %v856
        %6999 = vmatpush.bf16.msra.mxu0 %v848
        %7000 = vmatpush.bf16.msra.mxu0 %v840
        %7001 = vmatpush.bf16.msra.mxu0 %v832
        %7002 = vmatpush.bf16.msra.mxu0 %v824
        %7003 = vmatpush.bf16.msra.mxu0 %v816
        %7004 = vmatpush.bf16.msra.mxu0 %v808
        %7005 = vmatmul.bf16.gmra.mxu0 %v6811
        %v7006 = vpop.f32.mrf.mxu0
        %v7007 = vadd.f32 0.0, %v7006
        %v7008 = vpop.f32.mrf.mxu0
        %7009 = vdwg.mxu0
        %7010 = vmatpush.bf16.msra.mxu0 %v928
        %7011 = vmatpush.bf16.msra.mxu0 %v920
        %7012 = vmatpush.bf16.msra.mxu0 %v912
        %7013 = vmatpush.bf16.msra.mxu0 %v904
        %7014 = vmatpush.bf16.msra.mxu0 %v896
        %7015 = vmatpush.bf16.msra.mxu0 %v888
        %7016 = vmatpush.bf16.msra.mxu0 %v880
        %7017 = vmatpush.bf16.msra.mxu0 %v872
        %7018 = vmatmul.bf16.gmra.mxu0 %v6812
        %v7019 = vpop.f32.mrf.mxu0
        %v7020 = vadd.f32 %v7007, %v7019
        %v7021 = vpop.f32.mrf.mxu0
        %7022 = vdwg.mxu0
        %v7023 = vadd.f32 %v6800, %v6838
        %v7024 = vadd.f32 %v6801, %v6864
        %v7025 = vadd.f32 %v6802, %v6890
        %v7026 = vadd.f32 %v6803, %v6916
        %v7027 = vadd.f32 %v6804, %v6942
        %v7028 = vadd.f32 %v6805, %v6968
        %v7029 = vadd.f32 %v6806, %v6994
        %v7030 = vadd.f32 %v6807, %v7020
        %v7031 = vxor.u32 %v7023, 2147483648
        %v7032 = vxor.u32 %v7024, 2147483648
        %v7033 = vmul.f32 %v7031, 1.442695
        %v7034 = vpow.pop %v7033
        %v7035 = vmul.f32 %v7032, 1.442695
        %v7036 = vpow.pop %v7035
        %v7037 = vadd.f32 %v7034, 1.0
        %v7038 = vadd.f32 %v7036, 1.0
        %v7039 = vrcp.pop %v7037
        %v7040 = vmul.f32 %v7037, %v7039
        %v7041 = vsub.f32 1.0, %v7040
        %v7042 = vmul.f32 %v7039, %v7041
        %v7043 = vadd.f32 %v7039, %v7042
        %vm7044 = vweird.f32 %v7037
        %vm7045 = vweird.f32 %v7039
        %vm7046 = vmor %vm7044, %vm7045
        %v7047 = vsel %vm7046, %v7039, %v7043
        %v7048 = vand.u32 2147483647, %v7037
        %vm7049 = vcmp.eq.f32.partialorder %v7048, 8.507059e+37
        %v7050 = vand.u32 %v7037, 2147483648
        %v7051 = vor.u32 1.1754944e-38, %v7050
        %v7052 = vsel %vm7049, %v7051, %v7047
        %v7053 = vmul.f32 1.0, %v7052
        %v7054 = vrcp.pop %v7038
        %v7055 = vmul.f32 %v7038, %v7054
        %v7056 = vsub.f32 1.0, %v7055
        %v7057 = vmul.f32 %v7054, %v7056
        %v7058 = vadd.f32 %v7054, %v7057
        %vm7059 = vweird.f32 %v7038
        %vm7060 = vweird.f32 %v7054
        %vm7061 = vmor %vm7059, %vm7060
        %v7062 = vsel %vm7061, %v7054, %v7058
        %v7063 = vand.u32 2147483647, %v7038
        %vm7064 = vcmp.eq.f32.partialorder %v7063, 8.507059e+37
        %v7065 = vand.u32 %v7038, 2147483648
        %v7066 = vor.u32 1.1754944e-38, %v7065
        %v7067 = vsel %vm7064, %v7066, %v7062
        %v7068 = vmul.f32 1.0, %v7067
        %v7069 = vxor.u32 %v7025, 2147483648
        %v7070 = vxor.u32 %v7026, 2147483648
        %v7071 = vmul.f32 %v7069, 1.442695
        %v7072 = vpow.pop %v7071
        %v7073 = vmul.f32 %v7070, 1.442695
        %v7074 = vpow.pop %v7073
        %v7075 = vadd.f32 %v7072, 1.0
        %v7076 = vadd.f32 %v7074, 1.0
        %v7077 = vrcp.pop %v7075
        %v7078 = vmul.f32 %v7075, %v7077
        %v7079 = vsub.f32 1.0, %v7078
        %v7080 = vmul.f32 %v7077, %v7079
        %v7081 = vadd.f32 %v7077, %v7080
        %vm7082 = vweird.f32 %v7075
        %vm7083 = vweird.f32 %v7077
        %vm7084 = vmor %vm7082, %vm7083
        %v7085 = vsel %vm7084, %v7077, %v7081
        %v7086 = vand.u32 2147483647, %v7075
        %vm7087 = vcmp.eq.f32.partialorder %v7086, 8.507059e+37
        %v7088 = vand.u32 %v7075, 2147483648
        %v7089 = vor.u32 1.1754944e-38, %v7088
        %v7090 = vsel %vm7087, %v7089, %v7085
        %v7091 = vmul.f32 1.0, %v7090
        %v7092 = vrcp.pop %v7076
        %v7093 = vmul.f32 %v7076, %v7092
        %v7094 = vsub.f32 1.0, %v7093
        %v7095 = vmul.f32 %v7092, %v7094
        %v7096 = vadd.f32 %v7092, %v7095
        %vm7097 = vweird.f32 %v7076
        %vm7098 = vweird.f32 %v7092
        %vm7099 = vmor %vm7097, %vm7098
        %v7100 = vsel %vm7099, %v7092, %v7096
        %v7101 = vand.u32 2147483647, %v7076
        %vm7102 = vcmp.eq.f32.partialorder %v7101, 8.507059e+37
        %v7103 = vand.u32 %v7076, 2147483648
        %v7104 = vor.u32 1.1754944e-38, %v7103
        %v7105 = vsel %vm7102, %v7104, %v7100
        %v7106 = vmul.f32 1.0, %v7105
        %v7107 = vtanh.pop %v7027
        %v7108 = vtanh.pop %v7028
        %v7109 = vxor.u32 %v7029, 2147483648
        %v7110 = vxor.u32 %v7030, 2147483648
        %v7111 = vmul.f32 %v7109, 1.442695
        %v7112 = vpow.pop %v7111
        %v7113 = vmul.f32 %v7110, 1.442695
        %v7114 = vpow.pop %v7113
        %v7115 = vadd.f32 %v7112, 1.0
        %v7116 = vadd.f32 %v7114, 1.0
        %v7117 = vrcp.pop %v7115
        %v7118 = vmul.f32 %v7115, %v7117
        %v7119 = vsub.f32 1.0, %v7118
        %v7120 = vmul.f32 %v7117, %v7119
        %v7121 = vadd.f32 %v7117, %v7120
        %vm7122 = vweird.f32 %v7115
        %vm7123 = vweird.f32 %v7117
        %vm7124 = vmor %vm7122, %vm7123
        %v7125 = vsel %vm7124, %v7117, %v7121
        %v7126 = vand.u32 2147483647, %v7115
        %vm7127 = vcmp.eq.f32.partialorder %v7126, 8.507059e+37
        %v7128 = vand.u32 %v7115, 2147483648
        %v7129 = vor.u32 1.1754944e-38, %v7128
        %v7130 = vsel %vm7127, %v7129, %v7125
        %v7131 = vmul.f32 1.0, %v7130
        %v7132 = vrcp.pop %v7116
        %v7133 = vmul.f32 %v7116, %v7132
        %v7134 = vsub.f32 1.0, %v7133
        %v7135 = vmul.f32 %v7132, %v7134
        %v7136 = vadd.f32 %v7132, %v7135
        %vm7137 = vweird.f32 %v7116
        %vm7138 = vweird.f32 %v7132
        %vm7139 = vmor %vm7137, %vm7138
        %v7140 = vsel %vm7139, %v7132, %v7136
        %v7141 = vand.u32 2147483647, %v7116
        %vm7142 = vcmp.eq.f32.partialorder %v7141, 8.507059e+37
        %v7143 = vand.u32 %v7116, 2147483648
        %v7144 = vor.u32 1.1754944e-38, %v7143
        %v7145 = vsel %vm7142, %v7144, %v7140
        %v7146 = vmul.f32 1.0, %v7145
        %v7147 = vmul.f32 %v7091, %v6784
        %v7148 = vmul.f32 %v7106, %v6785
        %v7149 = vmul.f32 %v7053, %v7107
        %v7150 = vmul.f32 %v7068, %v7108
        %v7151 = vadd.f32 %v7147, %v7149
        %v7152 = vadd.f32 %v7148, %v7150
        %v7153 = vtanh.pop %v7151
        %v7154 = vtanh.pop %v7152
        %v7155 = vmul.f32 %v7131, %v7153
        %v7156 = vmul.f32 %v7146, %v7154
        %s7157 = sadd.s32 %s402, 15
        %p7158 = scmp.lt.s32.totalorder %s7157, 24
        %s7159 = scalar_select %p7158, 1, 0
        %s7160 = scvt.s32.f32 %s7159
        %v7161 = vstv %s7160
        %v7162 = vmul.f32 %v7161, %v7151
        %v7163 = vmul.f32 %v7161, %v7152
        %s7164 = ssub.f32 1.0, %s7160
        %v7165 = vstv %s7164
        %v7166 = vmul.f32 %v7165, %v6784
        %v7167 = vmul.f32 %v7165, %v6785
        %v7168 = vadd.f32 %v7162, %v7166
        %v7169 = vadd.f32 %v7163, %v7167
        %v7170 = vmul.f32 %v7161, %v7155
        %v7171 = vmul.f32 %v7161, %v7156
        %v7172 = vmul.f32 %v7165, %v6790
        %v7173 = vmul.f32 %v7165, %v6791
        %v7174 = vadd.f32 %v7170, %v7172
        %v7175 = vadd.f32 %v7171, %v7173
        %v7176 = vpack.c.bf16 %v7175, %v7174
        %s7177 = scalar_lea.vmem %s255, 120 [#allocation9]
        %7178 = vst [vmem:[%s7177] sm:$0xff] %v7176
        %7179 = vst [vmem:[#allocation2] sm:$0xff] %v7174
        %7180 = vst [vmem:[#allocation2 + $0x8] sm:$0xff] %v7175
        %7181 = vst [vmem:[#allocation3] sm:$0xff] %v7168
        %7182 = vst [vmem:[#allocation3 + $0x8] sm:$0xff] %v7169
        %p7183 = scmp.eq.s32.totalorder %s29, 1
        // Predicated region
        $region41: #{tpu_custom_call.1} parent=27 // pred_check
          %p7184 = pneg %p7183
        $region42: #{tpu_custom_call.1} parent=27 // pred_check_branch
          %7186 = sbr.rel (%p7184) target = $region44
        $region43: #{tpu_custom_call.1} parent=27 // pred_region
          %7187 = vst [vmem:[#allocation10] sm:$0xff] %v7174
          %7188 = vst [vmem:[#allocation10 + $0x8] sm:$0xff] %v7175
          %7189 = vst [vmem:[#allocation12] sm:$0xff] %v7168
          %7190 = vst [vmem:[#allocation12 + $0x8] sm:$0xff] %v7169
        $region44: #{tpu_custom_call.1} parent=27 // pred_fallthru
          _
        %s7191 = sand.u32 %s95, 1
        %s7192 = scalar_lea.sflag [#allocation6], %s7191
        %s7193 = sand.u32 %s95, 1
        %s7194 = smul.addr %s7193, 128
        %s7195 = scalar_lea.vmem [#allocation9], %s7194
        // Predicated region
        $region45: #{tpu_custom_call.1} parent=27 // pred_check
          %p7196 = pneg %p105
        $region46: #{tpu_custom_call.1} parent=27 // pred_check_branch
          %7198 = sbr.rel (%p7196) target = $region48
        $region47: #{tpu_custom_call.1} parent=27 // pred_region
          %s7199 = smul.u32 16, %s29
          %7201 = vsyncadd %s7192, 0
          %s7202 = smul.addr %s28, 2
          %s7203 = smul.addr %s7199, 2
          %s7204 = sadd.s32 %s7202, %s7203
          %s7205 = smul.addr %s7204, 4
          %s7206 = scalar_lea.hbm %s2, %s7205
          %s7207 = sshll.u32 %s7195, 4
          %s7208 = int_to_ptr.vmem [resolvable:$true] %s7207
          %s7209 = sshll.u32 %s7206, 4
          %s7210 = int_to_ptr.hbm [resolvable:$true] %s7209
          %7215 = dma.vmem_to_hbm [thread:$0]  %s7208, 2048, %s7210, %s7192, 128, 128, 8
        $region48: #{tpu_custom_call.1} parent=27 // pred_fallthru
          _
        // Predicated region
        $region49: #{tpu_custom_call.1} parent=27 // pred_check
          %p7216 = pneg %p131
        $region50: #{tpu_custom_call.1} parent=27 // pred_check_branch
          %7218 = sbr.rel (%p7216) target = $region52
        $region51: #{tpu_custom_call.1} parent=27 // pred_region
          %7220 = vsyncadd [#allocation11], 0
          %s7221 = smul.addr %s28, 2
          %s7222 = smul.addr %s7221, 8
          %s7223 = scalar_lea.hbm %s3, %s7222
          %s7225 = sshll.u32 [#allocation10], 4
          %s7226 = int_to_ptr.vmem [resolvable:$true] %s7225
          %s7227 = sshll.u32 %s7223, 4
          %s7228 = int_to_ptr.hbm [resolvable:$true] %s7227
          %7230 = dma.vmem_to_hbm [thread:$0]  %s7226, 256, %s7228, [#allocation11]
        $region52: #{tpu_custom_call.1} parent=27 // pred_fallthru
          _
        // Predicated region
        $region53: #{tpu_custom_call.1} parent=27 // pred_check
          %p7231 = pneg %p157
        $region54: #{tpu_custom_call.1} parent=27 // pred_check_branch
          %7233 = sbr.rel (%p7231) target = $region56
        $region55: #{tpu_custom_call.1} parent=27 // pred_region
          %7235 = vsyncadd [#allocation11], 0
          %s7236 = smul.addr %s28, 2
          %s7237 = smul.addr %s7236, 8
          %s7238 = scalar_lea.hbm %s4, %s7237
          %s7240 = sshll.u32 [#allocation12], 4
          %s7241 = int_to_ptr.vmem [resolvable:$true] %s7240
          %s7242 = sshll.u32 %s7238, 4
          %s7243 = int_to_ptr.hbm [resolvable:$true] %s7242
          %7245 = dma.vmem_to_hbm [thread:$0]  %s7241, 256, %s7243, [#allocation11]
        $region56: #{tpu_custom_call.1} parent=27 // pred_fallthru
          _
        // Predicated region
        $region57: #{tpu_custom_call.1} parent=27 // pred_check
          %p7246 = pneg %p131
        $region58: #{tpu_custom_call.1} parent=27 // pred_check_branch
          %7248 = sbr.rel (%p7246) target = $region60
        $region59: #{tpu_custom_call.1} parent=27 // pred_region
          %7250 = dma.done [#allocation11], 256
        $region60: #{tpu_custom_call.1} parent=27 // pred_fallthru
          _
        // Predicated region
        $region61: #{tpu_custom_call.1} parent=27 // pred_check
          %p7251 = pneg %p157
        $region62: #{tpu_custom_call.1} parent=27 // pred_check_branch
          %7253 = sbr.rel (%p7251) target = $region64
        $region63: #{tpu_custom_call.1} parent=27 // pred_region
          %7255 = dma.done [#allocation11], 256
        $region64: #{tpu_custom_call.1} parent=27 // pred_fallthru
          _
      $region28: #{tpu_custom_call.1} parent=5 // pred_fallthru
        _
      %p7256 = scmp.le.s32.totalorder 2, %s19
      // Predicated region
      $region65: #{tpu_custom_call.1} parent=5 // pred_check
        %p7257 = pneg %p7256
      $region66: #{tpu_custom_call.1} parent=5 // pred_check_branch
        %7259 = sbr.rel (%p7257) target = $region68
      $region67: #{tpu_custom_call.1} parent=5 // pred_region
        %s7260 = ssub.s32 %s19, 2
        // Predicated region
        $region69: #{tpu_custom_call.1} parent=67 // pred_check
          %p7261 = pneg %p111
        $region70: #{tpu_custom_call.1} parent=67 // pred_check_branch
          %7263 = sbr.rel (%p7261) target = $region72
        $region71: #{tpu_custom_call.1} parent=67 // pred_region
          %s7264 = sand.u32 %s96, 1
          %s7265 = scalar_lea.sflag [#allocation6], %s7264
          %s7266 = sand.u32 %s96, 1
          %s7267 = smul.addr %s7266, 128
          %s7268 = scalar_lea.vmem [#allocation9], %s7267
          %7270 = dma.done %s7265, 2048
        $region72: #{tpu_custom_call.1} parent=67 // pred_fallthru
          _
      $region68: #{tpu_custom_call.1} parent=5 // pred_fallthru
        _
    $region6: #{tpu_custom_call.1} parent=1 // loop_footer
      %s23 = sadd.s32 1, %s19
    $region7: #{tpu_custom_call.1} parent=1 // loop_footer_branch
      %18 = sbr.rel target = $region3
    $region8: #{tpu_custom_call.1} parent=1 // loop_exit
      _
    %7271 = vsyncpa [#allocation5], 1
    %s7272 = scalar_lea.sflag [#allocation5], 1
    %7273 = vsyncpa %s7272, 1
    %7274 = vsyncpa [#allocation8], 1
    %7275 = vsyncpa [#allocation6], 1
    %s7276 = scalar_lea.sflag [#allocation6], 1
    %7277 = vsyncpa %s7276, 1
    %7278 = vsyncpa [#allocation11], 1

</llo_original>
